<compile_context>
chip_gen: v6e
topology: v6e:2x2x1
jax: 0.10.0
libtpu: 0.0.40
codegen_flags: <defaults>
</compile_context>

<pallas_src>
import jax
import jax.numpy as jnp
from jax.experimental import pallas as pl
from jax.experimental.pallas import tpu as pltpu


# ---------------------------------------------------------------------------
# Fused kernel: [per image] conv1+maxpool -> conv2  --stage-->  [per block] fc1 -> fc2
# ---------------------------------------------------------------------------
def _cnn_fused_kernel(p1_ref, w1_ref, b1_ref, w2_ref, b2_ref,
                      wf1_ref, bf1_ref, wf2_ref, bf2_ref, out_ref, h2_ref):
    # p1_ref : (Bt, 48, 4096) bf16  im2col images; rows=(c,kh,kw), lanes=(u,v,a,b,i,j)
    # w1_ref : (64, 48)       bf16  conv1 weight (cout, cin*kh*kw)
    # b1_ref : (64, 1)        f32
    # w2_ref : (4, 16, 64)    bf16  conv2 weight per tap (a*2+b, cout, cin)
    # b2_ref : (16, 1)        f32
    # wf1_ref: (16, 256, 256) bf16  fc1 weight, rows blocked by conv2 out-channel
    # bf1_ref: (1, 256)       f32
    # wf2_ref: (256, 128)     bf16  fc2 weight, N padded 101 -> 128
    # bf2_ref: (1, 128)       f32
    # out_ref: (1, Bt, 128)   f32
    # h2_ref : (16, Bt, 256)  bf16  VMEM scratch staging conv2 outputs
    Bt = p1_ref.shape[0]

    # Hoisted weight/bias reads, reused across the unrolled image loop.
    w1 = w1_ref[...]                                    # (64, 48)
    b1 = b1_ref[...]                                    # (64, 1)
    b2 = b2_ref[...]                                    # (16, 1)
    w2 = [w2_ref[ab] for ab in range(4)]                # 4 x (16, 64)

    # ------------------- per-image conv path -------------------
    for n in range(Bt):
        p1n = p1_ref[n]                                 # (48, 4096) bf16
        # conv1 fused with 2x2/stride-2 maxpool: take the max of the four
        # (u, v) pre-activation slabs first (bias is identical across the
        # pooling window and ReLU is monotone, so this equals pool(relu(conv))).
        pre = jnp.dot(w1, p1n[:, 0:1024], preferred_element_type=jnp.float32)
        for uv in range(1, 4):
            pre = jnp.maximum(
                pre,
                jnp.dot(w1, p1n[:, uv * 1024:(uv + 1) * 1024],
                        preferred_element_type=jnp.float32))
        pooled = jnp.maximum(pre + b1, 0.0).astype(jnp.bfloat16)   # (64,1024) lanes (a,b,i,j)

        # conv2 + relu: sum over the 4 kernel taps (a, b) -> (16, 256), lanes (i,j)
        acc2 = jnp.dot(w2[0], pooled[:, 0:256], preferred_element_type=jnp.float32)
        for ab in range(1, 4):
            acc2 = acc2 + jnp.dot(w2[ab], pooled[:, ab * 256:(ab + 1) * 256],
                                  preferred_element_type=jnp.float32)
        h2b = jnp.maximum(acc2 + b2, 0.0).astype(jnp.bfloat16)     # (16, 256)

        # Stage into the (16, Bt, 256) scratch: row n of each out-channel tile.
        h2_ref[:, n, :] = h2b

    # ------------------- batched fc path (M = Bt) -------------------
    # fc1 + relu: PyTorch NCHW flatten (k = co*256 + i*16 + j) is folded into
    # the (16, 256, 256) weight blocking -> 16 matmuls with LHS (Bt, 256).
    acc3 = jnp.dot(h2_ref[0], wf1_ref[0], preferred_element_type=jnp.float32)
    for co in range(1, 16):
        acc3 = acc3 + jnp.dot(h2_ref[co], wf1_ref[co],
                              preferred_element_type=jnp.float32)
    h3 = jnp.maximum(acc3 + bf1_ref[...], 0.0)                      # (Bt, 256)

    # Dropout(p=0.2): identity at inference (eval mode).
    # TODO(synk): training-mode stochastic dropout (pltpu.prng_*) not implemented.

    # fc2 + relu (output lanes padded 101 -> 128 for unmasked stores).
    acc4 = jnp.dot(h3.astype(jnp.bfloat16), wf2_ref[...],
                   preferred_element_type=jnp.float32)
    out_ref[0] = jnp.maximum(acc4 + bf2_ref[...], 0.0)


# ---------------------------------------------------------------------------
# Parameters (deterministic synthetic init, derived from PyTorch weight shapes)
# ---------------------------------------------------------------------------
def init_params(key):
    k = jax.random.split(key, 8)
    s = 0.05
    w1 = jax.random.normal(k[0], (64, 3, 4, 4), jnp.float32) * s    # conv1.weight
    b1 = jax.random.normal(k[1], (64,), jnp.float32) * s
    w2 = jax.random.normal(k[2], (16, 64, 2, 2), jnp.float32) * s   # conv2.weight
    b2 = jax.random.normal(k[3], (16,), jnp.float32) * s
    wf1 = jax.random.normal(k[4], (256, 4096), jnp.float32) * s     # fc1.weight
    bf1 = jax.random.normal(k[5], (256,), jnp.float32) * s
    wf2 = jax.random.normal(k[6], (101, 256), jnp.float32) * s      # fc2.weight
    bf2 = jax.random.normal(k[7], (101,), jnp.float32) * s

    # conv1: (cout, cin, kh, kw) -> (64, 48) with K ordered (cin, kh, kw)
    w1_t = w1.reshape(64, 48).astype(jnp.bfloat16)
    b1_t = b1.reshape(64, 1)
    # conv2: (cout, cin, a, b) -> (a*2+b, cout, cin) = (4, 16, 64)
    w2_t = w2.transpose(2, 3, 0, 1).reshape(4, 16, 64).astype(jnp.bfloat16)
    b2_t = b2.reshape(16, 1)
    # fc1: x @ W.T with NCHW flat index k = co*256 + (i*16 + j) -> (16, 256, 256)
    wf1_t = wf1.T.reshape(16, 256, 256).astype(jnp.bfloat16)
    bf1_t = bf1.reshape(1, 256)
    # fc2: x @ W.T, output padded 101 -> 128 lanes (zero weights/bias, ReLU-safe)
    wf2_t = jnp.zeros((256, 128), jnp.float32).at[:, :101].set(wf2.T)
    wf2_t = wf2_t.astype(jnp.bfloat16)
    bf2_t = jnp.zeros((1, 128), jnp.float32).at[0, :101].set(bf2)

    return {"w1": w1_t, "b1": b1_t, "w2": w2_t, "b2": b2_t,
            "wf1": wf1_t, "bf1": bf1_t, "wf2": wf2_t, "bf2": bf2_t}


# ---------------------------------------------------------------------------
# Forward pass
# ---------------------------------------------------------------------------
def cnn_forward(x, params, block_b=8):
    B, C, H, W = x.shape                          # NCHW, expects (B, 3, 256, 256)
    assert (C, H, W) == (3, 256, 256), (C, H, W)  # fc1 requires 4096 features

    Bt = min(block_b, B)                          # images per grid step
    G = pl.cdiv(B, Bt)
    B_pad = G * Bt

    xb = x.astype(jnp.bfloat16)
    if B_pad != B:
        xb = jnp.pad(xb, ((0, B_pad - B), (0, 0), (0, 0), (0, 0)))

    # Single im2col transpose (the only XLA glue op), done in bf16:
    #   height = 16*i + 8*a + 4*u + kh ; width = 16*j + 8*b + 4*v + kw
    # -> p1[b, (c,kh,kw), (u,v,a,b,i,j)]  of shape (B_pad, 48, 4096), bf16.
    # TODO(synk): if profiling shows this glue op dominates, move the patch
    # swizzle into a dedicated Pallas relayout kernel with lane-dense stores.
    p = xb.reshape(B_pad, 3, 16, 2, 2, 4, 16, 2, 2, 4)  # (B,c,i,a,u,kh,j,b,v,kw)
    p = p.transpose(0, 1, 5, 9, 4, 8, 3, 7, 2, 6)       # (B,c,kh,kw,u,v,a,b,i,j)
    p1 = p.reshape(B_pad, 48, 4096)

    # Advisory cost estimate for the XLA scheduler (launch/HBM-bound regime).
    flops = 2 * B_pad * (64 * 48 * 4096 + 4 * 16 * 64 * 256
                         + 4096 * 256 + 256 * 128)
    weight_bytes = (64 * 48 + 4 * 16 * 64 + 16 * 256 * 256 + 256 * 128) * 2 \
        + (64 + 16 + 256 + 128) * 4
    bytes_accessed = B_pad * 48 * 4096 * 2 + weight_bytes + B_pad * 128 * 4

    out = pl.pallas_call(
        _cnn_fused_kernel,
        out_shape=jax.ShapeDtypeStruct((G, Bt, 128), jnp.float32),
        grid=(G,),
        in_specs=[
            pl.BlockSpec((Bt, 48, 4096), lambda g: (g, 0, 0)),   # p1 (Bt images)
            pl.BlockSpec((64, 48), lambda g: (0, 0)),            # w1
            pl.BlockSpec((64, 1), lambda g: (0, 0)),             # b1
            pl.BlockSpec((4, 16, 64), lambda g: (0, 0, 0)),      # w2
            pl.BlockSpec((16, 1), lambda g: (0, 0)),             # b2
            pl.BlockSpec((16, 256, 256), lambda g: (0, 0, 0)),   # wf1
            pl.BlockSpec((1, 256), lambda g: (0, 0)),            # bf1
            pl.BlockSpec((256, 128), lambda g: (0, 0)),          # wf2 (padded)
            pl.BlockSpec((1, 128), lambda g: (0, 0)),            # bf2 (padded)
        ],
        out_specs=pl.BlockSpec((1, Bt, 128), lambda g: (g, 0, 0)),
        scratch_shapes=[pltpu.VMEM((16, Bt, 256), jnp.bfloat16)],
        compiler_params=pltpu.CompilerParams(
            dimension_semantics=("parallel",)),
        cost_estimate=pl.CostEstimate(
            flops=flops, transcendentals=0, bytes_accessed=bytes_accessed),
    )(p1, params["w1"], params["b1"], params["w2"], params["b2"],
      params["wf1"], params["bf1"], params["wf2"], params["bf2"])

    # Drop batch padding and the 27 zero padding columns -> (B, 101)
    return out.reshape(B_pad, 128)[:B, :101]


if __name__ == "__main__":
    key = jax.random.PRNGKey(0)
    k_param, k_x = jax.random.split(key)
    params = init_params(k_param)
    # fc1 expects 4096 = 16*16*16 features -> input spatial must be 256x256.
    x = jax.random.normal(k_x, (2, 3, 256, 256), jnp.float32)

    out = jax.jit(cnn_forward)(x, params)
    out = jax.block_until_ready(out)
    assert out.shape == (2, 101), out.shape
    assert bool(jnp.all(out >= 0.0))              # final ReLU
    assert bool(jnp.all(jnp.isfinite(out)))
    print("KERNEL_OK")
</pallas_src>

<mosaic_0001>
module attributes {stable_mosaic.version = 11 : i64} {
  func.func @_cnn_fused_kernel(%arg0: i32, %arg1: memref<2x48x4096xbf16, #tpu.memory_space<vmem>>, %arg2: memref<64x48xbf16, #tpu.memory_space<vmem>>, %arg3: memref<64x1xf32, #tpu.memory_space<vmem>>, %arg4: memref<4x16x64xbf16, #tpu.memory_space<vmem>>, %arg5: memref<16x1xf32, #tpu.memory_space<vmem>>, %arg6: memref<16x256x256xbf16, #tpu.memory_space<vmem>>, %arg7: memref<1x256xf32, #tpu.memory_space<vmem>>, %arg8: memref<256x128xbf16, #tpu.memory_space<vmem>>, %arg9: memref<1x128xf32, #tpu.memory_space<vmem>>, %arg10: memref<1x2x128xf32, #tpu.memory_space<vmem>>, %arg11: memref<16x2x256xbf16, #tpu.memory_space<vmem>>) attributes {dimension_semantics = [#tpu.dimension_semantics<parallel>], iteration_bounds = array<i64: 1>, scalar_prefetch = 0 : i64, scratch_operands = 1 : i64, tpu.core_type = #tpu.core_type<tc>, window_params = [{transform_indices = @transform_0, window_bounds = array<i64: 2, 48, 4096>}, {pipeline_mode = #tpu.pipeline_mode<synchronous>, transform_indices = @transform_1, window_bounds = array<i64: 64, 48>}, {pipeline_mode = #tpu.pipeline_mode<synchronous>, transform_indices = @transform_2, window_bounds = array<i64: 64, 1>}, {pipeline_mode = #tpu.pipeline_mode<synchronous>, transform_indices = @transform_3, window_bounds = array<i64: 4, 16, 64>}, {pipeline_mode = #tpu.pipeline_mode<synchronous>, transform_indices = @transform_4, window_bounds = array<i64: 16, 1>}, {pipeline_mode = #tpu.pipeline_mode<synchronous>, transform_indices = @transform_5, window_bounds = array<i64: 16, 256, 256>}, {pipeline_mode = #tpu.pipeline_mode<synchronous>, transform_indices = @transform_6, window_bounds = array<i64: 1, 256>}, {pipeline_mode = #tpu.pipeline_mode<synchronous>, transform_indices = @transform_7, window_bounds = array<i64: 256, 128>}, {pipeline_mode = #tpu.pipeline_mode<synchronous>, transform_indices = @transform_8, window_bounds = array<i64: 1, 128>}, {transform_indices = @transform_9, window_bounds = array<i64: 1, 2, 128>}]} {
    %c0 = arith.constant 0 : index
    %c0_0 = arith.constant 0 : index
    %0 = vector.load %arg2[%c0, %c0_0] : memref<64x48xbf16, #tpu.memory_space<vmem>>, vector<64x48xbf16>
    %c0_1 = arith.constant 0 : index
    %c0_2 = arith.constant 0 : index
    %1 = vector.load %arg3[%c0_1, %c0_2] : memref<64x1xf32, #tpu.memory_space<vmem>>, vector<64x1xf32>
    %c0_3 = arith.constant 0 : index
    %c0_4 = arith.constant 0 : index
    %2 = vector.load %arg5[%c0_3, %c0_4] : memref<16x1xf32, #tpu.memory_space<vmem>>, vector<16x1xf32>
    %c0_5 = arith.constant 0 : index
    %c0_6 = arith.constant 0 : index
    %c0_7 = arith.constant 0 : index
    %3 = vector.load %arg4[%c0_5, %c0_6, %c0_7] : memref<4x16x64xbf16, #tpu.memory_space<vmem>>, vector<1x16x64xbf16>
    %4 = vector.shape_cast %3 : vector<1x16x64xbf16> to vector<16x64xbf16>
    %c1 = arith.constant 1 : index
    %c0_8 = arith.constant 0 : index
    %c0_9 = arith.constant 0 : index
    %5 = vector.load %arg4[%c1, %c0_8, %c0_9] : memref<4x16x64xbf16, #tpu.memory_space<vmem>>, vector<1x16x64xbf16>
    %6 = vector.shape_cast %5 : vector<1x16x64xbf16> to vector<16x64xbf16>
    %c2 = arith.constant 2 : index
    %c0_10 = arith.constant 0 : index
    %c0_11 = arith.constant 0 : index
    %7 = vector.load %arg4[%c2, %c0_10, %c0_11] : memref<4x16x64xbf16, #tpu.memory_space<vmem>>, vector<1x16x64xbf16>
    %8 = vector.shape_cast %7 : vector<1x16x64xbf16> to vector<16x64xbf16>
    %c3 = arith.constant 3 : index
    %c0_12 = arith.constant 0 : index
    %c0_13 = arith.constant 0 : index
    %9 = vector.load %arg4[%c3, %c0_12, %c0_13] : memref<4x16x64xbf16, #tpu.memory_space<vmem>>, vector<1x16x64xbf16>
    %10 = vector.shape_cast %9 : vector<1x16x64xbf16> to vector<16x64xbf16>
    %c0_14 = arith.constant 0 : index
    %c0_15 = arith.constant 0 : index
    %c0_16 = arith.constant 0 : index
    %11 = vector.load %arg1[%c0_14, %c0_15, %c0_16] : memref<2x48x4096xbf16, #tpu.memory_space<vmem>>, vector<1x48x4096xbf16>
    %12 = vector.shape_cast %11 : vector<1x48x4096xbf16> to vector<48x4096xbf16>
    %13 = vector.extract_strided_slice %12 {offsets = [0, 0], sizes = [48, 1024], strides = [1, 1]} : vector<48x4096xbf16> to vector<48x1024xbf16>
    %cst = arith.constant dense<0.000000e+00> : vector<64x1024xf32>
    %14 = tpu.matmul %0, %13, %cst {dimension_numbers = #tpu.dot_dimension_numbers<[1], [0], [0], [1], [0, 0, 1, 1], [], []>} : vector<64x48xbf16>, vector<48x1024xbf16>, vector<64x1024xf32> -> vector<64x1024xf32>
    %15 = vector.extract_strided_slice %12 {offsets = [0, 1024], sizes = [48, 1024], strides = [1, 1]} : vector<48x4096xbf16> to vector<48x1024xbf16>
    %cst_17 = arith.constant dense<0.000000e+00> : vector<64x1024xf32>
    %16 = tpu.matmul %0, %15, %cst_17 {dimension_numbers = #tpu.dot_dimension_numbers<[1], [0], [0], [1], [0, 0, 1, 1], [], []>} : vector<64x48xbf16>, vector<48x1024xbf16>, vector<64x1024xf32> -> vector<64x1024xf32>
    %17 = arith.maximumf %14, %16 : vector<64x1024xf32>
    %18 = vector.extract_strided_slice %12 {offsets = [0, 2048], sizes = [48, 1024], strides = [1, 1]} : vector<48x4096xbf16> to vector<48x1024xbf16>
    %cst_18 = arith.constant dense<0.000000e+00> : vector<64x1024xf32>
    %19 = tpu.matmul %0, %18, %cst_18 {dimension_numbers = #tpu.dot_dimension_numbers<[1], [0], [0], [1], [0, 0, 1, 1], [], []>} : vector<64x48xbf16>, vector<48x1024xbf16>, vector<64x1024xf32> -> vector<64x1024xf32>
    %20 = arith.maximumf %17, %19 : vector<64x1024xf32>
    %21 = vector.extract_strided_slice %12 {offsets = [0, 3072], sizes = [48, 1024], strides = [1, 1]} : vector<48x4096xbf16> to vector<48x1024xbf16>
    %cst_19 = arith.constant dense<0.000000e+00> : vector<64x1024xf32>
    %22 = tpu.matmul %0, %21, %cst_19 {dimension_numbers = #tpu.dot_dimension_numbers<[1], [0], [0], [1], [0, 0, 1, 1], [], []>} : vector<64x48xbf16>, vector<48x1024xbf16>, vector<64x1024xf32> -> vector<64x1024xf32>
    %23 = arith.maximumf %20, %22 : vector<64x1024xf32>
    %24 = vector.broadcast %1 : vector<64x1xf32> to vector<64x1024xf32>
    %25 = arith.addf %23, %24 : vector<64x1024xf32>
    %cst_20 = arith.constant 0.000000e+00 : f32
    %26 = vector.broadcast %cst_20 : f32 to vector<64x1024xf32>
    %27 = arith.maximumf %25, %26 : vector<64x1024xf32>
    %28 = arith.truncf %27 : vector<64x1024xf32> to vector<64x1024xbf16>
    %29 = vector.extract_strided_slice %28 {offsets = [0, 0], sizes = [64, 256], strides = [1, 1]} : vector<64x1024xbf16> to vector<64x256xbf16>
    %cst_21 = arith.constant dense<0.000000e+00> : vector<16x256xf32>
    %30 = tpu.matmul %4, %29, %cst_21 {dimension_numbers = #tpu.dot_dimension_numbers<[1], [0], [0], [1], [0, 0, 1, 1], [], []>} : vector<16x64xbf16>, vector<64x256xbf16>, vector<16x256xf32> -> vector<16x256xf32>
    %31 = vector.extract_strided_slice %28 {offsets = [0, 256], sizes = [64, 256], strides = [1, 1]} : vector<64x1024xbf16> to vector<64x256xbf16>
    %cst_22 = arith.constant dense<0.000000e+00> : vector<16x256xf32>
    %32 = tpu.matmul %6, %31, %cst_22 {dimension_numbers = #tpu.dot_dimension_numbers<[1], [0], [0], [1], [0, 0, 1, 1], [], []>} : vector<16x64xbf16>, vector<64x256xbf16>, vector<16x256xf32> -> vector<16x256xf32>
    %33 = arith.addf %30, %32 : vector<16x256xf32>
    %34 = vector.extract_strided_slice %28 {offsets = [0, 512], sizes = [64, 256], strides = [1, 1]} : vector<64x1024xbf16> to vector<64x256xbf16>
    %cst_23 = arith.constant dense<0.000000e+00> : vector<16x256xf32>
    %35 = tpu.matmul %8, %34, %cst_23 {dimension_numbers = #tpu.dot_dimension_numbers<[1], [0], [0], [1], [0, 0, 1, 1], [], []>} : vector<16x64xbf16>, vector<64x256xbf16>, vector<16x256xf32> -> vector<16x256xf32>
    %36 = arith.addf %33, %35 : vector<16x256xf32>
    %37 = vector.extract_strided_slice %28 {offsets = [0, 768], sizes = [64, 256], strides = [1, 1]} : vector<64x1024xbf16> to vector<64x256xbf16>
    %cst_24 = arith.constant dense<0.000000e+00> : vector<16x256xf32>
    %38 = tpu.matmul %10, %37, %cst_24 {dimension_numbers = #tpu.dot_dimension_numbers<[1], [0], [0], [1], [0, 0, 1, 1], [], []>} : vector<16x64xbf16>, vector<64x256xbf16>, vector<16x256xf32> -> vector<16x256xf32>
    %39 = arith.addf %36, %38 : vector<16x256xf32>
    %40 = vector.broadcast %2 : vector<16x1xf32> to vector<16x256xf32>
    %41 = arith.addf %39, %40 : vector<16x256xf32>
    %cst_25 = arith.constant 0.000000e+00 : f32
    %42 = vector.broadcast %cst_25 : f32 to vector<16x256xf32>
    %43 = arith.maximumf %41, %42 : vector<16x256xf32>
    %44 = arith.truncf %43 : vector<16x256xf32> to vector<16x256xbf16>
    %c0_26 = arith.constant 0 : index
    %c0_27 = arith.constant 0 : index
    %c0_28 = arith.constant 0 : index
    %45 = vector.load %arg11[%c0_26, %c0_27, %c0_28] : memref<16x2x256xbf16, #tpu.memory_space<vmem>>, vector<16x1x256xbf16>
    %46 = vector.shape_cast %45 : vector<16x1x256xbf16> to vector<16x256xbf16>
    %47 = vector.shape_cast %44 : vector<16x256xbf16> to vector<16x1x256xbf16>
    tpu.vector_store %arg11[%c0_26, %c0_27, %c0_28], %47 {strides = array<i32>} : memref<16x2x256xbf16, #tpu.memory_space<vmem>>, vector<16x1x256xbf16>,
    %c1_29 = arith.constant 1 : index
    %c0_30 = arith.constant 0 : index
    %c0_31 = arith.constant 0 : index
    %48 = vector.load %arg1[%c1_29, %c0_30, %c0_31] : memref<2x48x4096xbf16, #tpu.memory_space<vmem>>, vector<1x48x4096xbf16>
    %49 = vector.shape_cast %48 : vector<1x48x4096xbf16> to vector<48x4096xbf16>
    %50 = vector.extract_strided_slice %49 {offsets = [0, 0], sizes = [48, 1024], strides = [1, 1]} : vector<48x4096xbf16> to vector<48x1024xbf16>
    %cst_32 = arith.constant dense<0.000000e+00> : vector<64x1024xf32>
    %51 = tpu.matmul %0, %50, %cst_32 {dimension_numbers = #tpu.dot_dimension_numbers<[1], [0], [0], [1], [0, 0, 1, 1], [], []>} : vector<64x48xbf16>, vector<48x1024xbf16>, vector<64x1024xf32> -> vector<64x1024xf32>
    %52 = vector.extract_strided_slice %49 {offsets = [0, 1024], sizes = [48, 1024], strides = [1, 1]} : vector<48x4096xbf16> to vector<48x1024xbf16>
    %cst_33 = arith.constant dense<0.000000e+00> : vector<64x1024xf32>
    %53 = tpu.matmul %0, %52, %cst_33 {dimension_numbers = #tpu.dot_dimension_numbers<[1], [0], [0], [1], [0, 0, 1, 1], [], []>} : vector<64x48xbf16>, vector<48x1024xbf16>, vector<64x1024xf32> -> vector<64x1024xf32>
    %54 = arith.maximumf %51, %53 : vector<64x1024xf32>
    %55 = vector.extract_strided_slice %49 {offsets = [0, 2048], sizes = [48, 1024], strides = [1, 1]} : vector<48x4096xbf16> to vector<48x1024xbf16>
    %cst_34 = arith.constant dense<0.000000e+00> : vector<64x1024xf32>
    %56 = tpu.matmul %0, %55, %cst_34 {dimension_numbers = #tpu.dot_dimension_numbers<[1], [0], [0], [1], [0, 0, 1, 1], [], []>} : vector<64x48xbf16>, vector<48x1024xbf16>, vector<64x1024xf32> -> vector<64x1024xf32>
    %57 = arith.maximumf %54, %56 : vector<64x1024xf32>
    %58 = vector.extract_strided_slice %49 {offsets = [0, 3072], sizes = [48, 1024], strides = [1, 1]} : vector<48x4096xbf16> to vector<48x1024xbf16>
    %cst_35 = arith.constant dense<0.000000e+00> : vector<64x1024xf32>
    %59 = tpu.matmul %0, %58, %cst_35 {dimension_numbers = #tpu.dot_dimension_numbers<[1], [0], [0], [1], [0, 0, 1, 1], [], []>} : vector<64x48xbf16>, vector<48x1024xbf16>, vector<64x1024xf32> -> vector<64x1024xf32>
    %60 = arith.maximumf %57, %59 : vector<64x1024xf32>
    %61 = vector.broadcast %1 : vector<64x1xf32> to vector<64x1024xf32>
    %62 = arith.addf %60, %61 : vector<64x1024xf32>
    %cst_36 = arith.constant 0.000000e+00 : f32
    %63 = vector.broadcast %cst_36 : f32 to vector<64x1024xf32>
    %64 = arith.maximumf %62, %63 : vector<64x1024xf32>
    %65 = arith.truncf %64 : vector<64x1024xf32> to vector<64x1024xbf16>
    %66 = vector.extract_strided_slice %65 {offsets = [0, 0], sizes = [64, 256], strides = [1, 1]} : vector<64x1024xbf16> to vector<64x256xbf16>
    %cst_37 = arith.constant dense<0.000000e+00> : vector<16x256xf32>
    %67 = tpu.matmul %4, %66, %cst_37 {dimension_numbers = #tpu.dot_dimension_numbers<[1], [0], [0], [1], [0, 0, 1, 1], [], []>} : vector<16x64xbf16>, vector<64x256xbf16>, vector<16x256xf32> -> vector<16x256xf32>
    %68 = vector.extract_strided_slice %65 {offsets = [0, 256], sizes = [64, 256], strides = [1, 1]} : vector<64x1024xbf16> to vector<64x256xbf16>
    %cst_38 = arith.constant dense<0.000000e+00> : vector<16x256xf32>
    %69 = tpu.matmul %6, %68, %cst_38 {dimension_numbers = #tpu.dot_dimension_numbers<[1], [0], [0], [1], [0, 0, 1, 1], [], []>} : vector<16x64xbf16>, vector<64x256xbf16>, vector<16x256xf32> -> vector<16x256xf32>
    %70 = arith.addf %67, %69 : vector<16x256xf32>
    %71 = vector.extract_strided_slice %65 {offsets = [0, 512], sizes = [64, 256], strides = [1, 1]} : vector<64x1024xbf16> to vector<64x256xbf16>
    %cst_39 = arith.constant dense<0.000000e+00> : vector<16x256xf32>
    %72 = tpu.matmul %8, %71, %cst_39 {dimension_numbers = #tpu.dot_dimension_numbers<[1], [0], [0], [1], [0, 0, 1, 1], [], []>} : vector<16x64xbf16>, vector<64x256xbf16>, vector<16x256xf32> -> vector<16x256xf32>
    %73 = arith.addf %70, %72 : vector<16x256xf32>
    %74 = vector.extract_strided_slice %65 {offsets = [0, 768], sizes = [64, 256], strides = [1, 1]} : vector<64x1024xbf16> to vector<64x256xbf16>
    %cst_40 = arith.constant dense<0.000000e+00> : vector<16x256xf32>
    %75 = tpu.matmul %10, %74, %cst_40 {dimension_numbers = #tpu.dot_dimension_numbers<[1], [0], [0], [1], [0, 0, 1, 1], [], []>} : vector<16x64xbf16>, vector<64x256xbf16>, vector<16x256xf32> -> vector<16x256xf32>
    %76 = arith.addf %73, %75 : vector<16x256xf32>
    %77 = vector.broadcast %2 : vector<16x1xf32> to vector<16x256xf32>
    %78 = arith.addf %76, %77 : vector<16x256xf32>
    %cst_41 = arith.constant 0.000000e+00 : f32
    %79 = vector.broadcast %cst_41 : f32 to vector<16x256xf32>
    %80 = arith.maximumf %78, %79 : vector<16x256xf32>
    %81 = arith.truncf %80 : vector<16x256xf32> to vector<16x256xbf16>
    %c0_42 = arith.constant 0 : index
    %c1_43 = arith.constant 1 : index
    %c0_44 = arith.constant 0 : index
    %82 = vector.load %arg11[%c0_42, %c1_43, %c0_44] : memref<16x2x256xbf16, #tpu.memory_space<vmem>>, vector<16x1x256xbf16>
    %83 = vector.shape_cast %82 : vector<16x1x256xbf16> to vector<16x256xbf16>
    %84 = vector.shape_cast %81 : vector<16x256xbf16> to vector<16x1x256xbf16>
    tpu.vector_store %arg11[%c0_42, %c1_43, %c0_44], %84 {strides = array<i32>} : memref<16x2x256xbf16, #tpu.memory_space<vmem>>, vector<16x1x256xbf16>,
    %c0_45 = arith.constant 0 : index
    %c0_46 = arith.constant 0 : index
    %c0_47 = arith.constant 0 : index
    %85 = vector.load %arg11[%c0_45, %c0_46, %c0_47] : memref<16x2x256xbf16, #tpu.memory_space<vmem>>, vector<1x2x256xbf16>
    %86 = vector.shape_cast %85 : vector<1x2x256xbf16> to vector<2x256xbf16>
    %c0_48 = arith.constant 0 : index
    %c0_49 = arith.constant 0 : index
    %c0_50 = arith.constant 0 : index
    %87 = vector.load %arg6[%c0_48, %c0_49, %c0_50] : memref<16x256x256xbf16, #tpu.memory_space<vmem>>, vector<1x256x256xbf16>
    %88 = vector.shape_cast %87 : vector<1x256x256xbf16> to vector<256x256xbf16>
    %cst_51 = arith.constant dense<0.000000e+00> : vector<2x256xf32>
    %89 = tpu.matmul %86, %88, %cst_51 {dimension_numbers = #tpu.dot_dimension_numbers<[1], [0], [0], [1], [0, 0, 1, 1], [], []>} : vector<2x256xbf16>, vector<256x256xbf16>, vector<2x256xf32> -> vector<2x256xf32>
    %c1_52 = arith.constant 1 : index
    %c0_53 = arith.constant 0 : index
    %c0_54 = arith.constant 0 : index
    %90 = vector.load %arg11[%c1_52, %c0_53, %c0_54] : memref<16x2x256xbf16, #tpu.memory_space<vmem>>, vector<1x2x256xbf16>
    %91 = vector.shape_cast %90 : vector<1x2x256xbf16> to vector<2x256xbf16>
    %c1_55 = arith.constant 1 : index
    %c0_56 = arith.constant 0 : index
    %c0_57 = arith.constant 0 : index
    %92 = vector.load %arg6[%c1_55, %c0_56, %c0_57] : memref<16x256x256xbf16, #tpu.memory_space<vmem>>, vector<1x256x256xbf16>
    %93 = vector.shape_cast %92 : vector<1x256x256xbf16> to vector<256x256xbf16>
    %cst_58 = arith.constant dense<0.000000e+00> : vector<2x256xf32>
    %94 = tpu.matmul %91, %93, %cst_58 {dimension_numbers = #tpu.dot_dimension_numbers<[1], [0], [0], [1], [0, 0, 1, 1], [], []>} : vector<2x256xbf16>, vector<256x256xbf16>, vector<2x256xf32> -> vector<2x256xf32>
    %95 = arith.addf %89, %94 : vector<2x256xf32>
    %c2_59 = arith.constant 2 : index
    %c0_60 = arith.constant 0 : index
    %c0_61 = arith.constant 0 : index
    %96 = vector.load %arg11[%c2_59, %c0_60, %c0_61] : memref<16x2x256xbf16, #tpu.memory_space<vmem>>, vector<1x2x256xbf16>
    %97 = vector.shape_cast %96 : vector<1x2x256xbf16> to vector<2x256xbf16>
    %c2_62 = arith.constant 2 : index
    %c0_63 = arith.constant 0 : index
    %c0_64 = arith.constant 0 : index
    %98 = vector.load %arg6[%c2_62, %c0_63, %c0_64] : memref<16x256x256xbf16, #tpu.memory_space<vmem>>, vector<1x256x256xbf16>
    %99 = vector.shape_cast %98 : vector<1x256x256xbf16> to vector<256x256xbf16>
    %cst_65 = arith.constant dense<0.000000e+00> : vector<2x256xf32>
    %100 = tpu.matmul %97, %99, %cst_65 {dimension_numbers = #tpu.dot_dimension_numbers<[1], [0], [0], [1], [0, 0, 1, 1], [], []>} : vector<2x256xbf16>, vector<256x256xbf16>, vector<2x256xf32> -> vector<2x256xf32>
    %101 = arith.addf %95, %100 : vector<2x256xf32>
    %c3_66 = arith.constant 3 : index
    %c0_67 = arith.constant 0 : index
    %c0_68 = arith.constant 0 : index
    %102 = vector.load %arg11[%c3_66, %c0_67, %c0_68] : memref<16x2x256xbf16, #tpu.memory_space<vmem>>, vector<1x2x256xbf16>
    %103 = vector.shape_cast %102 : vector<1x2x256xbf16> to vector<2x256xbf16>
    %c3_69 = arith.constant 3 : index
    %c0_70 = arith.constant 0 : index
    %c0_71 = arith.constant 0 : index
    %104 = vector.load %arg6[%c3_69, %c0_70, %c0_71] : memref<16x256x256xbf16, #tpu.memory_space<vmem>>, vector<1x256x256xbf16>
    %105 = vector.shape_cast %104 : vector<1x256x256xbf16> to vector<256x256xbf16>
    %cst_72 = arith.constant dense<0.000000e+00> : vector<2x256xf32>
    %106 = tpu.matmul %103, %105, %cst_72 {dimension_numbers = #tpu.dot_dimension_numbers<[1], [0], [0], [1], [0, 0, 1, 1], [], []>} : vector<2x256xbf16>, vector<256x256xbf16>, vector<2x256xf32> -> vector<2x256xf32>
    %107 = arith.addf %101, %106 : vector<2x256xf32>
    %c4 = arith.constant 4 : index
    %c0_73 = arith.constant 0 : index
    %c0_74 = arith.constant 0 : index
    %108 = vector.load %arg11[%c4, %c0_73, %c0_74] : memref<16x2x256xbf16, #tpu.memory_space<vmem>>, vector<1x2x256xbf16>
    %109 = vector.shape_cast %108 : vector<1x2x256xbf16> to vector<2x256xbf16>
    %c4_75 = arith.constant 4 : index
    %c0_76 = arith.constant 0 : index
    %c0_77 = arith.constant 0 : index
    %110 = vector.load %arg6[%c4_75, %c0_76, %c0_77] : memref<16x256x256xbf16, #tpu.memory_space<vmem>>, vector<1x256x256xbf16>
    %111 = vector.shape_cast %110 : vector<1x256x256xbf16> to vector<256x256xbf16>
    %cst_78 = arith.constant dense<0.000000e+00> : vector<2x256xf32>
    %112 = tpu.matmul %109, %111, %cst_78 {dimension_numbers = #tpu.dot_dimension_numbers<[1], [0], [0], [1], [0, 0, 1, 1], [], []>} : vector<2x256xbf16>, vector<256x256xbf16>, vector<2x256xf32> -> vector<2x256xf32>
    %113 = arith.addf %107, %112 : vector<2x256xf32>
    %c5 = arith.constant 5 : index
    %c0_79 = arith.constant 0 : index
    %c0_80 = arith.constant 0 : index
    %114 = vector.load %arg11[%c5, %c0_79, %c0_80] : memref<16x2x256xbf16, #tpu.memory_space<vmem>>, vector<1x2x256xbf16>
    %115 = vector.shape_cast %114 : vector<1x2x256xbf16> to vector<2x256xbf16>
    %c5_81 = arith.constant 5 : index
    %c0_82 = arith.constant 0 : index
    %c0_83 = arith.constant 0 : index
    %116 = vector.load %arg6[%c5_81, %c0_82, %c0_83] : memref<16x256x256xbf16, #tpu.memory_space<vmem>>, vector<1x256x256xbf16>
    %117 = vector.shape_cast %116 : vector<1x256x256xbf16> to vector<256x256xbf16>
    %cst_84 = arith.constant dense<0.000000e+00> : vector<2x256xf32>
    %118 = tpu.matmul %115, %117, %cst_84 {dimension_numbers = #tpu.dot_dimension_numbers<[1], [0], [0], [1], [0, 0, 1, 1], [], []>} : vector<2x256xbf16>, vector<256x256xbf16>, vector<2x256xf32> -> vector<2x256xf32>
    %119 = arith.addf %113, %118 : vector<2x256xf32>
    %c6 = arith.constant 6 : index
    %c0_85 = arith.constant 0 : index
    %c0_86 = arith.constant 0 : index
    %120 = vector.load %arg11[%c6, %c0_85, %c0_86] : memref<16x2x256xbf16, #tpu.memory_space<vmem>>, vector<1x2x256xbf16>
    %121 = vector.shape_cast %120 : vector<1x2x256xbf16> to vector<2x256xbf16>
    %c6_87 = arith.constant 6 : index
    %c0_88 = arith.constant 0 : index
    %c0_89 = arith.constant 0 : index
    %122 = vector.load %arg6[%c6_87, %c0_88, %c0_89] : memref<16x256x256xbf16, #tpu.memory_space<vmem>>, vector<1x256x256xbf16>
    %123 = vector.shape_cast %122 : vector<1x256x256xbf16> to vector<256x256xbf16>
    %cst_90 = arith.constant dense<0.000000e+00> : vector<2x256xf32>
    %124 = tpu.matmul %121, %123, %cst_90 {dimension_numbers = #tpu.dot_dimension_numbers<[1], [0], [0], [1], [0, 0, 1, 1], [], []>} : vector<2x256xbf16>, vector<256x256xbf16>, vector<2x256xf32> -> vector<2x256xf32>
    %125 = arith.addf %119, %124 : vector<2x256xf32>
    %c7 = arith.constant 7 : index
    %c0_91 = arith.constant 0 : index
    %c0_92 = arith.constant 0 : index
    %126 = vector.load %arg11[%c7, %c0_91, %c0_92] : memref<16x2x256xbf16, #tpu.memory_space<vmem>>, vector<1x2x256xbf16>
    %127 = vector.shape_cast %126 : vector<1x2x256xbf16> to vector<2x256xbf16>
    %c7_93 = arith.constant 7 : index
    %c0_94 = arith.constant 0 : index
    %c0_95 = arith.constant 0 : index
    %128 = vector.load %arg6[%c7_93, %c0_94, %c0_95] : memref<16x256x256xbf16, #tpu.memory_space<vmem>>, vector<1x256x256xbf16>
    %129 = vector.shape_cast %128 : vector<1x256x256xbf16> to vector<256x256xbf16>
    %cst_96 = arith.constant dense<0.000000e+00> : vector<2x256xf32>
    %130 = tpu.matmul %127, %129, %cst_96 {dimension_numbers = #tpu.dot_dimension_numbers<[1], [0], [0], [1], [0, 0, 1, 1], [], []>} : vector<2x256xbf16>, vector<256x256xbf16>, vector<2x256xf32> -> vector<2x256xf32>
    %131 = arith.addf %125, %130 : vector<2x256xf32>
    %c8 = arith.constant 8 : index
    %c0_97 = arith.constant 0 : index
    %c0_98 = arith.constant 0 : index
    %132 = vector.load %arg11[%c8, %c0_97, %c0_98] : memref<16x2x256xbf16, #tpu.memory_space<vmem>>, vector<1x2x256xbf16>
    %133 = vector.shape_cast %132 : vector<1x2x256xbf16> to vector<2x256xbf16>
    %c8_99 = arith.constant 8 : index
    %c0_100 = arith.constant 0 : index
    %c0_101 = arith.constant 0 : index
    %134 = vector.load %arg6[%c8_99, %c0_100, %c0_101] : memref<16x256x256xbf16, #tpu.memory_space<vmem>>, vector<1x256x256xbf16>
    %135 = vector.shape_cast %134 : vector<1x256x256xbf16> to vector<256x256xbf16>
    %cst_102 = arith.constant dense<0.000000e+00> : vector<2x256xf32>
    %136 = tpu.matmul %133, %135, %cst_102 {dimension_numbers = #tpu.dot_dimension_numbers<[1], [0], [0], [1], [0, 0, 1, 1], [], []>} : vector<2x256xbf16>, vector<256x256xbf16>, vector<2x256xf32> -> vector<2x256xf32>
    %137 = arith.addf %131, %136 : vector<2x256xf32>
    %c9 = arith.constant 9 : index
    %c0_103 = arith.constant 0 : index
    %c0_104 = arith.constant 0 : index
    %138 = vector.load %arg11[%c9, %c0_103, %c0_104] : memref<16x2x256xbf16, #tpu.memory_space<vmem>>, vector<1x2x256xbf16>
    %139 = vector.shape_cast %138 : vector<1x2x256xbf16> to vector<2x256xbf16>
    %c9_105 = arith.constant 9 : index
    %c0_106 = arith.constant 0 : index
    %c0_107 = arith.constant 0 : index
    %140 = vector.load %arg6[%c9_105, %c0_106, %c0_107] : memref<16x256x256xbf16, #tpu.memory_space<vmem>>, vector<1x256x256xbf16>
    %141 = vector.shape_cast %140 : vector<1x256x256xbf16> to vector<256x256xbf16>
    %cst_108 = arith.constant dense<0.000000e+00> : vector<2x256xf32>
    %142 = tpu.matmul %139, %141, %cst_108 {dimension_numbers = #tpu.dot_dimension_numbers<[1], [0], [0], [1], [0, 0, 1, 1], [], []>} : vector<2x256xbf16>, vector<256x256xbf16>, vector<2x256xf32> -> vector<2x256xf32>
    %143 = arith.addf %137, %142 : vector<2x256xf32>
    %c10 = arith.constant 10 : index
    %c0_109 = arith.constant 0 : index
    %c0_110 = arith.constant 0 : index
    %144 = vector.load %arg11[%c10, %c0_109, %c0_110] : memref<16x2x256xbf16, #tpu.memory_space<vmem>>, vector<1x2x256xbf16>
    %145 = vector.shape_cast %144 : vector<1x2x256xbf16> to vector<2x256xbf16>
    %c10_111 = arith.constant 10 : index
    %c0_112 = arith.constant 0 : index
    %c0_113 = arith.constant 0 : index
    %146 = vector.load %arg6[%c10_111, %c0_112, %c0_113] : memref<16x256x256xbf16, #tpu.memory_space<vmem>>, vector<1x256x256xbf16>
    %147 = vector.shape_cast %146 : vector<1x256x256xbf16> to vector<256x256xbf16>
    %cst_114 = arith.constant dense<0.000000e+00> : vector<2x256xf32>
    %148 = tpu.matmul %145, %147, %cst_114 {dimension_numbers = #tpu.dot_dimension_numbers<[1], [0], [0], [1], [0, 0, 1, 1], [], []>} : vector<2x256xbf16>, vector<256x256xbf16>, vector<2x256xf32> -> vector<2x256xf32>
    %149 = arith.addf %143, %148 : vector<2x256xf32>
    %c11 = arith.constant 11 : index
    %c0_115 = arith.constant 0 : index
    %c0_116 = arith.constant 0 : index
    %150 = vector.load %arg11[%c11, %c0_115, %c0_116] : memref<16x2x256xbf16, #tpu.memory_space<vmem>>, vector<1x2x256xbf16>
    %151 = vector.shape_cast %150 : vector<1x2x256xbf16> to vector<2x256xbf16>
    %c11_117 = arith.constant 11 : index
    %c0_118 = arith.constant 0 : index
    %c0_119 = arith.constant 0 : index
    %152 = vector.load %arg6[%c11_117, %c0_118, %c0_119] : memref<16x256x256xbf16, #tpu.memory_space<vmem>>, vector<1x256x256xbf16>
    %153 = vector.shape_cast %152 : vector<1x256x256xbf16> to vector<256x256xbf16>
    %cst_120 = arith.constant dense<0.000000e+00> : vector<2x256xf32>
    %154 = tpu.matmul %151, %153, %cst_120 {dimension_numbers = #tpu.dot_dimension_numbers<[1], [0], [0], [1], [0, 0, 1, 1], [], []>} : vector<2x256xbf16>, vector<256x256xbf16>, vector<2x256xf32> -> vector<2x256xf32>
    %155 = arith.addf %149, %154 : vector<2x256xf32>
    %c12 = arith.constant 12 : index
    %c0_121 = arith.constant 0 : index
    %c0_122 = arith.constant 0 : index
    %156 = vector.load %arg11[%c12, %c0_121, %c0_122] : memref<16x2x256xbf16, #tpu.memory_space<vmem>>, vector<1x2x256xbf16>
    %157 = vector.shape_cast %156 : vector<1x2x256xbf16> to vector<2x256xbf16>
    %c12_123 = arith.constant 12 : index
    %c0_124 = arith.constant 0 : index
    %c0_125 = arith.constant 0 : index
    %158 = vector.load %arg6[%c12_123, %c0_124, %c0_125] : memref<16x256x256xbf16, #tpu.memory_space<vmem>>, vector<1x256x256xbf16>
    %159 = vector.shape_cast %158 : vector<1x256x256xbf16> to vector<256x256xbf16>
    %cst_126 = arith.constant dense<0.000000e+00> : vector<2x256xf32>
    %160 = tpu.matmul %157, %159, %cst_126 {dimension_numbers = #tpu.dot_dimension_numbers<[1], [0], [0], [1], [0, 0, 1, 1], [], []>} : vector<2x256xbf16>, vector<256x256xbf16>, vector<2x256xf32> -> vector<2x256xf32>
    %161 = arith.addf %155, %160 : vector<2x256xf32>
    %c13 = arith.constant 13 : index
    %c0_127 = arith.constant 0 : index
    %c0_128 = arith.constant 0 : index
    %162 = vector.load %arg11[%c13, %c0_127, %c0_128] : memref<16x2x256xbf16, #tpu.memory_space<vmem>>, vector<1x2x256xbf16>
    %163 = vector.shape_cast %162 : vector<1x2x256xbf16> to vector<2x256xbf16>
    %c13_129 = arith.constant 13 : index
    %c0_130 = arith.constant 0 : index
    %c0_131 = arith.constant 0 : index
    %164 = vector.load %arg6[%c13_129, %c0_130, %c0_131] : memref<16x256x256xbf16, #tpu.memory_space<vmem>>, vector<1x256x256xbf16>
    %165 = vector.shape_cast %164 : vector<1x256x256xbf16> to vector<256x256xbf16>
    %cst_132 = arith.constant dense<0.000000e+00> : vector<2x256xf32>
    %166 = tpu.matmul %163, %165, %cst_132 {dimension_numbers = #tpu.dot_dimension_numbers<[1], [0], [0], [1], [0, 0, 1, 1], [], []>} : vector<2x256xbf16>, vector<256x256xbf16>, vector<2x256xf32> -> vector<2x256xf32>
    %167 = arith.addf %161, %166 : vector<2x256xf32>
    %c14 = arith.constant 14 : index
    %c0_133 = arith.constant 0 : index
    %c0_134 = arith.constant 0 : index
    %168 = vector.load %arg11[%c14, %c0_133, %c0_134] : memref<16x2x256xbf16, #tpu.memory_space<vmem>>, vector<1x2x256xbf16>
    %169 = vector.shape_cast %168 : vector<1x2x256xbf16> to vector<2x256xbf16>
    %c14_135 = arith.constant 14 : index
    %c0_136 = arith.constant 0 : index
    %c0_137 = arith.constant 0 : index
    %170 = vector.load %arg6[%c14_135, %c0_136, %c0_137] : memref<16x256x256xbf16, #tpu.memory_space<vmem>>, vector<1x256x256xbf16>
    %171 = vector.shape_cast %170 : vector<1x256x256xbf16> to vector<256x256xbf16>
    %cst_138 = arith.constant dense<0.000000e+00> : vector<2x256xf32>
    %172 = tpu.matmul %169, %171, %cst_138 {dimension_numbers = #tpu.dot_dimension_numbers<[1], [0], [0], [1], [0, 0, 1, 1], [], []>} : vector<2x256xbf16>, vector<256x256xbf16>, vector<2x256xf32> -> vector<2x256xf32>
    %173 = arith.addf %167, %172 : vector<2x256xf32>
    %c15 = arith.constant 15 : index
    %c0_139 = arith.constant 0 : index
    %c0_140 = arith.constant 0 : index
    %174 = vector.load %arg11[%c15, %c0_139, %c0_140] : memref<16x2x256xbf16, #tpu.memory_space<vmem>>, vector<1x2x256xbf16>
    %175 = vector.shape_cast %174 : vector<1x2x256xbf16> to vector<2x256xbf16>
    %c15_141 = arith.constant 15 : index
    %c0_142 = arith.constant 0 : index
    %c0_143 = arith.constant 0 : index
    %176 = vector.load %arg6[%c15_141, %c0_142, %c0_143] : memref<16x256x256xbf16, #tpu.memory_space<vmem>>, vector<1x256x256xbf16>
    %177 = vector.shape_cast %176 : vector<1x256x256xbf16> to vector<256x256xbf16>
    %cst_144 = arith.constant dense<0.000000e+00> : vector<2x256xf32>
    %178 = tpu.matmul %175, %177, %cst_144 {dimension_numbers = #tpu.dot_dimension_numbers<[1], [0], [0], [1], [0, 0, 1, 1], [], []>} : vector<2x256xbf16>, vector<256x256xbf16>, vector<2x256xf32> -> vector<2x256xf32>
    %179 = arith.addf %173, %178 : vector<2x256xf32>
    %c0_145 = arith.constant 0 : index
    %c0_146 = arith.constant 0 : index
    %180 = vector.load %arg7[%c0_145, %c0_146] : memref<1x256xf32, #tpu.memory_space<vmem>>, vector<1x256xf32>
    %181 = vector.broadcast %180 : vector<1x256xf32> to vector<2x256xf32>
    %182 = arith.addf %179, %181 : vector<2x256xf32>
    %cst_147 = arith.constant 0.000000e+00 : f32
    %183 = vector.broadcast %cst_147 : f32 to vector<2x256xf32>
    %184 = arith.maximumf %182, %183 : vector<2x256xf32>
    %185 = arith.truncf %184 : vector<2x256xf32> to vector<2x256xbf16>
    %c0_148 = arith.constant 0 : index
    %c0_149 = arith.constant 0 : index
    %186 = vector.load %arg8[%c0_148, %c0_149] : memref<256x128xbf16, #tpu.memory_space<vmem>>, vector<256x128xbf16>
    %cst_150 = arith.constant dense<0.000000e+00> : vector<2x128xf32>
    %187 = tpu.matmul %185, %186, %cst_150 {dimension_numbers = #tpu.dot_dimension_numbers<[1], [0], [0], [1], [0, 0, 1, 1], [], []>} : vector<2x256xbf16>, vector<256x128xbf16>, vector<2x128xf32> -> vector<2x128xf32>
    %c0_151 = arith.constant 0 : index
    %c0_152 = arith.constant 0 : index
    %188 = vector.load %arg9[%c0_151, %c0_152] : memref<1x128xf32, #tpu.memory_space<vmem>>, vector<1x128xf32>
    %189 = vector.broadcast %188 : vector<1x128xf32> to vector<2x128xf32>
    %190 = arith.addf %187, %189 : vector<2x128xf32>
    %cst_153 = arith.constant 0.000000e+00 : f32
    %191 = vector.broadcast %cst_153 : f32 to vector<2x128xf32>
    %192 = arith.maximumf %190, %191 : vector<2x128xf32>
    %c0_154 = arith.constant 0 : index
    %c0_155 = arith.constant 0 : index
    %c0_156 = arith.constant 0 : index
    %193 = vector.load %arg10[%c0_154, %c0_155, %c0_156] : memref<1x2x128xf32, #tpu.memory_space<vmem>>, vector<1x2x128xf32>
    %194 = vector.shape_cast %193 : vector<1x2x128xf32> to vector<2x128xf32>
    %195 = vector.shape_cast %192 : vector<2x128xf32> to vector<1x2x128xf32>
    tpu.vector_store %arg10[%c0_154, %c0_155, %c0_156], %195 {strides = array<i32>} : memref<1x2x128xf32, #tpu.memory_space<vmem>>, vector<1x2x128xf32>,
    return
  }
  func.func @transform_0(%arg0: i32) -> (i32, i32, i32) {
    %c0_i32 = arith.constant 0 : i32
    %c0_i32_0 = arith.constant 0 : i32
    %c0_i32_1 = arith.constant 0 : i32
    return %arg0, %c0_i32, %c0_i32_0 : i32, i32, i32
  }
  func.func @transform_1(%arg0: i32) -> (i32, i32) {
    %c0_i32 = arith.constant 0 : i32
    %c0_i32_0 = arith.constant 0 : i32
    %c0_i32_1 = arith.constant 0 : i32
    return %c0_i32, %c0_i32_0 : i32, i32
  }
  func.func @transform_2(%arg0: i32) -> (i32, i32) {
    %c0_i32 = arith.constant 0 : i32
    %c0_i32_0 = arith.constant 0 : i32
    %c0_i32_1 = arith.constant 0 : i32
    return %c0_i32, %c0_i32_0 : i32, i32
  }
  func.func @transform_3(%arg0: i32) -> (i32, i32, i32) {
    %c0_i32 = arith.constant 0 : i32
    %c0_i32_0 = arith.constant 0 : i32
    %c0_i32_1 = arith.constant 0 : i32
    %c0_i32_2 = arith.constant 0 : i32
    return %c0_i32, %c0_i32_0, %c0_i32_1 : i32, i32, i32
  }
  func.func @transform_4(%arg0: i32) -> (i32, i32) {
    %c0_i32 = arith.constant 0 : i32
    %c0_i32_0 = arith.constant 0 : i32
    %c0_i32_1 = arith.constant 0 : i32
    return %c0_i32, %c0_i32_0 : i32, i32
  }
  func.func @transform_5(%arg0: i32) -> (i32, i32, i32) {
    %c0_i32 = arith.constant 0 : i32
    %c0_i32_0 = arith.constant 0 : i32
    %c0_i32_1 = arith.constant 0 : i32
    %c0_i32_2 = arith.constant 0 : i32
    return %c0_i32, %c0_i32_0, %c0_i32_1 : i32, i32, i32
  }
  func.func @transform_6(%arg0: i32) -> (i32, i32) {
    %c0_i32 = arith.constant 0 : i32
    %c0_i32_0 = arith.constant 0 : i32
    %c0_i32_1 = arith.constant 0 : i32
    return %c0_i32, %c0_i32_0 : i32, i32
  }
  func.func @transform_7(%arg0: i32) -> (i32, i32) {
    %c0_i32 = arith.constant 0 : i32
    %c0_i32_0 = arith.constant 0 : i32
    %c0_i32_1 = arith.constant 0 : i32
    return %c0_i32, %c0_i32_0 : i32, i32
  }
  func.func @transform_8(%arg0: i32) -> (i32, i32) {
    %c0_i32 = arith.constant 0 : i32
    %c0_i32_0 = arith.constant 0 : i32
    %c0_i32_1 = arith.constant 0 : i32
    return %c0_i32, %c0_i32_0 : i32, i32
  }
  func.func @transform_9(%arg0: i32) -> (i32, i32, i32) {
    %c0_i32 = arith.constant 0 : i32
    %c0_i32_0 = arith.constant 0 : i32
    %c0_i32_1 = arith.constant 0 : i32
    return %arg0, %c0_i32, %c0_i32_0 : i32, i32, i32
  }
}

</mosaic_0001>

<llo_original>
// kernel: cnn_forward.1
$region0: #{cnn_forward.1}
  #allocation0 [shape = 'u32[]', space=smem, size = 0x4, offset = 0x4, fixed_abs, tag = 'smem constant byte address 0x4 - core index']
  #allocation1 [shape = 'u32[144,128]{1,0:T(1,128)}', space=vmem, size = 0x12000, scoped, tag = 'internal scratch']
  #allocation2 [shape = 'bf16[16,2,256]{2,1,0:T(2,128)(2,1)}', space=vmem, size = 0x4000, scoped, tag = 'scratch operand']
  %s0 = inlined_call_operand.vmem [shape: bf16[2,48,4096], index: 0, kind: input, shape index: {}]
  %s1 = inlined_call_operand.vmem [shape: bf16[64,48], index: 1, kind: input, shape index: {}]
  %s2 = inlined_call_operand.vmem [shape: f32[64,1], index: 2, kind: input, shape index: {}]
  %s3 = inlined_call_operand.vmem [shape: bf16[4,16,64], index: 3, kind: input, shape index: {}]
  %s4 = inlined_call_operand.vmem [shape: f32[16,1], index: 4, kind: input, shape index: {}]
  %s5 = inlined_call_operand.vmem [shape: bf16[16,256,256], index: 5, kind: input, shape index: {}]
  %s6 = inlined_call_operand.vmem [shape: f32[1,256], index: 6, kind: input, shape index: {}]
  %s7 = inlined_call_operand.vmem [shape: bf16[256,128], index: 7, kind: input, shape index: {}]
  %s8 = inlined_call_operand.vmem [shape: f32[1,128], index: 8, kind: input, shape index: {}]
  %s9 = inlined_call_operand.hbm [shape: f32[1,2,128], index: 9, kind: output, shape index: {}]
  %s10 = sld [smem:[#allocation0]]
  $region46: #{cnn_forward.1} parent=0
    _
  %s12 = ssub.s32 1, %s10
  %s13 = scalar_select 0, %s12, %s10
  $region1: #{cnn_forward.1} parent=0
    #allocation3 [shape = 'u8[1024]{0}', space=vmem, size = 0x400, scoped, tag = 'output window, operand 0, single buffered']
    #allocation4 [shape = 's32[1]{0}', space=sflag, size = 0x4, scoped, tag = 'scoped memory for cnn_forward.1']
    %14 = vsyncpa [#allocation4], 0
    // Predicated region
    $region2: #{cnn_forward.1} parent=1 // pred_check
      _
    $region3: #{cnn_forward.1} parent=1 // pred_check_branch
      %16 = sbr.rel (0) target = $region5
    $region4: #{cnn_forward.1} parent=1 // pred_region
      _
    $region5: #{cnn_forward.1} parent=1 // pred_fallthru
      _
    // Predicated region
    $region6: #{cnn_forward.1} parent=1 // pred_check
      _
    $region7: #{cnn_forward.1} parent=1 // pred_check_branch
      %18 = sbr.rel (0) target = $region9
    $region8: #{cnn_forward.1} parent=1 // pred_region
      _
    $region9: #{cnn_forward.1} parent=1 // pred_fallthru
      _
    // Predicated region
    $region10: #{cnn_forward.1} parent=1 // pred_check
      _
    $region11: #{cnn_forward.1} parent=1 // pred_check_branch
      %20 = sbr.rel (0) target = $region13
    $region12: #{cnn_forward.1} parent=1 // pred_region
      _
    $region13: #{cnn_forward.1} parent=1 // pred_fallthru
      _
    // Predicated region
    $region14: #{cnn_forward.1} parent=1 // pred_check
      _
    $region15: #{cnn_forward.1} parent=1 // pred_check_branch
      %22 = sbr.rel (0) target = $region17
    $region16: #{cnn_forward.1} parent=1 // pred_region
      _
    $region17: #{cnn_forward.1} parent=1 // pred_fallthru
      _
    // Predicated region
    $region18: #{cnn_forward.1} parent=1 // pred_check
      _
    $region19: #{cnn_forward.1} parent=1 // pred_check_branch
      %24 = sbr.rel (0) target = $region21
    $region20: #{cnn_forward.1} parent=1 // pred_region
      _
    $region21: #{cnn_forward.1} parent=1 // pred_fallthru
      _
    // Predicated region
    $region22: #{cnn_forward.1} parent=1 // pred_check
      _
    $region23: #{cnn_forward.1} parent=1 // pred_check_branch
      %26 = sbr.rel (0) target = $region25
    $region24: #{cnn_forward.1} parent=1 // pred_region
      _
    $region25: #{cnn_forward.1} parent=1 // pred_fallthru
      _
    // Predicated region
    $region26: #{cnn_forward.1} parent=1 // pred_check
      _
    $region27: #{cnn_forward.1} parent=1 // pred_check_branch
      %28 = sbr.rel (0) target = $region29
    $region28: #{cnn_forward.1} parent=1 // pred_region
      _
    $region29: #{cnn_forward.1} parent=1 // pred_fallthru
      _
    // Predicated region
    $region30: #{cnn_forward.1} parent=1 // pred_check
      _
    $region31: #{cnn_forward.1} parent=1 // pred_check_branch
      %30 = sbr.rel (0) target = $region33
    $region32: #{cnn_forward.1} parent=1 // pred_region
      _
    $region33: #{cnn_forward.1} parent=1 // pred_fallthru
      _
    // Predicated region
    $region34: #{cnn_forward.1} parent=1 // pred_check
      _
    $region35: #{cnn_forward.1} parent=1 // pred_check_branch
      %32 = sbr.rel (0) target = $region37
    $region36: #{cnn_forward.1} parent=1 // pred_region
      _
    $region37: #{cnn_forward.1} parent=1 // pred_fallthru
      _
    %v34 = vld [vmem:[%s1] sm:$0xf]
    %v35 = vld [vmem:[%s1 + $0x4] sm:$0xf]
    %v36 = vld [vmem:[%s1 + $0x8] sm:$0xf]
    %v37 = vld [vmem:[%s1 + $0xc] sm:$0xf]
    %v38 = vld [vmem:[%s1 + $0x10] sm:$0xf]
    %v39 = vld [vmem:[%s1 + $0x14] sm:$0xf]
    %v40 = vld [vmem:[%s1 + $0x18] sm:$0xf]
    %v41 = vld [vmem:[%s1 + $0x1c] sm:$0xf]
    %v42 = vld [vmem:[%s2] sm:$0xff]
    %v43 = vld [vmem:[%s2 + $0x8] sm:$0xff]
    %v44 = vld [vmem:[%s2 + $0x10] sm:$0xff]
    %v45 = vld [vmem:[%s2 + $0x18] sm:$0xff]
    %v46 = vld [vmem:[%s2 + $0x20] sm:$0xff]
    %v47 = vld [vmem:[%s2 + $0x28] sm:$0xff]
    %v48 = vld [vmem:[%s2 + $0x30] sm:$0xff]
    %v49 = vld [vmem:[%s2 + $0x38] sm:$0xff]
    %v50 = vld [vmem:[%s4] sm:$0xff]
    %v51 = vld [vmem:[%s4 + $0x8] sm:$0xff]
    %v52 = vld [vmem:[%s3] sm:$0xf]
    %v53 = vld [vmem:[%s3 + $0x4] sm:$0xf]
    %s54 = scalar_lea.vmem %s3, 8
    %v55 = vld [vmem:[%s54] sm:$0xf]
    %v56 = vld [vmem:[%s54 + $0x4] sm:$0xf]
    %s57 = scalar_lea.vmem %s3, 16
    %v58 = vld [vmem:[%s57] sm:$0xf]
    %v59 = vld [vmem:[%s57 + $0x4] sm:$0xf]
    %s60 = scalar_lea.vmem %s3, 24
    %v61 = vld [vmem:[%s60] sm:$0xf]
    %v62 = vld [vmem:[%s60 + $0x4] sm:$0xf]
    %v63 = vld [vmem:[%s0] sm:$0xff]
    %v64 = vld [vmem:[%s0 + $0x8] sm:$0xff]
    %v65 = vld [vmem:[%s0 + $0x10] sm:$0xff]
    %v66 = vld [vmem:[%s0 + $0x18] sm:$0xff]
    %v67 = vld [vmem:[%s0 + $0x20] sm:$0xff]
    %v68 = vld [vmem:[%s0 + $0x28] sm:$0xff]
    %v69 = vld [vmem:[%s0 + $0x30] sm:$0xff]
    %v70 = vld [vmem:[%s0 + $0x38] sm:$0xff]
    %v71 = vld [vmem:[%s0 + $0x40] sm:$0xff]
    %v72 = vld [vmem:[%s0 + $0x48] sm:$0xff]
    %v73 = vld [vmem:[%s0 + $0x50] sm:$0xff]
    %v74 = vld [vmem:[%s0 + $0x58] sm:$0xff]
    %v75 = vld [vmem:[%s0 + $0x60] sm:$0xff]
    %v76 = vld [vmem:[%s0 + $0x68] sm:$0xff]
    %v77 = vld [vmem:[%s0 + $0x70] sm:$0xff]
    %v78 = vld [vmem:[%s0 + $0x78] sm:$0xff]
    %v79 = vld [vmem:[%s0 + $0x80] sm:$0xff]
    %v80 = vld [vmem:[%s0 + $0x88] sm:$0xff]
    %v81 = vld [vmem:[%s0 + $0x90] sm:$0xff]
    %v82 = vld [vmem:[%s0 + $0x98] sm:$0xff]
    %v83 = vld [vmem:[%s0 + $0xa0] sm:$0xff]
    %v84 = vld [vmem:[%s0 + $0xa8] sm:$0xff]
    %v85 = vld [vmem:[%s0 + $0xb0] sm:$0xff]
    %v86 = vld [vmem:[%s0 + $0xb8] sm:$0xff]
    %v87 = vld [vmem:[%s0 + $0xc0] sm:$0xff]
    %v88 = vld [vmem:[%s0 + $0xc8] sm:$0xff]
    %v89 = vld [vmem:[%s0 + $0xd0] sm:$0xff]
    %v90 = vld [vmem:[%s0 + $0xd8] sm:$0xff]
    %v91 = vld [vmem:[%s0 + $0xe0] sm:$0xff]
    %v92 = vld [vmem:[%s0 + $0xe8] sm:$0xff]
    %v93 = vld [vmem:[%s0 + $0xf0] sm:$0xff]
    %v94 = vld [vmem:[%s0 + $0xf8] sm:$0xff]
    %v95 = vld [vmem:[%s0 + $0x100] sm:$0xff]
    %v96 = vld [vmem:[%s0 + $0x108] sm:$0xff]
    %v97 = vld [vmem:[%s0 + $0x110] sm:$0xff]
    %v98 = vld [vmem:[%s0 + $0x118] sm:$0xff]
    %v99 = vld [vmem:[%s0 + $0x120] sm:$0xff]
    %v100 = vld [vmem:[%s0 + $0x128] sm:$0xff]
    %v101 = vld [vmem:[%s0 + $0x130] sm:$0xff]
    %v102 = vld [vmem:[%s0 + $0x138] sm:$0xff]
    %v103 = vld [vmem:[%s0 + $0x140] sm:$0xff]
    %v104 = vld [vmem:[%s0 + $0x148] sm:$0xff]
    %v105 = vld [vmem:[%s0 + $0x150] sm:$0xff]
    %v106 = vld [vmem:[%s0 + $0x158] sm:$0xff]
    %v107 = vld [vmem:[%s0 + $0x160] sm:$0xff]
    %v108 = vld [vmem:[%s0 + $0x168] sm:$0xff]
    %v109 = vld [vmem:[%s0 + $0x170] sm:$0xff]
    %v110 = vld [vmem:[%s0 + $0x178] sm:$0xff]
    %v111 = vld [vmem:[%s0 + $0x180] sm:$0xff]
    %v112 = vld [vmem:[%s0 + $0x188] sm:$0xff]
    %v113 = vld [vmem:[%s0 + $0x190] sm:$0xff]
    %v114 = vld [vmem:[%s0 + $0x198] sm:$0xff]
    %v115 = vld [vmem:[%s0 + $0x1a0] sm:$0xff]
    %v116 = vld [vmem:[%s0 + $0x1a8] sm:$0xff]
    %v117 = vld [vmem:[%s0 + $0x1b0] sm:$0xff]
    %v118 = vld [vmem:[%s0 + $0x1b8] sm:$0xff]
    %v119 = vld [vmem:[%s0 + $0x1c0] sm:$0xff]
    %v120 = vld [vmem:[%s0 + $0x1c8] sm:$0xff]
    %v121 = vld [vmem:[%s0 + $0x1d0] sm:$0xff]
    %v122 = vld [vmem:[%s0 + $0x1d8] sm:$0xff]
    %v123 = vld [vmem:[%s0 + $0x1e0] sm:$0xff]
    %v124 = vld [vmem:[%s0 + $0x1e8] sm:$0xff]
    %v125 = vld [vmem:[%s0 + $0x1f0] sm:$0xff]
    %v126 = vld [vmem:[%s0 + $0x1f8] sm:$0xff]
    %v127 = vld [vmem:[%s0 + $0x200] sm:$0xff]
    %v128 = vld [vmem:[%s0 + $0x208] sm:$0xff]
    %v129 = vld [vmem:[%s0 + $0x210] sm:$0xff]
    %v130 = vld [vmem:[%s0 + $0x218] sm:$0xff]
    %v131 = vld [vmem:[%s0 + $0x220] sm:$0xff]
    %v132 = vld [vmem:[%s0 + $0x228] sm:$0xff]
    %v133 = vld [vmem:[%s0 + $0x230] sm:$0xff]
    %v134 = vld [vmem:[%s0 + $0x238] sm:$0xff]
    %v135 = vld [vmem:[%s0 + $0x240] sm:$0xff]
    %v136 = vld [vmem:[%s0 + $0x248] sm:$0xff]
    %v137 = vld [vmem:[%s0 + $0x250] sm:$0xff]
    %v138 = vld [vmem:[%s0 + $0x258] sm:$0xff]
    %v139 = vld [vmem:[%s0 + $0x260] sm:$0xff]
    %v140 = vld [vmem:[%s0 + $0x268] sm:$0xff]
    %v141 = vld [vmem:[%s0 + $0x270] sm:$0xff]
    %v142 = vld [vmem:[%s0 + $0x278] sm:$0xff]
    %v143 = vld [vmem:[%s0 + $0x280] sm:$0xff]
    %v144 = vld [vmem:[%s0 + $0x288] sm:$0xff]
    %v145 = vld [vmem:[%s0 + $0x290] sm:$0xff]
    %v146 = vld [vmem:[%s0 + $0x298] sm:$0xff]
    %v147 = vld [vmem:[%s0 + $0x2a0] sm:$0xff]
    %v148 = vld [vmem:[%s0 + $0x2a8] sm:$0xff]
    %v149 = vld [vmem:[%s0 + $0x2b0] sm:$0xff]
    %v150 = vld [vmem:[%s0 + $0x2b8] sm:$0xff]
    %v151 = vld [vmem:[%s0 + $0x2c0] sm:$0xff]
    %v152 = vld [vmem:[%s0 + $0x2c8] sm:$0xff]
    %v153 = vld [vmem:[%s0 + $0x2d0] sm:$0xff]
    %v154 = vld [vmem:[%s0 + $0x2d8] sm:$0xff]
    %v155 = vld [vmem:[%s0 + $0x2e0] sm:$0xff]
    %v156 = vld [vmem:[%s0 + $0x2e8] sm:$0xff]
    %v157 = vld [vmem:[%s0 + $0x2f0] sm:$0xff]
    %v158 = vld [vmem:[%s0 + $0x2f8] sm:$0xff]
    %v167 = vunpack.c.l.b16 %v34
    %v168 = vunpack.c.l.b16 %v35
    %v169 = vunpack.c.l.b16 %v36
    %v170 = vunpack.c.l.b16 %v37
    %v171 = vunpack.c.l.b16 %v38
    %v172 = vunpack.c.l.b16 %v39
    %v173 = vunpack.c.l.b16 %v40
    %v174 = vunpack.c.l.b16 %v41
    %v175 = vpack.c.b16 %v168, %v167
    %v176 = vpack.c.b16 %v170, %v169
    %v177 = vpack.c.b16 %v172, %v171
    %v178 = vpack.c.b16 %v174, %v173
    %v203 = vunpack.c.l.b16 %v63
    %v204 = vunpack.c.h.b16 %v63
    %v205 = vunpack.c.l.b16 %v64
    %v206 = vunpack.c.h.b16 %v64
    %v207 = vunpack.c.l.b16 %v65
    %v208 = vunpack.c.h.b16 %v65
    %v209 = vunpack.c.l.b16 %v66
    %v210 = vunpack.c.h.b16 %v66
    %v211 = vunpack.c.l.b16 %v79
    %v212 = vunpack.c.h.b16 %v79
    %v213 = vunpack.c.l.b16 %v80
    %v214 = vunpack.c.h.b16 %v80
    %v215 = vunpack.c.l.b16 %v81
    %v216 = vunpack.c.h.b16 %v81
    %v217 = vunpack.c.l.b16 %v82
    %v218 = vunpack.c.h.b16 %v82
    %v219 = vunpack.c.l.b16 %v95
    %v220 = vunpack.c.h.b16 %v95
    %v221 = vunpack.c.l.b16 %v96
    %v222 = vunpack.c.h.b16 %v96
    %v223 = vunpack.c.l.b16 %v97
    %v224 = vunpack.c.h.b16 %v97
    %v225 = vunpack.c.l.b16 %v98
    %v226 = vunpack.c.h.b16 %v98
    %v227 = vunpack.c.l.b16 %v111
    %v228 = vunpack.c.h.b16 %v111
    %v229 = vunpack.c.l.b16 %v112
    %v230 = vunpack.c.h.b16 %v112
    %v231 = vunpack.c.l.b16 %v113
    %v232 = vunpack.c.h.b16 %v113
    %v233 = vunpack.c.l.b16 %v114
    %v234 = vunpack.c.h.b16 %v114
    %v235 = vunpack.c.l.b16 %v127
    %v236 = vunpack.c.h.b16 %v127
    %v237 = vunpack.c.l.b16 %v128
    %v238 = vunpack.c.h.b16 %v128
    %v239 = vunpack.c.l.b16 %v129
    %v240 = vunpack.c.h.b16 %v129
    %v241 = vunpack.c.l.b16 %v130
    %v242 = vunpack.c.h.b16 %v130
    %v243 = vunpack.c.l.b16 %v143
    %v244 = vunpack.c.h.b16 %v143
    %v245 = vunpack.c.l.b16 %v144
    %v246 = vunpack.c.h.b16 %v144
    %v247 = vunpack.c.l.b16 %v145
    %v248 = vunpack.c.h.b16 %v145
    %v249 = vunpack.c.l.b16 %v146
    %v250 = vunpack.c.h.b16 %v146
    %v251 = vpack.c.b16 %v211, %v203
    %v252 = vpack.c.b16 %v212, %v204
    %v253 = vpack.c.b16 %v213, %v205
    %v254 = vpack.c.b16 %v214, %v206
    %v255 = vpack.c.b16 %v215, %v207
    %v256 = vpack.c.b16 %v216, %v208
    %v257 = vpack.c.b16 %v217, %v209
    %v258 = vpack.c.b16 %v218, %v210
    %v259 = vpack.c.b16 %v227, %v219
    %v260 = vpack.c.b16 %v228, %v220
    %v261 = vpack.c.b16 %v229, %v221
    %v262 = vpack.c.b16 %v230, %v222
    %v263 = vpack.c.b16 %v231, %v223
    %v264 = vpack.c.b16 %v232, %v224
    %v265 = vpack.c.b16 %v233, %v225
    %v266 = vpack.c.b16 %v234, %v226
    %v267 = vpack.c.b16 %v243, %v235
    %v268 = vpack.c.b16 %v244, %v236
    %v269 = vpack.c.b16 %v245, %v237
    %v270 = vpack.c.b16 %v246, %v238
    %v271 = vpack.c.b16 %v247, %v239
    %v272 = vpack.c.b16 %v248, %v240
    %v273 = vpack.c.b16 %v249, %v241
    %v274 = vpack.c.b16 %v250, %v242
    %vm299 = vcmask 392192
    %v301 = vsel %vm299, %v175, 0
    %v304 = vsel %vm299, %v176, 0
    %v307 = vsel %vm299, %v177, 0
    %v310 = vsel %vm299, %v178, 0
    %312 = vmatprep.subr.bf16.mxu0 0
    %313 = vmatpush1.bf16.msra.mxu0 0
    %314 = vmatprep.subr.bf16.mxu0 0
    %315 = vmatpush1.bf16.msra.mxu0 0
    %316 = vmatprep.subr.bf16.mxu0 0
    %317 = vmatpush1.bf16.msra.mxu0 0
    %318 = vmatprep.subr.bf16.mxu0 0
    %319 = vmatpush1.bf16.msra.mxu0 0
    %320 = vmatprep.subr.bf16.mxu0 0
    %321 = vmatpush1.bf16.msra.mxu0 0
    %322 = vmatprep.subr.bf16.mxu0 %v268
    %323 = vmatpush1.bf16.msra.mxu0 %v267
    %324 = vmatprep.subr.bf16.mxu0 %v260
    %325 = vmatpush1.bf16.msra.mxu0 %v259
    %326 = vmatprep.subr.bf16.mxu0 %v252
    %327 = vmatpush1.bf16.msra.mxu0 %v251
    %328 = vmatprep.subr.bf16.mxu0 0
    %329 = vmatpush2.bf16.msra.mxu0 0
    %330 = vmatprep.subr.bf16.mxu0 0
    %331 = vmatpush2.bf16.msra.mxu0 0
    %332 = vmatprep.subr.bf16.mxu0 0
    %333 = vmatpush2.bf16.msra.mxu0 0
    %334 = vmatprep.subr.bf16.mxu0 0
    %335 = vmatpush2.bf16.msra.mxu0 0
    %336 = vmatprep.subr.bf16.mxu0 0
    %337 = vmatpush2.bf16.msra.mxu0 0
    %338 = vmatprep.subr.bf16.mxu0 0
    %339 = vmatpush2.bf16.msra.mxu0 0
    %340 = vmatprep.subr.bf16.mxu0 0
    %341 = vmatpush2.bf16.msra.mxu0 0
    %342 = vmatprep.subr.bf16.mxu0 0
    %343 = vmatpush2.bf16.msra.mxu0 0
    %344 = vmatprep.mubr.bf16.mxu0 0
    %345 = vmatmul.mubr.bf16.gmra.mxu0 %v301
    %v346 = vpop.f32.mrf.mxu0
    %v347 = vadd.f32 0.0, %v346
    %v348 = vpop.f32.mrf.mxu0
    %v349 = vadd.f32 0.0, %v348
    %v350 = vpop.f32.mrf.mxu0
    %v351 = vadd.f32 0.0, %v350
    %v352 = vpop.f32.mrf.mxu0
    %v353 = vadd.f32 0.0, %v352
    %354 = vmatprep.mubr.bf16.mxu0 0
    %355 = vmatmul.mubr.bf16.gmra.mxu0 %v304
    %v356 = vpop.f32.mrf.mxu0
    %v357 = vadd.f32 0.0, %v356
    %v358 = vpop.f32.mrf.mxu0
    %v359 = vadd.f32 0.0, %v358
    %v360 = vpop.f32.mrf.mxu0
    %v361 = vadd.f32 0.0, %v360
    %v362 = vpop.f32.mrf.mxu0
    %v363 = vadd.f32 0.0, %v362
    %364 = vmatprep.mubr.bf16.mxu0 0
    %365 = vmatmul.mubr.bf16.gmra.mxu0 %v307
    %v366 = vpop.f32.mrf.mxu0
    %v367 = vadd.f32 0.0, %v366
    %v368 = vpop.f32.mrf.mxu0
    %v369 = vadd.f32 0.0, %v368
    %v370 = vpop.f32.mrf.mxu0
    %v371 = vadd.f32 0.0, %v370
    %v372 = vpop.f32.mrf.mxu0
    %v373 = vadd.f32 0.0, %v372
    %374 = vmatprep.mubr.bf16.mxu0 0
    %375 = vmatmul.mubr.bf16.gmra.mxu0 %v310
    %v376 = vpop.f32.mrf.mxu0
    %v377 = vadd.f32 0.0, %v376
    %v378 = vpop.f32.mrf.mxu0
    %v379 = vadd.f32 0.0, %v378
    %v380 = vpop.f32.mrf.mxu0
    %v381 = vadd.f32 0.0, %v380
    %v382 = vpop.f32.mrf.mxu0
    %v383 = vadd.f32 0.0, %v382
    %384 = vdwg.mxu0
    %385 = vmatprep.subr.bf16.mxu0 0
    %386 = vmatpush1.bf16.msra.mxu0 0
    %387 = vmatprep.subr.bf16.mxu0 0
    %388 = vmatpush1.bf16.msra.mxu0 0
    %389 = vmatprep.subr.bf16.mxu0 0
    %390 = vmatpush1.bf16.msra.mxu0 0
    %391 = vmatprep.subr.bf16.mxu0 0
    %392 = vmatpush1.bf16.msra.mxu0 0
    %393 = vmatprep.subr.bf16.mxu0 0
    %394 = vmatpush1.bf16.msra.mxu0 0
    %395 = vmatprep.subr.bf16.mxu0 %v270
    %396 = vmatpush1.bf16.msra.mxu0 %v269
    %397 = vmatprep.subr.bf16.mxu0 %v262
    %398 = vmatpush1.bf16.msra.mxu0 %v261
    %399 = vmatprep.subr.bf16.mxu0 %v254
    %400 = vmatpush1.bf16.msra.mxu0 %v253
    %401 = vmatprep.subr.bf16.mxu0 0
    %402 = vmatpush2.bf16.msra.mxu0 0
    %403 = vmatprep.subr.bf16.mxu0 0
    %404 = vmatpush2.bf16.msra.mxu0 0
    %405 = vmatprep.subr.bf16.mxu0 0
    %406 = vmatpush2.bf16.msra.mxu0 0
    %407 = vmatprep.subr.bf16.mxu0 0
    %408 = vmatpush2.bf16.msra.mxu0 0
    %409 = vmatprep.subr.bf16.mxu0 0
    %410 = vmatpush2.bf16.msra.mxu0 0
    %411 = vmatprep.subr.bf16.mxu0 0
    %412 = vmatpush2.bf16.msra.mxu0 0
    %413 = vmatprep.subr.bf16.mxu0 0
    %414 = vmatpush2.bf16.msra.mxu0 0
    %415 = vmatprep.subr.bf16.mxu0 0
    %416 = vmatpush2.bf16.msra.mxu0 0
    %417 = vmatprep.mubr.bf16.mxu0 0
    %418 = vmatmul.mubr.bf16.gmra.mxu0 %v301
    %v419 = vpop.f32.mrf.mxu0
    %v420 = vadd.f32 0.0, %v419
    %v421 = vpop.f32.mrf.mxu0
    %v422 = vadd.f32 0.0, %v421
    %v423 = vpop.f32.mrf.mxu0
    %v424 = vadd.f32 0.0, %v423
    %v425 = vpop.f32.mrf.mxu0
    %v426 = vadd.f32 0.0, %v425
    %427 = vmatprep.mubr.bf16.mxu0 0
    %428 = vmatmul.mubr.bf16.gmra.mxu0 %v304
    %v429 = vpop.f32.mrf.mxu0
    %v430 = vadd.f32 0.0, %v429
    %v431 = vpop.f32.mrf.mxu0
    %v432 = vadd.f32 0.0, %v431
    %v433 = vpop.f32.mrf.mxu0
    %v434 = vadd.f32 0.0, %v433
    %v435 = vpop.f32.mrf.mxu0
    %v436 = vadd.f32 0.0, %v435
    %437 = vmatprep.mubr.bf16.mxu0 0
    %438 = vmatmul.mubr.bf16.gmra.mxu0 %v307
    %v439 = vpop.f32.mrf.mxu0
    %v440 = vadd.f32 0.0, %v439
    %v441 = vpop.f32.mrf.mxu0
    %v442 = vadd.f32 0.0, %v441
    %v443 = vpop.f32.mrf.mxu0
    %v444 = vadd.f32 0.0, %v443
    %v445 = vpop.f32.mrf.mxu0
    %v446 = vadd.f32 0.0, %v445
    %447 = vmatprep.mubr.bf16.mxu0 0
    %448 = vmatmul.mubr.bf16.gmra.mxu0 %v310
    %v449 = vpop.f32.mrf.mxu0
    %v450 = vadd.f32 0.0, %v449
    %v451 = vpop.f32.mrf.mxu0
    %v452 = vadd.f32 0.0, %v451
    %v453 = vpop.f32.mrf.mxu0
    %v454 = vadd.f32 0.0, %v453
    %v455 = vpop.f32.mrf.mxu0
    %v456 = vadd.f32 0.0, %v455
    %457 = vdwg.mxu0
    %458 = vmatprep.subr.bf16.mxu0 0
    %459 = vmatpush1.bf16.msra.mxu0 0
    %460 = vmatprep.subr.bf16.mxu0 0
    %461 = vmatpush1.bf16.msra.mxu0 0
    %462 = vmatprep.subr.bf16.mxu0 0
    %463 = vmatpush1.bf16.msra.mxu0 0
    %464 = vmatprep.subr.bf16.mxu0 0
    %465 = vmatpush1.bf16.msra.mxu0 0
    %466 = vmatprep.subr.bf16.mxu0 0
    %467 = vmatpush1.bf16.msra.mxu0 0
    %468 = vmatprep.subr.bf16.mxu0 %v272
    %469 = vmatpush1.bf16.msra.mxu0 %v271
    %470 = vmatprep.subr.bf16.mxu0 %v264
    %471 = vmatpush1.bf16.msra.mxu0 %v263
    %472 = vmatprep.subr.bf16.mxu0 %v256
    %473 = vmatpush1.bf16.msra.mxu0 %v255
    %474 = vmatprep.subr.bf16.mxu0 0
    %475 = vmatpush2.bf16.msra.mxu0 0
    %476 = vmatprep.subr.bf16.mxu0 0
    %477 = vmatpush2.bf16.msra.mxu0 0
    %478 = vmatprep.subr.bf16.mxu0 0
    %479 = vmatpush2.bf16.msra.mxu0 0
    %480 = vmatprep.subr.bf16.mxu0 0
    %481 = vmatpush2.bf16.msra.mxu0 0
    %482 = vmatprep.subr.bf16.mxu0 0
    %483 = vmatpush2.bf16.msra.mxu0 0
    %484 = vmatprep.subr.bf16.mxu0 0
    %485 = vmatpush2.bf16.msra.mxu0 0
    %486 = vmatprep.subr.bf16.mxu0 0
    %487 = vmatpush2.bf16.msra.mxu0 0
    %488 = vmatprep.subr.bf16.mxu0 0
    %489 = vmatpush2.bf16.msra.mxu0 0
    %490 = vmatprep.mubr.bf16.mxu0 0
    %491 = vmatmul.mubr.bf16.gmra.mxu0 %v301
    %v492 = vpop.f32.mrf.mxu0
    %v493 = vadd.f32 0.0, %v492
    %v494 = vpop.f32.mrf.mxu0
    %v495 = vadd.f32 0.0, %v494
    %v496 = vpop.f32.mrf.mxu0
    %v497 = vadd.f32 0.0, %v496
    %v498 = vpop.f32.mrf.mxu0
    %v499 = vadd.f32 0.0, %v498
    %500 = vmatprep.mubr.bf16.mxu0 0
    %501 = vmatmul.mubr.bf16.gmra.mxu0 %v304
    %v502 = vpop.f32.mrf.mxu0
    %v503 = vadd.f32 0.0, %v502
    %v504 = vpop.f32.mrf.mxu0
    %v505 = vadd.f32 0.0, %v504
    %v506 = vpop.f32.mrf.mxu0
    %v507 = vadd.f32 0.0, %v506
    %v508 = vpop.f32.mrf.mxu0
    %v509 = vadd.f32 0.0, %v508
    %510 = vmatprep.mubr.bf16.mxu0 0
    %511 = vmatmul.mubr.bf16.gmra.mxu0 %v307
    %v512 = vpop.f32.mrf.mxu0
    %v513 = vadd.f32 0.0, %v512
    %v514 = vpop.f32.mrf.mxu0
    %v515 = vadd.f32 0.0, %v514
    %v516 = vpop.f32.mrf.mxu0
    %v517 = vadd.f32 0.0, %v516
    %v518 = vpop.f32.mrf.mxu0
    %v519 = vadd.f32 0.0, %v518
    %520 = vmatprep.mubr.bf16.mxu0 0
    %521 = vmatmul.mubr.bf16.gmra.mxu0 %v310
    %v522 = vpop.f32.mrf.mxu0
    %v523 = vadd.f32 0.0, %v522
    %v524 = vpop.f32.mrf.mxu0
    %v525 = vadd.f32 0.0, %v524
    %v526 = vpop.f32.mrf.mxu0
    %v527 = vadd.f32 0.0, %v526
    %v528 = vpop.f32.mrf.mxu0
    %v529 = vadd.f32 0.0, %v528
    %530 = vdwg.mxu0
    %531 = vmatprep.subr.bf16.mxu0 0
    %532 = vmatpush1.bf16.msra.mxu0 0
    %533 = vmatprep.subr.bf16.mxu0 0
    %534 = vmatpush1.bf16.msra.mxu0 0
    %535 = vmatprep.subr.bf16.mxu0 0
    %536 = vmatpush1.bf16.msra.mxu0 0
    %537 = vmatprep.subr.bf16.mxu0 0
    %538 = vmatpush1.bf16.msra.mxu0 0
    %539 = vmatprep.subr.bf16.mxu0 0
    %540 = vmatpush1.bf16.msra.mxu0 0
    %541 = vmatprep.subr.bf16.mxu0 %v274
    %542 = vmatpush1.bf16.msra.mxu0 %v273
    %543 = vmatprep.subr.bf16.mxu0 %v266
    %544 = vmatpush1.bf16.msra.mxu0 %v265
    %545 = vmatprep.subr.bf16.mxu0 %v258
    %546 = vmatpush1.bf16.msra.mxu0 %v257
    %547 = vmatprep.subr.bf16.mxu0 0
    %548 = vmatpush2.bf16.msra.mxu0 0
    %549 = vmatprep.subr.bf16.mxu0 0
    %550 = vmatpush2.bf16.msra.mxu0 0
    %551 = vmatprep.subr.bf16.mxu0 0
    %552 = vmatpush2.bf16.msra.mxu0 0
    %553 = vmatprep.subr.bf16.mxu0 0
    %554 = vmatpush2.bf16.msra.mxu0 0
    %555 = vmatprep.subr.bf16.mxu0 0
    %556 = vmatpush2.bf16.msra.mxu0 0
    %557 = vmatprep.subr.bf16.mxu0 0
    %558 = vmatpush2.bf16.msra.mxu0 0
    %559 = vmatprep.subr.bf16.mxu0 0
    %560 = vmatpush2.bf16.msra.mxu0 0
    %561 = vmatprep.subr.bf16.mxu0 0
    %562 = vmatpush2.bf16.msra.mxu0 0
    %563 = vmatprep.mubr.bf16.mxu0 0
    %564 = vmatmul.mubr.bf16.gmra.mxu0 %v301
    %v565 = vpop.f32.mrf.mxu0
    %v566 = vadd.f32 0.0, %v565
    %v567 = vpop.f32.mrf.mxu0
    %v568 = vadd.f32 0.0, %v567
    %v569 = vpop.f32.mrf.mxu0
    %v570 = vadd.f32 0.0, %v569
    %v571 = vpop.f32.mrf.mxu0
    %v572 = vadd.f32 0.0, %v571
    %573 = vmatprep.mubr.bf16.mxu0 0
    %574 = vmatmul.mubr.bf16.gmra.mxu0 %v304
    %v575 = vpop.f32.mrf.mxu0
    %v576 = vadd.f32 0.0, %v575
    %v577 = vpop.f32.mrf.mxu0
    %v578 = vadd.f32 0.0, %v577
    %v579 = vpop.f32.mrf.mxu0
    %v580 = vadd.f32 0.0, %v579
    %v581 = vpop.f32.mrf.mxu0
    %v582 = vadd.f32 0.0, %v581
    %583 = vmatprep.mubr.bf16.mxu0 0
    %584 = vmatmul.mubr.bf16.gmra.mxu0 %v307
    %v585 = vpop.f32.mrf.mxu0
    %v586 = vadd.f32 0.0, %v585
    %v587 = vpop.f32.mrf.mxu0
    %v588 = vadd.f32 0.0, %v587
    %v589 = vpop.f32.mrf.mxu0
    %v590 = vadd.f32 0.0, %v589
    %v591 = vpop.f32.mrf.mxu0
    %v592 = vadd.f32 0.0, %v591
    %593 = vmatprep.mubr.bf16.mxu0 0
    %594 = vmatmul.mubr.bf16.gmra.mxu0 %v310
    %v595 = vpop.f32.mrf.mxu0
    %v596 = vadd.f32 0.0, %v595
    %v597 = vpop.f32.mrf.mxu0
    %v598 = vadd.f32 0.0, %v597
    %v599 = vpop.f32.mrf.mxu0
    %v600 = vadd.f32 0.0, %v599
    %v601 = vpop.f32.mrf.mxu0
    %v602 = vadd.f32 0.0, %v601
    %603 = vdwg.mxu0
    %v628 = vunpack.c.l.b16 %v67
    %v629 = vunpack.c.h.b16 %v67
    %v630 = vunpack.c.l.b16 %v68
    %v631 = vunpack.c.h.b16 %v68
    %v632 = vunpack.c.l.b16 %v69
    %v633 = vunpack.c.h.b16 %v69
    %v634 = vunpack.c.l.b16 %v70
    %v635 = vunpack.c.h.b16 %v70
    %v636 = vunpack.c.l.b16 %v83
    %v637 = vunpack.c.h.b16 %v83
    %v638 = vunpack.c.l.b16 %v84
    %v639 = vunpack.c.h.b16 %v84
    %v640 = vunpack.c.l.b16 %v85
    %v641 = vunpack.c.h.b16 %v85
    %v642 = vunpack.c.l.b16 %v86
    %v643 = vunpack.c.h.b16 %v86
    %v644 = vunpack.c.l.b16 %v99
    %v645 = vunpack.c.h.b16 %v99
    %v646 = vunpack.c.l.b16 %v100
    %v647 = vunpack.c.h.b16 %v100
    %v648 = vunpack.c.l.b16 %v101
    %v649 = vunpack.c.h.b16 %v101
    %v650 = vunpack.c.l.b16 %v102
    %v651 = vunpack.c.h.b16 %v102
    %v652 = vunpack.c.l.b16 %v115
    %v653 = vunpack.c.h.b16 %v115
    %v654 = vunpack.c.l.b16 %v116
    %v655 = vunpack.c.h.b16 %v116
    %v656 = vunpack.c.l.b16 %v117
    %v657 = vunpack.c.h.b16 %v117
    %v658 = vunpack.c.l.b16 %v118
    %v659 = vunpack.c.h.b16 %v118
    %v660 = vunpack.c.l.b16 %v131
    %v661 = vunpack.c.h.b16 %v131
    %v662 = vunpack.c.l.b16 %v132
    %v663 = vunpack.c.h.b16 %v132
    %v664 = vunpack.c.l.b16 %v133
    %v665 = vunpack.c.h.b16 %v133
    %v666 = vunpack.c.l.b16 %v134
    %v667 = vunpack.c.h.b16 %v134
    %v668 = vunpack.c.l.b16 %v147
    %v669 = vunpack.c.h.b16 %v147
    %v670 = vunpack.c.l.b16 %v148
    %v671 = vunpack.c.h.b16 %v148
    %v672 = vunpack.c.l.b16 %v149
    %v673 = vunpack.c.h.b16 %v149
    %v674 = vunpack.c.l.b16 %v150
    %v675 = vunpack.c.h.b16 %v150
    %v676 = vpack.c.b16 %v636, %v628
    %v677 = vpack.c.b16 %v637, %v629
    %v678 = vpack.c.b16 %v638, %v630
    %v679 = vpack.c.b16 %v639, %v631
    %v680 = vpack.c.b16 %v640, %v632
    %v681 = vpack.c.b16 %v641, %v633
    %v682 = vpack.c.b16 %v642, %v634
    %v683 = vpack.c.b16 %v643, %v635
    %v684 = vpack.c.b16 %v652, %v644
    %v685 = vpack.c.b16 %v653, %v645
    %v686 = vpack.c.b16 %v654, %v646
    %v687 = vpack.c.b16 %v655, %v647
    %v688 = vpack.c.b16 %v656, %v648
    %v689 = vpack.c.b16 %v657, %v649
    %v690 = vpack.c.b16 %v658, %v650
    %v691 = vpack.c.b16 %v659, %v651
    %v692 = vpack.c.b16 %v668, %v660
    %v693 = vpack.c.b16 %v669, %v661
    %v694 = vpack.c.b16 %v670, %v662
    %v695 = vpack.c.b16 %v671, %v663
    %v696 = vpack.c.b16 %v672, %v664
    %v697 = vpack.c.b16 %v673, %v665
    %v698 = vpack.c.b16 %v674, %v666
    %v699 = vpack.c.b16 %v675, %v667
    %724 = vmatprep.subr.bf16.mxu0 0
    %725 = vmatpush1.bf16.msra.mxu0 0
    %726 = vmatprep.subr.bf16.mxu0 0
    %727 = vmatpush1.bf16.msra.mxu0 0
    %728 = vmatprep.subr.bf16.mxu0 0
    %729 = vmatpush1.bf16.msra.mxu0 0
    %730 = vmatprep.subr.bf16.mxu0 0
    %731 = vmatpush1.bf16.msra.mxu0 0
    %732 = vmatprep.subr.bf16.mxu0 0
    %733 = vmatpush1.bf16.msra.mxu0 0
    %734 = vmatprep.subr.bf16.mxu0 %v693
    %735 = vmatpush1.bf16.msra.mxu0 %v692
    %736 = vmatprep.subr.bf16.mxu0 %v685
    %737 = vmatpush1.bf16.msra.mxu0 %v684
    %738 = vmatprep.subr.bf16.mxu0 %v677
    %739 = vmatpush1.bf16.msra.mxu0 %v676
    %740 = vmatprep.subr.bf16.mxu0 0
    %741 = vmatpush2.bf16.msra.mxu0 0
    %742 = vmatprep.subr.bf16.mxu0 0
    %743 = vmatpush2.bf16.msra.mxu0 0
    %744 = vmatprep.subr.bf16.mxu0 0
    %745 = vmatpush2.bf16.msra.mxu0 0
    %746 = vmatprep.subr.bf16.mxu0 0
    %747 = vmatpush2.bf16.msra.mxu0 0
    %748 = vmatprep.subr.bf16.mxu0 0
    %749 = vmatpush2.bf16.msra.mxu0 0
    %750 = vmatprep.subr.bf16.mxu0 0
    %751 = vmatpush2.bf16.msra.mxu0 0
    %752 = vmatprep.subr.bf16.mxu0 0
    %753 = vmatpush2.bf16.msra.mxu0 0
    %754 = vmatprep.subr.bf16.mxu0 0
    %755 = vmatpush2.bf16.msra.mxu0 0
    %756 = vmatprep.mubr.bf16.mxu0 0
    %757 = vmatmul.mubr.bf16.gmra.mxu0 %v301
    %v758 = vpop.f32.mrf.mxu0
    %v759 = vadd.f32 0.0, %v758
    %v760 = vpop.f32.mrf.mxu0
    %v761 = vadd.f32 0.0, %v760
    %v762 = vpop.f32.mrf.mxu0
    %v763 = vadd.f32 0.0, %v762
    %v764 = vpop.f32.mrf.mxu0
    %v765 = vadd.f32 0.0, %v764
    %766 = vmatprep.mubr.bf16.mxu0 0
    %767 = vmatmul.mubr.bf16.gmra.mxu0 %v304
    %v768 = vpop.f32.mrf.mxu0
    %v769 = vadd.f32 0.0, %v768
    %v770 = vpop.f32.mrf.mxu0
    %v771 = vadd.f32 0.0, %v770
    %v772 = vpop.f32.mrf.mxu0
    %v773 = vadd.f32 0.0, %v772
    %v774 = vpop.f32.mrf.mxu0
    %v775 = vadd.f32 0.0, %v774
    %776 = vmatprep.mubr.bf16.mxu0 0
    %777 = vmatmul.mubr.bf16.gmra.mxu0 %v307
    %v778 = vpop.f32.mrf.mxu0
    %v779 = vadd.f32 0.0, %v778
    %v780 = vpop.f32.mrf.mxu0
    %v781 = vadd.f32 0.0, %v780
    %v782 = vpop.f32.mrf.mxu0
    %v783 = vadd.f32 0.0, %v782
    %v784 = vpop.f32.mrf.mxu0
    %v785 = vadd.f32 0.0, %v784
    %786 = vmatprep.mubr.bf16.mxu0 0
    %787 = vmatmul.mubr.bf16.gmra.mxu0 %v310
    %v788 = vpop.f32.mrf.mxu0
    %v789 = vadd.f32 0.0, %v788
    %v790 = vpop.f32.mrf.mxu0
    %v791 = vadd.f32 0.0, %v790
    %v792 = vpop.f32.mrf.mxu0
    %v793 = vadd.f32 0.0, %v792
    %v794 = vpop.f32.mrf.mxu0
    %v795 = vadd.f32 0.0, %v794
    %796 = vdwg.mxu0
    %797 = vmatprep.subr.bf16.mxu0 0
    %798 = vmatpush1.bf16.msra.mxu0 0
    %799 = vmatprep.subr.bf16.mxu0 0
    %800 = vmatpush1.bf16.msra.mxu0 0
    %801 = vmatprep.subr.bf16.mxu0 0
    %802 = vmatpush1.bf16.msra.mxu0 0
    %803 = vmatprep.subr.bf16.mxu0 0
    %804 = vmatpush1.bf16.msra.mxu0 0
    %805 = vmatprep.subr.bf16.mxu0 0
    %806 = vmatpush1.bf16.msra.mxu0 0
    %807 = vmatprep.subr.bf16.mxu0 %v695
    %808 = vmatpush1.bf16.msra.mxu0 %v694
    %809 = vmatprep.subr.bf16.mxu0 %v687
    %810 = vmatpush1.bf16.msra.mxu0 %v686
    %811 = vmatprep.subr.bf16.mxu0 %v679
    %812 = vmatpush1.bf16.msra.mxu0 %v678
    %813 = vmatprep.subr.bf16.mxu0 0
    %814 = vmatpush2.bf16.msra.mxu0 0
    %815 = vmatprep.subr.bf16.mxu0 0
    %816 = vmatpush2.bf16.msra.mxu0 0
    %817 = vmatprep.subr.bf16.mxu0 0
    %818 = vmatpush2.bf16.msra.mxu0 0
    %819 = vmatprep.subr.bf16.mxu0 0
    %820 = vmatpush2.bf16.msra.mxu0 0
    %821 = vmatprep.subr.bf16.mxu0 0
    %822 = vmatpush2.bf16.msra.mxu0 0
    %823 = vmatprep.subr.bf16.mxu0 0
    %824 = vmatpush2.bf16.msra.mxu0 0
    %825 = vmatprep.subr.bf16.mxu0 0
    %826 = vmatpush2.bf16.msra.mxu0 0
    %827 = vmatprep.subr.bf16.mxu0 0
    %828 = vmatpush2.bf16.msra.mxu0 0
    %829 = vmatprep.mubr.bf16.mxu0 0
    %830 = vmatmul.mubr.bf16.gmra.mxu0 %v301
    %v831 = vpop.f32.mrf.mxu0
    %v832 = vadd.f32 0.0, %v831
    %v833 = vpop.f32.mrf.mxu0
    %v834 = vadd.f32 0.0, %v833
    %v835 = vpop.f32.mrf.mxu0
    %v836 = vadd.f32 0.0, %v835
    %v837 = vpop.f32.mrf.mxu0
    %v838 = vadd.f32 0.0, %v837
    %839 = vmatprep.mubr.bf16.mxu0 0
    %840 = vmatmul.mubr.bf16.gmra.mxu0 %v304
    %v841 = vpop.f32.mrf.mxu0
    %v842 = vadd.f32 0.0, %v841
    %v843 = vpop.f32.mrf.mxu0
    %v844 = vadd.f32 0.0, %v843
    %v845 = vpop.f32.mrf.mxu0
    %v846 = vadd.f32 0.0, %v845
    %v847 = vpop.f32.mrf.mxu0
    %v848 = vadd.f32 0.0, %v847
    %849 = vmatprep.mubr.bf16.mxu0 0
    %850 = vmatmul.mubr.bf16.gmra.mxu0 %v307
    %v851 = vpop.f32.mrf.mxu0
    %v852 = vadd.f32 0.0, %v851
    %v853 = vpop.f32.mrf.mxu0
    %v854 = vadd.f32 0.0, %v853
    %v855 = vpop.f32.mrf.mxu0
    %v856 = vadd.f32 0.0, %v855
    %v857 = vpop.f32.mrf.mxu0
    %v858 = vadd.f32 0.0, %v857
    %859 = vmatprep.mubr.bf16.mxu0 0
    %860 = vmatmul.mubr.bf16.gmra.mxu0 %v310
    %v861 = vpop.f32.mrf.mxu0
    %v862 = vadd.f32 0.0, %v861
    %v863 = vpop.f32.mrf.mxu0
    %v864 = vadd.f32 0.0, %v863
    %v865 = vpop.f32.mrf.mxu0
    %v866 = vadd.f32 0.0, %v865
    %v867 = vpop.f32.mrf.mxu0
    %v868 = vadd.f32 0.0, %v867
    %869 = vdwg.mxu0
    %870 = vmatprep.subr.bf16.mxu0 0
    %871 = vmatpush1.bf16.msra.mxu0 0
    %872 = vmatprep.subr.bf16.mxu0 0
    %873 = vmatpush1.bf16.msra.mxu0 0
    %874 = vmatprep.subr.bf16.mxu0 0
    %875 = vmatpush1.bf16.msra.mxu0 0
    %876 = vmatprep.subr.bf16.mxu0 0
    %877 = vmatpush1.bf16.msra.mxu0 0
    %878 = vmatprep.subr.bf16.mxu0 0
    %879 = vmatpush1.bf16.msra.mxu0 0
    %880 = vmatprep.subr.bf16.mxu0 %v697
    %881 = vmatpush1.bf16.msra.mxu0 %v696
    %882 = vmatprep.subr.bf16.mxu0 %v689
    %883 = vmatpush1.bf16.msra.mxu0 %v688
    %884 = vmatprep.subr.bf16.mxu0 %v681
    %885 = vmatpush1.bf16.msra.mxu0 %v680
    %886 = vmatprep.subr.bf16.mxu0 0
    %887 = vmatpush2.bf16.msra.mxu0 0
    %888 = vmatprep.subr.bf16.mxu0 0
    %889 = vmatpush2.bf16.msra.mxu0 0
    %890 = vmatprep.subr.bf16.mxu0 0
    %891 = vmatpush2.bf16.msra.mxu0 0
    %892 = vmatprep.subr.bf16.mxu0 0
    %893 = vmatpush2.bf16.msra.mxu0 0
    %894 = vmatprep.subr.bf16.mxu0 0
    %895 = vmatpush2.bf16.msra.mxu0 0
    %896 = vmatprep.subr.bf16.mxu0 0
    %897 = vmatpush2.bf16.msra.mxu0 0
    %898 = vmatprep.subr.bf16.mxu0 0
    %899 = vmatpush2.bf16.msra.mxu0 0
    %900 = vmatprep.subr.bf16.mxu0 0
    %901 = vmatpush2.bf16.msra.mxu0 0
    %902 = vmatprep.mubr.bf16.mxu0 0
    %903 = vmatmul.mubr.bf16.gmra.mxu0 %v301
    %v904 = vpop.f32.mrf.mxu0
    %v905 = vadd.f32 0.0, %v904
    %v906 = vpop.f32.mrf.mxu0
    %v907 = vadd.f32 0.0, %v906
    %v908 = vpop.f32.mrf.mxu0
    %v909 = vadd.f32 0.0, %v908
    %v910 = vpop.f32.mrf.mxu0
    %v911 = vadd.f32 0.0, %v910
    %912 = vmatprep.mubr.bf16.mxu0 0
    %913 = vmatmul.mubr.bf16.gmra.mxu0 %v304
    %v914 = vpop.f32.mrf.mxu0
    %v915 = vadd.f32 0.0, %v914
    %v916 = vpop.f32.mrf.mxu0
    %v917 = vadd.f32 0.0, %v916
    %v918 = vpop.f32.mrf.mxu0
    %v919 = vadd.f32 0.0, %v918
    %v920 = vpop.f32.mrf.mxu0
    %v921 = vadd.f32 0.0, %v920
    %922 = vmatprep.mubr.bf16.mxu0 0
    %923 = vmatmul.mubr.bf16.gmra.mxu0 %v307
    %v924 = vpop.f32.mrf.mxu0
    %v925 = vadd.f32 0.0, %v924
    %v926 = vpop.f32.mrf.mxu0
    %v927 = vadd.f32 0.0, %v926
    %v928 = vpop.f32.mrf.mxu0
    %v929 = vadd.f32 0.0, %v928
    %v930 = vpop.f32.mrf.mxu0
    %v931 = vadd.f32 0.0, %v930
    %932 = vmatprep.mubr.bf16.mxu0 0
    %933 = vmatmul.mubr.bf16.gmra.mxu0 %v310
    %v934 = vpop.f32.mrf.mxu0
    %v935 = vadd.f32 0.0, %v934
    %v936 = vpop.f32.mrf.mxu0
    %v937 = vadd.f32 0.0, %v936
    %v938 = vpop.f32.mrf.mxu0
    %v939 = vadd.f32 0.0, %v938
    %v940 = vpop.f32.mrf.mxu0
    %v941 = vadd.f32 0.0, %v940
    %942 = vdwg.mxu0
    %943 = vmatprep.subr.bf16.mxu0 0
    %944 = vmatpush1.bf16.msra.mxu0 0
    %945 = vmatprep.subr.bf16.mxu0 0
    %946 = vmatpush1.bf16.msra.mxu0 0
    %947 = vmatprep.subr.bf16.mxu0 0
    %948 = vmatpush1.bf16.msra.mxu0 0
    %949 = vmatprep.subr.bf16.mxu0 0
    %950 = vmatpush1.bf16.msra.mxu0 0
    %951 = vmatprep.subr.bf16.mxu0 0
    %952 = vmatpush1.bf16.msra.mxu0 0
    %953 = vmatprep.subr.bf16.mxu0 %v699
    %954 = vmatpush1.bf16.msra.mxu0 %v698
    %955 = vmatprep.subr.bf16.mxu0 %v691
    %956 = vmatpush1.bf16.msra.mxu0 %v690
    %957 = vmatprep.subr.bf16.mxu0 %v683
    %958 = vmatpush1.bf16.msra.mxu0 %v682
    %959 = vmatprep.subr.bf16.mxu0 0
    %960 = vmatpush2.bf16.msra.mxu0 0
    %961 = vmatprep.subr.bf16.mxu0 0
    %962 = vmatpush2.bf16.msra.mxu0 0
    %963 = vmatprep.subr.bf16.mxu0 0
    %964 = vmatpush2.bf16.msra.mxu0 0
    %965 = vmatprep.subr.bf16.mxu0 0
    %966 = vmatpush2.bf16.msra.mxu0 0
    %967 = vmatprep.subr.bf16.mxu0 0
    %968 = vmatpush2.bf16.msra.mxu0 0
    %969 = vmatprep.subr.bf16.mxu0 0
    %970 = vmatpush2.bf16.msra.mxu0 0
    %971 = vmatprep.subr.bf16.mxu0 0
    %972 = vmatpush2.bf16.msra.mxu0 0
    %973 = vmatprep.subr.bf16.mxu0 0
    %974 = vmatpush2.bf16.msra.mxu0 0
    %975 = vmatprep.mubr.bf16.mxu0 0
    %976 = vmatmul.mubr.bf16.gmra.mxu0 %v301
    %v977 = vpop.f32.mrf.mxu0
    %v978 = vadd.f32 0.0, %v977
    %v979 = vpop.f32.mrf.mxu0
    %v980 = vadd.f32 0.0, %v979
    %v981 = vpop.f32.mrf.mxu0
    %v982 = vadd.f32 0.0, %v981
    %v983 = vpop.f32.mrf.mxu0
    %v984 = vadd.f32 0.0, %v983
    %985 = vmatprep.mubr.bf16.mxu0 0
    %986 = vmatmul.mubr.bf16.gmra.mxu0 %v304
    %v987 = vpop.f32.mrf.mxu0
    %v988 = vadd.f32 0.0, %v987
    %v989 = vpop.f32.mrf.mxu0
    %v990 = vadd.f32 0.0, %v989
    %v991 = vpop.f32.mrf.mxu0
    %v992 = vadd.f32 0.0, %v991
    %v993 = vpop.f32.mrf.mxu0
    %v994 = vadd.f32 0.0, %v993
    %995 = vmatprep.mubr.bf16.mxu0 0
    %996 = vmatmul.mubr.bf16.gmra.mxu0 %v307
    %v997 = vpop.f32.mrf.mxu0
    %v998 = vadd.f32 0.0, %v997
    %v999 = vpop.f32.mrf.mxu0
    %v1000 = vadd.f32 0.0, %v999
    %v1001 = vpop.f32.mrf.mxu0
    %v1002 = vadd.f32 0.0, %v1001
    %v1003 = vpop.f32.mrf.mxu0
    %v1004 = vadd.f32 0.0, %v1003
    %1005 = vmatprep.mubr.bf16.mxu0 0
    %1006 = vmatmul.mubr.bf16.gmra.mxu0 %v310
    %v1007 = vpop.f32.mrf.mxu0
    %v1008 = vadd.f32 0.0, %v1007
    %v1009 = vpop.f32.mrf.mxu0
    %v1010 = vadd.f32 0.0, %v1009
    %v1011 = vpop.f32.mrf.mxu0
    %v1012 = vadd.f32 0.0, %v1011
    %v1013 = vpop.f32.mrf.mxu0
    %v1014 = vadd.f32 0.0, %v1013
    %1015 = vdwg.mxu0
    %v1016 = vmax.f32 %v347, %v759
    %v1017 = vmax.f32 %v349, %v761
    %v1018 = vmax.f32 %v420, %v832
    %v1019 = vmax.f32 %v422, %v834
    %v1020 = vmax.f32 %v493, %v905
    %v1021 = vmax.f32 %v495, %v907
    %v1022 = vmax.f32 %v566, %v978
    %v1023 = vmax.f32 %v568, %v980
    %v1024 = vmax.f32 %v351, %v763
    %v1025 = vmax.f32 %v353, %v765
    %v1026 = vmax.f32 %v424, %v836
    %v1027 = vmax.f32 %v426, %v838
    %v1028 = vmax.f32 %v497, %v909
    %v1029 = vmax.f32 %v499, %v911
    %v1030 = vmax.f32 %v570, %v982
    %v1031 = vmax.f32 %v572, %v984
    %v1032 = vmax.f32 %v357, %v769
    %v1033 = vmax.f32 %v359, %v771
    %v1034 = vmax.f32 %v430, %v842
    %v1035 = vmax.f32 %v432, %v844
    %v1036 = vmax.f32 %v503, %v915
    %v1037 = vmax.f32 %v505, %v917
    %v1038 = vmax.f32 %v576, %v988
    %v1039 = vmax.f32 %v578, %v990
    %v1040 = vmax.f32 %v361, %v773
    %v1041 = vmax.f32 %v363, %v775
    %v1042 = vmax.f32 %v434, %v846
    %v1043 = vmax.f32 %v436, %v848
    %v1044 = vmax.f32 %v507, %v919
    %v1045 = vmax.f32 %v509, %v921
    %v1046 = vmax.f32 %v580, %v992
    %v1047 = vmax.f32 %v582, %v994
    %v1048 = vmax.f32 %v367, %v779
    %v1049 = vmax.f32 %v369, %v781
    %v1050 = vmax.f32 %v440, %v852
    %v1051 = vmax.f32 %v442, %v854
    %v1052 = vmax.f32 %v513, %v925
    %v1053 = vmax.f32 %v515, %v927
    %v1054 = vmax.f32 %v586, %v998
    %v1055 = vmax.f32 %v588, %v1000
    %v1056 = vmax.f32 %v371, %v783
    %v1057 = vmax.f32 %v373, %v785
    %v1058 = vmax.f32 %v444, %v856
    %v1059 = vmax.f32 %v446, %v858
    %v1060 = vmax.f32 %v517, %v929
    %v1061 = vmax.f32 %v519, %v931
    %v1062 = vmax.f32 %v590, %v1002
    %v1063 = vmax.f32 %v592, %v1004
    %v1064 = vmax.f32 %v377, %v789
    %v1065 = vmax.f32 %v379, %v791
    %v1066 = vmax.f32 %v450, %v862
    %v1067 = vmax.f32 %v452, %v864
    %v1068 = vmax.f32 %v523, %v935
    %v1069 = vmax.f32 %v525, %v937
    %v1070 = vmax.f32 %v596, %v1008
    %v1071 = vmax.f32 %v598, %v1010
    %v1072 = vmax.f32 %v381, %v793
    %v1073 = vmax.f32 %v383, %v795
    %v1074 = vmax.f32 %v454, %v866
    %v1075 = vmax.f32 %v456, %v868
    %v1076 = vmax.f32 %v527, %v939
    %v1077 = vmax.f32 %v529, %v941
    %v1078 = vmax.f32 %v600, %v1012
    %v1079 = vmax.f32 %v602, %v1014
    %v1104 = vunpack.c.l.b16 %v71
    %v1105 = vunpack.c.h.b16 %v71
    %v1106 = vunpack.c.l.b16 %v72
    %v1107 = vunpack.c.h.b16 %v72
    %v1108 = vunpack.c.l.b16 %v73
    %v1109 = vunpack.c.h.b16 %v73
    %v1110 = vunpack.c.l.b16 %v74
    %v1111 = vunpack.c.h.b16 %v74
    %v1112 = vunpack.c.l.b16 %v87
    %v1113 = vunpack.c.h.b16 %v87
    %v1114 = vunpack.c.l.b16 %v88
    %v1115 = vunpack.c.h.b16 %v88
    %v1116 = vunpack.c.l.b16 %v89
    %v1117 = vunpack.c.h.b16 %v89
    %v1118 = vunpack.c.l.b16 %v90
    %v1119 = vunpack.c.h.b16 %v90
    %v1120 = vunpack.c.l.b16 %v103
    %v1121 = vunpack.c.h.b16 %v103
    %v1122 = vunpack.c.l.b16 %v104
    %v1123 = vunpack.c.h.b16 %v104
    %v1124 = vunpack.c.l.b16 %v105
    %v1125 = vunpack.c.h.b16 %v105
    %v1126 = vunpack.c.l.b16 %v106
    %v1127 = vunpack.c.h.b16 %v106
    %v1128 = vunpack.c.l.b16 %v119
    %v1129 = vunpack.c.h.b16 %v119
    %v1130 = vunpack.c.l.b16 %v120
    %v1131 = vunpack.c.h.b16 %v120
    %v1132 = vunpack.c.l.b16 %v121
    %v1133 = vunpack.c.h.b16 %v121
    %v1134 = vunpack.c.l.b16 %v122
    %v1135 = vunpack.c.h.b16 %v122
    %v1136 = vunpack.c.l.b16 %v135
    %v1137 = vunpack.c.h.b16 %v135
    %v1138 = vunpack.c.l.b16 %v136
    %v1139 = vunpack.c.h.b16 %v136
    %v1140 = vunpack.c.l.b16 %v137
    %v1141 = vunpack.c.h.b16 %v137
    %v1142 = vunpack.c.l.b16 %v138
    %v1143 = vunpack.c.h.b16 %v138
    %v1144 = vunpack.c.l.b16 %v151
    %v1145 = vunpack.c.h.b16 %v151
    %v1146 = vunpack.c.l.b16 %v152
    %v1147 = vunpack.c.h.b16 %v152
    %v1148 = vunpack.c.l.b16 %v153
    %v1149 = vunpack.c.h.b16 %v153
    %v1150 = vunpack.c.l.b16 %v154
    %v1151 = vunpack.c.h.b16 %v154
    %v1152 = vpack.c.b16 %v1112, %v1104
    %v1153 = vpack.c.b16 %v1113, %v1105
    %v1154 = vpack.c.b16 %v1114, %v1106
    %v1155 = vpack.c.b16 %v1115, %v1107
    %v1156 = vpack.c.b16 %v1116, %v1108
    %v1157 = vpack.c.b16 %v1117, %v1109
    %v1158 = vpack.c.b16 %v1118, %v1110
    %v1159 = vpack.c.b16 %v1119, %v1111
    %v1160 = vpack.c.b16 %v1128, %v1120
    %v1161 = vpack.c.b16 %v1129, %v1121
    %v1162 = vpack.c.b16 %v1130, %v1122
    %v1163 = vpack.c.b16 %v1131, %v1123
    %v1164 = vpack.c.b16 %v1132, %v1124
    %v1165 = vpack.c.b16 %v1133, %v1125
    %v1166 = vpack.c.b16 %v1134, %v1126
    %v1167 = vpack.c.b16 %v1135, %v1127
    %v1168 = vpack.c.b16 %v1144, %v1136
    %v1169 = vpack.c.b16 %v1145, %v1137
    %v1170 = vpack.c.b16 %v1146, %v1138
    %v1171 = vpack.c.b16 %v1147, %v1139
    %v1172 = vpack.c.b16 %v1148, %v1140
    %v1173 = vpack.c.b16 %v1149, %v1141
    %v1174 = vpack.c.b16 %v1150, %v1142
    %v1175 = vpack.c.b16 %v1151, %v1143
    %1200 = vmatprep.subr.bf16.mxu0 0
    %1201 = vmatpush1.bf16.msra.mxu0 0
    %1202 = vmatprep.subr.bf16.mxu0 0
    %1203 = vmatpush1.bf16.msra.mxu0 0
    %1204 = vmatprep.subr.bf16.mxu0 0
    %1205 = vmatpush1.bf16.msra.mxu0 0
    %1206 = vmatprep.subr.bf16.mxu0 0
    %1207 = vmatpush1.bf16.msra.mxu0 0
    %1208 = vmatprep.subr.bf16.mxu0 0
    %1209 = vmatpush1.bf16.msra.mxu0 0
    %1210 = vmatprep.subr.bf16.mxu0 %v1169
    %1211 = vmatpush1.bf16.msra.mxu0 %v1168
    %1212 = vmatprep.subr.bf16.mxu0 %v1161
    %1213 = vmatpush1.bf16.msra.mxu0 %v1160
    %1214 = vmatprep.subr.bf16.mxu0 %v1153
    %1215 = vmatpush1.bf16.msra.mxu0 %v1152
    %1216 = vmatprep.subr.bf16.mxu0 0
    %1217 = vmatpush2.bf16.msra.mxu0 0
    %1218 = vmatprep.subr.bf16.mxu0 0
    %1219 = vmatpush2.bf16.msra.mxu0 0
    %1220 = vmatprep.subr.bf16.mxu0 0
    %1221 = vmatpush2.bf16.msra.mxu0 0
    %1222 = vmatprep.subr.bf16.mxu0 0
    %1223 = vmatpush2.bf16.msra.mxu0 0
    %1224 = vmatprep.subr.bf16.mxu0 0
    %1225 = vmatpush2.bf16.msra.mxu0 0
    %1226 = vmatprep.subr.bf16.mxu0 0
    %1227 = vmatpush2.bf16.msra.mxu0 0
    %1228 = vmatprep.subr.bf16.mxu0 0
    %1229 = vmatpush2.bf16.msra.mxu0 0
    %1230 = vmatprep.subr.bf16.mxu0 0
    %1231 = vmatpush2.bf16.msra.mxu0 0
    %1232 = vmatprep.mubr.bf16.mxu0 0
    %1233 = vmatmul.mubr.bf16.gmra.mxu0 %v301
    %v1234 = vpop.f32.mrf.mxu0
    %v1235 = vadd.f32 0.0, %v1234
    %v1236 = vpop.f32.mrf.mxu0
    %v1237 = vadd.f32 0.0, %v1236
    %v1238 = vpop.f32.mrf.mxu0
    %v1239 = vadd.f32 0.0, %v1238
    %v1240 = vpop.f32.mrf.mxu0
    %v1241 = vadd.f32 0.0, %v1240
    %1242 = vmatprep.mubr.bf16.mxu0 0
    %1243 = vmatmul.mubr.bf16.gmra.mxu0 %v304
    %v1244 = vpop.f32.mrf.mxu0
    %v1245 = vadd.f32 0.0, %v1244
    %v1246 = vpop.f32.mrf.mxu0
    %v1247 = vadd.f32 0.0, %v1246
    %v1248 = vpop.f32.mrf.mxu0
    %v1249 = vadd.f32 0.0, %v1248
    %v1250 = vpop.f32.mrf.mxu0
    %v1251 = vadd.f32 0.0, %v1250
    %1252 = vmatprep.mubr.bf16.mxu0 0
    %1253 = vmatmul.mubr.bf16.gmra.mxu0 %v307
    %v1254 = vpop.f32.mrf.mxu0
    %v1255 = vadd.f32 0.0, %v1254
    %v1256 = vpop.f32.mrf.mxu0
    %v1257 = vadd.f32 0.0, %v1256
    %v1258 = vpop.f32.mrf.mxu0
    %v1259 = vadd.f32 0.0, %v1258
    %v1260 = vpop.f32.mrf.mxu0
    %v1261 = vadd.f32 0.0, %v1260
    %1262 = vmatprep.mubr.bf16.mxu0 0
    %1263 = vmatmul.mubr.bf16.gmra.mxu0 %v310
    %v1264 = vpop.f32.mrf.mxu0
    %v1265 = vadd.f32 0.0, %v1264
    %v1266 = vpop.f32.mrf.mxu0
    %v1267 = vadd.f32 0.0, %v1266
    %v1268 = vpop.f32.mrf.mxu0
    %v1269 = vadd.f32 0.0, %v1268
    %v1270 = vpop.f32.mrf.mxu0
    %v1271 = vadd.f32 0.0, %v1270
    %1272 = vdwg.mxu0
    %1273 = vmatprep.subr.bf16.mxu0 0
    %1274 = vmatpush1.bf16.msra.mxu0 0
    %1275 = vmatprep.subr.bf16.mxu0 0
    %1276 = vmatpush1.bf16.msra.mxu0 0
    %1277 = vmatprep.subr.bf16.mxu0 0
    %1278 = vmatpush1.bf16.msra.mxu0 0
    %1279 = vmatprep.subr.bf16.mxu0 0
    %1280 = vmatpush1.bf16.msra.mxu0 0
    %1281 = vmatprep.subr.bf16.mxu0 0
    %1282 = vmatpush1.bf16.msra.mxu0 0
    %1283 = vmatprep.subr.bf16.mxu0 %v1171
    %1284 = vmatpush1.bf16.msra.mxu0 %v1170
    %1285 = vmatprep.subr.bf16.mxu0 %v1163
    %1286 = vmatpush1.bf16.msra.mxu0 %v1162
    %1287 = vmatprep.subr.bf16.mxu0 %v1155
    %1288 = vmatpush1.bf16.msra.mxu0 %v1154
    %1289 = vmatprep.subr.bf16.mxu0 0
    %1290 = vmatpush2.bf16.msra.mxu0 0
    %1291 = vmatprep.subr.bf16.mxu0 0
    %1292 = vmatpush2.bf16.msra.mxu0 0
    %1293 = vmatprep.subr.bf16.mxu0 0
    %1294 = vmatpush2.bf16.msra.mxu0 0
    %1295 = vmatprep.subr.bf16.mxu0 0
    %1296 = vmatpush2.bf16.msra.mxu0 0
    %1297 = vmatprep.subr.bf16.mxu0 0
    %1298 = vmatpush2.bf16.msra.mxu0 0
    %1299 = vmatprep.subr.bf16.mxu0 0
    %1300 = vmatpush2.bf16.msra.mxu0 0
    %1301 = vmatprep.subr.bf16.mxu0 0
    %1302 = vmatpush2.bf16.msra.mxu0 0
    %1303 = vmatprep.subr.bf16.mxu0 0
    %1304 = vmatpush2.bf16.msra.mxu0 0
    %1305 = vmatprep.mubr.bf16.mxu0 0
    %1306 = vmatmul.mubr.bf16.gmra.mxu0 %v301
    %v1307 = vpop.f32.mrf.mxu0
    %v1308 = vadd.f32 0.0, %v1307
    %v1309 = vpop.f32.mrf.mxu0
    %v1310 = vadd.f32 0.0, %v1309
    %v1311 = vpop.f32.mrf.mxu0
    %v1312 = vadd.f32 0.0, %v1311
    %v1313 = vpop.f32.mrf.mxu0
    %v1314 = vadd.f32 0.0, %v1313
    %1315 = vmatprep.mubr.bf16.mxu0 0
    %1316 = vmatmul.mubr.bf16.gmra.mxu0 %v304
    %v1317 = vpop.f32.mrf.mxu0
    %v1318 = vadd.f32 0.0, %v1317
    %v1319 = vpop.f32.mrf.mxu0
    %v1320 = vadd.f32 0.0, %v1319
    %v1321 = vpop.f32.mrf.mxu0
    %v1322 = vadd.f32 0.0, %v1321
    %v1323 = vpop.f32.mrf.mxu0
    %v1324 = vadd.f32 0.0, %v1323
    %1325 = vmatprep.mubr.bf16.mxu0 0
    %1326 = vmatmul.mubr.bf16.gmra.mxu0 %v307
    %v1327 = vpop.f32.mrf.mxu0
    %v1328 = vadd.f32 0.0, %v1327
    %v1329 = vpop.f32.mrf.mxu0
    %v1330 = vadd.f32 0.0, %v1329
    %v1331 = vpop.f32.mrf.mxu0
    %v1332 = vadd.f32 0.0, %v1331
    %v1333 = vpop.f32.mrf.mxu0
    %v1334 = vadd.f32 0.0, %v1333
    %1335 = vmatprep.mubr.bf16.mxu0 0
    %1336 = vmatmul.mubr.bf16.gmra.mxu0 %v310
    %v1337 = vpop.f32.mrf.mxu0
    %v1338 = vadd.f32 0.0, %v1337
    %v1339 = vpop.f32.mrf.mxu0
    %v1340 = vadd.f32 0.0, %v1339
    %v1341 = vpop.f32.mrf.mxu0
    %v1342 = vadd.f32 0.0, %v1341
    %v1343 = vpop.f32.mrf.mxu0
    %v1344 = vadd.f32 0.0, %v1343
    %1345 = vdwg.mxu0
    %1346 = vmatprep.subr.bf16.mxu0 0
    %1347 = vmatpush1.bf16.msra.mxu0 0
    %1348 = vmatprep.subr.bf16.mxu0 0
    %1349 = vmatpush1.bf16.msra.mxu0 0
    %1350 = vmatprep.subr.bf16.mxu0 0
    %1351 = vmatpush1.bf16.msra.mxu0 0
    %1352 = vmatprep.subr.bf16.mxu0 0
    %1353 = vmatpush1.bf16.msra.mxu0 0
    %1354 = vmatprep.subr.bf16.mxu0 0
    %1355 = vmatpush1.bf16.msra.mxu0 0
    %1356 = vmatprep.subr.bf16.mxu0 %v1173
    %1357 = vmatpush1.bf16.msra.mxu0 %v1172
    %1358 = vmatprep.subr.bf16.mxu0 %v1165
    %1359 = vmatpush1.bf16.msra.mxu0 %v1164
    %1360 = vmatprep.subr.bf16.mxu0 %v1157
    %1361 = vmatpush1.bf16.msra.mxu0 %v1156
    %1362 = vmatprep.subr.bf16.mxu0 0
    %1363 = vmatpush2.bf16.msra.mxu0 0
    %1364 = vmatprep.subr.bf16.mxu0 0
    %1365 = vmatpush2.bf16.msra.mxu0 0
    %1366 = vmatprep.subr.bf16.mxu0 0
    %1367 = vmatpush2.bf16.msra.mxu0 0
    %1368 = vmatprep.subr.bf16.mxu0 0
    %1369 = vmatpush2.bf16.msra.mxu0 0
    %1370 = vmatprep.subr.bf16.mxu0 0
    %1371 = vmatpush2.bf16.msra.mxu0 0
    %1372 = vmatprep.subr.bf16.mxu0 0
    %1373 = vmatpush2.bf16.msra.mxu0 0
    %1374 = vmatprep.subr.bf16.mxu0 0
    %1375 = vmatpush2.bf16.msra.mxu0 0
    %1376 = vmatprep.subr.bf16.mxu0 0
    %1377 = vmatpush2.bf16.msra.mxu0 0
    %1378 = vmatprep.mubr.bf16.mxu0 0
    %1379 = vmatmul.mubr.bf16.gmra.mxu0 %v301
    %v1380 = vpop.f32.mrf.mxu0
    %v1381 = vadd.f32 0.0, %v1380
    %v1382 = vpop.f32.mrf.mxu0
    %v1383 = vadd.f32 0.0, %v1382
    %v1384 = vpop.f32.mrf.mxu0
    %v1385 = vadd.f32 0.0, %v1384
    %v1386 = vpop.f32.mrf.mxu0
    %v1387 = vadd.f32 0.0, %v1386
    %1388 = vmatprep.mubr.bf16.mxu0 0
    %1389 = vmatmul.mubr.bf16.gmra.mxu0 %v304
    %v1390 = vpop.f32.mrf.mxu0
    %v1391 = vadd.f32 0.0, %v1390
    %v1392 = vpop.f32.mrf.mxu0
    %v1393 = vadd.f32 0.0, %v1392
    %v1394 = vpop.f32.mrf.mxu0
    %v1395 = vadd.f32 0.0, %v1394
    %v1396 = vpop.f32.mrf.mxu0
    %v1397 = vadd.f32 0.0, %v1396
    %1398 = vmatprep.mubr.bf16.mxu0 0
    %1399 = vmatmul.mubr.bf16.gmra.mxu0 %v307
    %v1400 = vpop.f32.mrf.mxu0
    %v1401 = vadd.f32 0.0, %v1400
    %v1402 = vpop.f32.mrf.mxu0
    %v1403 = vadd.f32 0.0, %v1402
    %v1404 = vpop.f32.mrf.mxu0
    %v1405 = vadd.f32 0.0, %v1404
    %v1406 = vpop.f32.mrf.mxu0
    %v1407 = vadd.f32 0.0, %v1406
    %1408 = vmatprep.mubr.bf16.mxu0 0
    %1409 = vmatmul.mubr.bf16.gmra.mxu0 %v310
    %v1410 = vpop.f32.mrf.mxu0
    %v1411 = vadd.f32 0.0, %v1410
    %v1412 = vpop.f32.mrf.mxu0
    %v1413 = vadd.f32 0.0, %v1412
    %v1414 = vpop.f32.mrf.mxu0
    %v1415 = vadd.f32 0.0, %v1414
    %v1416 = vpop.f32.mrf.mxu0
    %v1417 = vadd.f32 0.0, %v1416
    %1418 = vdwg.mxu0
    %1419 = vmatprep.subr.bf16.mxu0 0
    %1420 = vmatpush1.bf16.msra.mxu0 0
    %1421 = vmatprep.subr.bf16.mxu0 0
    %1422 = vmatpush1.bf16.msra.mxu0 0
    %1423 = vmatprep.subr.bf16.mxu0 0
    %1424 = vmatpush1.bf16.msra.mxu0 0
    %1425 = vmatprep.subr.bf16.mxu0 0
    %1426 = vmatpush1.bf16.msra.mxu0 0
    %1427 = vmatprep.subr.bf16.mxu0 0
    %1428 = vmatpush1.bf16.msra.mxu0 0
    %1429 = vmatprep.subr.bf16.mxu0 %v1175
    %1430 = vmatpush1.bf16.msra.mxu0 %v1174
    %1431 = vmatprep.subr.bf16.mxu0 %v1167
    %1432 = vmatpush1.bf16.msra.mxu0 %v1166
    %1433 = vmatprep.subr.bf16.mxu0 %v1159
    %1434 = vmatpush1.bf16.msra.mxu0 %v1158
    %1435 = vmatprep.subr.bf16.mxu0 0
    %1436 = vmatpush2.bf16.msra.mxu0 0
    %1437 = vmatprep.subr.bf16.mxu0 0
    %1438 = vmatpush2.bf16.msra.mxu0 0
    %1439 = vmatprep.subr.bf16.mxu0 0
    %1440 = vmatpush2.bf16.msra.mxu0 0
    %1441 = vmatprep.subr.bf16.mxu0 0
    %1442 = vmatpush2.bf16.msra.mxu0 0
    %1443 = vmatprep.subr.bf16.mxu0 0
    %1444 = vmatpush2.bf16.msra.mxu0 0
    %1445 = vmatprep.subr.bf16.mxu0 0
    %1446 = vmatpush2.bf16.msra.mxu0 0
    %1447 = vmatprep.subr.bf16.mxu0 0
    %1448 = vmatpush2.bf16.msra.mxu0 0
    %1449 = vmatprep.subr.bf16.mxu0 0
    %1450 = vmatpush2.bf16.msra.mxu0 0
    %1451 = vmatprep.mubr.bf16.mxu0 0
    %1452 = vmatmul.mubr.bf16.gmra.mxu0 %v301
    %v1453 = vpop.f32.mrf.mxu0
    %v1454 = vadd.f32 0.0, %v1453
    %v1455 = vpop.f32.mrf.mxu0
    %v1456 = vadd.f32 0.0, %v1455
    %v1457 = vpop.f32.mrf.mxu0
    %v1458 = vadd.f32 0.0, %v1457
    %v1459 = vpop.f32.mrf.mxu0
    %v1460 = vadd.f32 0.0, %v1459
    %1461 = vmatprep.mubr.bf16.mxu0 0
    %1462 = vmatmul.mubr.bf16.gmra.mxu0 %v304
    %v1463 = vpop.f32.mrf.mxu0
    %v1464 = vadd.f32 0.0, %v1463
    %v1465 = vpop.f32.mrf.mxu0
    %v1466 = vadd.f32 0.0, %v1465
    %v1467 = vpop.f32.mrf.mxu0
    %v1468 = vadd.f32 0.0, %v1467
    %v1469 = vpop.f32.mrf.mxu0
    %v1470 = vadd.f32 0.0, %v1469
    %1471 = vmatprep.mubr.bf16.mxu0 0
    %1472 = vmatmul.mubr.bf16.gmra.mxu0 %v307
    %v1473 = vpop.f32.mrf.mxu0
    %v1474 = vadd.f32 0.0, %v1473
    %v1475 = vpop.f32.mrf.mxu0
    %v1476 = vadd.f32 0.0, %v1475
    %v1477 = vpop.f32.mrf.mxu0
    %v1478 = vadd.f32 0.0, %v1477
    %v1479 = vpop.f32.mrf.mxu0
    %v1480 = vadd.f32 0.0, %v1479
    %1481 = vmatprep.mubr.bf16.mxu0 0
    %1482 = vmatmul.mubr.bf16.gmra.mxu0 %v310
    %v1483 = vpop.f32.mrf.mxu0
    %v1484 = vadd.f32 0.0, %v1483
    %v1485 = vpop.f32.mrf.mxu0
    %v1486 = vadd.f32 0.0, %v1485
    %v1487 = vpop.f32.mrf.mxu0
    %v1488 = vadd.f32 0.0, %v1487
    %v1489 = vpop.f32.mrf.mxu0
    %v1490 = vadd.f32 0.0, %v1489
    %1491 = vdwg.mxu0
    %v1492 = vmax.f32 %v1016, %v1235
    %v1493 = vmax.f32 %v1017, %v1237
    %v1494 = vmax.f32 %v1018, %v1308
    %v1495 = vmax.f32 %v1019, %v1310
    %v1496 = vmax.f32 %v1020, %v1381
    %v1497 = vmax.f32 %v1021, %v1383
    %v1498 = vmax.f32 %v1022, %v1454
    %v1499 = vmax.f32 %v1023, %v1456
    %v1500 = vmax.f32 %v1024, %v1239
    %v1501 = vmax.f32 %v1025, %v1241
    %v1502 = vmax.f32 %v1026, %v1312
    %v1503 = vmax.f32 %v1027, %v1314
    %v1504 = vmax.f32 %v1028, %v1385
    %v1505 = vmax.f32 %v1029, %v1387
    %v1506 = vmax.f32 %v1030, %v1458
    %v1507 = vmax.f32 %v1031, %v1460
    %v1508 = vmax.f32 %v1032, %v1245
    %v1509 = vmax.f32 %v1033, %v1247
    %v1510 = vmax.f32 %v1034, %v1318
    %v1511 = vmax.f32 %v1035, %v1320
    %v1512 = vmax.f32 %v1036, %v1391
    %v1513 = vmax.f32 %v1037, %v1393
    %v1514 = vmax.f32 %v1038, %v1464
    %v1515 = vmax.f32 %v1039, %v1466
    %v1516 = vmax.f32 %v1040, %v1249
    %v1517 = vmax.f32 %v1041, %v1251
    %v1518 = vmax.f32 %v1042, %v1322
    %v1519 = vmax.f32 %v1043, %v1324
    %v1520 = vmax.f32 %v1044, %v1395
    %v1521 = vmax.f32 %v1045, %v1397
    %v1522 = vmax.f32 %v1046, %v1468
    %v1523 = vmax.f32 %v1047, %v1470
    %v1524 = vmax.f32 %v1048, %v1255
    %v1525 = vmax.f32 %v1049, %v1257
    %v1526 = vmax.f32 %v1050, %v1328
    %v1527 = vmax.f32 %v1051, %v1330
    %v1528 = vmax.f32 %v1052, %v1401
    %v1529 = vmax.f32 %v1053, %v1403
    %v1530 = vmax.f32 %v1054, %v1474
    %v1531 = vmax.f32 %v1055, %v1476
    %v1532 = vmax.f32 %v1056, %v1259
    %v1533 = vmax.f32 %v1057, %v1261
    %v1534 = vmax.f32 %v1058, %v1332
    %v1535 = vmax.f32 %v1059, %v1334
    %v1536 = vmax.f32 %v1060, %v1405
    %v1537 = vmax.f32 %v1061, %v1407
    %v1538 = vmax.f32 %v1062, %v1478
    %v1539 = vmax.f32 %v1063, %v1480
    %v1540 = vmax.f32 %v1064, %v1265
    %v1541 = vmax.f32 %v1065, %v1267
    %v1542 = vmax.f32 %v1066, %v1338
    %v1543 = vmax.f32 %v1067, %v1340
    %v1544 = vmax.f32 %v1068, %v1411
    %v1545 = vmax.f32 %v1069, %v1413
    %v1546 = vmax.f32 %v1070, %v1484
    %v1547 = vmax.f32 %v1071, %v1486
    %v1548 = vmax.f32 %v1072, %v1269
    %v1549 = vmax.f32 %v1073, %v1271
    %v1550 = vmax.f32 %v1074, %v1342
    %v1551 = vmax.f32 %v1075, %v1344
    %v1552 = vmax.f32 %v1076, %v1415
    %v1553 = vmax.f32 %v1077, %v1417
    %v1554 = vmax.f32 %v1078, %v1488
    %v1555 = vmax.f32 %v1079, %v1490
    %v1580 = vunpack.c.l.b16 %v75
    %v1581 = vunpack.c.h.b16 %v75
    %v1582 = vunpack.c.l.b16 %v76
    %v1583 = vunpack.c.h.b16 %v76
    %v1584 = vunpack.c.l.b16 %v77
    %v1585 = vunpack.c.h.b16 %v77
    %v1586 = vunpack.c.l.b16 %v78
    %v1587 = vunpack.c.h.b16 %v78
    %v1588 = vunpack.c.l.b16 %v91
    %v1589 = vunpack.c.h.b16 %v91
    %v1590 = vunpack.c.l.b16 %v92
    %v1591 = vunpack.c.h.b16 %v92
    %v1592 = vunpack.c.l.b16 %v93
    %v1593 = vunpack.c.h.b16 %v93
    %v1594 = vunpack.c.l.b16 %v94
    %v1595 = vunpack.c.h.b16 %v94
    %v1596 = vunpack.c.l.b16 %v107
    %v1597 = vunpack.c.h.b16 %v107
    %v1598 = vunpack.c.l.b16 %v108
    %v1599 = vunpack.c.h.b16 %v108
    %v1600 = vunpack.c.l.b16 %v109
    %v1601 = vunpack.c.h.b16 %v109
    %v1602 = vunpack.c.l.b16 %v110
    %v1603 = vunpack.c.h.b16 %v110
    %v1604 = vunpack.c.l.b16 %v123
    %v1605 = vunpack.c.h.b16 %v123
    %v1606 = vunpack.c.l.b16 %v124
    %v1607 = vunpack.c.h.b16 %v124
    %v1608 = vunpack.c.l.b16 %v125
    %v1609 = vunpack.c.h.b16 %v125
    %v1610 = vunpack.c.l.b16 %v126
    %v1611 = vunpack.c.h.b16 %v126
    %v1612 = vunpack.c.l.b16 %v139
    %v1613 = vunpack.c.h.b16 %v139
    %v1614 = vunpack.c.l.b16 %v140
    %v1615 = vunpack.c.h.b16 %v140
    %v1616 = vunpack.c.l.b16 %v141
    %v1617 = vunpack.c.h.b16 %v141
    %v1618 = vunpack.c.l.b16 %v142
    %v1619 = vunpack.c.h.b16 %v142
    %v1620 = vunpack.c.l.b16 %v155
    %v1621 = vunpack.c.h.b16 %v155
    %v1622 = vunpack.c.l.b16 %v156
    %v1623 = vunpack.c.h.b16 %v156
    %v1624 = vunpack.c.l.b16 %v157
    %v1625 = vunpack.c.h.b16 %v157
    %v1626 = vunpack.c.l.b16 %v158
    %v1627 = vunpack.c.h.b16 %v158
    %v1628 = vpack.c.b16 %v1588, %v1580
    %v1629 = vpack.c.b16 %v1589, %v1581
    %v1630 = vpack.c.b16 %v1590, %v1582
    %v1631 = vpack.c.b16 %v1591, %v1583
    %v1632 = vpack.c.b16 %v1592, %v1584
    %v1633 = vpack.c.b16 %v1593, %v1585
    %v1634 = vpack.c.b16 %v1594, %v1586
    %v1635 = vpack.c.b16 %v1595, %v1587
    %v1636 = vpack.c.b16 %v1604, %v1596
    %v1637 = vpack.c.b16 %v1605, %v1597
    %v1638 = vpack.c.b16 %v1606, %v1598
    %v1639 = vpack.c.b16 %v1607, %v1599
    %v1640 = vpack.c.b16 %v1608, %v1600
    %v1641 = vpack.c.b16 %v1609, %v1601
    %v1642 = vpack.c.b16 %v1610, %v1602
    %v1643 = vpack.c.b16 %v1611, %v1603
    %v1644 = vpack.c.b16 %v1620, %v1612
    %v1645 = vpack.c.b16 %v1621, %v1613
    %v1646 = vpack.c.b16 %v1622, %v1614
    %v1647 = vpack.c.b16 %v1623, %v1615
    %v1648 = vpack.c.b16 %v1624, %v1616
    %v1649 = vpack.c.b16 %v1625, %v1617
    %v1650 = vpack.c.b16 %v1626, %v1618
    %v1651 = vpack.c.b16 %v1627, %v1619
    %1676 = vmatprep.subr.bf16.mxu0 0
    %1677 = vmatpush1.bf16.msra.mxu0 0
    %1678 = vmatprep.subr.bf16.mxu0 0
    %1679 = vmatpush1.bf16.msra.mxu0 0
    %1680 = vmatprep.subr.bf16.mxu0 0
    %1681 = vmatpush1.bf16.msra.mxu0 0
    %1682 = vmatprep.subr.bf16.mxu0 0
    %1683 = vmatpush1.bf16.msra.mxu0 0
    %1684 = vmatprep.subr.bf16.mxu0 0
    %1685 = vmatpush1.bf16.msra.mxu0 0
    %1686 = vmatprep.subr.bf16.mxu0 %v1645
    %1687 = vmatpush1.bf16.msra.mxu0 %v1644
    %1688 = vmatprep.subr.bf16.mxu0 %v1637
    %1689 = vmatpush1.bf16.msra.mxu0 %v1636
    %1690 = vmatprep.subr.bf16.mxu0 %v1629
    %1691 = vmatpush1.bf16.msra.mxu0 %v1628
    %1692 = vmatprep.subr.bf16.mxu0 0
    %1693 = vmatpush2.bf16.msra.mxu0 0
    %1694 = vmatprep.subr.bf16.mxu0 0
    %1695 = vmatpush2.bf16.msra.mxu0 0
    %1696 = vmatprep.subr.bf16.mxu0 0
    %1697 = vmatpush2.bf16.msra.mxu0 0
    %1698 = vmatprep.subr.bf16.mxu0 0
    %1699 = vmatpush2.bf16.msra.mxu0 0
    %1700 = vmatprep.subr.bf16.mxu0 0
    %1701 = vmatpush2.bf16.msra.mxu0 0
    %1702 = vmatprep.subr.bf16.mxu0 0
    %1703 = vmatpush2.bf16.msra.mxu0 0
    %1704 = vmatprep.subr.bf16.mxu0 0
    %1705 = vmatpush2.bf16.msra.mxu0 0
    %1706 = vmatprep.subr.bf16.mxu0 0
    %1707 = vmatpush2.bf16.msra.mxu0 0
    %1708 = vmatprep.mubr.bf16.mxu0 0
    %1709 = vmatmul.mubr.bf16.gmra.mxu0 %v301
    %v1710 = vpop.f32.mrf.mxu0
    %v1711 = vadd.f32 0.0, %v1710
    %v1712 = vpop.f32.mrf.mxu0
    %v1713 = vadd.f32 0.0, %v1712
    %v1714 = vpop.f32.mrf.mxu0
    %v1715 = vadd.f32 0.0, %v1714
    %v1716 = vpop.f32.mrf.mxu0
    %v1717 = vadd.f32 0.0, %v1716
    %1718 = vmatprep.mubr.bf16.mxu0 0
    %1719 = vmatmul.mubr.bf16.gmra.mxu0 %v304
    %v1720 = vpop.f32.mrf.mxu0
    %v1721 = vadd.f32 0.0, %v1720
    %v1722 = vpop.f32.mrf.mxu0
    %v1723 = vadd.f32 0.0, %v1722
    %v1724 = vpop.f32.mrf.mxu0
    %v1725 = vadd.f32 0.0, %v1724
    %v1726 = vpop.f32.mrf.mxu0
    %v1727 = vadd.f32 0.0, %v1726
    %1728 = vmatprep.mubr.bf16.mxu0 0
    %1729 = vmatmul.mubr.bf16.gmra.mxu0 %v307
    %v1730 = vpop.f32.mrf.mxu0
    %v1731 = vadd.f32 0.0, %v1730
    %v1732 = vpop.f32.mrf.mxu0
    %v1733 = vadd.f32 0.0, %v1732
    %v1734 = vpop.f32.mrf.mxu0
    %v1735 = vadd.f32 0.0, %v1734
    %v1736 = vpop.f32.mrf.mxu0
    %v1737 = vadd.f32 0.0, %v1736
    %1738 = vmatprep.mubr.bf16.mxu0 0
    %1739 = vmatmul.mubr.bf16.gmra.mxu0 %v310
    %v1740 = vpop.f32.mrf.mxu0
    %v1741 = vadd.f32 0.0, %v1740
    %v1742 = vpop.f32.mrf.mxu0
    %v1743 = vadd.f32 0.0, %v1742
    %v1744 = vpop.f32.mrf.mxu0
    %v1745 = vadd.f32 0.0, %v1744
    %v1746 = vpop.f32.mrf.mxu0
    %v1747 = vadd.f32 0.0, %v1746
    %1748 = vdwg.mxu0
    %1749 = vmatprep.subr.bf16.mxu0 0
    %1750 = vmatpush1.bf16.msra.mxu0 0
    %1751 = vmatprep.subr.bf16.mxu0 0
    %1752 = vmatpush1.bf16.msra.mxu0 0
    %1753 = vmatprep.subr.bf16.mxu0 0
    %1754 = vmatpush1.bf16.msra.mxu0 0
    %1755 = vmatprep.subr.bf16.mxu0 0
    %1756 = vmatpush1.bf16.msra.mxu0 0
    %1757 = vmatprep.subr.bf16.mxu0 0
    %1758 = vmatpush1.bf16.msra.mxu0 0
    %1759 = vmatprep.subr.bf16.mxu0 %v1647
    %1760 = vmatpush1.bf16.msra.mxu0 %v1646
    %1761 = vmatprep.subr.bf16.mxu0 %v1639
    %1762 = vmatpush1.bf16.msra.mxu0 %v1638
    %1763 = vmatprep.subr.bf16.mxu0 %v1631
    %1764 = vmatpush1.bf16.msra.mxu0 %v1630
    %1765 = vmatprep.subr.bf16.mxu0 0
    %1766 = vmatpush2.bf16.msra.mxu0 0
    %1767 = vmatprep.subr.bf16.mxu0 0
    %1768 = vmatpush2.bf16.msra.mxu0 0
    %1769 = vmatprep.subr.bf16.mxu0 0
    %1770 = vmatpush2.bf16.msra.mxu0 0
    %1771 = vmatprep.subr.bf16.mxu0 0
    %1772 = vmatpush2.bf16.msra.mxu0 0
    %1773 = vmatprep.subr.bf16.mxu0 0
    %1774 = vmatpush2.bf16.msra.mxu0 0
    %1775 = vmatprep.subr.bf16.mxu0 0
    %1776 = vmatpush2.bf16.msra.mxu0 0
    %1777 = vmatprep.subr.bf16.mxu0 0
    %1778 = vmatpush2.bf16.msra.mxu0 0
    %1779 = vmatprep.subr.bf16.mxu0 0
    %1780 = vmatpush2.bf16.msra.mxu0 0
    %1781 = vmatprep.mubr.bf16.mxu0 0
    %1782 = vmatmul.mubr.bf16.gmra.mxu0 %v301
    %v1783 = vpop.f32.mrf.mxu0
    %v1784 = vadd.f32 0.0, %v1783
    %v1785 = vpop.f32.mrf.mxu0
    %v1786 = vadd.f32 0.0, %v1785
    %v1787 = vpop.f32.mrf.mxu0
    %v1788 = vadd.f32 0.0, %v1787
    %v1789 = vpop.f32.mrf.mxu0
    %v1790 = vadd.f32 0.0, %v1789
    %1791 = vmatprep.mubr.bf16.mxu0 0
    %1792 = vmatmul.mubr.bf16.gmra.mxu0 %v304
    %v1793 = vpop.f32.mrf.mxu0
    %v1794 = vadd.f32 0.0, %v1793
    %v1795 = vpop.f32.mrf.mxu0
    %v1796 = vadd.f32 0.0, %v1795
    %v1797 = vpop.f32.mrf.mxu0
    %v1798 = vadd.f32 0.0, %v1797
    %v1799 = vpop.f32.mrf.mxu0
    %v1800 = vadd.f32 0.0, %v1799
    %1801 = vmatprep.mubr.bf16.mxu0 0
    %1802 = vmatmul.mubr.bf16.gmra.mxu0 %v307
    %v1803 = vpop.f32.mrf.mxu0
    %v1804 = vadd.f32 0.0, %v1803
    %v1805 = vpop.f32.mrf.mxu0
    %v1806 = vadd.f32 0.0, %v1805
    %v1807 = vpop.f32.mrf.mxu0
    %v1808 = vadd.f32 0.0, %v1807
    %v1809 = vpop.f32.mrf.mxu0
    %v1810 = vadd.f32 0.0, %v1809
    %1811 = vmatprep.mubr.bf16.mxu0 0
    %1812 = vmatmul.mubr.bf16.gmra.mxu0 %v310
    %v1813 = vpop.f32.mrf.mxu0
    %v1814 = vadd.f32 0.0, %v1813
    %v1815 = vpop.f32.mrf.mxu0
    %v1816 = vadd.f32 0.0, %v1815
    %v1817 = vpop.f32.mrf.mxu0
    %v1818 = vadd.f32 0.0, %v1817
    %v1819 = vpop.f32.mrf.mxu0
    %v1820 = vadd.f32 0.0, %v1819
    %1821 = vdwg.mxu0
    %1822 = vmatprep.subr.bf16.mxu0 0
    %1823 = vmatpush1.bf16.msra.mxu0 0
    %1824 = vmatprep.subr.bf16.mxu0 0
    %1825 = vmatpush1.bf16.msra.mxu0 0
    %1826 = vmatprep.subr.bf16.mxu0 0
    %1827 = vmatpush1.bf16.msra.mxu0 0
    %1828 = vmatprep.subr.bf16.mxu0 0
    %1829 = vmatpush1.bf16.msra.mxu0 0
    %1830 = vmatprep.subr.bf16.mxu0 0
    %1831 = vmatpush1.bf16.msra.mxu0 0
    %1832 = vmatprep.subr.bf16.mxu0 %v1649
    %1833 = vmatpush1.bf16.msra.mxu0 %v1648
    %1834 = vmatprep.subr.bf16.mxu0 %v1641
    %1835 = vmatpush1.bf16.msra.mxu0 %v1640
    %1836 = vmatprep.subr.bf16.mxu0 %v1633
    %1837 = vmatpush1.bf16.msra.mxu0 %v1632
    %1838 = vmatprep.subr.bf16.mxu0 0
    %1839 = vmatpush2.bf16.msra.mxu0 0
    %1840 = vmatprep.subr.bf16.mxu0 0
    %1841 = vmatpush2.bf16.msra.mxu0 0
    %1842 = vmatprep.subr.bf16.mxu0 0
    %1843 = vmatpush2.bf16.msra.mxu0 0
    %1844 = vmatprep.subr.bf16.mxu0 0
    %1845 = vmatpush2.bf16.msra.mxu0 0
    %1846 = vmatprep.subr.bf16.mxu0 0
    %1847 = vmatpush2.bf16.msra.mxu0 0
    %1848 = vmatprep.subr.bf16.mxu0 0
    %1849 = vmatpush2.bf16.msra.mxu0 0
    %1850 = vmatprep.subr.bf16.mxu0 0
    %1851 = vmatpush2.bf16.msra.mxu0 0
    %1852 = vmatprep.subr.bf16.mxu0 0
    %1853 = vmatpush2.bf16.msra.mxu0 0
    %1854 = vmatprep.mubr.bf16.mxu0 0
    %1855 = vmatmul.mubr.bf16.gmra.mxu0 %v301
    %v1856 = vpop.f32.mrf.mxu0
    %v1857 = vadd.f32 0.0, %v1856
    %v1858 = vpop.f32.mrf.mxu0
    %v1859 = vadd.f32 0.0, %v1858
    %v1860 = vpop.f32.mrf.mxu0
    %v1861 = vadd.f32 0.0, %v1860
    %v1862 = vpop.f32.mrf.mxu0
    %v1863 = vadd.f32 0.0, %v1862
    %1864 = vmatprep.mubr.bf16.mxu0 0
    %1865 = vmatmul.mubr.bf16.gmra.mxu0 %v304
    %v1866 = vpop.f32.mrf.mxu0
    %v1867 = vadd.f32 0.0, %v1866
    %v1868 = vpop.f32.mrf.mxu0
    %v1869 = vadd.f32 0.0, %v1868
    %v1870 = vpop.f32.mrf.mxu0
    %v1871 = vadd.f32 0.0, %v1870
    %v1872 = vpop.f32.mrf.mxu0
    %v1873 = vadd.f32 0.0, %v1872
    %1874 = vmatprep.mubr.bf16.mxu0 0
    %1875 = vmatmul.mubr.bf16.gmra.mxu0 %v307
    %v1876 = vpop.f32.mrf.mxu0
    %v1877 = vadd.f32 0.0, %v1876
    %v1878 = vpop.f32.mrf.mxu0
    %v1879 = vadd.f32 0.0, %v1878
    %v1880 = vpop.f32.mrf.mxu0
    %v1881 = vadd.f32 0.0, %v1880
    %v1882 = vpop.f32.mrf.mxu0
    %v1883 = vadd.f32 0.0, %v1882
    %1884 = vmatprep.mubr.bf16.mxu0 0
    %1885 = vmatmul.mubr.bf16.gmra.mxu0 %v310
    %v1886 = vpop.f32.mrf.mxu0
    %v1887 = vadd.f32 0.0, %v1886
    %v1888 = vpop.f32.mrf.mxu0
    %v1889 = vadd.f32 0.0, %v1888
    %v1890 = vpop.f32.mrf.mxu0
    %v1891 = vadd.f32 0.0, %v1890
    %v1892 = vpop.f32.mrf.mxu0
    %v1893 = vadd.f32 0.0, %v1892
    %1894 = vdwg.mxu0
    %1895 = vmatprep.subr.bf16.mxu0 0
    %1896 = vmatpush1.bf16.msra.mxu0 0
    %1897 = vmatprep.subr.bf16.mxu0 0
    %1898 = vmatpush1.bf16.msra.mxu0 0
    %1899 = vmatprep.subr.bf16.mxu0 0
    %1900 = vmatpush1.bf16.msra.mxu0 0
    %1901 = vmatprep.subr.bf16.mxu0 0
    %1902 = vmatpush1.bf16.msra.mxu0 0
    %1903 = vmatprep.subr.bf16.mxu0 0
    %1904 = vmatpush1.bf16.msra.mxu0 0
    %1905 = vmatprep.subr.bf16.mxu0 %v1651
    %1906 = vmatpush1.bf16.msra.mxu0 %v1650
    %1907 = vmatprep.subr.bf16.mxu0 %v1643
    %1908 = vmatpush1.bf16.msra.mxu0 %v1642
    %1909 = vmatprep.subr.bf16.mxu0 %v1635
    %1910 = vmatpush1.bf16.msra.mxu0 %v1634
    %1911 = vmatprep.subr.bf16.mxu0 0
    %1912 = vmatpush2.bf16.msra.mxu0 0
    %1913 = vmatprep.subr.bf16.mxu0 0
    %1914 = vmatpush2.bf16.msra.mxu0 0
    %1915 = vmatprep.subr.bf16.mxu0 0
    %1916 = vmatpush2.bf16.msra.mxu0 0
    %1917 = vmatprep.subr.bf16.mxu0 0
    %1918 = vmatpush2.bf16.msra.mxu0 0
    %1919 = vmatprep.subr.bf16.mxu0 0
    %1920 = vmatpush2.bf16.msra.mxu0 0
    %1921 = vmatprep.subr.bf16.mxu0 0
    %1922 = vmatpush2.bf16.msra.mxu0 0
    %1923 = vmatprep.subr.bf16.mxu0 0
    %1924 = vmatpush2.bf16.msra.mxu0 0
    %1925 = vmatprep.subr.bf16.mxu0 0
    %1926 = vmatpush2.bf16.msra.mxu0 0
    %1927 = vmatprep.mubr.bf16.mxu0 0
    %1928 = vmatmul.mubr.bf16.gmra.mxu0 %v301
    %v1929 = vpop.f32.mrf.mxu0
    %v1930 = vadd.f32 0.0, %v1929
    %v1931 = vpop.f32.mrf.mxu0
    %v1932 = vadd.f32 0.0, %v1931
    %v1933 = vpop.f32.mrf.mxu0
    %v1934 = vadd.f32 0.0, %v1933
    %v1935 = vpop.f32.mrf.mxu0
    %v1936 = vadd.f32 0.0, %v1935
    %1937 = vmatprep.mubr.bf16.mxu0 0
    %1938 = vmatmul.mubr.bf16.gmra.mxu0 %v304
    %v1939 = vpop.f32.mrf.mxu0
    %v1940 = vadd.f32 0.0, %v1939
    %v1941 = vpop.f32.mrf.mxu0
    %v1942 = vadd.f32 0.0, %v1941
    %v1943 = vpop.f32.mrf.mxu0
    %v1944 = vadd.f32 0.0, %v1943
    %v1945 = vpop.f32.mrf.mxu0
    %v1946 = vadd.f32 0.0, %v1945
    %1947 = vmatprep.mubr.bf16.mxu0 0
    %1948 = vmatmul.mubr.bf16.gmra.mxu0 %v307
    %v1949 = vpop.f32.mrf.mxu0
    %v1950 = vadd.f32 0.0, %v1949
    %v1951 = vpop.f32.mrf.mxu0
    %v1952 = vadd.f32 0.0, %v1951
    %v1953 = vpop.f32.mrf.mxu0
    %v1954 = vadd.f32 0.0, %v1953
    %v1955 = vpop.f32.mrf.mxu0
    %v1956 = vadd.f32 0.0, %v1955
    %1957 = vmatprep.mubr.bf16.mxu0 0
    %1958 = vmatmul.mubr.bf16.gmra.mxu0 %v310
    %v1959 = vpop.f32.mrf.mxu0
    %v1960 = vadd.f32 0.0, %v1959
    %v1961 = vpop.f32.mrf.mxu0
    %v1962 = vadd.f32 0.0, %v1961
    %v1963 = vpop.f32.mrf.mxu0
    %v1964 = vadd.f32 0.0, %v1963
    %v1965 = vpop.f32.mrf.mxu0
    %v1966 = vadd.f32 0.0, %v1965
    %1967 = vdwg.mxu0
    %v1968 = vmax.f32 %v1492, %v1711
    %v1969 = vmax.f32 %v1493, %v1713
    %v1970 = vmax.f32 %v1494, %v1784
    %v1971 = vmax.f32 %v1495, %v1786
    %v1972 = vmax.f32 %v1496, %v1857
    %v1973 = vmax.f32 %v1497, %v1859
    %v1974 = vmax.f32 %v1498, %v1930
    %v1975 = vmax.f32 %v1499, %v1932
    %v1976 = vmax.f32 %v1500, %v1715
    %v1977 = vmax.f32 %v1501, %v1717
    %v1978 = vmax.f32 %v1502, %v1788
    %v1979 = vmax.f32 %v1503, %v1790
    %v1980 = vmax.f32 %v1504, %v1861
    %v1981 = vmax.f32 %v1505, %v1863
    %v1982 = vmax.f32 %v1506, %v1934
    %v1983 = vmax.f32 %v1507, %v1936
    %v1984 = vmax.f32 %v1508, %v1721
    %v1985 = vmax.f32 %v1509, %v1723
    %v1986 = vmax.f32 %v1510, %v1794
    %v1987 = vmax.f32 %v1511, %v1796
    %v1988 = vmax.f32 %v1512, %v1867
    %v1989 = vmax.f32 %v1513, %v1869
    %v1990 = vmax.f32 %v1514, %v1940
    %v1991 = vmax.f32 %v1515, %v1942
    %v1992 = vmax.f32 %v1516, %v1725
    %v1993 = vmax.f32 %v1517, %v1727
    %v1994 = vmax.f32 %v1518, %v1798
    %v1995 = vmax.f32 %v1519, %v1800
    %v1996 = vmax.f32 %v1520, %v1871
    %v1997 = vmax.f32 %v1521, %v1873
    %v1998 = vmax.f32 %v1522, %v1944
    %v1999 = vmax.f32 %v1523, %v1946
    %v2000 = vmax.f32 %v1524, %v1731
    %v2001 = vmax.f32 %v1525, %v1733
    %v2002 = vmax.f32 %v1526, %v1804
    %v2003 = vmax.f32 %v1527, %v1806
    %v2004 = vmax.f32 %v1528, %v1877
    %v2005 = vmax.f32 %v1529, %v1879
    %v2006 = vmax.f32 %v1530, %v1950
    %v2007 = vmax.f32 %v1531, %v1952
    %v2008 = vmax.f32 %v1532, %v1735
    %v2009 = vmax.f32 %v1533, %v1737
    %v2010 = vmax.f32 %v1534, %v1808
    %v2011 = vmax.f32 %v1535, %v1810
    %v2012 = vmax.f32 %v1536, %v1881
    %v2013 = vmax.f32 %v1537, %v1883
    %v2014 = vmax.f32 %v1538, %v1954
    %v2015 = vmax.f32 %v1539, %v1956
    %v2016 = vmax.f32 %v1540, %v1741
    %v2017 = vmax.f32 %v1541, %v1743
    %v2018 = vmax.f32 %v1542, %v1814
    %v2019 = vmax.f32 %v1543, %v1816
    %v2020 = vmax.f32 %v1544, %v1887
    %v2021 = vmax.f32 %v1545, %v1889
    %v2022 = vmax.f32 %v1546, %v1960
    %v2023 = vmax.f32 %v1547, %v1962
    %v2024 = vmax.f32 %v1548, %v1745
    %v2025 = vmax.f32 %v1549, %v1747
    %v2026 = vmax.f32 %v1550, %v1818
    %v2027 = vmax.f32 %v1551, %v1820
    %v2028 = vmax.f32 %v1552, %v1891
    %v2029 = vmax.f32 %v1553, %v1893
    %v2030 = vmax.f32 %v1554, %v1964
    %v2031 = vmax.f32 %v1555, %v1966
    %2033 = vset.pattern.permute.xlu0 0
    %2034 = vperm.xlu0 %2033, %v42
    %v2035 = vpop.permute.xlu0 %2034
    %2038 = vset.pattern.permute.xlu0 0
    %2039 = vperm.xlu0 %2038, %v43
    %v2040 = vpop.permute.xlu0 %2039
    %2043 = vset.pattern.permute.xlu0 0
    %2044 = vperm.xlu0 %2043, %v44
    %v2045 = vpop.permute.xlu0 %2044
    %2048 = vset.pattern.permute.xlu0 0
    %2049 = vperm.xlu0 %2048, %v45
    %v2050 = vpop.permute.xlu0 %2049
    %2053 = vset.pattern.permute.xlu0 0
    %2054 = vperm.xlu0 %2053, %v46
    %v2055 = vpop.permute.xlu0 %2054
    %2058 = vset.pattern.permute.xlu0 0
    %2059 = vperm.xlu0 %2058, %v47
    %v2060 = vpop.permute.xlu0 %2059
    %2063 = vset.pattern.permute.xlu0 0
    %2064 = vperm.xlu0 %2063, %v48
    %v2065 = vpop.permute.xlu0 %2064
    %2068 = vset.pattern.permute.xlu0 0
    %2069 = vperm.xlu0 %2068, %v49
    %v2070 = vpop.permute.xlu0 %2069
    %v2072 = vadd.f32 %v1968, %v2035
    %v2073 = vadd.f32 %v1969, %v2035
    %v2074 = vadd.f32 %v1970, %v2035
    %v2075 = vadd.f32 %v1971, %v2035
    %v2076 = vadd.f32 %v1972, %v2035
    %v2077 = vadd.f32 %v1973, %v2035
    %v2078 = vadd.f32 %v1974, %v2035
    %v2079 = vadd.f32 %v1975, %v2035
    %v2080 = vadd.f32 %v1976, %v2040
    %v2081 = vadd.f32 %v1977, %v2040
    %v2082 = vadd.f32 %v1978, %v2040
    %v2083 = vadd.f32 %v1979, %v2040
    %v2084 = vadd.f32 %v1980, %v2040
    %v2085 = vadd.f32 %v1981, %v2040
    %v2086 = vadd.f32 %v1982, %v2040
    %v2087 = vadd.f32 %v1983, %v2040
    %v2088 = vadd.f32 %v1984, %v2045
    %v2089 = vadd.f32 %v1985, %v2045
    %v2090 = vadd.f32 %v1986, %v2045
    %v2091 = vadd.f32 %v1987, %v2045
    %v2092 = vadd.f32 %v1988, %v2045
    %v2093 = vadd.f32 %v1989, %v2045
    %v2094 = vadd.f32 %v1990, %v2045
    %v2095 = vadd.f32 %v1991, %v2045
    %v2096 = vadd.f32 %v1992, %v2050
    %v2097 = vadd.f32 %v1993, %v2050
    %v2098 = vadd.f32 %v1994, %v2050
    %v2099 = vadd.f32 %v1995, %v2050
    %v2100 = vadd.f32 %v1996, %v2050
    %v2101 = vadd.f32 %v1997, %v2050
    %v2102 = vadd.f32 %v1998, %v2050
    %v2103 = vadd.f32 %v1999, %v2050
    %v2104 = vadd.f32 %v2000, %v2055
    %v2105 = vadd.f32 %v2001, %v2055
    %v2106 = vadd.f32 %v2002, %v2055
    %v2107 = vadd.f32 %v2003, %v2055
    %v2108 = vadd.f32 %v2004, %v2055
    %v2109 = vadd.f32 %v2005, %v2055
    %v2110 = vadd.f32 %v2006, %v2055
    %v2111 = vadd.f32 %v2007, %v2055
    %v2112 = vadd.f32 %v2008, %v2060
    %v2113 = vadd.f32 %v2009, %v2060
    %v2114 = vadd.f32 %v2010, %v2060
    %v2115 = vadd.f32 %v2011, %v2060
    %v2116 = vadd.f32 %v2012, %v2060
    %v2117 = vadd.f32 %v2013, %v2060
    %v2118 = vadd.f32 %v2014, %v2060
    %v2119 = vadd.f32 %v2015, %v2060
    %v2120 = vadd.f32 %v2016, %v2065
    %v2121 = vadd.f32 %v2017, %v2065
    %v2122 = vadd.f32 %v2018, %v2065
    %v2123 = vadd.f32 %v2019, %v2065
    %v2124 = vadd.f32 %v2020, %v2065
    %v2125 = vadd.f32 %v2021, %v2065
    %v2126 = vadd.f32 %v2022, %v2065
    %v2127 = vadd.f32 %v2023, %v2065
    %v2128 = vadd.f32 %v2024, %v2070
    %v2129 = vadd.f32 %v2025, %v2070
    %v2130 = vadd.f32 %v2026, %v2070
    %v2131 = vadd.f32 %v2027, %v2070
    %v2132 = vadd.f32 %v2028, %v2070
    %v2133 = vadd.f32 %v2029, %v2070
    %v2134 = vadd.f32 %v2030, %v2070
    %v2135 = vadd.f32 %v2031, %v2070
    %v2136 = vmax.f32 %v2072, 0.0
    %v2137 = vmax.f32 %v2073, 0.0
    %v2138 = vmax.f32 %v2074, 0.0
    %v2139 = vmax.f32 %v2075, 0.0
    %v2140 = vmax.f32 %v2076, 0.0
    %v2141 = vmax.f32 %v2077, 0.0
    %v2142 = vmax.f32 %v2078, 0.0
    %v2143 = vmax.f32 %v2079, 0.0
    %v2144 = vmax.f32 %v2080, 0.0
    %v2145 = vmax.f32 %v2081, 0.0
    %v2146 = vmax.f32 %v2082, 0.0
    %v2147 = vmax.f32 %v2083, 0.0
    %v2148 = vmax.f32 %v2084, 0.0
    %v2149 = vmax.f32 %v2085, 0.0
    %v2150 = vmax.f32 %v2086, 0.0
    %v2151 = vmax.f32 %v2087, 0.0
    %v2152 = vmax.f32 %v2088, 0.0
    %v2153 = vmax.f32 %v2089, 0.0
    %v2154 = vmax.f32 %v2090, 0.0
    %v2155 = vmax.f32 %v2091, 0.0
    %v2156 = vmax.f32 %v2092, 0.0
    %v2157 = vmax.f32 %v2093, 0.0
    %v2158 = vmax.f32 %v2094, 0.0
    %v2159 = vmax.f32 %v2095, 0.0
    %v2160 = vmax.f32 %v2096, 0.0
    %v2161 = vmax.f32 %v2097, 0.0
    %v2162 = vmax.f32 %v2098, 0.0
    %v2163 = vmax.f32 %v2099, 0.0
    %v2164 = vmax.f32 %v2100, 0.0
    %v2165 = vmax.f32 %v2101, 0.0
    %v2166 = vmax.f32 %v2102, 0.0
    %v2167 = vmax.f32 %v2103, 0.0
    %v2168 = vmax.f32 %v2104, 0.0
    %v2169 = vmax.f32 %v2105, 0.0
    %v2170 = vmax.f32 %v2106, 0.0
    %v2171 = vmax.f32 %v2107, 0.0
    %v2172 = vmax.f32 %v2108, 0.0
    %v2173 = vmax.f32 %v2109, 0.0
    %v2174 = vmax.f32 %v2110, 0.0
    %v2175 = vmax.f32 %v2111, 0.0
    %v2176 = vmax.f32 %v2112, 0.0
    %v2177 = vmax.f32 %v2113, 0.0
    %v2178 = vmax.f32 %v2114, 0.0
    %v2179 = vmax.f32 %v2115, 0.0
    %v2180 = vmax.f32 %v2116, 0.0
    %v2181 = vmax.f32 %v2117, 0.0
    %v2182 = vmax.f32 %v2118, 0.0
    %v2183 = vmax.f32 %v2119, 0.0
    %v2184 = vmax.f32 %v2120, 0.0
    %v2185 = vmax.f32 %v2121, 0.0
    %v2186 = vmax.f32 %v2122, 0.0
    %v2187 = vmax.f32 %v2123, 0.0
    %v2188 = vmax.f32 %v2124, 0.0
    %v2189 = vmax.f32 %v2125, 0.0
    %v2190 = vmax.f32 %v2126, 0.0
    %v2191 = vmax.f32 %v2127, 0.0
    %v2192 = vmax.f32 %v2128, 0.0
    %v2193 = vmax.f32 %v2129, 0.0
    %v2194 = vmax.f32 %v2130, 0.0
    %v2195 = vmax.f32 %v2131, 0.0
    %v2196 = vmax.f32 %v2132, 0.0
    %v2197 = vmax.f32 %v2133, 0.0
    %v2198 = vmax.f32 %v2134, 0.0
    %v2199 = vmax.f32 %v2135, 0.0
    %v2200 = vpack.c.bf16 %v2144, %v2136
    %v2201 = vpack.c.bf16 %v2145, %v2137
    %v2202 = vpack.c.bf16 %v2146, %v2138
    %v2203 = vpack.c.bf16 %v2147, %v2139
    %v2204 = vpack.c.bf16 %v2148, %v2140
    %v2205 = vpack.c.bf16 %v2149, %v2141
    %v2206 = vpack.c.bf16 %v2150, %v2142
    %v2207 = vpack.c.bf16 %v2151, %v2143
    %v2208 = vpack.c.bf16 %v2160, %v2152
    %v2209 = vpack.c.bf16 %v2161, %v2153
    %v2210 = vpack.c.bf16 %v2162, %v2154
    %v2211 = vpack.c.bf16 %v2163, %v2155
    %v2212 = vpack.c.bf16 %v2164, %v2156
    %v2213 = vpack.c.bf16 %v2165, %v2157
    %v2214 = vpack.c.bf16 %v2166, %v2158
    %v2215 = vpack.c.bf16 %v2167, %v2159
    %v2216 = vpack.c.bf16 %v2176, %v2168
    %v2217 = vpack.c.bf16 %v2177, %v2169
    %v2218 = vpack.c.bf16 %v2178, %v2170
    %v2219 = vpack.c.bf16 %v2179, %v2171
    %v2220 = vpack.c.bf16 %v2180, %v2172
    %v2221 = vpack.c.bf16 %v2181, %v2173
    %v2222 = vpack.c.bf16 %v2182, %v2174
    %v2223 = vpack.c.bf16 %v2183, %v2175
    %v2224 = vpack.c.bf16 %v2192, %v2184
    %v2225 = vpack.c.bf16 %v2193, %v2185
    %v2226 = vpack.c.bf16 %v2194, %v2186
    %v2227 = vpack.c.bf16 %v2195, %v2187
    %v2228 = vpack.c.bf16 %v2196, %v2188
    %v2229 = vpack.c.bf16 %v2197, %v2189
    %v2230 = vpack.c.bf16 %v2198, %v2190
    %v2231 = vpack.c.bf16 %v2199, %v2191
    %v2234 = vunpack.c.l.b16 %v55
    %v2235 = vunpack.c.l.b16 %v56
    %v2236 = vpack.c.b16 %v2235, %v2234
    %vm2237 = vcmask 523264
    %v2239 = vsel %vm2237, %v2236, 0
    %2241 = vmatprep.subr.bf16.mxu0 0
    %2242 = vmatpush1.bf16.msra.mxu0 0
    %2243 = vmatprep.subr.bf16.mxu0 0
    %2244 = vmatpush1.bf16.msra.mxu0 0
    %2245 = vmatprep.subr.bf16.mxu0 0
    %2246 = vmatpush1.bf16.msra.mxu0 0
    %2247 = vmatprep.subr.bf16.mxu0 0
    %2248 = vmatpush1.bf16.msra.mxu0 0
    %2249 = vmatprep.subr.bf16.mxu0 %v2227
    %2250 = vmatpush1.bf16.msra.mxu0 %v2226
    %2251 = vmatprep.subr.bf16.mxu0 %v2219
    %2252 = vmatpush1.bf16.msra.mxu0 %v2218
    %2253 = vmatprep.subr.bf16.mxu0 %v2211
    %2254 = vmatpush1.bf16.msra.mxu0 %v2210
    %2255 = vmatprep.subr.bf16.mxu0 %v2203
    %2256 = vmatpush1.bf16.msra.mxu0 %v2202
    %2257 = vmatprep.subr.bf16.mxu0 0
    %2258 = vmatpush2.bf16.msra.mxu0 0
    %2259 = vmatprep.subr.bf16.mxu0 0
    %2260 = vmatpush2.bf16.msra.mxu0 0
    %2261 = vmatprep.subr.bf16.mxu0 0
    %2262 = vmatpush2.bf16.msra.mxu0 0
    %2263 = vmatprep.subr.bf16.mxu0 0
    %2264 = vmatpush2.bf16.msra.mxu0 0
    %2265 = vmatprep.subr.bf16.mxu0 0
    %2266 = vmatpush2.bf16.msra.mxu0 0
    %2267 = vmatprep.subr.bf16.mxu0 0
    %2268 = vmatpush2.bf16.msra.mxu0 0
    %2269 = vmatprep.subr.bf16.mxu0 0
    %2270 = vmatpush2.bf16.msra.mxu0 0
    %2271 = vmatprep.subr.bf16.mxu0 0
    %2272 = vmatpush2.bf16.msra.mxu0 0
    %2273 = vmatprep.mubr.bf16.mxu0 0
    %2274 = vmatmul.mubr.bf16.gmra.mxu0 %v2239
    %v2275 = vpop.f32.mrf.mxu0
    %v2276 = vadd.f32 0.0, %v2275
    %v2277 = vpop.f32.mrf.mxu0
    %v2278 = vadd.f32 0.0, %v2277
    %v2279 = vpop.f32.mrf.mxu0
    %v2280 = vadd.f32 0.0, %v2279
    %v2281 = vpop.f32.mrf.mxu0
    %v2282 = vadd.f32 0.0, %v2281
    %2283 = vdwg.mxu0
    %v2286 = vunpack.c.l.b16 %v52
    %v2287 = vunpack.c.l.b16 %v53
    %v2288 = vpack.c.b16 %v2287, %v2286
    %v2290 = vsel %vm2237, %v2288, 0
    %2292 = vmatprep.subr.bf16.mxu0 0
    %2293 = vmatpush1.bf16.msra.mxu0 0
    %2294 = vmatprep.subr.bf16.mxu0 0
    %2295 = vmatpush1.bf16.msra.mxu0 0
    %2296 = vmatprep.subr.bf16.mxu0 0
    %2297 = vmatpush1.bf16.msra.mxu0 0
    %2298 = vmatprep.subr.bf16.mxu0 0
    %2299 = vmatpush1.bf16.msra.mxu0 0
    %2300 = vmatprep.subr.bf16.mxu0 %v2225
    %2301 = vmatpush1.bf16.msra.mxu0 %v2224
    %2302 = vmatprep.subr.bf16.mxu0 %v2217
    %2303 = vmatpush1.bf16.msra.mxu0 %v2216
    %2304 = vmatprep.subr.bf16.mxu0 %v2209
    %2305 = vmatpush1.bf16.msra.mxu0 %v2208
    %2306 = vmatprep.subr.bf16.mxu0 %v2201
    %2307 = vmatpush1.bf16.msra.mxu0 %v2200
    %2308 = vmatprep.subr.bf16.mxu0 0
    %2309 = vmatpush2.bf16.msra.mxu0 0
    %2310 = vmatprep.subr.bf16.mxu0 0
    %2311 = vmatpush2.bf16.msra.mxu0 0
    %2312 = vmatprep.subr.bf16.mxu0 0
    %2313 = vmatpush2.bf16.msra.mxu0 0
    %2314 = vmatprep.subr.bf16.mxu0 0
    %2315 = vmatpush2.bf16.msra.mxu0 0
    %2316 = vmatprep.subr.bf16.mxu0 0
    %2317 = vmatpush2.bf16.msra.mxu0 0
    %2318 = vmatprep.subr.bf16.mxu0 0
    %2319 = vmatpush2.bf16.msra.mxu0 0
    %2320 = vmatprep.subr.bf16.mxu0 0
    %2321 = vmatpush2.bf16.msra.mxu0 0
    %2322 = vmatprep.subr.bf16.mxu0 0
    %2323 = vmatpush2.bf16.msra.mxu0 0
    %2324 = vmatprep.mubr.bf16.mxu0 0
    %2325 = vmatmul.mubr.bf16.gmra.mxu0 %v2290
    %v2326 = vpop.f32.mrf.mxu0
    %v2327 = vadd.f32 %v2276, %v2326
    %v2328 = vpop.f32.mrf.mxu0
    %v2329 = vadd.f32 %v2278, %v2328
    %v2330 = vpop.f32.mrf.mxu0
    %v2331 = vadd.f32 %v2280, %v2330
    %v2332 = vpop.f32.mrf.mxu0
    %v2333 = vadd.f32 %v2282, %v2332
    %2334 = vdwg.mxu0
    %v2337 = vunpack.c.l.b16 %v58
    %v2338 = vunpack.c.l.b16 %v59
    %v2339 = vpack.c.b16 %v2338, %v2337
    %v2341 = vsel %vm2237, %v2339, 0
    %2343 = vmatprep.subr.bf16.mxu0 0
    %2344 = vmatpush1.bf16.msra.mxu0 0
    %2345 = vmatprep.subr.bf16.mxu0 0
    %2346 = vmatpush1.bf16.msra.mxu0 0
    %2347 = vmatprep.subr.bf16.mxu0 0
    %2348 = vmatpush1.bf16.msra.mxu0 0
    %2349 = vmatprep.subr.bf16.mxu0 0
    %2350 = vmatpush1.bf16.msra.mxu0 0
    %2351 = vmatprep.subr.bf16.mxu0 %v2229
    %2352 = vmatpush1.bf16.msra.mxu0 %v2228
    %2353 = vmatprep.subr.bf16.mxu0 %v2221
    %2354 = vmatpush1.bf16.msra.mxu0 %v2220
    %2355 = vmatprep.subr.bf16.mxu0 %v2213
    %2356 = vmatpush1.bf16.msra.mxu0 %v2212
    %2357 = vmatprep.subr.bf16.mxu0 %v2205
    %2358 = vmatpush1.bf16.msra.mxu0 %v2204
    %2359 = vmatprep.subr.bf16.mxu0 0
    %2360 = vmatpush2.bf16.msra.mxu0 0
    %2361 = vmatprep.subr.bf16.mxu0 0
    %2362 = vmatpush2.bf16.msra.mxu0 0
    %2363 = vmatprep.subr.bf16.mxu0 0
    %2364 = vmatpush2.bf16.msra.mxu0 0
    %2365 = vmatprep.subr.bf16.mxu0 0
    %2366 = vmatpush2.bf16.msra.mxu0 0
    %2367 = vmatprep.subr.bf16.mxu0 0
    %2368 = vmatpush2.bf16.msra.mxu0 0
    %2369 = vmatprep.subr.bf16.mxu0 0
    %2370 = vmatpush2.bf16.msra.mxu0 0
    %2371 = vmatprep.subr.bf16.mxu0 0
    %2372 = vmatpush2.bf16.msra.mxu0 0
    %2373 = vmatprep.subr.bf16.mxu0 0
    %2374 = vmatpush2.bf16.msra.mxu0 0
    %2375 = vmatprep.mubr.bf16.mxu0 0
    %2376 = vmatmul.mubr.bf16.gmra.mxu0 %v2341
    %v2377 = vpop.f32.mrf.mxu0
    %v2378 = vadd.f32 0.0, %v2377
    %v2379 = vpop.f32.mrf.mxu0
    %v2380 = vadd.f32 0.0, %v2379
    %v2381 = vpop.f32.mrf.mxu0
    %v2382 = vadd.f32 0.0, %v2381
    %v2383 = vpop.f32.mrf.mxu0
    %v2384 = vadd.f32 0.0, %v2383
    %2385 = vdwg.mxu0
    %v2386 = vadd.f32 %v2327, %v2378
    %v2387 = vadd.f32 %v2329, %v2380
    %v2388 = vadd.f32 %v2331, %v2382
    %v2389 = vadd.f32 %v2333, %v2384
    %v2392 = vunpack.c.l.b16 %v61
    %v2393 = vunpack.c.l.b16 %v62
    %v2394 = vpack.c.b16 %v2393, %v2392
    %v2396 = vsel %vm2237, %v2394, 0
    %2398 = vmatprep.subr.bf16.mxu0 0
    %2399 = vmatpush1.bf16.msra.mxu0 0
    %2400 = vmatprep.subr.bf16.mxu0 0
    %2401 = vmatpush1.bf16.msra.mxu0 0
    %2402 = vmatprep.subr.bf16.mxu0 0
    %2403 = vmatpush1.bf16.msra.mxu0 0
    %2404 = vmatprep.subr.bf16.mxu0 0
    %2405 = vmatpush1.bf16.msra.mxu0 0
    %2406 = vmatprep.subr.bf16.mxu0 %v2231
    %2407 = vmatpush1.bf16.msra.mxu0 %v2230
    %2408 = vmatprep.subr.bf16.mxu0 %v2223
    %2409 = vmatpush1.bf16.msra.mxu0 %v2222
    %2410 = vmatprep.subr.bf16.mxu0 %v2215
    %2411 = vmatpush1.bf16.msra.mxu0 %v2214
    %2412 = vmatprep.subr.bf16.mxu0 %v2207
    %2413 = vmatpush1.bf16.msra.mxu0 %v2206
    %2414 = vmatprep.subr.bf16.mxu0 0
    %2415 = vmatpush2.bf16.msra.mxu0 0
    %2416 = vmatprep.subr.bf16.mxu0 0
    %2417 = vmatpush2.bf16.msra.mxu0 0
    %2418 = vmatprep.subr.bf16.mxu0 0
    %2419 = vmatpush2.bf16.msra.mxu0 0
    %2420 = vmatprep.subr.bf16.mxu0 0
    %2421 = vmatpush2.bf16.msra.mxu0 0
    %2422 = vmatprep.subr.bf16.mxu0 0
    %2423 = vmatpush2.bf16.msra.mxu0 0
    %2424 = vmatprep.subr.bf16.mxu0 0
    %2425 = vmatpush2.bf16.msra.mxu0 0
    %2426 = vmatprep.subr.bf16.mxu0 0
    %2427 = vmatpush2.bf16.msra.mxu0 0
    %2428 = vmatprep.subr.bf16.mxu0 0
    %2429 = vmatpush2.bf16.msra.mxu0 0
    %2430 = vmatprep.mubr.bf16.mxu0 0
    %2431 = vmatmul.mubr.bf16.gmra.mxu0 %v2396
    %v2432 = vpop.f32.mrf.mxu0
    %v2433 = vadd.f32 0.0, %v2432
    %v2434 = vpop.f32.mrf.mxu0
    %v2435 = vadd.f32 0.0, %v2434
    %v2436 = vpop.f32.mrf.mxu0
    %v2437 = vadd.f32 0.0, %v2436
    %v2438 = vpop.f32.mrf.mxu0
    %v2439 = vadd.f32 0.0, %v2438
    %2440 = vdwg.mxu0
    %v2441 = vadd.f32 %v2386, %v2433
    %v2442 = vadd.f32 %v2387, %v2435
    %v2443 = vadd.f32 %v2388, %v2437
    %v2444 = vadd.f32 %v2389, %v2439
    %2446 = vset.pattern.permute.xlu0 0
    %2447 = vperm.xlu0 %2446, %v50
    %v2448 = vpop.permute.xlu0 %2447
    %2451 = vset.pattern.permute.xlu0 0
    %2452 = vperm.xlu0 %2451, %v51
    %v2453 = vpop.permute.xlu0 %2452
    %v2455 = vadd.f32 %v2441, %v2448
    %v2456 = vadd.f32 %v2442, %v2448
    %v2457 = vadd.f32 %v2443, %v2453
    %v2458 = vadd.f32 %v2444, %v2453
    %v2459 = vmax.f32 %v2455, 0.0
    %v2460 = vmax.f32 %v2456, 0.0
    %v2461 = vmax.f32 %v2457, 0.0
    %v2462 = vmax.f32 %v2458, 0.0
    %v2463 = vpack.c.bf16 %v2461, %v2459
    %v2464 = vpack.c.bf16 %v2462, %v2460
    %v2467 = vcombine.low %v2463, %v2464
    %v2468 = vcombine.high %v2463, %v2464
    %v2470 = vunpack.c.l.s4 1966171168
    %v2471 = vunpack.c.0.s8 %v2470
    %v2472 = vlaneseq
    %v2473 = vshrl.u32 %v2472, 7
    %v2474 = vsub.s32 %v2471, %v2473
    %v2475 = vrot.slane %v2467, %v2474
    %v2477 = vunpack.c.l.s4 1966171168
    %v2478 = vunpack.c.0.s8 %v2477
    %v2479 = vlaneseq
    %v2480 = vshrl.u32 %v2479, 7
    %v2481 = vsub.s32 %v2478, %v2480
    %v2482 = vrot.slane %v2468, %v2481
    %v2483 = vcombine.high %v2475, %v2475
    %v2484 = vcombine.high %v2482, %v2482
    %v2486 = vunpack.c.l.s4 1966171168
    %v2487 = vunpack.c.0.s8 %v2486
    %v2488 = vlaneseq
    %v2489 = vshrl.u32 %v2488, 7
    %v2490 = vsub.s32 %v2487, %v2489
    %v2491 = vrot.slane %v2475, %v2490
    %v2493 = vunpack.c.l.s4 1966171168
    %v2494 = vunpack.c.0.s8 %v2493
    %v2495 = vlaneseq
    %v2496 = vshrl.u32 %v2495, 7
    %v2497 = vsub.s32 %v2494, %v2496
    %v2498 = vrot.slane %v2482, %v2497
    %v2500 = vunpack.c.l.s4 1966171168
    %v2501 = vunpack.c.0.s8 %v2500
    %v2502 = vlaneseq
    %v2503 = vshrl.u32 %v2502, 7
    %v2504 = vsub.s32 %v2501, %v2503
    %v2505 = vrot.slane %v2483, %v2504
    %v2507 = vunpack.c.l.s4 1966171168
    %v2508 = vunpack.c.0.s8 %v2507
    %v2509 = vlaneseq
    %v2510 = vshrl.u32 %v2509, 7
    %v2511 = vsub.s32 %v2508, %v2510
    %v2512 = vrot.slane %v2484, %v2511
    %v2513 = vcombine.high %v2491, %v2491
    %v2514 = vcombine.high %v2498, %v2498
    %v2515 = vcombine.high %v2505, %v2505
    %v2516 = vcombine.high %v2512, %v2512
    %v2517 = vunpack.i.l.s16 %v2491
    %v2518 = vunpack.i.h.s16 %v2491
    %v2519 = vunpack.i.l.s16 %v2505
    %v2520 = vunpack.i.h.s16 %v2505
    %v2521 = vunpack.i.l.s16 %v2513
    %v2522 = vunpack.i.h.s16 %v2513
    %v2523 = vunpack.i.l.s16 %v2515
    %v2524 = vunpack.i.h.s16 %v2515
    %v2525 = vunpack.i.l.s16 %v2498
    %v2526 = vunpack.i.h.s16 %v2498
    %v2527 = vunpack.i.l.s16 %v2512
    %v2528 = vunpack.i.h.s16 %v2512
    %v2529 = vunpack.i.l.s16 %v2514
    %v2530 = vunpack.i.h.s16 %v2514
    %v2531 = vunpack.i.l.s16 %v2516
    %v2532 = vunpack.i.h.s16 %v2516
    %v2533 = vpack.i.b16 %v2517, %v2517
    %v2534 = vpack.i.b16 %v2518, %v2518
    %v2535 = vpack.i.b16 %v2519, %v2519
    %v2536 = vpack.i.b16 %v2520, %v2520
    %v2537 = vpack.i.b16 %v2521, %v2521
    %v2538 = vpack.i.b16 %v2522, %v2522
    %v2539 = vpack.i.b16 %v2523, %v2523
    %v2540 = vpack.i.b16 %v2524, %v2524
    %v2541 = vpack.i.b16 %v2525, %v2525
    %v2542 = vpack.i.b16 %v2526, %v2526
    %v2543 = vpack.i.b16 %v2527, %v2527
    %v2544 = vpack.i.b16 %v2528, %v2528
    %v2545 = vpack.i.b16 %v2529, %v2529
    %v2546 = vpack.i.b16 %v2530, %v2530
    %v2547 = vpack.i.b16 %v2531, %v2531
    %v2548 = vpack.i.b16 %v2532, %v2532
    %vm2565 = vcmask 1040384
    %vm2566 = vsmask.f32 256
    %vm2567 = vmand %vm2565, %vm2566
    %vm2568 = vcmask 1041409
    %vm2569 = vsmask.f32 1280
    %vm2570 = vmand %vm2568, %vm2569
    %vm2571 = vmor %vm2570, %vm2567
    %v2572 = vld [vmem:[#allocation2] sm:$0x3]
    %v2573 = vsel %vm2571, %v2533, %v2572
    %2574 = vst [vmem:[#allocation2] sm:$0x3] %v2573
    %v2575 = vld [vmem:[#allocation2 + $0x2] sm:$0x3]
    %v2576 = vsel %vm2571, %v2534, %v2575
    %2577 = vst [vmem:[#allocation2 + $0x2] sm:$0x3] %v2576
    %v2578 = vld [vmem:[#allocation2 + $0x4] sm:$0x3]
    %v2579 = vsel %vm2571, %v2535, %v2578
    %2580 = vst [vmem:[#allocation2 + $0x4] sm:$0x3] %v2579
    %v2581 = vld [vmem:[#allocation2 + $0x6] sm:$0x3]
    %v2582 = vsel %vm2571, %v2536, %v2581
    %2583 = vst [vmem:[#allocation2 + $0x6] sm:$0x3] %v2582
    %v2584 = vld [vmem:[#allocation2 + $0x8] sm:$0x3]
    %v2585 = vsel %vm2571, %v2537, %v2584
    %2586 = vst [vmem:[#allocation2 + $0x8] sm:$0x3] %v2585
    %v2587 = vld [vmem:[#allocation2 + $0xa] sm:$0x3]
    %v2588 = vsel %vm2571, %v2538, %v2587
    %2589 = vst [vmem:[#allocation2 + $0xa] sm:$0x3] %v2588
    %v2590 = vld [vmem:[#allocation2 + $0xc] sm:$0x3]
    %v2591 = vsel %vm2571, %v2539, %v2590
    %2592 = vst [vmem:[#allocation2 + $0xc] sm:$0x3] %v2591
    %v2593 = vld [vmem:[#allocation2 + $0xe] sm:$0x3]
    %v2594 = vsel %vm2571, %v2540, %v2593
    %2595 = vst [vmem:[#allocation2 + $0xe] sm:$0x3] %v2594
    %v2596 = vld [vmem:[#allocation2 + $0x10] sm:$0x3]
    %v2597 = vsel %vm2571, %v2541, %v2596
    %2598 = vst [vmem:[#allocation2 + $0x10] sm:$0x3] %v2597
    %v2599 = vld [vmem:[#allocation2 + $0x12] sm:$0x3]
    %v2600 = vsel %vm2571, %v2542, %v2599
    %2601 = vst [vmem:[#allocation2 + $0x12] sm:$0x3] %v2600
    %v2602 = vld [vmem:[#allocation2 + $0x14] sm:$0x3]
    %v2603 = vsel %vm2571, %v2543, %v2602
    %2604 = vst [vmem:[#allocation2 + $0x14] sm:$0x3] %v2603
    %v2605 = vld [vmem:[#allocation2 + $0x16] sm:$0x3]
    %v2606 = vsel %vm2571, %v2544, %v2605
    %2607 = vst [vmem:[#allocation2 + $0x16] sm:$0x3] %v2606
    %v2608 = vld [vmem:[#allocation2 + $0x18] sm:$0x3]
    %v2609 = vsel %vm2571, %v2545, %v2608
    %2610 = vst [vmem:[#allocation2 + $0x18] sm:$0x3] %v2609
    %v2611 = vld [vmem:[#allocation2 + $0x1a] sm:$0x3]
    %v2612 = vsel %vm2571, %v2546, %v2611
    %2613 = vst [vmem:[#allocation2 + $0x1a] sm:$0x3] %v2612
    %v2614 = vld [vmem:[#allocation2 + $0x1c] sm:$0x3]
    %v2615 = vsel %vm2571, %v2547, %v2614
    %2616 = vst [vmem:[#allocation2 + $0x1c] sm:$0x3] %v2615
    %v2617 = vld [vmem:[#allocation2 + $0x1e] sm:$0x3]
    %v2618 = vsel %vm2571, %v2548, %v2617
    %2619 = vst [vmem:[#allocation2 + $0x1e] sm:$0x3] %v2618
    %s2620 = scalar_lea.vmem %s0, 768
    %v2621 = vld [vmem:[%s2620] sm:$0xff]
    %v2622 = vld [vmem:[%s2620 + $0x8] sm:$0xff]
    %v2623 = vld [vmem:[%s2620 + $0x10] sm:$0xff]
    %v2624 = vld [vmem:[%s2620 + $0x18] sm:$0xff]
    %v2625 = vld [vmem:[%s2620 + $0x20] sm:$0xff]
    %v2626 = vld [vmem:[%s2620 + $0x28] sm:$0xff]
    %v2627 = vld [vmem:[%s2620 + $0x30] sm:$0xff]
    %v2628 = vld [vmem:[%s2620 + $0x38] sm:$0xff]
    %v2629 = vld [vmem:[%s2620 + $0x40] sm:$0xff]
    %v2630 = vld [vmem:[%s2620 + $0x48] sm:$0xff]
    %v2631 = vld [vmem:[%s2620 + $0x50] sm:$0xff]
    %v2632 = vld [vmem:[%s2620 + $0x58] sm:$0xff]
    %v2633 = vld [vmem:[%s2620 + $0x60] sm:$0xff]
    %v2634 = vld [vmem:[%s2620 + $0x68] sm:$0xff]
    %v2635 = vld [vmem:[%s2620 + $0x70] sm:$0xff]
    %v2636 = vld [vmem:[%s2620 + $0x78] sm:$0xff]
    %v2637 = vld [vmem:[%s2620 + $0x80] sm:$0xff]
    %v2638 = vld [vmem:[%s2620 + $0x88] sm:$0xff]
    %v2639 = vld [vmem:[%s2620 + $0x90] sm:$0xff]
    %v2640 = vld [vmem:[%s2620 + $0x98] sm:$0xff]
    %v2641 = vld [vmem:[%s2620 + $0xa0] sm:$0xff]
    %v2642 = vld [vmem:[%s2620 + $0xa8] sm:$0xff]
    %v2643 = vld [vmem:[%s2620 + $0xb0] sm:$0xff]
    %v2644 = vld [vmem:[%s2620 + $0xb8] sm:$0xff]
    %v2645 = vld [vmem:[%s2620 + $0xc0] sm:$0xff]
    %v2646 = vld [vmem:[%s2620 + $0xc8] sm:$0xff]
    %v2647 = vld [vmem:[%s2620 + $0xd0] sm:$0xff]
    %v2648 = vld [vmem:[%s2620 + $0xd8] sm:$0xff]
    %v2649 = vld [vmem:[%s2620 + $0xe0] sm:$0xff]
    %v2650 = vld [vmem:[%s2620 + $0xe8] sm:$0xff]
    %v2651 = vld [vmem:[%s2620 + $0xf0] sm:$0xff]
    %v2652 = vld [vmem:[%s2620 + $0xf8] sm:$0xff]
    %v2653 = vld [vmem:[%s2620 + $0x100] sm:$0xff]
    %v2654 = vld [vmem:[%s2620 + $0x108] sm:$0xff]
    %v2655 = vld [vmem:[%s2620 + $0x110] sm:$0xff]
    %v2656 = vld [vmem:[%s2620 + $0x118] sm:$0xff]
    %v2657 = vld [vmem:[%s2620 + $0x120] sm:$0xff]
    %v2658 = vld [vmem:[%s2620 + $0x128] sm:$0xff]
    %v2659 = vld [vmem:[%s2620 + $0x130] sm:$0xff]
    %v2660 = vld [vmem:[%s2620 + $0x138] sm:$0xff]
    %v2661 = vld [vmem:[%s2620 + $0x140] sm:$0xff]
    %v2662 = vld [vmem:[%s2620 + $0x148] sm:$0xff]
    %v2663 = vld [vmem:[%s2620 + $0x150] sm:$0xff]
    %v2664 = vld [vmem:[%s2620 + $0x158] sm:$0xff]
    %v2665 = vld [vmem:[%s2620 + $0x160] sm:$0xff]
    %v2666 = vld [vmem:[%s2620 + $0x168] sm:$0xff]
    %v2667 = vld [vmem:[%s2620 + $0x170] sm:$0xff]
    %v2668 = vld [vmem:[%s2620 + $0x178] sm:$0xff]
    %v2669 = vld [vmem:[%s2620 + $0x180] sm:$0xff]
    %v2670 = vld [vmem:[%s2620 + $0x188] sm:$0xff]
    %v2671 = vld [vmem:[%s2620 + $0x190] sm:$0xff]
    %v2672 = vld [vmem:[%s2620 + $0x198] sm:$0xff]
    %v2673 = vld [vmem:[%s2620 + $0x1a0] sm:$0xff]
    %v2674 = vld [vmem:[%s2620 + $0x1a8] sm:$0xff]
    %v2675 = vld [vmem:[%s2620 + $0x1b0] sm:$0xff]
    %v2676 = vld [vmem:[%s2620 + $0x1b8] sm:$0xff]
    %v2677 = vld [vmem:[%s2620 + $0x1c0] sm:$0xff]
    %v2678 = vld [vmem:[%s2620 + $0x1c8] sm:$0xff]
    %v2679 = vld [vmem:[%s2620 + $0x1d0] sm:$0xff]
    %v2680 = vld [vmem:[%s2620 + $0x1d8] sm:$0xff]
    %v2681 = vld [vmem:[%s2620 + $0x1e0] sm:$0xff]
    %v2682 = vld [vmem:[%s2620 + $0x1e8] sm:$0xff]
    %v2683 = vld [vmem:[%s2620 + $0x1f0] sm:$0xff]
    %v2684 = vld [vmem:[%s2620 + $0x1f8] sm:$0xff]
    %v2685 = vld [vmem:[%s2620 + $0x200] sm:$0xff]
    %v2686 = vld [vmem:[%s2620 + $0x208] sm:$0xff]
    %v2687 = vld [vmem:[%s2620 + $0x210] sm:$0xff]
    %v2688 = vld [vmem:[%s2620 + $0x218] sm:$0xff]
    %v2689 = vld [vmem:[%s2620 + $0x220] sm:$0xff]
    %v2690 = vld [vmem:[%s2620 + $0x228] sm:$0xff]
    %v2691 = vld [vmem:[%s2620 + $0x230] sm:$0xff]
    %v2692 = vld [vmem:[%s2620 + $0x238] sm:$0xff]
    %v2693 = vld [vmem:[%s2620 + $0x240] sm:$0xff]
    %v2694 = vld [vmem:[%s2620 + $0x248] sm:$0xff]
    %v2695 = vld [vmem:[%s2620 + $0x250] sm:$0xff]
    %v2696 = vld [vmem:[%s2620 + $0x258] sm:$0xff]
    %v2697 = vld [vmem:[%s2620 + $0x260] sm:$0xff]
    %v2698 = vld [vmem:[%s2620 + $0x268] sm:$0xff]
    %v2699 = vld [vmem:[%s2620 + $0x270] sm:$0xff]
    %v2700 = vld [vmem:[%s2620 + $0x278] sm:$0xff]
    %v2701 = vld [vmem:[%s2620 + $0x280] sm:$0xff]
    %v2702 = vld [vmem:[%s2620 + $0x288] sm:$0xff]
    %v2703 = vld [vmem:[%s2620 + $0x290] sm:$0xff]
    %v2704 = vld [vmem:[%s2620 + $0x298] sm:$0xff]
    %v2705 = vld [vmem:[%s2620 + $0x2a0] sm:$0xff]
    %v2706 = vld [vmem:[%s2620 + $0x2a8] sm:$0xff]
    %v2707 = vld [vmem:[%s2620 + $0x2b0] sm:$0xff]
    %v2708 = vld [vmem:[%s2620 + $0x2b8] sm:$0xff]
    %v2709 = vld [vmem:[%s2620 + $0x2c0] sm:$0xff]
    %v2710 = vld [vmem:[%s2620 + $0x2c8] sm:$0xff]
    %v2711 = vld [vmem:[%s2620 + $0x2d0] sm:$0xff]
    %v2712 = vld [vmem:[%s2620 + $0x2d8] sm:$0xff]
    %v2713 = vld [vmem:[%s2620 + $0x2e0] sm:$0xff]
    %v2714 = vld [vmem:[%s2620 + $0x2e8] sm:$0xff]
    %v2715 = vld [vmem:[%s2620 + $0x2f0] sm:$0xff]
    %v2716 = vld [vmem:[%s2620 + $0x2f8] sm:$0xff]
    %v2741 = vunpack.c.l.b16 %v2621
    %v2742 = vunpack.c.h.b16 %v2621
    %v2743 = vunpack.c.l.b16 %v2622
    %v2744 = vunpack.c.h.b16 %v2622
    %v2745 = vunpack.c.l.b16 %v2623
    %v2746 = vunpack.c.h.b16 %v2623
    %v2747 = vunpack.c.l.b16 %v2624
    %v2748 = vunpack.c.h.b16 %v2624
    %v2749 = vunpack.c.l.b16 %v2637
    %v2750 = vunpack.c.h.b16 %v2637
    %v2751 = vunpack.c.l.b16 %v2638
    %v2752 = vunpack.c.h.b16 %v2638
    %v2753 = vunpack.c.l.b16 %v2639
    %v2754 = vunpack.c.h.b16 %v2639
    %v2755 = vunpack.c.l.b16 %v2640
    %v2756 = vunpack.c.h.b16 %v2640
    %v2757 = vunpack.c.l.b16 %v2653
    %v2758 = vunpack.c.h.b16 %v2653
    %v2759 = vunpack.c.l.b16 %v2654
    %v2760 = vunpack.c.h.b16 %v2654
    %v2761 = vunpack.c.l.b16 %v2655
    %v2762 = vunpack.c.h.b16 %v2655
    %v2763 = vunpack.c.l.b16 %v2656
    %v2764 = vunpack.c.h.b16 %v2656
    %v2765 = vunpack.c.l.b16 %v2669
    %v2766 = vunpack.c.h.b16 %v2669
    %v2767 = vunpack.c.l.b16 %v2670
    %v2768 = vunpack.c.h.b16 %v2670
    %v2769 = vunpack.c.l.b16 %v2671
    %v2770 = vunpack.c.h.b16 %v2671
    %v2771 = vunpack.c.l.b16 %v2672
    %v2772 = vunpack.c.h.b16 %v2672
    %v2773 = vunpack.c.l.b16 %v2685
    %v2774 = vunpack.c.h.b16 %v2685
    %v2775 = vunpack.c.l.b16 %v2686
    %v2776 = vunpack.c.h.b16 %v2686
    %v2777 = vunpack.c.l.b16 %v2687
    %v2778 = vunpack.c.h.b16 %v2687
    %v2779 = vunpack.c.l.b16 %v2688
    %v2780 = vunpack.c.h.b16 %v2688
    %v2781 = vunpack.c.l.b16 %v2701
    %v2782 = vunpack.c.h.b16 %v2701
    %v2783 = vunpack.c.l.b16 %v2702
    %v2784 = vunpack.c.h.b16 %v2702
    %v2785 = vunpack.c.l.b16 %v2703
    %v2786 = vunpack.c.h.b16 %v2703
    %v2787 = vunpack.c.l.b16 %v2704
    %v2788 = vunpack.c.h.b16 %v2704
    %v2789 = vpack.c.b16 %v2749, %v2741
    %v2790 = vpack.c.b16 %v2750, %v2742
    %v2791 = vpack.c.b16 %v2751, %v2743
    %v2792 = vpack.c.b16 %v2752, %v2744
    %v2793 = vpack.c.b16 %v2753, %v2745
    %v2794 = vpack.c.b16 %v2754, %v2746
    %v2795 = vpack.c.b16 %v2755, %v2747
    %v2796 = vpack.c.b16 %v2756, %v2748
    %v2797 = vpack.c.b16 %v2765, %v2757
    %v2798 = vpack.c.b16 %v2766, %v2758
    %v2799 = vpack.c.b16 %v2767, %v2759
    %v2800 = vpack.c.b16 %v2768, %v2760
    %v2801 = vpack.c.b16 %v2769, %v2761
    %v2802 = vpack.c.b16 %v2770, %v2762
    %v2803 = vpack.c.b16 %v2771, %v2763
    %v2804 = vpack.c.b16 %v2772, %v2764
    %v2805 = vpack.c.b16 %v2781, %v2773
    %v2806 = vpack.c.b16 %v2782, %v2774
    %v2807 = vpack.c.b16 %v2783, %v2775
    %v2808 = vpack.c.b16 %v2784, %v2776
    %v2809 = vpack.c.b16 %v2785, %v2777
    %v2810 = vpack.c.b16 %v2786, %v2778
    %v2811 = vpack.c.b16 %v2787, %v2779
    %v2812 = vpack.c.b16 %v2788, %v2780
    %2837 = vmatprep.subr.bf16.mxu0 0
    %2838 = vmatpush1.bf16.msra.mxu0 0
    %2839 = vmatprep.subr.bf16.mxu0 0
    %2840 = vmatpush1.bf16.msra.mxu0 0
    %2841 = vmatprep.subr.bf16.mxu0 0
    %2842 = vmatpush1.bf16.msra.mxu0 0
    %2843 = vmatprep.subr.bf16.mxu0 0
    %2844 = vmatpush1.bf16.msra.mxu0 0
    %2845 = vmatprep.subr.bf16.mxu0 0
    %2846 = vmatpush1.bf16.msra.mxu0 0
    %2847 = vmatprep.subr.bf16.mxu0 %v2806
    %2848 = vmatpush1.bf16.msra.mxu0 %v2805
    %2849 = vmatprep.subr.bf16.mxu0 %v2798
    %2850 = vmatpush1.bf16.msra.mxu0 %v2797
    %2851 = vmatprep.subr.bf16.mxu0 %v2790
    %2852 = vmatpush1.bf16.msra.mxu0 %v2789
    %2853 = vmatprep.subr.bf16.mxu0 0
    %2854 = vmatpush2.bf16.msra.mxu0 0
    %2855 = vmatprep.subr.bf16.mxu0 0
    %2856 = vmatpush2.bf16.msra.mxu0 0
    %2857 = vmatprep.subr.bf16.mxu0 0
    %2858 = vmatpush2.bf16.msra.mxu0 0
    %2859 = vmatprep.subr.bf16.mxu0 0
    %2860 = vmatpush2.bf16.msra.mxu0 0
    %2861 = vmatprep.subr.bf16.mxu0 0
    %2862 = vmatpush2.bf16.msra.mxu0 0
    %2863 = vmatprep.subr.bf16.mxu0 0
    %2864 = vmatpush2.bf16.msra.mxu0 0
    %2865 = vmatprep.subr.bf16.mxu0 0
    %2866 = vmatpush2.bf16.msra.mxu0 0
    %2867 = vmatprep.subr.bf16.mxu0 0
    %2868 = vmatpush2.bf16.msra.mxu0 0
    %2869 = vmatprep.mubr.bf16.mxu0 0
    %2870 = vmatmul.mubr.bf16.gmra.mxu0 %v301
    %v2871 = vpop.f32.mrf.mxu0
    %v2872 = vadd.f32 0.0, %v2871
    %v2873 = vpop.f32.mrf.mxu0
    %v2874 = vadd.f32 0.0, %v2873
    %v2875 = vpop.f32.mrf.mxu0
    %v2876 = vadd.f32 0.0, %v2875
    %v2877 = vpop.f32.mrf.mxu0
    %v2878 = vadd.f32 0.0, %v2877
    %2879 = vmatprep.mubr.bf16.mxu0 0
    %2880 = vmatmul.mubr.bf16.gmra.mxu0 %v304
    %v2881 = vpop.f32.mrf.mxu0
    %v2882 = vadd.f32 0.0, %v2881
    %v2883 = vpop.f32.mrf.mxu0
    %v2884 = vadd.f32 0.0, %v2883
    %v2885 = vpop.f32.mrf.mxu0
    %v2886 = vadd.f32 0.0, %v2885
    %v2887 = vpop.f32.mrf.mxu0
    %v2888 = vadd.f32 0.0, %v2887
    %2889 = vmatprep.mubr.bf16.mxu0 0
    %2890 = vmatmul.mubr.bf16.gmra.mxu0 %v307
    %v2891 = vpop.f32.mrf.mxu0
    %v2892 = vadd.f32 0.0, %v2891
    %v2893 = vpop.f32.mrf.mxu0
    %v2894 = vadd.f32 0.0, %v2893
    %v2895 = vpop.f32.mrf.mxu0
    %v2896 = vadd.f32 0.0, %v2895
    %v2897 = vpop.f32.mrf.mxu0
    %v2898 = vadd.f32 0.0, %v2897
    %2899 = vmatprep.mubr.bf16.mxu0 0
    %2900 = vmatmul.mubr.bf16.gmra.mxu0 %v310
    %v2901 = vpop.f32.mrf.mxu0
    %v2902 = vadd.f32 0.0, %v2901
    %v2903 = vpop.f32.mrf.mxu0
    %v2904 = vadd.f32 0.0, %v2903
    %v2905 = vpop.f32.mrf.mxu0
    %v2906 = vadd.f32 0.0, %v2905
    %v2907 = vpop.f32.mrf.mxu0
    %v2908 = vadd.f32 0.0, %v2907
    %2909 = vdwg.mxu0
    %2910 = vmatprep.subr.bf16.mxu0 0
    %2911 = vmatpush1.bf16.msra.mxu0 0
    %2912 = vmatprep.subr.bf16.mxu0 0
    %2913 = vmatpush1.bf16.msra.mxu0 0
    %2914 = vmatprep.subr.bf16.mxu0 0
    %2915 = vmatpush1.bf16.msra.mxu0 0
    %2916 = vmatprep.subr.bf16.mxu0 0
    %2917 = vmatpush1.bf16.msra.mxu0 0
    %2918 = vmatprep.subr.bf16.mxu0 0
    %2919 = vmatpush1.bf16.msra.mxu0 0
    %2920 = vmatprep.subr.bf16.mxu0 %v2808
    %2921 = vmatpush1.bf16.msra.mxu0 %v2807
    %2922 = vmatprep.subr.bf16.mxu0 %v2800
    %2923 = vmatpush1.bf16.msra.mxu0 %v2799
    %2924 = vmatprep.subr.bf16.mxu0 %v2792
    %2925 = vmatpush1.bf16.msra.mxu0 %v2791
    %2926 = vmatprep.subr.bf16.mxu0 0
    %2927 = vmatpush2.bf16.msra.mxu0 0
    %2928 = vmatprep.subr.bf16.mxu0 0
    %2929 = vmatpush2.bf16.msra.mxu0 0
    %2930 = vmatprep.subr.bf16.mxu0 0
    %2931 = vmatpush2.bf16.msra.mxu0 0
    %2932 = vmatprep.subr.bf16.mxu0 0
    %2933 = vmatpush2.bf16.msra.mxu0 0
    %2934 = vmatprep.subr.bf16.mxu0 0
    %2935 = vmatpush2.bf16.msra.mxu0 0
    %2936 = vmatprep.subr.bf16.mxu0 0
    %2937 = vmatpush2.bf16.msra.mxu0 0
    %2938 = vmatprep.subr.bf16.mxu0 0
    %2939 = vmatpush2.bf16.msra.mxu0 0
    %2940 = vmatprep.subr.bf16.mxu0 0
    %2941 = vmatpush2.bf16.msra.mxu0 0
    %2942 = vmatprep.mubr.bf16.mxu0 0
    %2943 = vmatmul.mubr.bf16.gmra.mxu0 %v301
    %v2944 = vpop.f32.mrf.mxu0
    %v2945 = vadd.f32 0.0, %v2944
    %v2946 = vpop.f32.mrf.mxu0
    %v2947 = vadd.f32 0.0, %v2946
    %v2948 = vpop.f32.mrf.mxu0
    %v2949 = vadd.f32 0.0, %v2948
    %v2950 = vpop.f32.mrf.mxu0
    %v2951 = vadd.f32 0.0, %v2950
    %2952 = vmatprep.mubr.bf16.mxu0 0
    %2953 = vmatmul.mubr.bf16.gmra.mxu0 %v304
    %v2954 = vpop.f32.mrf.mxu0
    %v2955 = vadd.f32 0.0, %v2954
    %v2956 = vpop.f32.mrf.mxu0
    %v2957 = vadd.f32 0.0, %v2956
    %v2958 = vpop.f32.mrf.mxu0
    %v2959 = vadd.f32 0.0, %v2958
    %v2960 = vpop.f32.mrf.mxu0
    %v2961 = vadd.f32 0.0, %v2960
    %2962 = vmatprep.mubr.bf16.mxu0 0
    %2963 = vmatmul.mubr.bf16.gmra.mxu0 %v307
    %v2964 = vpop.f32.mrf.mxu0
    %v2965 = vadd.f32 0.0, %v2964
    %v2966 = vpop.f32.mrf.mxu0
    %v2967 = vadd.f32 0.0, %v2966
    %v2968 = vpop.f32.mrf.mxu0
    %v2969 = vadd.f32 0.0, %v2968
    %v2970 = vpop.f32.mrf.mxu0
    %v2971 = vadd.f32 0.0, %v2970
    %2972 = vmatprep.mubr.bf16.mxu0 0
    %2973 = vmatmul.mubr.bf16.gmra.mxu0 %v310
    %v2974 = vpop.f32.mrf.mxu0
    %v2975 = vadd.f32 0.0, %v2974
    %v2976 = vpop.f32.mrf.mxu0
    %v2977 = vadd.f32 0.0, %v2976
    %v2978 = vpop.f32.mrf.mxu0
    %v2979 = vadd.f32 0.0, %v2978
    %v2980 = vpop.f32.mrf.mxu0
    %v2981 = vadd.f32 0.0, %v2980
    %2982 = vdwg.mxu0
    %2983 = vmatprep.subr.bf16.mxu0 0
    %2984 = vmatpush1.bf16.msra.mxu0 0
    %2985 = vmatprep.subr.bf16.mxu0 0
    %2986 = vmatpush1.bf16.msra.mxu0 0
    %2987 = vmatprep.subr.bf16.mxu0 0
    %2988 = vmatpush1.bf16.msra.mxu0 0
    %2989 = vmatprep.subr.bf16.mxu0 0
    %2990 = vmatpush1.bf16.msra.mxu0 0
    %2991 = vmatprep.subr.bf16.mxu0 0
    %2992 = vmatpush1.bf16.msra.mxu0 0
    %2993 = vmatprep.subr.bf16.mxu0 %v2810
    %2994 = vmatpush1.bf16.msra.mxu0 %v2809
    %2995 = vmatprep.subr.bf16.mxu0 %v2802
    %2996 = vmatpush1.bf16.msra.mxu0 %v2801
    %2997 = vmatprep.subr.bf16.mxu0 %v2794
    %2998 = vmatpush1.bf16.msra.mxu0 %v2793
    %2999 = vmatprep.subr.bf16.mxu0 0
    %3000 = vmatpush2.bf16.msra.mxu0 0
    %3001 = vmatprep.subr.bf16.mxu0 0
    %3002 = vmatpush2.bf16.msra.mxu0 0
    %3003 = vmatprep.subr.bf16.mxu0 0
    %3004 = vmatpush2.bf16.msra.mxu0 0
    %3005 = vmatprep.subr.bf16.mxu0 0
    %3006 = vmatpush2.bf16.msra.mxu0 0
    %3007 = vmatprep.subr.bf16.mxu0 0
    %3008 = vmatpush2.bf16.msra.mxu0 0
    %3009 = vmatprep.subr.bf16.mxu0 0
    %3010 = vmatpush2.bf16.msra.mxu0 0
    %3011 = vmatprep.subr.bf16.mxu0 0
    %3012 = vmatpush2.bf16.msra.mxu0 0
    %3013 = vmatprep.subr.bf16.mxu0 0
    %3014 = vmatpush2.bf16.msra.mxu0 0
    %3015 = vmatprep.mubr.bf16.mxu0 0
    %3016 = vmatmul.mubr.bf16.gmra.mxu0 %v301
    %v3017 = vpop.f32.mrf.mxu0
    %v3018 = vadd.f32 0.0, %v3017
    %v3019 = vpop.f32.mrf.mxu0
    %v3020 = vadd.f32 0.0, %v3019
    %v3021 = vpop.f32.mrf.mxu0
    %v3022 = vadd.f32 0.0, %v3021
    %v3023 = vpop.f32.mrf.mxu0
    %v3024 = vadd.f32 0.0, %v3023
    %3025 = vmatprep.mubr.bf16.mxu0 0
    %3026 = vmatmul.mubr.bf16.gmra.mxu0 %v304
    %v3027 = vpop.f32.mrf.mxu0
    %v3028 = vadd.f32 0.0, %v3027
    %v3029 = vpop.f32.mrf.mxu0
    %v3030 = vadd.f32 0.0, %v3029
    %v3031 = vpop.f32.mrf.mxu0
    %v3032 = vadd.f32 0.0, %v3031
    %v3033 = vpop.f32.mrf.mxu0
    %v3034 = vadd.f32 0.0, %v3033
    %3035 = vmatprep.mubr.bf16.mxu0 0
    %3036 = vmatmul.mubr.bf16.gmra.mxu0 %v307
    %v3037 = vpop.f32.mrf.mxu0
    %v3038 = vadd.f32 0.0, %v3037
    %v3039 = vpop.f32.mrf.mxu0
    %v3040 = vadd.f32 0.0, %v3039
    %v3041 = vpop.f32.mrf.mxu0
    %v3042 = vadd.f32 0.0, %v3041
    %v3043 = vpop.f32.mrf.mxu0
    %v3044 = vadd.f32 0.0, %v3043
    %3045 = vmatprep.mubr.bf16.mxu0 0
    %3046 = vmatmul.mubr.bf16.gmra.mxu0 %v310
    %v3047 = vpop.f32.mrf.mxu0
    %v3048 = vadd.f32 0.0, %v3047
    %v3049 = vpop.f32.mrf.mxu0
    %v3050 = vadd.f32 0.0, %v3049
    %v3051 = vpop.f32.mrf.mxu0
    %v3052 = vadd.f32 0.0, %v3051
    %v3053 = vpop.f32.mrf.mxu0
    %v3054 = vadd.f32 0.0, %v3053
    %3055 = vdwg.mxu0
    %3056 = vmatprep.subr.bf16.mxu0 0
    %3057 = vmatpush1.bf16.msra.mxu0 0
    %3058 = vmatprep.subr.bf16.mxu0 0
    %3059 = vmatpush1.bf16.msra.mxu0 0
    %3060 = vmatprep.subr.bf16.mxu0 0
    %3061 = vmatpush1.bf16.msra.mxu0 0
    %3062 = vmatprep.subr.bf16.mxu0 0
    %3063 = vmatpush1.bf16.msra.mxu0 0
    %3064 = vmatprep.subr.bf16.mxu0 0
    %3065 = vmatpush1.bf16.msra.mxu0 0
    %3066 = vmatprep.subr.bf16.mxu0 %v2812
    %3067 = vmatpush1.bf16.msra.mxu0 %v2811
    %3068 = vmatprep.subr.bf16.mxu0 %v2804
    %3069 = vmatpush1.bf16.msra.mxu0 %v2803
    %3070 = vmatprep.subr.bf16.mxu0 %v2796
    %3071 = vmatpush1.bf16.msra.mxu0 %v2795
    %3072 = vmatprep.subr.bf16.mxu0 0
    %3073 = vmatpush2.bf16.msra.mxu0 0
    %3074 = vmatprep.subr.bf16.mxu0 0
    %3075 = vmatpush2.bf16.msra.mxu0 0
    %3076 = vmatprep.subr.bf16.mxu0 0
    %3077 = vmatpush2.bf16.msra.mxu0 0
    %3078 = vmatprep.subr.bf16.mxu0 0
    %3079 = vmatpush2.bf16.msra.mxu0 0
    %3080 = vmatprep.subr.bf16.mxu0 0
    %3081 = vmatpush2.bf16.msra.mxu0 0
    %3082 = vmatprep.subr.bf16.mxu0 0
    %3083 = vmatpush2.bf16.msra.mxu0 0
    %3084 = vmatprep.subr.bf16.mxu0 0
    %3085 = vmatpush2.bf16.msra.mxu0 0
    %3086 = vmatprep.subr.bf16.mxu0 0
    %3087 = vmatpush2.bf16.msra.mxu0 0
    %3088 = vmatprep.mubr.bf16.mxu0 0
    %3089 = vmatmul.mubr.bf16.gmra.mxu0 %v301
    %v3090 = vpop.f32.mrf.mxu0
    %v3091 = vadd.f32 0.0, %v3090
    %v3092 = vpop.f32.mrf.mxu0
    %v3093 = vadd.f32 0.0, %v3092
    %v3094 = vpop.f32.mrf.mxu0
    %v3095 = vadd.f32 0.0, %v3094
    %v3096 = vpop.f32.mrf.mxu0
    %v3097 = vadd.f32 0.0, %v3096
    %3098 = vmatprep.mubr.bf16.mxu0 0
    %3099 = vmatmul.mubr.bf16.gmra.mxu0 %v304
    %v3100 = vpop.f32.mrf.mxu0
    %v3101 = vadd.f32 0.0, %v3100
    %v3102 = vpop.f32.mrf.mxu0
    %v3103 = vadd.f32 0.0, %v3102
    %v3104 = vpop.f32.mrf.mxu0
    %v3105 = vadd.f32 0.0, %v3104
    %v3106 = vpop.f32.mrf.mxu0
    %v3107 = vadd.f32 0.0, %v3106
    %3108 = vmatprep.mubr.bf16.mxu0 0
    %3109 = vmatmul.mubr.bf16.gmra.mxu0 %v307
    %v3110 = vpop.f32.mrf.mxu0
    %v3111 = vadd.f32 0.0, %v3110
    %v3112 = vpop.f32.mrf.mxu0
    %v3113 = vadd.f32 0.0, %v3112
    %v3114 = vpop.f32.mrf.mxu0
    %v3115 = vadd.f32 0.0, %v3114
    %v3116 = vpop.f32.mrf.mxu0
    %v3117 = vadd.f32 0.0, %v3116
    %3118 = vmatprep.mubr.bf16.mxu0 0
    %3119 = vmatmul.mubr.bf16.gmra.mxu0 %v310
    %v3120 = vpop.f32.mrf.mxu0
    %v3121 = vadd.f32 0.0, %v3120
    %v3122 = vpop.f32.mrf.mxu0
    %v3123 = vadd.f32 0.0, %v3122
    %v3124 = vpop.f32.mrf.mxu0
    %v3125 = vadd.f32 0.0, %v3124
    %v3126 = vpop.f32.mrf.mxu0
    %v3127 = vadd.f32 0.0, %v3126
    %3128 = vdwg.mxu0
    %v3153 = vunpack.c.l.b16 %v2625
    %v3154 = vunpack.c.h.b16 %v2625
    %v3155 = vunpack.c.l.b16 %v2626
    %v3156 = vunpack.c.h.b16 %v2626
    %v3157 = vunpack.c.l.b16 %v2627
    %v3158 = vunpack.c.h.b16 %v2627
    %v3159 = vunpack.c.l.b16 %v2628
    %v3160 = vunpack.c.h.b16 %v2628
    %v3161 = vunpack.c.l.b16 %v2641
    %v3162 = vunpack.c.h.b16 %v2641
    %v3163 = vunpack.c.l.b16 %v2642
    %v3164 = vunpack.c.h.b16 %v2642
    %v3165 = vunpack.c.l.b16 %v2643
    %v3166 = vunpack.c.h.b16 %v2643
    %v3167 = vunpack.c.l.b16 %v2644
    %v3168 = vunpack.c.h.b16 %v2644
    %v3169 = vunpack.c.l.b16 %v2657
    %v3170 = vunpack.c.h.b16 %v2657
    %v3171 = vunpack.c.l.b16 %v2658
    %v3172 = vunpack.c.h.b16 %v2658
    %v3173 = vunpack.c.l.b16 %v2659
    %v3174 = vunpack.c.h.b16 %v2659
    %v3175 = vunpack.c.l.b16 %v2660
    %v3176 = vunpack.c.h.b16 %v2660
    %v3177 = vunpack.c.l.b16 %v2673
    %v3178 = vunpack.c.h.b16 %v2673
    %v3179 = vunpack.c.l.b16 %v2674
    %v3180 = vunpack.c.h.b16 %v2674
    %v3181 = vunpack.c.l.b16 %v2675
    %v3182 = vunpack.c.h.b16 %v2675
    %v3183 = vunpack.c.l.b16 %v2676
    %v3184 = vunpack.c.h.b16 %v2676
    %v3185 = vunpack.c.l.b16 %v2689
    %v3186 = vunpack.c.h.b16 %v2689
    %v3187 = vunpack.c.l.b16 %v2690
    %v3188 = vunpack.c.h.b16 %v2690
    %v3189 = vunpack.c.l.b16 %v2691
    %v3190 = vunpack.c.h.b16 %v2691
    %v3191 = vunpack.c.l.b16 %v2692
    %v3192 = vunpack.c.h.b16 %v2692
    %v3193 = vunpack.c.l.b16 %v2705
    %v3194 = vunpack.c.h.b16 %v2705
    %v3195 = vunpack.c.l.b16 %v2706
    %v3196 = vunpack.c.h.b16 %v2706
    %v3197 = vunpack.c.l.b16 %v2707
    %v3198 = vunpack.c.h.b16 %v2707
    %v3199 = vunpack.c.l.b16 %v2708
    %v3200 = vunpack.c.h.b16 %v2708
    %v3201 = vpack.c.b16 %v3161, %v3153
    %v3202 = vpack.c.b16 %v3162, %v3154
    %v3203 = vpack.c.b16 %v3163, %v3155
    %v3204 = vpack.c.b16 %v3164, %v3156
    %v3205 = vpack.c.b16 %v3165, %v3157
    %v3206 = vpack.c.b16 %v3166, %v3158
    %v3207 = vpack.c.b16 %v3167, %v3159
    %v3208 = vpack.c.b16 %v3168, %v3160
    %v3209 = vpack.c.b16 %v3177, %v3169
    %v3210 = vpack.c.b16 %v3178, %v3170
    %v3211 = vpack.c.b16 %v3179, %v3171
    %v3212 = vpack.c.b16 %v3180, %v3172
    %v3213 = vpack.c.b16 %v3181, %v3173
    %v3214 = vpack.c.b16 %v3182, %v3174
    %v3215 = vpack.c.b16 %v3183, %v3175
    %v3216 = vpack.c.b16 %v3184, %v3176
    %v3217 = vpack.c.b16 %v3193, %v3185
    %v3218 = vpack.c.b16 %v3194, %v3186
    %v3219 = vpack.c.b16 %v3195, %v3187
    %v3220 = vpack.c.b16 %v3196, %v3188
    %v3221 = vpack.c.b16 %v3197, %v3189
    %v3222 = vpack.c.b16 %v3198, %v3190
    %v3223 = vpack.c.b16 %v3199, %v3191
    %v3224 = vpack.c.b16 %v3200, %v3192
    %3249 = vmatprep.subr.bf16.mxu0 0
    %3250 = vmatpush1.bf16.msra.mxu0 0
    %3251 = vmatprep.subr.bf16.mxu0 0
    %3252 = vmatpush1.bf16.msra.mxu0 0
    %3253 = vmatprep.subr.bf16.mxu0 0
    %3254 = vmatpush1.bf16.msra.mxu0 0
    %3255 = vmatprep.subr.bf16.mxu0 0
    %3256 = vmatpush1.bf16.msra.mxu0 0
    %3257 = vmatprep.subr.bf16.mxu0 0
    %3258 = vmatpush1.bf16.msra.mxu0 0
    %3259 = vmatprep.subr.bf16.mxu0 %v3218
    %3260 = vmatpush1.bf16.msra.mxu0 %v3217
    %3261 = vmatprep.subr.bf16.mxu0 %v3210
    %3262 = vmatpush1.bf16.msra.mxu0 %v3209
    %3263 = vmatprep.subr.bf16.mxu0 %v3202
    %3264 = vmatpush1.bf16.msra.mxu0 %v3201
    %3265 = vmatprep.subr.bf16.mxu0 0
    %3266 = vmatpush2.bf16.msra.mxu0 0
    %3267 = vmatprep.subr.bf16.mxu0 0
    %3268 = vmatpush2.bf16.msra.mxu0 0
    %3269 = vmatprep.subr.bf16.mxu0 0
    %3270 = vmatpush2.bf16.msra.mxu0 0
    %3271 = vmatprep.subr.bf16.mxu0 0
    %3272 = vmatpush2.bf16.msra.mxu0 0
    %3273 = vmatprep.subr.bf16.mxu0 0
    %3274 = vmatpush2.bf16.msra.mxu0 0
    %3275 = vmatprep.subr.bf16.mxu0 0
    %3276 = vmatpush2.bf16.msra.mxu0 0
    %3277 = vmatprep.subr.bf16.mxu0 0
    %3278 = vmatpush2.bf16.msra.mxu0 0
    %3279 = vmatprep.subr.bf16.mxu0 0
    %3280 = vmatpush2.bf16.msra.mxu0 0
    %3281 = vmatprep.mubr.bf16.mxu0 0
    %3282 = vmatmul.mubr.bf16.gmra.mxu0 %v301
    %v3283 = vpop.f32.mrf.mxu0
    %v3284 = vadd.f32 0.0, %v3283
    %v3285 = vpop.f32.mrf.mxu0
    %v3286 = vadd.f32 0.0, %v3285
    %v3287 = vpop.f32.mrf.mxu0
    %v3288 = vadd.f32 0.0, %v3287
    %v3289 = vpop.f32.mrf.mxu0
    %v3290 = vadd.f32 0.0, %v3289
    %3291 = vmatprep.mubr.bf16.mxu0 0
    %3292 = vmatmul.mubr.bf16.gmra.mxu0 %v304
    %v3293 = vpop.f32.mrf.mxu0
    %v3294 = vadd.f32 0.0, %v3293
    %v3295 = vpop.f32.mrf.mxu0
    %v3296 = vadd.f32 0.0, %v3295
    %v3297 = vpop.f32.mrf.mxu0
    %v3298 = vadd.f32 0.0, %v3297
    %v3299 = vpop.f32.mrf.mxu0
    %v3300 = vadd.f32 0.0, %v3299
    %3301 = vmatprep.mubr.bf16.mxu0 0
    %3302 = vmatmul.mubr.bf16.gmra.mxu0 %v307
    %v3303 = vpop.f32.mrf.mxu0
    %v3304 = vadd.f32 0.0, %v3303
    %v3305 = vpop.f32.mrf.mxu0
    %v3306 = vadd.f32 0.0, %v3305
    %v3307 = vpop.f32.mrf.mxu0
    %v3308 = vadd.f32 0.0, %v3307
    %v3309 = vpop.f32.mrf.mxu0
    %v3310 = vadd.f32 0.0, %v3309
    %3311 = vmatprep.mubr.bf16.mxu0 0
    %3312 = vmatmul.mubr.bf16.gmra.mxu0 %v310
    %v3313 = vpop.f32.mrf.mxu0
    %v3314 = vadd.f32 0.0, %v3313
    %v3315 = vpop.f32.mrf.mxu0
    %v3316 = vadd.f32 0.0, %v3315
    %v3317 = vpop.f32.mrf.mxu0
    %v3318 = vadd.f32 0.0, %v3317
    %v3319 = vpop.f32.mrf.mxu0
    %v3320 = vadd.f32 0.0, %v3319
    %3321 = vdwg.mxu0
    %3322 = vmatprep.subr.bf16.mxu0 0
    %3323 = vmatpush1.bf16.msra.mxu0 0
    %3324 = vmatprep.subr.bf16.mxu0 0
    %3325 = vmatpush1.bf16.msra.mxu0 0
    %3326 = vmatprep.subr.bf16.mxu0 0
    %3327 = vmatpush1.bf16.msra.mxu0 0
    %3328 = vmatprep.subr.bf16.mxu0 0
    %3329 = vmatpush1.bf16.msra.mxu0 0
    %3330 = vmatprep.subr.bf16.mxu0 0
    %3331 = vmatpush1.bf16.msra.mxu0 0
    %3332 = vmatprep.subr.bf16.mxu0 %v3220
    %3333 = vmatpush1.bf16.msra.mxu0 %v3219
    %3334 = vmatprep.subr.bf16.mxu0 %v3212
    %3335 = vmatpush1.bf16.msra.mxu0 %v3211
    %3336 = vmatprep.subr.bf16.mxu0 %v3204
    %3337 = vmatpush1.bf16.msra.mxu0 %v3203
    %3338 = vmatprep.subr.bf16.mxu0 0
    %3339 = vmatpush2.bf16.msra.mxu0 0
    %3340 = vmatprep.subr.bf16.mxu0 0
    %3341 = vmatpush2.bf16.msra.mxu0 0
    %3342 = vmatprep.subr.bf16.mxu0 0
    %3343 = vmatpush2.bf16.msra.mxu0 0
    %3344 = vmatprep.subr.bf16.mxu0 0
    %3345 = vmatpush2.bf16.msra.mxu0 0
    %3346 = vmatprep.subr.bf16.mxu0 0
    %3347 = vmatpush2.bf16.msra.mxu0 0
    %3348 = vmatprep.subr.bf16.mxu0 0
    %3349 = vmatpush2.bf16.msra.mxu0 0
    %3350 = vmatprep.subr.bf16.mxu0 0
    %3351 = vmatpush2.bf16.msra.mxu0 0
    %3352 = vmatprep.subr.bf16.mxu0 0
    %3353 = vmatpush2.bf16.msra.mxu0 0
    %3354 = vmatprep.mubr.bf16.mxu0 0
    %3355 = vmatmul.mubr.bf16.gmra.mxu0 %v301
    %v3356 = vpop.f32.mrf.mxu0
    %v3357 = vadd.f32 0.0, %v3356
    %v3358 = vpop.f32.mrf.mxu0
    %v3359 = vadd.f32 0.0, %v3358
    %v3360 = vpop.f32.mrf.mxu0
    %v3361 = vadd.f32 0.0, %v3360
    %v3362 = vpop.f32.mrf.mxu0
    %v3363 = vadd.f32 0.0, %v3362
    %3364 = vmatprep.mubr.bf16.mxu0 0
    %3365 = vmatmul.mubr.bf16.gmra.mxu0 %v304
    %v3366 = vpop.f32.mrf.mxu0
    %v3367 = vadd.f32 0.0, %v3366
    %v3368 = vpop.f32.mrf.mxu0
    %v3369 = vadd.f32 0.0, %v3368
    %v3370 = vpop.f32.mrf.mxu0
    %v3371 = vadd.f32 0.0, %v3370
    %v3372 = vpop.f32.mrf.mxu0
    %v3373 = vadd.f32 0.0, %v3372
    %3374 = vmatprep.mubr.bf16.mxu0 0
    %3375 = vmatmul.mubr.bf16.gmra.mxu0 %v307
    %v3376 = vpop.f32.mrf.mxu0
    %v3377 = vadd.f32 0.0, %v3376
    %v3378 = vpop.f32.mrf.mxu0
    %v3379 = vadd.f32 0.0, %v3378
    %v3380 = vpop.f32.mrf.mxu0
    %v3381 = vadd.f32 0.0, %v3380
    %v3382 = vpop.f32.mrf.mxu0
    %v3383 = vadd.f32 0.0, %v3382
    %3384 = vmatprep.mubr.bf16.mxu0 0
    %3385 = vmatmul.mubr.bf16.gmra.mxu0 %v310
    %v3386 = vpop.f32.mrf.mxu0
    %v3387 = vadd.f32 0.0, %v3386
    %v3388 = vpop.f32.mrf.mxu0
    %v3389 = vadd.f32 0.0, %v3388
    %v3390 = vpop.f32.mrf.mxu0
    %v3391 = vadd.f32 0.0, %v3390
    %v3392 = vpop.f32.mrf.mxu0
    %v3393 = vadd.f32 0.0, %v3392
    %3394 = vdwg.mxu0
    %3395 = vmatprep.subr.bf16.mxu0 0
    %3396 = vmatpush1.bf16.msra.mxu0 0
    %3397 = vmatprep.subr.bf16.mxu0 0
    %3398 = vmatpush1.bf16.msra.mxu0 0
    %3399 = vmatprep.subr.bf16.mxu0 0
    %3400 = vmatpush1.bf16.msra.mxu0 0
    %3401 = vmatprep.subr.bf16.mxu0 0
    %3402 = vmatpush1.bf16.msra.mxu0 0
    %3403 = vmatprep.subr.bf16.mxu0 0
    %3404 = vmatpush1.bf16.msra.mxu0 0
    %3405 = vmatprep.subr.bf16.mxu0 %v3222
    %3406 = vmatpush1.bf16.msra.mxu0 %v3221
    %3407 = vmatprep.subr.bf16.mxu0 %v3214
    %3408 = vmatpush1.bf16.msra.mxu0 %v3213
    %3409 = vmatprep.subr.bf16.mxu0 %v3206
    %3410 = vmatpush1.bf16.msra.mxu0 %v3205
    %3411 = vmatprep.subr.bf16.mxu0 0
    %3412 = vmatpush2.bf16.msra.mxu0 0
    %3413 = vmatprep.subr.bf16.mxu0 0
    %3414 = vmatpush2.bf16.msra.mxu0 0
    %3415 = vmatprep.subr.bf16.mxu0 0
    %3416 = vmatpush2.bf16.msra.mxu0 0
    %3417 = vmatprep.subr.bf16.mxu0 0
    %3418 = vmatpush2.bf16.msra.mxu0 0
    %3419 = vmatprep.subr.bf16.mxu0 0
    %3420 = vmatpush2.bf16.msra.mxu0 0
    %3421 = vmatprep.subr.bf16.mxu0 0
    %3422 = vmatpush2.bf16.msra.mxu0 0
    %3423 = vmatprep.subr.bf16.mxu0 0
    %3424 = vmatpush2.bf16.msra.mxu0 0
    %3425 = vmatprep.subr.bf16.mxu0 0
    %3426 = vmatpush2.bf16.msra.mxu0 0
    %3427 = vmatprep.mubr.bf16.mxu0 0
    %3428 = vmatmul.mubr.bf16.gmra.mxu0 %v301
    %v3429 = vpop.f32.mrf.mxu0
    %v3430 = vadd.f32 0.0, %v3429
    %v3431 = vpop.f32.mrf.mxu0
    %v3432 = vadd.f32 0.0, %v3431
    %v3433 = vpop.f32.mrf.mxu0
    %v3434 = vadd.f32 0.0, %v3433
    %v3435 = vpop.f32.mrf.mxu0
    %v3436 = vadd.f32 0.0, %v3435
    %3437 = vmatprep.mubr.bf16.mxu0 0
    %3438 = vmatmul.mubr.bf16.gmra.mxu0 %v304
    %v3439 = vpop.f32.mrf.mxu0
    %v3440 = vadd.f32 0.0, %v3439
    %v3441 = vpop.f32.mrf.mxu0
    %v3442 = vadd.f32 0.0, %v3441
    %v3443 = vpop.f32.mrf.mxu0
    %v3444 = vadd.f32 0.0, %v3443
    %v3445 = vpop.f32.mrf.mxu0
    %v3446 = vadd.f32 0.0, %v3445
    %3447 = vmatprep.mubr.bf16.mxu0 0
    %3448 = vmatmul.mubr.bf16.gmra.mxu0 %v307
    %v3449 = vpop.f32.mrf.mxu0
    %v3450 = vadd.f32 0.0, %v3449
    %v3451 = vpop.f32.mrf.mxu0
    %v3452 = vadd.f32 0.0, %v3451
    %v3453 = vpop.f32.mrf.mxu0
    %v3454 = vadd.f32 0.0, %v3453
    %v3455 = vpop.f32.mrf.mxu0
    %v3456 = vadd.f32 0.0, %v3455
    %3457 = vmatprep.mubr.bf16.mxu0 0
    %3458 = vmatmul.mubr.bf16.gmra.mxu0 %v310
    %v3459 = vpop.f32.mrf.mxu0
    %v3460 = vadd.f32 0.0, %v3459
    %v3461 = vpop.f32.mrf.mxu0
    %v3462 = vadd.f32 0.0, %v3461
    %v3463 = vpop.f32.mrf.mxu0
    %v3464 = vadd.f32 0.0, %v3463
    %v3465 = vpop.f32.mrf.mxu0
    %v3466 = vadd.f32 0.0, %v3465
    %3467 = vdwg.mxu0
    %3468 = vmatprep.subr.bf16.mxu0 0
    %3469 = vmatpush1.bf16.msra.mxu0 0
    %3470 = vmatprep.subr.bf16.mxu0 0
    %3471 = vmatpush1.bf16.msra.mxu0 0
    %3472 = vmatprep.subr.bf16.mxu0 0
    %3473 = vmatpush1.bf16.msra.mxu0 0
    %3474 = vmatprep.subr.bf16.mxu0 0
    %3475 = vmatpush1.bf16.msra.mxu0 0
    %3476 = vmatprep.subr.bf16.mxu0 0
    %3477 = vmatpush1.bf16.msra.mxu0 0
    %3478 = vmatprep.subr.bf16.mxu0 %v3224
    %3479 = vmatpush1.bf16.msra.mxu0 %v3223
    %3480 = vmatprep.subr.bf16.mxu0 %v3216
    %3481 = vmatpush1.bf16.msra.mxu0 %v3215
    %3482 = vmatprep.subr.bf16.mxu0 %v3208
    %3483 = vmatpush1.bf16.msra.mxu0 %v3207
    %3484 = vmatprep.subr.bf16.mxu0 0
    %3485 = vmatpush2.bf16.msra.mxu0 0
    %3486 = vmatprep.subr.bf16.mxu0 0
    %3487 = vmatpush2.bf16.msra.mxu0 0
    %3488 = vmatprep.subr.bf16.mxu0 0
    %3489 = vmatpush2.bf16.msra.mxu0 0
    %3490 = vmatprep.subr.bf16.mxu0 0
    %3491 = vmatpush2.bf16.msra.mxu0 0
    %3492 = vmatprep.subr.bf16.mxu0 0
    %3493 = vmatpush2.bf16.msra.mxu0 0
    %3494 = vmatprep.subr.bf16.mxu0 0
    %3495 = vmatpush2.bf16.msra.mxu0 0
    %3496 = vmatprep.subr.bf16.mxu0 0
    %3497 = vmatpush2.bf16.msra.mxu0 0
    %3498 = vmatprep.subr.bf16.mxu0 0
    %3499 = vmatpush2.bf16.msra.mxu0 0
    %3500 = vmatprep.mubr.bf16.mxu0 0
    %3501 = vmatmul.mubr.bf16.gmra.mxu0 %v301
    %v3502 = vpop.f32.mrf.mxu0
    %v3503 = vadd.f32 0.0, %v3502
    %v3504 = vpop.f32.mrf.mxu0
    %v3505 = vadd.f32 0.0, %v3504
    %v3506 = vpop.f32.mrf.mxu0
    %v3507 = vadd.f32 0.0, %v3506
    %v3508 = vpop.f32.mrf.mxu0
    %v3509 = vadd.f32 0.0, %v3508
    %3510 = vmatprep.mubr.bf16.mxu0 0
    %3511 = vmatmul.mubr.bf16.gmra.mxu0 %v304
    %v3512 = vpop.f32.mrf.mxu0
    %v3513 = vadd.f32 0.0, %v3512
    %v3514 = vpop.f32.mrf.mxu0
    %v3515 = vadd.f32 0.0, %v3514
    %v3516 = vpop.f32.mrf.mxu0
    %v3517 = vadd.f32 0.0, %v3516
    %v3518 = vpop.f32.mrf.mxu0
    %v3519 = vadd.f32 0.0, %v3518
    %3520 = vmatprep.mubr.bf16.mxu0 0
    %3521 = vmatmul.mubr.bf16.gmra.mxu0 %v307
    %v3522 = vpop.f32.mrf.mxu0
    %v3523 = vadd.f32 0.0, %v3522
    %v3524 = vpop.f32.mrf.mxu0
    %v3525 = vadd.f32 0.0, %v3524
    %v3526 = vpop.f32.mrf.mxu0
    %v3527 = vadd.f32 0.0, %v3526
    %v3528 = vpop.f32.mrf.mxu0
    %v3529 = vadd.f32 0.0, %v3528
    %3530 = vmatprep.mubr.bf16.mxu0 0
    %3531 = vmatmul.mubr.bf16.gmra.mxu0 %v310
    %v3532 = vpop.f32.mrf.mxu0
    %v3533 = vadd.f32 0.0, %v3532
    %v3534 = vpop.f32.mrf.mxu0
    %v3535 = vadd.f32 0.0, %v3534
    %v3536 = vpop.f32.mrf.mxu0
    %v3537 = vadd.f32 0.0, %v3536
    %v3538 = vpop.f32.mrf.mxu0
    %v3539 = vadd.f32 0.0, %v3538
    %3540 = vdwg.mxu0
    %v3541 = vmax.f32 %v2872, %v3284
    %v3542 = vmax.f32 %v2874, %v3286
    %v3543 = vmax.f32 %v2945, %v3357
    %v3544 = vmax.f32 %v2947, %v3359
    %v3545 = vmax.f32 %v3018, %v3430
    %v3546 = vmax.f32 %v3020, %v3432
    %v3547 = vmax.f32 %v3091, %v3503
    %v3548 = vmax.f32 %v3093, %v3505
    %v3549 = vmax.f32 %v2876, %v3288
    %v3550 = vmax.f32 %v2878, %v3290
    %v3551 = vmax.f32 %v2949, %v3361
    %v3552 = vmax.f32 %v2951, %v3363
    %v3553 = vmax.f32 %v3022, %v3434
    %v3554 = vmax.f32 %v3024, %v3436
    %v3555 = vmax.f32 %v3095, %v3507
    %v3556 = vmax.f32 %v3097, %v3509
    %v3557 = vmax.f32 %v2882, %v3294
    %v3558 = vmax.f32 %v2884, %v3296
    %v3559 = vmax.f32 %v2955, %v3367
    %v3560 = vmax.f32 %v2957, %v3369
    %v3561 = vmax.f32 %v3028, %v3440
    %v3562 = vmax.f32 %v3030, %v3442
    %v3563 = vmax.f32 %v3101, %v3513
    %v3564 = vmax.f32 %v3103, %v3515
    %v3565 = vmax.f32 %v2886, %v3298
    %v3566 = vmax.f32 %v2888, %v3300
    %v3567 = vmax.f32 %v2959, %v3371
    %v3568 = vmax.f32 %v2961, %v3373
    %v3569 = vmax.f32 %v3032, %v3444
    %v3570 = vmax.f32 %v3034, %v3446
    %v3571 = vmax.f32 %v3105, %v3517
    %v3572 = vmax.f32 %v3107, %v3519
    %v3573 = vmax.f32 %v2892, %v3304
    %v3574 = vmax.f32 %v2894, %v3306
    %v3575 = vmax.f32 %v2965, %v3377
    %v3576 = vmax.f32 %v2967, %v3379
    %v3577 = vmax.f32 %v3038, %v3450
    %v3578 = vmax.f32 %v3040, %v3452
    %v3579 = vmax.f32 %v3111, %v3523
    %v3580 = vmax.f32 %v3113, %v3525
    %v3581 = vmax.f32 %v2896, %v3308
    %v3582 = vmax.f32 %v2898, %v3310
    %v3583 = vmax.f32 %v2969, %v3381
    %v3584 = vmax.f32 %v2971, %v3383
    %v3585 = vmax.f32 %v3042, %v3454
    %v3586 = vmax.f32 %v3044, %v3456
    %v3587 = vmax.f32 %v3115, %v3527
    %v3588 = vmax.f32 %v3117, %v3529
    %v3589 = vmax.f32 %v2902, %v3314
    %v3590 = vmax.f32 %v2904, %v3316
    %v3591 = vmax.f32 %v2975, %v3387
    %v3592 = vmax.f32 %v2977, %v3389
    %v3593 = vmax.f32 %v3048, %v3460
    %v3594 = vmax.f32 %v3050, %v3462
    %v3595 = vmax.f32 %v3121, %v3533
    %v3596 = vmax.f32 %v3123, %v3535
    %v3597 = vmax.f32 %v2906, %v3318
    %v3598 = vmax.f32 %v2908, %v3320
    %v3599 = vmax.f32 %v2979, %v3391
    %v3600 = vmax.f32 %v2981, %v3393
    %v3601 = vmax.f32 %v3052, %v3464
    %v3602 = vmax.f32 %v3054, %v3466
    %v3603 = vmax.f32 %v3125, %v3537
    %v3604 = vmax.f32 %v3127, %v3539
    %v3629 = vunpack.c.l.b16 %v2629
    %v3630 = vunpack.c.h.b16 %v2629
    %v3631 = vunpack.c.l.b16 %v2630
    %v3632 = vunpack.c.h.b16 %v2630
    %v3633 = vunpack.c.l.b16 %v2631
    %v3634 = vunpack.c.h.b16 %v2631
    %v3635 = vunpack.c.l.b16 %v2632
    %v3636 = vunpack.c.h.b16 %v2632
    %v3637 = vunpack.c.l.b16 %v2645
    %v3638 = vunpack.c.h.b16 %v2645
    %v3639 = vunpack.c.l.b16 %v2646
    %v3640 = vunpack.c.h.b16 %v2646
    %v3641 = vunpack.c.l.b16 %v2647
    %v3642 = vunpack.c.h.b16 %v2647
    %v3643 = vunpack.c.l.b16 %v2648
    %v3644 = vunpack.c.h.b16 %v2648
    %v3645 = vunpack.c.l.b16 %v2661
    %v3646 = vunpack.c.h.b16 %v2661
    %v3647 = vunpack.c.l.b16 %v2662
    %v3648 = vunpack.c.h.b16 %v2662
    %v3649 = vunpack.c.l.b16 %v2663
    %v3650 = vunpack.c.h.b16 %v2663
    %v3651 = vunpack.c.l.b16 %v2664
    %v3652 = vunpack.c.h.b16 %v2664
    %v3653 = vunpack.c.l.b16 %v2677
    %v3654 = vunpack.c.h.b16 %v2677
    %v3655 = vunpack.c.l.b16 %v2678
    %v3656 = vunpack.c.h.b16 %v2678
    %v3657 = vunpack.c.l.b16 %v2679
    %v3658 = vunpack.c.h.b16 %v2679
    %v3659 = vunpack.c.l.b16 %v2680
    %v3660 = vunpack.c.h.b16 %v2680
    %v3661 = vunpack.c.l.b16 %v2693
    %v3662 = vunpack.c.h.b16 %v2693
    %v3663 = vunpack.c.l.b16 %v2694
    %v3664 = vunpack.c.h.b16 %v2694
    %v3665 = vunpack.c.l.b16 %v2695
    %v3666 = vunpack.c.h.b16 %v2695
    %v3667 = vunpack.c.l.b16 %v2696
    %v3668 = vunpack.c.h.b16 %v2696
    %v3669 = vunpack.c.l.b16 %v2709
    %v3670 = vunpack.c.h.b16 %v2709
    %v3671 = vunpack.c.l.b16 %v2710
    %v3672 = vunpack.c.h.b16 %v2710
    %v3673 = vunpack.c.l.b16 %v2711
    %v3674 = vunpack.c.h.b16 %v2711
    %v3675 = vunpack.c.l.b16 %v2712
    %v3676 = vunpack.c.h.b16 %v2712
    %v3677 = vpack.c.b16 %v3637, %v3629
    %v3678 = vpack.c.b16 %v3638, %v3630
    %v3679 = vpack.c.b16 %v3639, %v3631
    %v3680 = vpack.c.b16 %v3640, %v3632
    %v3681 = vpack.c.b16 %v3641, %v3633
    %v3682 = vpack.c.b16 %v3642, %v3634
    %v3683 = vpack.c.b16 %v3643, %v3635
    %v3684 = vpack.c.b16 %v3644, %v3636
    %v3685 = vpack.c.b16 %v3653, %v3645
    %v3686 = vpack.c.b16 %v3654, %v3646
    %v3687 = vpack.c.b16 %v3655, %v3647
    %v3688 = vpack.c.b16 %v3656, %v3648
    %v3689 = vpack.c.b16 %v3657, %v3649
    %v3690 = vpack.c.b16 %v3658, %v3650
    %v3691 = vpack.c.b16 %v3659, %v3651
    %v3692 = vpack.c.b16 %v3660, %v3652
    %v3693 = vpack.c.b16 %v3669, %v3661
    %v3694 = vpack.c.b16 %v3670, %v3662
    %v3695 = vpack.c.b16 %v3671, %v3663
    %v3696 = vpack.c.b16 %v3672, %v3664
    %v3697 = vpack.c.b16 %v3673, %v3665
    %v3698 = vpack.c.b16 %v3674, %v3666
    %v3699 = vpack.c.b16 %v3675, %v3667
    %v3700 = vpack.c.b16 %v3676, %v3668
    %3725 = vmatprep.subr.bf16.mxu0 0
    %3726 = vmatpush1.bf16.msra.mxu0 0
    %3727 = vmatprep.subr.bf16.mxu0 0
    %3728 = vmatpush1.bf16.msra.mxu0 0
    %3729 = vmatprep.subr.bf16.mxu0 0
    %3730 = vmatpush1.bf16.msra.mxu0 0
    %3731 = vmatprep.subr.bf16.mxu0 0
    %3732 = vmatpush1.bf16.msra.mxu0 0
    %3733 = vmatprep.subr.bf16.mxu0 0
    %3734 = vmatpush1.bf16.msra.mxu0 0
    %3735 = vmatprep.subr.bf16.mxu0 %v3694
    %3736 = vmatpush1.bf16.msra.mxu0 %v3693
    %3737 = vmatprep.subr.bf16.mxu0 %v3686
    %3738 = vmatpush1.bf16.msra.mxu0 %v3685
    %3739 = vmatprep.subr.bf16.mxu0 %v3678
    %3740 = vmatpush1.bf16.msra.mxu0 %v3677
    %3741 = vmatprep.subr.bf16.mxu0 0
    %3742 = vmatpush2.bf16.msra.mxu0 0
    %3743 = vmatprep.subr.bf16.mxu0 0
    %3744 = vmatpush2.bf16.msra.mxu0 0
    %3745 = vmatprep.subr.bf16.mxu0 0
    %3746 = vmatpush2.bf16.msra.mxu0 0
    %3747 = vmatprep.subr.bf16.mxu0 0
    %3748 = vmatpush2.bf16.msra.mxu0 0
    %3749 = vmatprep.subr.bf16.mxu0 0
    %3750 = vmatpush2.bf16.msra.mxu0 0
    %3751 = vmatprep.subr.bf16.mxu0 0
    %3752 = vmatpush2.bf16.msra.mxu0 0
    %3753 = vmatprep.subr.bf16.mxu0 0
    %3754 = vmatpush2.bf16.msra.mxu0 0
    %3755 = vmatprep.subr.bf16.mxu0 0
    %3756 = vmatpush2.bf16.msra.mxu0 0
    %3757 = vmatprep.mubr.bf16.mxu0 0
    %3758 = vmatmul.mubr.bf16.gmra.mxu0 %v301
    %v3759 = vpop.f32.mrf.mxu0
    %v3760 = vadd.f32 0.0, %v3759
    %v3761 = vpop.f32.mrf.mxu0
    %v3762 = vadd.f32 0.0, %v3761
    %v3763 = vpop.f32.mrf.mxu0
    %v3764 = vadd.f32 0.0, %v3763
    %v3765 = vpop.f32.mrf.mxu0
    %v3766 = vadd.f32 0.0, %v3765
    %3767 = vmatprep.mubr.bf16.mxu0 0
    %3768 = vmatmul.mubr.bf16.gmra.mxu0 %v304
    %v3769 = vpop.f32.mrf.mxu0
    %v3770 = vadd.f32 0.0, %v3769
    %v3771 = vpop.f32.mrf.mxu0
    %v3772 = vadd.f32 0.0, %v3771
    %v3773 = vpop.f32.mrf.mxu0
    %v3774 = vadd.f32 0.0, %v3773
    %v3775 = vpop.f32.mrf.mxu0
    %v3776 = vadd.f32 0.0, %v3775
    %3777 = vmatprep.mubr.bf16.mxu0 0
    %3778 = vmatmul.mubr.bf16.gmra.mxu0 %v307
    %v3779 = vpop.f32.mrf.mxu0
    %v3780 = vadd.f32 0.0, %v3779
    %v3781 = vpop.f32.mrf.mxu0
    %v3782 = vadd.f32 0.0, %v3781
    %v3783 = vpop.f32.mrf.mxu0
    %v3784 = vadd.f32 0.0, %v3783
    %v3785 = vpop.f32.mrf.mxu0
    %v3786 = vadd.f32 0.0, %v3785
    %3787 = vmatprep.mubr.bf16.mxu0 0
    %3788 = vmatmul.mubr.bf16.gmra.mxu0 %v310
    %v3789 = vpop.f32.mrf.mxu0
    %v3790 = vadd.f32 0.0, %v3789
    %v3791 = vpop.f32.mrf.mxu0
    %v3792 = vadd.f32 0.0, %v3791
    %v3793 = vpop.f32.mrf.mxu0
    %v3794 = vadd.f32 0.0, %v3793
    %v3795 = vpop.f32.mrf.mxu0
    %v3796 = vadd.f32 0.0, %v3795
    %3797 = vdwg.mxu0
    %3798 = vmatprep.subr.bf16.mxu0 0
    %3799 = vmatpush1.bf16.msra.mxu0 0
    %3800 = vmatprep.subr.bf16.mxu0 0
    %3801 = vmatpush1.bf16.msra.mxu0 0
    %3802 = vmatprep.subr.bf16.mxu0 0
    %3803 = vmatpush1.bf16.msra.mxu0 0
    %3804 = vmatprep.subr.bf16.mxu0 0
    %3805 = vmatpush1.bf16.msra.mxu0 0
    %3806 = vmatprep.subr.bf16.mxu0 0
    %3807 = vmatpush1.bf16.msra.mxu0 0
    %3808 = vmatprep.subr.bf16.mxu0 %v3696
    %3809 = vmatpush1.bf16.msra.mxu0 %v3695
    %3810 = vmatprep.subr.bf16.mxu0 %v3688
    %3811 = vmatpush1.bf16.msra.mxu0 %v3687
    %3812 = vmatprep.subr.bf16.mxu0 %v3680
    %3813 = vmatpush1.bf16.msra.mxu0 %v3679
    %3814 = vmatprep.subr.bf16.mxu0 0
    %3815 = vmatpush2.bf16.msra.mxu0 0
    %3816 = vmatprep.subr.bf16.mxu0 0
    %3817 = vmatpush2.bf16.msra.mxu0 0
    %3818 = vmatprep.subr.bf16.mxu0 0
    %3819 = vmatpush2.bf16.msra.mxu0 0
    %3820 = vmatprep.subr.bf16.mxu0 0
    %3821 = vmatpush2.bf16.msra.mxu0 0
    %3822 = vmatprep.subr.bf16.mxu0 0
    %3823 = vmatpush2.bf16.msra.mxu0 0
    %3824 = vmatprep.subr.bf16.mxu0 0
    %3825 = vmatpush2.bf16.msra.mxu0 0
    %3826 = vmatprep.subr.bf16.mxu0 0
    %3827 = vmatpush2.bf16.msra.mxu0 0
    %3828 = vmatprep.subr.bf16.mxu0 0
    %3829 = vmatpush2.bf16.msra.mxu0 0
    %3830 = vmatprep.mubr.bf16.mxu0 0
    %3831 = vmatmul.mubr.bf16.gmra.mxu0 %v301
    %v3832 = vpop.f32.mrf.mxu0
    %v3833 = vadd.f32 0.0, %v3832
    %v3834 = vpop.f32.mrf.mxu0
    %v3835 = vadd.f32 0.0, %v3834
    %v3836 = vpop.f32.mrf.mxu0
    %v3837 = vadd.f32 0.0, %v3836
    %v3838 = vpop.f32.mrf.mxu0
    %v3839 = vadd.f32 0.0, %v3838
    %3840 = vmatprep.mubr.bf16.mxu0 0
    %3841 = vmatmul.mubr.bf16.gmra.mxu0 %v304
    %v3842 = vpop.f32.mrf.mxu0
    %v3843 = vadd.f32 0.0, %v3842
    %v3844 = vpop.f32.mrf.mxu0
    %v3845 = vadd.f32 0.0, %v3844
    %v3846 = vpop.f32.mrf.mxu0
    %v3847 = vadd.f32 0.0, %v3846
    %v3848 = vpop.f32.mrf.mxu0
    %v3849 = vadd.f32 0.0, %v3848
    %3850 = vmatprep.mubr.bf16.mxu0 0
    %3851 = vmatmul.mubr.bf16.gmra.mxu0 %v307
    %v3852 = vpop.f32.mrf.mxu0
    %v3853 = vadd.f32 0.0, %v3852
    %v3854 = vpop.f32.mrf.mxu0
    %v3855 = vadd.f32 0.0, %v3854
    %v3856 = vpop.f32.mrf.mxu0
    %v3857 = vadd.f32 0.0, %v3856
    %v3858 = vpop.f32.mrf.mxu0
    %v3859 = vadd.f32 0.0, %v3858
    %3860 = vmatprep.mubr.bf16.mxu0 0
    %3861 = vmatmul.mubr.bf16.gmra.mxu0 %v310
    %v3862 = vpop.f32.mrf.mxu0
    %v3863 = vadd.f32 0.0, %v3862
    %v3864 = vpop.f32.mrf.mxu0
    %v3865 = vadd.f32 0.0, %v3864
    %v3866 = vpop.f32.mrf.mxu0
    %v3867 = vadd.f32 0.0, %v3866
    %v3868 = vpop.f32.mrf.mxu0
    %v3869 = vadd.f32 0.0, %v3868
    %3870 = vdwg.mxu0
    %3871 = vmatprep.subr.bf16.mxu0 0
    %3872 = vmatpush1.bf16.msra.mxu0 0
    %3873 = vmatprep.subr.bf16.mxu0 0
    %3874 = vmatpush1.bf16.msra.mxu0 0
    %3875 = vmatprep.subr.bf16.mxu0 0
    %3876 = vmatpush1.bf16.msra.mxu0 0
    %3877 = vmatprep.subr.bf16.mxu0 0
    %3878 = vmatpush1.bf16.msra.mxu0 0
    %3879 = vmatprep.subr.bf16.mxu0 0
    %3880 = vmatpush1.bf16.msra.mxu0 0
    %3881 = vmatprep.subr.bf16.mxu0 %v3698
    %3882 = vmatpush1.bf16.msra.mxu0 %v3697
    %3883 = vmatprep.subr.bf16.mxu0 %v3690
    %3884 = vmatpush1.bf16.msra.mxu0 %v3689
    %3885 = vmatprep.subr.bf16.mxu0 %v3682
    %3886 = vmatpush1.bf16.msra.mxu0 %v3681
    %3887 = vmatprep.subr.bf16.mxu0 0
    %3888 = vmatpush2.bf16.msra.mxu0 0
    %3889 = vmatprep.subr.bf16.mxu0 0
    %3890 = vmatpush2.bf16.msra.mxu0 0
    %3891 = vmatprep.subr.bf16.mxu0 0
    %3892 = vmatpush2.bf16.msra.mxu0 0
    %3893 = vmatprep.subr.bf16.mxu0 0
    %3894 = vmatpush2.bf16.msra.mxu0 0
    %3895 = vmatprep.subr.bf16.mxu0 0
    %3896 = vmatpush2.bf16.msra.mxu0 0
    %3897 = vmatprep.subr.bf16.mxu0 0
    %3898 = vmatpush2.bf16.msra.mxu0 0
    %3899 = vmatprep.subr.bf16.mxu0 0
    %3900 = vmatpush2.bf16.msra.mxu0 0
    %3901 = vmatprep.subr.bf16.mxu0 0
    %3902 = vmatpush2.bf16.msra.mxu0 0
    %3903 = vmatprep.mubr.bf16.mxu0 0
    %3904 = vmatmul.mubr.bf16.gmra.mxu0 %v301
    %v3905 = vpop.f32.mrf.mxu0
    %v3906 = vadd.f32 0.0, %v3905
    %v3907 = vpop.f32.mrf.mxu0
    %v3908 = vadd.f32 0.0, %v3907
    %v3909 = vpop.f32.mrf.mxu0
    %v3910 = vadd.f32 0.0, %v3909
    %v3911 = vpop.f32.mrf.mxu0
    %v3912 = vadd.f32 0.0, %v3911
    %3913 = vmatprep.mubr.bf16.mxu0 0
    %3914 = vmatmul.mubr.bf16.gmra.mxu0 %v304
    %v3915 = vpop.f32.mrf.mxu0
    %v3916 = vadd.f32 0.0, %v3915
    %v3917 = vpop.f32.mrf.mxu0
    %v3918 = vadd.f32 0.0, %v3917
    %v3919 = vpop.f32.mrf.mxu0
    %v3920 = vadd.f32 0.0, %v3919
    %v3921 = vpop.f32.mrf.mxu0
    %v3922 = vadd.f32 0.0, %v3921
    %3923 = vmatprep.mubr.bf16.mxu0 0
    %3924 = vmatmul.mubr.bf16.gmra.mxu0 %v307
    %v3925 = vpop.f32.mrf.mxu0
    %v3926 = vadd.f32 0.0, %v3925
    %v3927 = vpop.f32.mrf.mxu0
    %v3928 = vadd.f32 0.0, %v3927
    %v3929 = vpop.f32.mrf.mxu0
    %v3930 = vadd.f32 0.0, %v3929
    %v3931 = vpop.f32.mrf.mxu0
    %v3932 = vadd.f32 0.0, %v3931
    %3933 = vmatprep.mubr.bf16.mxu0 0
    %3934 = vmatmul.mubr.bf16.gmra.mxu0 %v310
    %v3935 = vpop.f32.mrf.mxu0
    %v3936 = vadd.f32 0.0, %v3935
    %v3937 = vpop.f32.mrf.mxu0
    %v3938 = vadd.f32 0.0, %v3937
    %v3939 = vpop.f32.mrf.mxu0
    %v3940 = vadd.f32 0.0, %v3939
    %v3941 = vpop.f32.mrf.mxu0
    %v3942 = vadd.f32 0.0, %v3941
    %3943 = vdwg.mxu0
    %3944 = vmatprep.subr.bf16.mxu0 0
    %3945 = vmatpush1.bf16.msra.mxu0 0
    %3946 = vmatprep.subr.bf16.mxu0 0
    %3947 = vmatpush1.bf16.msra.mxu0 0
    %3948 = vmatprep.subr.bf16.mxu0 0
    %3949 = vmatpush1.bf16.msra.mxu0 0
    %3950 = vmatprep.subr.bf16.mxu0 0
    %3951 = vmatpush1.bf16.msra.mxu0 0
    %3952 = vmatprep.subr.bf16.mxu0 0
    %3953 = vmatpush1.bf16.msra.mxu0 0
    %3954 = vmatprep.subr.bf16.mxu0 %v3700
    %3955 = vmatpush1.bf16.msra.mxu0 %v3699
    %3956 = vmatprep.subr.bf16.mxu0 %v3692
    %3957 = vmatpush1.bf16.msra.mxu0 %v3691
    %3958 = vmatprep.subr.bf16.mxu0 %v3684
    %3959 = vmatpush1.bf16.msra.mxu0 %v3683
    %3960 = vmatprep.subr.bf16.mxu0 0
    %3961 = vmatpush2.bf16.msra.mxu0 0
    %3962 = vmatprep.subr.bf16.mxu0 0
    %3963 = vmatpush2.bf16.msra.mxu0 0
    %3964 = vmatprep.subr.bf16.mxu0 0
    %3965 = vmatpush2.bf16.msra.mxu0 0
    %3966 = vmatprep.subr.bf16.mxu0 0
    %3967 = vmatpush2.bf16.msra.mxu0 0
    %3968 = vmatprep.subr.bf16.mxu0 0
    %3969 = vmatpush2.bf16.msra.mxu0 0
    %3970 = vmatprep.subr.bf16.mxu0 0
    %3971 = vmatpush2.bf16.msra.mxu0 0
    %3972 = vmatprep.subr.bf16.mxu0 0
    %3973 = vmatpush2.bf16.msra.mxu0 0
    %3974 = vmatprep.subr.bf16.mxu0 0
    %3975 = vmatpush2.bf16.msra.mxu0 0
    %3976 = vmatprep.mubr.bf16.mxu0 0
    %3977 = vmatmul.mubr.bf16.gmra.mxu0 %v301
    %v3978 = vpop.f32.mrf.mxu0
    %v3979 = vadd.f32 0.0, %v3978
    %v3980 = vpop.f32.mrf.mxu0
    %v3981 = vadd.f32 0.0, %v3980
    %v3982 = vpop.f32.mrf.mxu0
    %v3983 = vadd.f32 0.0, %v3982
    %v3984 = vpop.f32.mrf.mxu0
    %v3985 = vadd.f32 0.0, %v3984
    %3986 = vmatprep.mubr.bf16.mxu0 0
    %3987 = vmatmul.mubr.bf16.gmra.mxu0 %v304
    %v3988 = vpop.f32.mrf.mxu0
    %v3989 = vadd.f32 0.0, %v3988
    %v3990 = vpop.f32.mrf.mxu0
    %v3991 = vadd.f32 0.0, %v3990
    %v3992 = vpop.f32.mrf.mxu0
    %v3993 = vadd.f32 0.0, %v3992
    %v3994 = vpop.f32.mrf.mxu0
    %v3995 = vadd.f32 0.0, %v3994
    %3996 = vmatprep.mubr.bf16.mxu0 0
    %3997 = vmatmul.mubr.bf16.gmra.mxu0 %v307
    %v3998 = vpop.f32.mrf.mxu0
    %v3999 = vadd.f32 0.0, %v3998
    %v4000 = vpop.f32.mrf.mxu0
    %v4001 = vadd.f32 0.0, %v4000
    %v4002 = vpop.f32.mrf.mxu0
    %v4003 = vadd.f32 0.0, %v4002
    %v4004 = vpop.f32.mrf.mxu0
    %v4005 = vadd.f32 0.0, %v4004
    %4006 = vmatprep.mubr.bf16.mxu0 0
    %4007 = vmatmul.mubr.bf16.gmra.mxu0 %v310
    %v4008 = vpop.f32.mrf.mxu0
    %v4009 = vadd.f32 0.0, %v4008
    %v4010 = vpop.f32.mrf.mxu0
    %v4011 = vadd.f32 0.0, %v4010
    %v4012 = vpop.f32.mrf.mxu0
    %v4013 = vadd.f32 0.0, %v4012
    %v4014 = vpop.f32.mrf.mxu0
    %v4015 = vadd.f32 0.0, %v4014
    %4016 = vdwg.mxu0
    %v4017 = vmax.f32 %v3541, %v3760
    %v4018 = vmax.f32 %v3542, %v3762
    %v4019 = vmax.f32 %v3543, %v3833
    %v4020 = vmax.f32 %v3544, %v3835
    %v4021 = vmax.f32 %v3545, %v3906
    %v4022 = vmax.f32 %v3546, %v3908
    %v4023 = vmax.f32 %v3547, %v3979
    %v4024 = vmax.f32 %v3548, %v3981
    %v4025 = vmax.f32 %v3549, %v3764
    %v4026 = vmax.f32 %v3550, %v3766
    %v4027 = vmax.f32 %v3551, %v3837
    %v4028 = vmax.f32 %v3552, %v3839
    %v4029 = vmax.f32 %v3553, %v3910
    %v4030 = vmax.f32 %v3554, %v3912
    %v4031 = vmax.f32 %v3555, %v3983
    %v4032 = vmax.f32 %v3556, %v3985
    %v4033 = vmax.f32 %v3557, %v3770
    %v4034 = vmax.f32 %v3558, %v3772
    %v4035 = vmax.f32 %v3559, %v3843
    %v4036 = vmax.f32 %v3560, %v3845
    %v4037 = vmax.f32 %v3561, %v3916
    %v4038 = vmax.f32 %v3562, %v3918
    %v4039 = vmax.f32 %v3563, %v3989
    %v4040 = vmax.f32 %v3564, %v3991
    %v4041 = vmax.f32 %v3565, %v3774
    %v4042 = vmax.f32 %v3566, %v3776
    %v4043 = vmax.f32 %v3567, %v3847
    %v4044 = vmax.f32 %v3568, %v3849
    %v4045 = vmax.f32 %v3569, %v3920
    %v4046 = vmax.f32 %v3570, %v3922
    %v4047 = vmax.f32 %v3571, %v3993
    %v4048 = vmax.f32 %v3572, %v3995
    %v4049 = vmax.f32 %v3573, %v3780
    %v4050 = vmax.f32 %v3574, %v3782
    %v4051 = vmax.f32 %v3575, %v3853
    %v4052 = vmax.f32 %v3576, %v3855
    %v4053 = vmax.f32 %v3577, %v3926
    %v4054 = vmax.f32 %v3578, %v3928
    %v4055 = vmax.f32 %v3579, %v3999
    %v4056 = vmax.f32 %v3580, %v4001
    %v4057 = vmax.f32 %v3581, %v3784
    %v4058 = vmax.f32 %v3582, %v3786
    %v4059 = vmax.f32 %v3583, %v3857
    %v4060 = vmax.f32 %v3584, %v3859
    %v4061 = vmax.f32 %v3585, %v3930
    %v4062 = vmax.f32 %v3586, %v3932
    %v4063 = vmax.f32 %v3587, %v4003
    %v4064 = vmax.f32 %v3588, %v4005
    %v4065 = vmax.f32 %v3589, %v3790
    %v4066 = vmax.f32 %v3590, %v3792
    %v4067 = vmax.f32 %v3591, %v3863
    %v4068 = vmax.f32 %v3592, %v3865
    %v4069 = vmax.f32 %v3593, %v3936
    %v4070 = vmax.f32 %v3594, %v3938
    %v4071 = vmax.f32 %v3595, %v4009
    %v4072 = vmax.f32 %v3596, %v4011
    %v4073 = vmax.f32 %v3597, %v3794
    %v4074 = vmax.f32 %v3598, %v3796
    %v4075 = vmax.f32 %v3599, %v3867
    %v4076 = vmax.f32 %v3600, %v3869
    %v4077 = vmax.f32 %v3601, %v3940
    %v4078 = vmax.f32 %v3602, %v3942
    %v4079 = vmax.f32 %v3603, %v4013
    %v4080 = vmax.f32 %v3604, %v4015
    %v4105 = vunpack.c.l.b16 %v2633
    %v4106 = vunpack.c.h.b16 %v2633
    %v4107 = vunpack.c.l.b16 %v2634
    %v4108 = vunpack.c.h.b16 %v2634
    %v4109 = vunpack.c.l.b16 %v2635
    %v4110 = vunpack.c.h.b16 %v2635
    %v4111 = vunpack.c.l.b16 %v2636
    %v4112 = vunpack.c.h.b16 %v2636
    %v4113 = vunpack.c.l.b16 %v2649
    %v4114 = vunpack.c.h.b16 %v2649
    %v4115 = vunpack.c.l.b16 %v2650
    %v4116 = vunpack.c.h.b16 %v2650
    %v4117 = vunpack.c.l.b16 %v2651
    %v4118 = vunpack.c.h.b16 %v2651
    %v4119 = vunpack.c.l.b16 %v2652
    %v4120 = vunpack.c.h.b16 %v2652
    %v4121 = vunpack.c.l.b16 %v2665
    %v4122 = vunpack.c.h.b16 %v2665
    %v4123 = vunpack.c.l.b16 %v2666
    %v4124 = vunpack.c.h.b16 %v2666
    %v4125 = vunpack.c.l.b16 %v2667
    %v4126 = vunpack.c.h.b16 %v2667
    %v4127 = vunpack.c.l.b16 %v2668
    %v4128 = vunpack.c.h.b16 %v2668
    %v4129 = vunpack.c.l.b16 %v2681
    %v4130 = vunpack.c.h.b16 %v2681
    %v4131 = vunpack.c.l.b16 %v2682
    %v4132 = vunpack.c.h.b16 %v2682
    %v4133 = vunpack.c.l.b16 %v2683
    %v4134 = vunpack.c.h.b16 %v2683
    %v4135 = vunpack.c.l.b16 %v2684
    %v4136 = vunpack.c.h.b16 %v2684
    %v4137 = vunpack.c.l.b16 %v2697
    %v4138 = vunpack.c.h.b16 %v2697
    %v4139 = vunpack.c.l.b16 %v2698
    %v4140 = vunpack.c.h.b16 %v2698
    %v4141 = vunpack.c.l.b16 %v2699
    %v4142 = vunpack.c.h.b16 %v2699
    %v4143 = vunpack.c.l.b16 %v2700
    %v4144 = vunpack.c.h.b16 %v2700
    %v4145 = vunpack.c.l.b16 %v2713
    %v4146 = vunpack.c.h.b16 %v2713
    %v4147 = vunpack.c.l.b16 %v2714
    %v4148 = vunpack.c.h.b16 %v2714
    %v4149 = vunpack.c.l.b16 %v2715
    %v4150 = vunpack.c.h.b16 %v2715
    %v4151 = vunpack.c.l.b16 %v2716
    %v4152 = vunpack.c.h.b16 %v2716
    %v4153 = vpack.c.b16 %v4113, %v4105
    %v4154 = vpack.c.b16 %v4114, %v4106
    %v4155 = vpack.c.b16 %v4115, %v4107
    %v4156 = vpack.c.b16 %v4116, %v4108
    %v4157 = vpack.c.b16 %v4117, %v4109
    %v4158 = vpack.c.b16 %v4118, %v4110
    %v4159 = vpack.c.b16 %v4119, %v4111
    %v4160 = vpack.c.b16 %v4120, %v4112
    %v4161 = vpack.c.b16 %v4129, %v4121
    %v4162 = vpack.c.b16 %v4130, %v4122
    %v4163 = vpack.c.b16 %v4131, %v4123
    %v4164 = vpack.c.b16 %v4132, %v4124
    %v4165 = vpack.c.b16 %v4133, %v4125
    %v4166 = vpack.c.b16 %v4134, %v4126
    %v4167 = vpack.c.b16 %v4135, %v4127
    %v4168 = vpack.c.b16 %v4136, %v4128
    %v4169 = vpack.c.b16 %v4145, %v4137
    %v4170 = vpack.c.b16 %v4146, %v4138
    %v4171 = vpack.c.b16 %v4147, %v4139
    %v4172 = vpack.c.b16 %v4148, %v4140
    %v4173 = vpack.c.b16 %v4149, %v4141
    %v4174 = vpack.c.b16 %v4150, %v4142
    %v4175 = vpack.c.b16 %v4151, %v4143
    %v4176 = vpack.c.b16 %v4152, %v4144
    %4201 = vmatprep.subr.bf16.mxu0 0
    %4202 = vmatpush1.bf16.msra.mxu0 0
    %4203 = vmatprep.subr.bf16.mxu0 0
    %4204 = vmatpush1.bf16.msra.mxu0 0
    %4205 = vmatprep.subr.bf16.mxu0 0
    %4206 = vmatpush1.bf16.msra.mxu0 0
    %4207 = vmatprep.subr.bf16.mxu0 0
    %4208 = vmatpush1.bf16.msra.mxu0 0
    %4209 = vmatprep.subr.bf16.mxu0 0
    %4210 = vmatpush1.bf16.msra.mxu0 0
    %4211 = vmatprep.subr.bf16.mxu0 %v4170
    %4212 = vmatpush1.bf16.msra.mxu0 %v4169
    %4213 = vmatprep.subr.bf16.mxu0 %v4162
    %4214 = vmatpush1.bf16.msra.mxu0 %v4161
    %4215 = vmatprep.subr.bf16.mxu0 %v4154
    %4216 = vmatpush1.bf16.msra.mxu0 %v4153
    %4217 = vmatprep.subr.bf16.mxu0 0
    %4218 = vmatpush2.bf16.msra.mxu0 0
    %4219 = vmatprep.subr.bf16.mxu0 0
    %4220 = vmatpush2.bf16.msra.mxu0 0
    %4221 = vmatprep.subr.bf16.mxu0 0
    %4222 = vmatpush2.bf16.msra.mxu0 0
    %4223 = vmatprep.subr.bf16.mxu0 0
    %4224 = vmatpush2.bf16.msra.mxu0 0
    %4225 = vmatprep.subr.bf16.mxu0 0
    %4226 = vmatpush2.bf16.msra.mxu0 0
    %4227 = vmatprep.subr.bf16.mxu0 0
    %4228 = vmatpush2.bf16.msra.mxu0 0
    %4229 = vmatprep.subr.bf16.mxu0 0
    %4230 = vmatpush2.bf16.msra.mxu0 0
    %4231 = vmatprep.subr.bf16.mxu0 0
    %4232 = vmatpush2.bf16.msra.mxu0 0
    %4233 = vmatprep.mubr.bf16.mxu0 0
    %4234 = vmatmul.mubr.bf16.gmra.mxu0 %v301
    %v4235 = vpop.f32.mrf.mxu0
    %v4236 = vadd.f32 0.0, %v4235
    %v4237 = vpop.f32.mrf.mxu0
    %v4238 = vadd.f32 0.0, %v4237
    %v4239 = vpop.f32.mrf.mxu0
    %v4240 = vadd.f32 0.0, %v4239
    %v4241 = vpop.f32.mrf.mxu0
    %v4242 = vadd.f32 0.0, %v4241
    %4243 = vmatprep.mubr.bf16.mxu0 0
    %4244 = vmatmul.mubr.bf16.gmra.mxu0 %v304
    %v4245 = vpop.f32.mrf.mxu0
    %v4246 = vadd.f32 0.0, %v4245
    %v4247 = vpop.f32.mrf.mxu0
    %v4248 = vadd.f32 0.0, %v4247
    %v4249 = vpop.f32.mrf.mxu0
    %v4250 = vadd.f32 0.0, %v4249
    %v4251 = vpop.f32.mrf.mxu0
    %v4252 = vadd.f32 0.0, %v4251
    %4253 = vmatprep.mubr.bf16.mxu0 0
    %4254 = vmatmul.mubr.bf16.gmra.mxu0 %v307
    %v4255 = vpop.f32.mrf.mxu0
    %v4256 = vadd.f32 0.0, %v4255
    %v4257 = vpop.f32.mrf.mxu0
    %v4258 = vadd.f32 0.0, %v4257
    %v4259 = vpop.f32.mrf.mxu0
    %v4260 = vadd.f32 0.0, %v4259
    %v4261 = vpop.f32.mrf.mxu0
    %v4262 = vadd.f32 0.0, %v4261
    %4263 = vmatprep.mubr.bf16.mxu0 0
    %4264 = vmatmul.mubr.bf16.gmra.mxu0 %v310
    %v4265 = vpop.f32.mrf.mxu0
    %v4266 = vadd.f32 0.0, %v4265
    %v4267 = vpop.f32.mrf.mxu0
    %v4268 = vadd.f32 0.0, %v4267
    %v4269 = vpop.f32.mrf.mxu0
    %v4270 = vadd.f32 0.0, %v4269
    %v4271 = vpop.f32.mrf.mxu0
    %v4272 = vadd.f32 0.0, %v4271
    %4273 = vdwg.mxu0
    %4274 = vmatprep.subr.bf16.mxu0 0
    %4275 = vmatpush1.bf16.msra.mxu0 0
    %4276 = vmatprep.subr.bf16.mxu0 0
    %4277 = vmatpush1.bf16.msra.mxu0 0
    %4278 = vmatprep.subr.bf16.mxu0 0
    %4279 = vmatpush1.bf16.msra.mxu0 0
    %4280 = vmatprep.subr.bf16.mxu0 0
    %4281 = vmatpush1.bf16.msra.mxu0 0
    %4282 = vmatprep.subr.bf16.mxu0 0
    %4283 = vmatpush1.bf16.msra.mxu0 0
    %4284 = vmatprep.subr.bf16.mxu0 %v4172
    %4285 = vmatpush1.bf16.msra.mxu0 %v4171
    %4286 = vmatprep.subr.bf16.mxu0 %v4164
    %4287 = vmatpush1.bf16.msra.mxu0 %v4163
    %4288 = vmatprep.subr.bf16.mxu0 %v4156
    %4289 = vmatpush1.bf16.msra.mxu0 %v4155
    %4290 = vmatprep.subr.bf16.mxu0 0
    %4291 = vmatpush2.bf16.msra.mxu0 0
    %4292 = vmatprep.subr.bf16.mxu0 0
    %4293 = vmatpush2.bf16.msra.mxu0 0
    %4294 = vmatprep.subr.bf16.mxu0 0
    %4295 = vmatpush2.bf16.msra.mxu0 0
    %4296 = vmatprep.subr.bf16.mxu0 0
    %4297 = vmatpush2.bf16.msra.mxu0 0
    %4298 = vmatprep.subr.bf16.mxu0 0
    %4299 = vmatpush2.bf16.msra.mxu0 0
    %4300 = vmatprep.subr.bf16.mxu0 0
    %4301 = vmatpush2.bf16.msra.mxu0 0
    %4302 = vmatprep.subr.bf16.mxu0 0
    %4303 = vmatpush2.bf16.msra.mxu0 0
    %4304 = vmatprep.subr.bf16.mxu0 0
    %4305 = vmatpush2.bf16.msra.mxu0 0
    %4306 = vmatprep.mubr.bf16.mxu0 0
    %4307 = vmatmul.mubr.bf16.gmra.mxu0 %v301
    %v4308 = vpop.f32.mrf.mxu0
    %v4309 = vadd.f32 0.0, %v4308
    %v4310 = vpop.f32.mrf.mxu0
    %v4311 = vadd.f32 0.0, %v4310
    %v4312 = vpop.f32.mrf.mxu0
    %v4313 = vadd.f32 0.0, %v4312
    %v4314 = vpop.f32.mrf.mxu0
    %v4315 = vadd.f32 0.0, %v4314
    %4316 = vmatprep.mubr.bf16.mxu0 0
    %4317 = vmatmul.mubr.bf16.gmra.mxu0 %v304
    %v4318 = vpop.f32.mrf.mxu0
    %v4319 = vadd.f32 0.0, %v4318
    %v4320 = vpop.f32.mrf.mxu0
    %v4321 = vadd.f32 0.0, %v4320
    %v4322 = vpop.f32.mrf.mxu0
    %v4323 = vadd.f32 0.0, %v4322
    %v4324 = vpop.f32.mrf.mxu0
    %v4325 = vadd.f32 0.0, %v4324
    %4326 = vmatprep.mubr.bf16.mxu0 0
    %4327 = vmatmul.mubr.bf16.gmra.mxu0 %v307
    %v4328 = vpop.f32.mrf.mxu0
    %v4329 = vadd.f32 0.0, %v4328
    %v4330 = vpop.f32.mrf.mxu0
    %v4331 = vadd.f32 0.0, %v4330
    %v4332 = vpop.f32.mrf.mxu0
    %v4333 = vadd.f32 0.0, %v4332
    %v4334 = vpop.f32.mrf.mxu0
    %v4335 = vadd.f32 0.0, %v4334
    %4336 = vmatprep.mubr.bf16.mxu0 0
    %4337 = vmatmul.mubr.bf16.gmra.mxu0 %v310
    %v4338 = vpop.f32.mrf.mxu0
    %v4339 = vadd.f32 0.0, %v4338
    %v4340 = vpop.f32.mrf.mxu0
    %v4341 = vadd.f32 0.0, %v4340
    %v4342 = vpop.f32.mrf.mxu0
    %v4343 = vadd.f32 0.0, %v4342
    %v4344 = vpop.f32.mrf.mxu0
    %v4345 = vadd.f32 0.0, %v4344
    %4346 = vdwg.mxu0
    %4347 = vmatprep.subr.bf16.mxu0 0
    %4348 = vmatpush1.bf16.msra.mxu0 0
    %4349 = vmatprep.subr.bf16.mxu0 0
    %4350 = vmatpush1.bf16.msra.mxu0 0
    %4351 = vmatprep.subr.bf16.mxu0 0
    %4352 = vmatpush1.bf16.msra.mxu0 0
    %4353 = vmatprep.subr.bf16.mxu0 0
    %4354 = vmatpush1.bf16.msra.mxu0 0
    %4355 = vmatprep.subr.bf16.mxu0 0
    %4356 = vmatpush1.bf16.msra.mxu0 0
    %4357 = vmatprep.subr.bf16.mxu0 %v4174
    %4358 = vmatpush1.bf16.msra.mxu0 %v4173
    %4359 = vmatprep.subr.bf16.mxu0 %v4166
    %4360 = vmatpush1.bf16.msra.mxu0 %v4165
    %4361 = vmatprep.subr.bf16.mxu0 %v4158
    %4362 = vmatpush1.bf16.msra.mxu0 %v4157
    %4363 = vmatprep.subr.bf16.mxu0 0
    %4364 = vmatpush2.bf16.msra.mxu0 0
    %4365 = vmatprep.subr.bf16.mxu0 0
    %4366 = vmatpush2.bf16.msra.mxu0 0
    %4367 = vmatprep.subr.bf16.mxu0 0
    %4368 = vmatpush2.bf16.msra.mxu0 0
    %4369 = vmatprep.subr.bf16.mxu0 0
    %4370 = vmatpush2.bf16.msra.mxu0 0
    %4371 = vmatprep.subr.bf16.mxu0 0
    %4372 = vmatpush2.bf16.msra.mxu0 0
    %4373 = vmatprep.subr.bf16.mxu0 0
    %4374 = vmatpush2.bf16.msra.mxu0 0
    %4375 = vmatprep.subr.bf16.mxu0 0
    %4376 = vmatpush2.bf16.msra.mxu0 0
    %4377 = vmatprep.subr.bf16.mxu0 0
    %4378 = vmatpush2.bf16.msra.mxu0 0
    %4379 = vmatprep.mubr.bf16.mxu0 0
    %4380 = vmatmul.mubr.bf16.gmra.mxu0 %v301
    %v4381 = vpop.f32.mrf.mxu0
    %v4382 = vadd.f32 0.0, %v4381
    %v4383 = vpop.f32.mrf.mxu0
    %v4384 = vadd.f32 0.0, %v4383
    %v4385 = vpop.f32.mrf.mxu0
    %v4386 = vadd.f32 0.0, %v4385
    %v4387 = vpop.f32.mrf.mxu0
    %v4388 = vadd.f32 0.0, %v4387
    %4389 = vmatprep.mubr.bf16.mxu0 0
    %4390 = vmatmul.mubr.bf16.gmra.mxu0 %v304
    %v4391 = vpop.f32.mrf.mxu0
    %v4392 = vadd.f32 0.0, %v4391
    %v4393 = vpop.f32.mrf.mxu0
    %v4394 = vadd.f32 0.0, %v4393
    %v4395 = vpop.f32.mrf.mxu0
    %v4396 = vadd.f32 0.0, %v4395
    %v4397 = vpop.f32.mrf.mxu0
    %v4398 = vadd.f32 0.0, %v4397
    %4399 = vmatprep.mubr.bf16.mxu0 0
    %4400 = vmatmul.mubr.bf16.gmra.mxu0 %v307
    %v4401 = vpop.f32.mrf.mxu0
    %v4402 = vadd.f32 0.0, %v4401
    %v4403 = vpop.f32.mrf.mxu0
    %v4404 = vadd.f32 0.0, %v4403
    %v4405 = vpop.f32.mrf.mxu0
    %v4406 = vadd.f32 0.0, %v4405
    %v4407 = vpop.f32.mrf.mxu0
    %v4408 = vadd.f32 0.0, %v4407
    %4409 = vmatprep.mubr.bf16.mxu0 0
    %4410 = vmatmul.mubr.bf16.gmra.mxu0 %v310
    %v4411 = vpop.f32.mrf.mxu0
    %v4412 = vadd.f32 0.0, %v4411
    %v4413 = vpop.f32.mrf.mxu0
    %v4414 = vadd.f32 0.0, %v4413
    %v4415 = vpop.f32.mrf.mxu0
    %v4416 = vadd.f32 0.0, %v4415
    %v4417 = vpop.f32.mrf.mxu0
    %v4418 = vadd.f32 0.0, %v4417
    %4419 = vdwg.mxu0
    %4420 = vmatprep.subr.bf16.mxu0 0
    %4421 = vmatpush1.bf16.msra.mxu0 0
    %4422 = vmatprep.subr.bf16.mxu0 0
    %4423 = vmatpush1.bf16.msra.mxu0 0
    %4424 = vmatprep.subr.bf16.mxu0 0
    %4425 = vmatpush1.bf16.msra.mxu0 0
    %4426 = vmatprep.subr.bf16.mxu0 0
    %4427 = vmatpush1.bf16.msra.mxu0 0
    %4428 = vmatprep.subr.bf16.mxu0 0
    %4429 = vmatpush1.bf16.msra.mxu0 0
    %4430 = vmatprep.subr.bf16.mxu0 %v4176
    %4431 = vmatpush1.bf16.msra.mxu0 %v4175
    %4432 = vmatprep.subr.bf16.mxu0 %v4168
    %4433 = vmatpush1.bf16.msra.mxu0 %v4167
    %4434 = vmatprep.subr.bf16.mxu0 %v4160
    %4435 = vmatpush1.bf16.msra.mxu0 %v4159
    %4436 = vmatprep.subr.bf16.mxu0 0
    %4437 = vmatpush2.bf16.msra.mxu0 0
    %4438 = vmatprep.subr.bf16.mxu0 0
    %4439 = vmatpush2.bf16.msra.mxu0 0
    %4440 = vmatprep.subr.bf16.mxu0 0
    %4441 = vmatpush2.bf16.msra.mxu0 0
    %4442 = vmatprep.subr.bf16.mxu0 0
    %4443 = vmatpush2.bf16.msra.mxu0 0
    %4444 = vmatprep.subr.bf16.mxu0 0
    %4445 = vmatpush2.bf16.msra.mxu0 0
    %4446 = vmatprep.subr.bf16.mxu0 0
    %4447 = vmatpush2.bf16.msra.mxu0 0
    %4448 = vmatprep.subr.bf16.mxu0 0
    %4449 = vmatpush2.bf16.msra.mxu0 0
    %4450 = vmatprep.subr.bf16.mxu0 0
    %4451 = vmatpush2.bf16.msra.mxu0 0
    %4452 = vmatprep.mubr.bf16.mxu0 0
    %4453 = vmatmul.mubr.bf16.gmra.mxu0 %v301
    %v4454 = vpop.f32.mrf.mxu0
    %v4455 = vadd.f32 0.0, %v4454
    %v4456 = vpop.f32.mrf.mxu0
    %v4457 = vadd.f32 0.0, %v4456
    %v4458 = vpop.f32.mrf.mxu0
    %v4459 = vadd.f32 0.0, %v4458
    %v4460 = vpop.f32.mrf.mxu0
    %v4461 = vadd.f32 0.0, %v4460
    %4462 = vmatprep.mubr.bf16.mxu0 0
    %4463 = vmatmul.mubr.bf16.gmra.mxu0 %v304
    %v4464 = vpop.f32.mrf.mxu0
    %v4465 = vadd.f32 0.0, %v4464
    %v4466 = vpop.f32.mrf.mxu0
    %v4467 = vadd.f32 0.0, %v4466
    %v4468 = vpop.f32.mrf.mxu0
    %v4469 = vadd.f32 0.0, %v4468
    %v4470 = vpop.f32.mrf.mxu0
    %v4471 = vadd.f32 0.0, %v4470
    %4472 = vmatprep.mubr.bf16.mxu0 0
    %4473 = vmatmul.mubr.bf16.gmra.mxu0 %v307
    %v4474 = vpop.f32.mrf.mxu0
    %v4475 = vadd.f32 0.0, %v4474
    %v4476 = vpop.f32.mrf.mxu0
    %v4477 = vadd.f32 0.0, %v4476
    %v4478 = vpop.f32.mrf.mxu0
    %v4479 = vadd.f32 0.0, %v4478
    %v4480 = vpop.f32.mrf.mxu0
    %v4481 = vadd.f32 0.0, %v4480
    %4482 = vmatprep.mubr.bf16.mxu0 0
    %4483 = vmatmul.mubr.bf16.gmra.mxu0 %v310
    %v4484 = vpop.f32.mrf.mxu0
    %v4485 = vadd.f32 0.0, %v4484
    %v4486 = vpop.f32.mrf.mxu0
    %v4487 = vadd.f32 0.0, %v4486
    %v4488 = vpop.f32.mrf.mxu0
    %v4489 = vadd.f32 0.0, %v4488
    %v4490 = vpop.f32.mrf.mxu0
    %v4491 = vadd.f32 0.0, %v4490
    %4492 = vdwg.mxu0
    %v4493 = vmax.f32 %v4017, %v4236
    %v4494 = vmax.f32 %v4018, %v4238
    %v4495 = vmax.f32 %v4019, %v4309
    %v4496 = vmax.f32 %v4020, %v4311
    %v4497 = vmax.f32 %v4021, %v4382
    %v4498 = vmax.f32 %v4022, %v4384
    %v4499 = vmax.f32 %v4023, %v4455
    %v4500 = vmax.f32 %v4024, %v4457
    %v4501 = vmax.f32 %v4025, %v4240
    %v4502 = vmax.f32 %v4026, %v4242
    %v4503 = vmax.f32 %v4027, %v4313
    %v4504 = vmax.f32 %v4028, %v4315
    %v4505 = vmax.f32 %v4029, %v4386
    %v4506 = vmax.f32 %v4030, %v4388
    %v4507 = vmax.f32 %v4031, %v4459
    %v4508 = vmax.f32 %v4032, %v4461
    %v4509 = vmax.f32 %v4033, %v4246
    %v4510 = vmax.f32 %v4034, %v4248
    %v4511 = vmax.f32 %v4035, %v4319
    %v4512 = vmax.f32 %v4036, %v4321
    %v4513 = vmax.f32 %v4037, %v4392
    %v4514 = vmax.f32 %v4038, %v4394
    %v4515 = vmax.f32 %v4039, %v4465
    %v4516 = vmax.f32 %v4040, %v4467
    %v4517 = vmax.f32 %v4041, %v4250
    %v4518 = vmax.f32 %v4042, %v4252
    %v4519 = vmax.f32 %v4043, %v4323
    %v4520 = vmax.f32 %v4044, %v4325
    %v4521 = vmax.f32 %v4045, %v4396
    %v4522 = vmax.f32 %v4046, %v4398
    %v4523 = vmax.f32 %v4047, %v4469
    %v4524 = vmax.f32 %v4048, %v4471
    %v4525 = vmax.f32 %v4049, %v4256
    %v4526 = vmax.f32 %v4050, %v4258
    %v4527 = vmax.f32 %v4051, %v4329
    %v4528 = vmax.f32 %v4052, %v4331
    %v4529 = vmax.f32 %v4053, %v4402
    %v4530 = vmax.f32 %v4054, %v4404
    %v4531 = vmax.f32 %v4055, %v4475
    %v4532 = vmax.f32 %v4056, %v4477
    %v4533 = vmax.f32 %v4057, %v4260
    %v4534 = vmax.f32 %v4058, %v4262
    %v4535 = vmax.f32 %v4059, %v4333
    %v4536 = vmax.f32 %v4060, %v4335
    %v4537 = vmax.f32 %v4061, %v4406
    %v4538 = vmax.f32 %v4062, %v4408
    %v4539 = vmax.f32 %v4063, %v4479
    %v4540 = vmax.f32 %v4064, %v4481
    %v4541 = vmax.f32 %v4065, %v4266
    %v4542 = vmax.f32 %v4066, %v4268
    %v4543 = vmax.f32 %v4067, %v4339
    %v4544 = vmax.f32 %v4068, %v4341
    %v4545 = vmax.f32 %v4069, %v4412
    %v4546 = vmax.f32 %v4070, %v4414
    %v4547 = vmax.f32 %v4071, %v4485
    %v4548 = vmax.f32 %v4072, %v4487
    %v4549 = vmax.f32 %v4073, %v4270
    %v4550 = vmax.f32 %v4074, %v4272
    %v4551 = vmax.f32 %v4075, %v4343
    %v4552 = vmax.f32 %v4076, %v4345
    %v4553 = vmax.f32 %v4077, %v4416
    %v4554 = vmax.f32 %v4078, %v4418
    %v4555 = vmax.f32 %v4079, %v4489
    %v4556 = vmax.f32 %v4080, %v4491
    %v4557 = vadd.f32 %v4493, %v2035
    %v4558 = vadd.f32 %v4494, %v2035
    %v4559 = vadd.f32 %v4495, %v2035
    %v4560 = vadd.f32 %v4496, %v2035
    %v4561 = vadd.f32 %v4497, %v2035
    %v4562 = vadd.f32 %v4498, %v2035
    %v4563 = vadd.f32 %v4499, %v2035
    %v4564 = vadd.f32 %v4500, %v2035
    %v4565 = vadd.f32 %v4501, %v2040
    %v4566 = vadd.f32 %v4502, %v2040
    %v4567 = vadd.f32 %v4503, %v2040
    %v4568 = vadd.f32 %v4504, %v2040
    %v4569 = vadd.f32 %v4505, %v2040
    %v4570 = vadd.f32 %v4506, %v2040
    %v4571 = vadd.f32 %v4507, %v2040
    %v4572 = vadd.f32 %v4508, %v2040
    %v4573 = vadd.f32 %v4509, %v2045
    %v4574 = vadd.f32 %v4510, %v2045
    %v4575 = vadd.f32 %v4511, %v2045
    %v4576 = vadd.f32 %v4512, %v2045
    %v4577 = vadd.f32 %v4513, %v2045
    %v4578 = vadd.f32 %v4514, %v2045
    %v4579 = vadd.f32 %v4515, %v2045
    %v4580 = vadd.f32 %v4516, %v2045
    %v4581 = vadd.f32 %v4517, %v2050
    %v4582 = vadd.f32 %v4518, %v2050
    %v4583 = vadd.f32 %v4519, %v2050
    %v4584 = vadd.f32 %v4520, %v2050
    %v4585 = vadd.f32 %v4521, %v2050
    %v4586 = vadd.f32 %v4522, %v2050
    %v4587 = vadd.f32 %v4523, %v2050
    %v4588 = vadd.f32 %v4524, %v2050
    %v4589 = vadd.f32 %v4525, %v2055
    %v4590 = vadd.f32 %v4526, %v2055
    %v4591 = vadd.f32 %v4527, %v2055
    %v4592 = vadd.f32 %v4528, %v2055
    %v4593 = vadd.f32 %v4529, %v2055
    %v4594 = vadd.f32 %v4530, %v2055
    %v4595 = vadd.f32 %v4531, %v2055
    %v4596 = vadd.f32 %v4532, %v2055
    %v4597 = vadd.f32 %v4533, %v2060
    %v4598 = vadd.f32 %v4534, %v2060
    %v4599 = vadd.f32 %v4535, %v2060
    %v4600 = vadd.f32 %v4536, %v2060
    %v4601 = vadd.f32 %v4537, %v2060
    %v4602 = vadd.f32 %v4538, %v2060
    %v4603 = vadd.f32 %v4539, %v2060
    %v4604 = vadd.f32 %v4540, %v2060
    %v4605 = vadd.f32 %v4541, %v2065
    %v4606 = vadd.f32 %v4542, %v2065
    %v4607 = vadd.f32 %v4543, %v2065
    %v4608 = vadd.f32 %v4544, %v2065
    %v4609 = vadd.f32 %v4545, %v2065
    %v4610 = vadd.f32 %v4546, %v2065
    %v4611 = vadd.f32 %v4547, %v2065
    %v4612 = vadd.f32 %v4548, %v2065
    %v4613 = vadd.f32 %v4549, %v2070
    %v4614 = vadd.f32 %v4550, %v2070
    %v4615 = vadd.f32 %v4551, %v2070
    %v4616 = vadd.f32 %v4552, %v2070
    %v4617 = vadd.f32 %v4553, %v2070
    %v4618 = vadd.f32 %v4554, %v2070
    %v4619 = vadd.f32 %v4555, %v2070
    %v4620 = vadd.f32 %v4556, %v2070
    %v4621 = vmax.f32 %v4557, 0.0
    %v4622 = vmax.f32 %v4558, 0.0
    %v4623 = vmax.f32 %v4559, 0.0
    %v4624 = vmax.f32 %v4560, 0.0
    %v4625 = vmax.f32 %v4561, 0.0
    %v4626 = vmax.f32 %v4562, 0.0
    %v4627 = vmax.f32 %v4563, 0.0
    %v4628 = vmax.f32 %v4564, 0.0
    %v4629 = vmax.f32 %v4565, 0.0
    %v4630 = vmax.f32 %v4566, 0.0
    %v4631 = vmax.f32 %v4567, 0.0
    %v4632 = vmax.f32 %v4568, 0.0
    %v4633 = vmax.f32 %v4569, 0.0
    %v4634 = vmax.f32 %v4570, 0.0
    %v4635 = vmax.f32 %v4571, 0.0
    %v4636 = vmax.f32 %v4572, 0.0
    %v4637 = vmax.f32 %v4573, 0.0
    %v4638 = vmax.f32 %v4574, 0.0
    %v4639 = vmax.f32 %v4575, 0.0
    %v4640 = vmax.f32 %v4576, 0.0
    %v4641 = vmax.f32 %v4577, 0.0
    %v4642 = vmax.f32 %v4578, 0.0
    %v4643 = vmax.f32 %v4579, 0.0
    %v4644 = vmax.f32 %v4580, 0.0
    %v4645 = vmax.f32 %v4581, 0.0
    %v4646 = vmax.f32 %v4582, 0.0
    %v4647 = vmax.f32 %v4583, 0.0
    %v4648 = vmax.f32 %v4584, 0.0
    %v4649 = vmax.f32 %v4585, 0.0
    %v4650 = vmax.f32 %v4586, 0.0
    %v4651 = vmax.f32 %v4587, 0.0
    %v4652 = vmax.f32 %v4588, 0.0
    %v4653 = vmax.f32 %v4589, 0.0
    %v4654 = vmax.f32 %v4590, 0.0
    %v4655 = vmax.f32 %v4591, 0.0
    %v4656 = vmax.f32 %v4592, 0.0
    %v4657 = vmax.f32 %v4593, 0.0
    %v4658 = vmax.f32 %v4594, 0.0
    %v4659 = vmax.f32 %v4595, 0.0
    %v4660 = vmax.f32 %v4596, 0.0
    %v4661 = vmax.f32 %v4597, 0.0
    %v4662 = vmax.f32 %v4598, 0.0
    %v4663 = vmax.f32 %v4599, 0.0
    %v4664 = vmax.f32 %v4600, 0.0
    %v4665 = vmax.f32 %v4601, 0.0
    %v4666 = vmax.f32 %v4602, 0.0
    %v4667 = vmax.f32 %v4603, 0.0
    %v4668 = vmax.f32 %v4604, 0.0
    %v4669 = vmax.f32 %v4605, 0.0
    %v4670 = vmax.f32 %v4606, 0.0
    %v4671 = vmax.f32 %v4607, 0.0
    %v4672 = vmax.f32 %v4608, 0.0
    %v4673 = vmax.f32 %v4609, 0.0
    %v4674 = vmax.f32 %v4610, 0.0
    %v4675 = vmax.f32 %v4611, 0.0
    %v4676 = vmax.f32 %v4612, 0.0
    %v4677 = vmax.f32 %v4613, 0.0
    %v4678 = vmax.f32 %v4614, 0.0
    %v4679 = vmax.f32 %v4615, 0.0
    %v4680 = vmax.f32 %v4616, 0.0
    %v4681 = vmax.f32 %v4617, 0.0
    %v4682 = vmax.f32 %v4618, 0.0
    %v4683 = vmax.f32 %v4619, 0.0
    %v4684 = vmax.f32 %v4620, 0.0
    %v4685 = vpack.c.bf16 %v4629, %v4621
    %v4686 = vpack.c.bf16 %v4630, %v4622
    %v4687 = vpack.c.bf16 %v4631, %v4623
    %v4688 = vpack.c.bf16 %v4632, %v4624
    %v4689 = vpack.c.bf16 %v4633, %v4625
    %v4690 = vpack.c.bf16 %v4634, %v4626
    %v4691 = vpack.c.bf16 %v4635, %v4627
    %v4692 = vpack.c.bf16 %v4636, %v4628
    %v4693 = vpack.c.bf16 %v4645, %v4637
    %v4694 = vpack.c.bf16 %v4646, %v4638
    %v4695 = vpack.c.bf16 %v4647, %v4639
    %v4696 = vpack.c.bf16 %v4648, %v4640
    %v4697 = vpack.c.bf16 %v4649, %v4641
    %v4698 = vpack.c.bf16 %v4650, %v4642
    %v4699 = vpack.c.bf16 %v4651, %v4643
    %v4700 = vpack.c.bf16 %v4652, %v4644
    %v4701 = vpack.c.bf16 %v4661, %v4653
    %v4702 = vpack.c.bf16 %v4662, %v4654
    %v4703 = vpack.c.bf16 %v4663, %v4655
    %v4704 = vpack.c.bf16 %v4664, %v4656
    %v4705 = vpack.c.bf16 %v4665, %v4657
    %v4706 = vpack.c.bf16 %v4666, %v4658
    %v4707 = vpack.c.bf16 %v4667, %v4659
    %v4708 = vpack.c.bf16 %v4668, %v4660
    %v4709 = vpack.c.bf16 %v4677, %v4669
    %v4710 = vpack.c.bf16 %v4678, %v4670
    %v4711 = vpack.c.bf16 %v4679, %v4671
    %v4712 = vpack.c.bf16 %v4680, %v4672
    %v4713 = vpack.c.bf16 %v4681, %v4673
    %v4714 = vpack.c.bf16 %v4682, %v4674
    %v4715 = vpack.c.bf16 %v4683, %v4675
    %v4716 = vpack.c.bf16 %v4684, %v4676
    %4717 = vmatprep.subr.bf16.mxu0 0
    %4718 = vmatpush1.bf16.msra.mxu0 0
    %4719 = vmatprep.subr.bf16.mxu0 0
    %4720 = vmatpush1.bf16.msra.mxu0 0
    %4721 = vmatprep.subr.bf16.mxu0 0
    %4722 = vmatpush1.bf16.msra.mxu0 0
    %4723 = vmatprep.subr.bf16.mxu0 0
    %4724 = vmatpush1.bf16.msra.mxu0 0
    %4725 = vmatprep.subr.bf16.mxu0 %v4712
    %4726 = vmatpush1.bf16.msra.mxu0 %v4711
    %4727 = vmatprep.subr.bf16.mxu0 %v4704
    %4728 = vmatpush1.bf16.msra.mxu0 %v4703
    %4729 = vmatprep.subr.bf16.mxu0 %v4696
    %4730 = vmatpush1.bf16.msra.mxu0 %v4695
    %4731 = vmatprep.subr.bf16.mxu0 %v4688
    %4732 = vmatpush1.bf16.msra.mxu0 %v4687
    %4733 = vmatprep.subr.bf16.mxu0 0
    %4734 = vmatpush2.bf16.msra.mxu0 0
    %4735 = vmatprep.subr.bf16.mxu0 0
    %4736 = vmatpush2.bf16.msra.mxu0 0
    %4737 = vmatprep.subr.bf16.mxu0 0
    %4738 = vmatpush2.bf16.msra.mxu0 0
    %4739 = vmatprep.subr.bf16.mxu0 0
    %4740 = vmatpush2.bf16.msra.mxu0 0
    %4741 = vmatprep.subr.bf16.mxu0 0
    %4742 = vmatpush2.bf16.msra.mxu0 0
    %4743 = vmatprep.subr.bf16.mxu0 0
    %4744 = vmatpush2.bf16.msra.mxu0 0
    %4745 = vmatprep.subr.bf16.mxu0 0
    %4746 = vmatpush2.bf16.msra.mxu0 0
    %4747 = vmatprep.subr.bf16.mxu0 0
    %4748 = vmatpush2.bf16.msra.mxu0 0
    %4749 = vmatprep.mubr.bf16.mxu0 0
    %4750 = vmatmul.mubr.bf16.gmra.mxu0 %v2239
    %v4751 = vpop.f32.mrf.mxu0
    %v4752 = vadd.f32 0.0, %v4751
    %v4753 = vpop.f32.mrf.mxu0
    %v4754 = vadd.f32 0.0, %v4753
    %v4755 = vpop.f32.mrf.mxu0
    %v4756 = vadd.f32 0.0, %v4755
    %v4757 = vpop.f32.mrf.mxu0
    %v4758 = vadd.f32 0.0, %v4757
    %4759 = vdwg.mxu0
    %4760 = vmatprep.subr.bf16.mxu0 0
    %4761 = vmatpush1.bf16.msra.mxu0 0
    %4762 = vmatprep.subr.bf16.mxu0 0
    %4763 = vmatpush1.bf16.msra.mxu0 0
    %4764 = vmatprep.subr.bf16.mxu0 0
    %4765 = vmatpush1.bf16.msra.mxu0 0
    %4766 = vmatprep.subr.bf16.mxu0 0
    %4767 = vmatpush1.bf16.msra.mxu0 0
    %4768 = vmatprep.subr.bf16.mxu0 %v4710
    %4769 = vmatpush1.bf16.msra.mxu0 %v4709
    %4770 = vmatprep.subr.bf16.mxu0 %v4702
    %4771 = vmatpush1.bf16.msra.mxu0 %v4701
    %4772 = vmatprep.subr.bf16.mxu0 %v4694
    %4773 = vmatpush1.bf16.msra.mxu0 %v4693
    %4774 = vmatprep.subr.bf16.mxu0 %v4686
    %4775 = vmatpush1.bf16.msra.mxu0 %v4685
    %4776 = vmatprep.subr.bf16.mxu0 0
    %4777 = vmatpush2.bf16.msra.mxu0 0
    %4778 = vmatprep.subr.bf16.mxu0 0
    %4779 = vmatpush2.bf16.msra.mxu0 0
    %4780 = vmatprep.subr.bf16.mxu0 0
    %4781 = vmatpush2.bf16.msra.mxu0 0
    %4782 = vmatprep.subr.bf16.mxu0 0
    %4783 = vmatpush2.bf16.msra.mxu0 0
    %4784 = vmatprep.subr.bf16.mxu0 0
    %4785 = vmatpush2.bf16.msra.mxu0 0
    %4786 = vmatprep.subr.bf16.mxu0 0
    %4787 = vmatpush2.bf16.msra.mxu0 0
    %4788 = vmatprep.subr.bf16.mxu0 0
    %4789 = vmatpush2.bf16.msra.mxu0 0
    %4790 = vmatprep.subr.bf16.mxu0 0
    %4791 = vmatpush2.bf16.msra.mxu0 0
    %4792 = vmatprep.mubr.bf16.mxu0 0
    %4793 = vmatmul.mubr.bf16.gmra.mxu0 %v2290
    %v4794 = vpop.f32.mrf.mxu0
    %v4795 = vadd.f32 %v4752, %v4794
    %v4796 = vpop.f32.mrf.mxu0
    %v4797 = vadd.f32 %v4754, %v4796
    %v4798 = vpop.f32.mrf.mxu0
    %v4799 = vadd.f32 %v4756, %v4798
    %v4800 = vpop.f32.mrf.mxu0
    %v4801 = vadd.f32 %v4758, %v4800
    %4802 = vdwg.mxu0
    %4803 = vmatprep.subr.bf16.mxu0 0
    %4804 = vmatpush1.bf16.msra.mxu0 0
    %4805 = vmatprep.subr.bf16.mxu0 0
    %4806 = vmatpush1.bf16.msra.mxu0 0
    %4807 = vmatprep.subr.bf16.mxu0 0
    %4808 = vmatpush1.bf16.msra.mxu0 0
    %4809 = vmatprep.subr.bf16.mxu0 0
    %4810 = vmatpush1.bf16.msra.mxu0 0
    %4811 = vmatprep.subr.bf16.mxu0 %v4714
    %4812 = vmatpush1.bf16.msra.mxu0 %v4713
    %4813 = vmatprep.subr.bf16.mxu0 %v4706
    %4814 = vmatpush1.bf16.msra.mxu0 %v4705
    %4815 = vmatprep.subr.bf16.mxu0 %v4698
    %4816 = vmatpush1.bf16.msra.mxu0 %v4697
    %4817 = vmatprep.subr.bf16.mxu0 %v4690
    %4818 = vmatpush1.bf16.msra.mxu0 %v4689
    %4819 = vmatprep.subr.bf16.mxu0 0
    %4820 = vmatpush2.bf16.msra.mxu0 0
    %4821 = vmatprep.subr.bf16.mxu0 0
    %4822 = vmatpush2.bf16.msra.mxu0 0
    %4823 = vmatprep.subr.bf16.mxu0 0
    %4824 = vmatpush2.bf16.msra.mxu0 0
    %4825 = vmatprep.subr.bf16.mxu0 0
    %4826 = vmatpush2.bf16.msra.mxu0 0
    %4827 = vmatprep.subr.bf16.mxu0 0
    %4828 = vmatpush2.bf16.msra.mxu0 0
    %4829 = vmatprep.subr.bf16.mxu0 0
    %4830 = vmatpush2.bf16.msra.mxu0 0
    %4831 = vmatprep.subr.bf16.mxu0 0
    %4832 = vmatpush2.bf16.msra.mxu0 0
    %4833 = vmatprep.subr.bf16.mxu0 0
    %4834 = vmatpush2.bf16.msra.mxu0 0
    %4835 = vmatprep.mubr.bf16.mxu0 0
    %4836 = vmatmul.mubr.bf16.gmra.mxu0 %v2341
    %v4837 = vpop.f32.mrf.mxu0
    %v4838 = vadd.f32 0.0, %v4837
    %v4839 = vpop.f32.mrf.mxu0
    %v4840 = vadd.f32 0.0, %v4839
    %v4841 = vpop.f32.mrf.mxu0
    %v4842 = vadd.f32 0.0, %v4841
    %v4843 = vpop.f32.mrf.mxu0
    %v4844 = vadd.f32 0.0, %v4843
    %4845 = vdwg.mxu0
    %v4846 = vadd.f32 %v4795, %v4838
    %v4847 = vadd.f32 %v4797, %v4840
    %v4848 = vadd.f32 %v4799, %v4842
    %v4849 = vadd.f32 %v4801, %v4844
    %4850 = vmatprep.subr.bf16.mxu0 0
    %4851 = vmatpush1.bf16.msra.mxu0 0
    %4852 = vmatprep.subr.bf16.mxu0 0
    %4853 = vmatpush1.bf16.msra.mxu0 0
    %4854 = vmatprep.subr.bf16.mxu0 0
    %4855 = vmatpush1.bf16.msra.mxu0 0
    %4856 = vmatprep.subr.bf16.mxu0 0
    %4857 = vmatpush1.bf16.msra.mxu0 0
    %4858 = vmatprep.subr.bf16.mxu0 %v4716
    %4859 = vmatpush1.bf16.msra.mxu0 %v4715
    %4860 = vmatprep.subr.bf16.mxu0 %v4708
    %4861 = vmatpush1.bf16.msra.mxu0 %v4707
    %4862 = vmatprep.subr.bf16.mxu0 %v4700
    %4863 = vmatpush1.bf16.msra.mxu0 %v4699
    %4864 = vmatprep.subr.bf16.mxu0 %v4692
    %4865 = vmatpush1.bf16.msra.mxu0 %v4691
    %4866 = vmatprep.subr.bf16.mxu0 0
    %4867 = vmatpush2.bf16.msra.mxu0 0
    %4868 = vmatprep.subr.bf16.mxu0 0
    %4869 = vmatpush2.bf16.msra.mxu0 0
    %4870 = vmatprep.subr.bf16.mxu0 0
    %4871 = vmatpush2.bf16.msra.mxu0 0
    %4872 = vmatprep.subr.bf16.mxu0 0
    %4873 = vmatpush2.bf16.msra.mxu0 0
    %4874 = vmatprep.subr.bf16.mxu0 0
    %4875 = vmatpush2.bf16.msra.mxu0 0
    %4876 = vmatprep.subr.bf16.mxu0 0
    %4877 = vmatpush2.bf16.msra.mxu0 0
    %4878 = vmatprep.subr.bf16.mxu0 0
    %4879 = vmatpush2.bf16.msra.mxu0 0
    %4880 = vmatprep.subr.bf16.mxu0 0
    %4881 = vmatpush2.bf16.msra.mxu0 0
    %4882 = vmatprep.mubr.bf16.mxu0 0
    %4883 = vmatmul.mubr.bf16.gmra.mxu0 %v2396
    %v4884 = vpop.f32.mrf.mxu0
    %v4885 = vadd.f32 0.0, %v4884
    %v4886 = vpop.f32.mrf.mxu0
    %v4887 = vadd.f32 0.0, %v4886
    %v4888 = vpop.f32.mrf.mxu0
    %v4889 = vadd.f32 0.0, %v4888
    %v4890 = vpop.f32.mrf.mxu0
    %v4891 = vadd.f32 0.0, %v4890
    %4892 = vdwg.mxu0
    %v4893 = vadd.f32 %v4846, %v4885
    %v4894 = vadd.f32 %v4847, %v4887
    %v4895 = vadd.f32 %v4848, %v4889
    %v4896 = vadd.f32 %v4849, %v4891
    %v4897 = vadd.f32 %v4893, %v2448
    %v4898 = vadd.f32 %v4894, %v2448
    %v4899 = vadd.f32 %v4895, %v2453
    %v4900 = vadd.f32 %v4896, %v2453
    %v4901 = vmax.f32 %v4897, 0.0
    %v4902 = vmax.f32 %v4898, 0.0
    %v4903 = vmax.f32 %v4899, 0.0
    %v4904 = vmax.f32 %v4900, 0.0
    %v4905 = vpack.c.bf16 %v4903, %v4901
    %v4906 = vpack.c.bf16 %v4904, %v4902
    %v4909 = vcombine.low %v4905, %v4906
    %v4910 = vcombine.high %v4905, %v4906
    %v4912 = vunpack.c.l.s4 1966171168
    %v4913 = vunpack.c.0.s8 %v4912
    %v4914 = vlaneseq
    %v4915 = vshrl.u32 %v4914, 7
    %v4916 = vsub.s32 %v4913, %v4915
    %v4917 = vrot.slane %v4909, %v4916
    %v4919 = vunpack.c.l.s4 1966171168
    %v4920 = vunpack.c.0.s8 %v4919
    %v4921 = vlaneseq
    %v4922 = vshrl.u32 %v4921, 7
    %v4923 = vsub.s32 %v4920, %v4922
    %v4924 = vrot.slane %v4910, %v4923
    %v4925 = vcombine.high %v4917, %v4917
    %v4926 = vcombine.high %v4924, %v4924
    %v4928 = vunpack.c.l.s4 1966171168
    %v4929 = vunpack.c.0.s8 %v4928
    %v4930 = vlaneseq
    %v4931 = vshrl.u32 %v4930, 7
    %v4932 = vsub.s32 %v4929, %v4931
    %v4933 = vrot.slane %v4917, %v4932
    %v4935 = vunpack.c.l.s4 1966171168
    %v4936 = vunpack.c.0.s8 %v4935
    %v4937 = vlaneseq
    %v4938 = vshrl.u32 %v4937, 7
    %v4939 = vsub.s32 %v4936, %v4938
    %v4940 = vrot.slane %v4924, %v4939
    %v4942 = vunpack.c.l.s4 1966171168
    %v4943 = vunpack.c.0.s8 %v4942
    %v4944 = vlaneseq
    %v4945 = vshrl.u32 %v4944, 7
    %v4946 = vsub.s32 %v4943, %v4945
    %v4947 = vrot.slane %v4925, %v4946
    %v4949 = vunpack.c.l.s4 1966171168
    %v4950 = vunpack.c.0.s8 %v4949
    %v4951 = vlaneseq
    %v4952 = vshrl.u32 %v4951, 7
    %v4953 = vsub.s32 %v4950, %v4952
    %v4954 = vrot.slane %v4926, %v4953
    %v4955 = vcombine.high %v4933, %v4933
    %v4956 = vcombine.high %v4940, %v4940
    %v4957 = vcombine.high %v4947, %v4947
    %v4958 = vcombine.high %v4954, %v4954
    %v4959 = vunpack.i.l.s16 %v4933
    %v4960 = vunpack.i.h.s16 %v4933
    %v4961 = vunpack.i.l.s16 %v4947
    %v4962 = vunpack.i.h.s16 %v4947
    %v4963 = vunpack.i.l.s16 %v4955
    %v4964 = vunpack.i.h.s16 %v4955
    %v4965 = vunpack.i.l.s16 %v4957
    %v4966 = vunpack.i.h.s16 %v4957
    %v4967 = vunpack.i.l.s16 %v4940
    %v4968 = vunpack.i.h.s16 %v4940
    %v4969 = vunpack.i.l.s16 %v4954
    %v4970 = vunpack.i.h.s16 %v4954
    %v4971 = vunpack.i.l.s16 %v4956
    %v4972 = vunpack.i.h.s16 %v4956
    %v4973 = vunpack.i.l.s16 %v4958
    %v4974 = vunpack.i.h.s16 %v4958
    %v4975 = vpack.i.b16 %v4959, %v4959
    %v4976 = vpack.i.b16 %v4960, %v4960
    %v4977 = vpack.i.b16 %v4961, %v4961
    %v4978 = vpack.i.b16 %v4962, %v4962
    %v4979 = vpack.i.b16 %v4963, %v4963
    %v4980 = vpack.i.b16 %v4964, %v4964
    %v4981 = vpack.i.b16 %v4965, %v4965
    %v4982 = vpack.i.b16 %v4966, %v4966
    %v4983 = vpack.i.b16 %v4967, %v4967
    %v4984 = vpack.i.b16 %v4968, %v4968
    %v4985 = vpack.i.b16 %v4969, %v4969
    %v4986 = vpack.i.b16 %v4970, %v4970
    %v4987 = vpack.i.b16 %v4971, %v4971
    %v4988 = vpack.i.b16 %v4972, %v4972
    %v4989 = vpack.i.b16 %v4973, %v4973
    %v4990 = vpack.i.b16 %v4974, %v4974
    %vm5007 = vsmask.f32 7938
    %vm5008 = vmand %vm2565, %vm5007
    %vm5009 = vsmask.f32 7942
    %vm5010 = vmand %vm2568, %vm5009
    %vm5011 = vmor %vm5010, %vm5008
    %v5012 = vld [vmem:[#allocation2] sm:$0x3]
    %v5013 = vsel %vm5011, %v4975, %v5012
    %5014 = vst [vmem:[#allocation2] sm:$0x3] %v5013
    %v5015 = vld [vmem:[#allocation2 + $0x2] sm:$0x3]
    %v5016 = vsel %vm5011, %v4976, %v5015
    %5017 = vst [vmem:[#allocation2 + $0x2] sm:$0x3] %v5016
    %v5018 = vld [vmem:[#allocation2 + $0x4] sm:$0x3]
    %v5019 = vsel %vm5011, %v4977, %v5018
    %5020 = vst [vmem:[#allocation2 + $0x4] sm:$0x3] %v5019
    %v5021 = vld [vmem:[#allocation2 + $0x6] sm:$0x3]
    %v5022 = vsel %vm5011, %v4978, %v5021
    %5023 = vst [vmem:[#allocation2 + $0x6] sm:$0x3] %v5022
    %v5024 = vld [vmem:[#allocation2 + $0x8] sm:$0x3]
    %v5025 = vsel %vm5011, %v4979, %v5024
    %5026 = vst [vmem:[#allocation2 + $0x8] sm:$0x3] %v5025
    %v5027 = vld [vmem:[#allocation2 + $0xa] sm:$0x3]
    %v5028 = vsel %vm5011, %v4980, %v5027
    %5029 = vst [vmem:[#allocation2 + $0xa] sm:$0x3] %v5028
    %v5030 = vld [vmem:[#allocation2 + $0xc] sm:$0x3]
    %v5031 = vsel %vm5011, %v4981, %v5030
    %5032 = vst [vmem:[#allocation2 + $0xc] sm:$0x3] %v5031
    %v5033 = vld [vmem:[#allocation2 + $0xe] sm:$0x3]
    %v5034 = vsel %vm5011, %v4982, %v5033
    %5035 = vst [vmem:[#allocation2 + $0xe] sm:$0x3] %v5034
    %v5036 = vld [vmem:[#allocation2 + $0x10] sm:$0x3]
    %v5037 = vsel %vm5011, %v4983, %v5036
    %5038 = vst [vmem:[#allocation2 + $0x10] sm:$0x3] %v5037
    %v5039 = vld [vmem:[#allocation2 + $0x12] sm:$0x3]
    %v5040 = vsel %vm5011, %v4984, %v5039
    %5041 = vst [vmem:[#allocation2 + $0x12] sm:$0x3] %v5040
    %v5042 = vld [vmem:[#allocation2 + $0x14] sm:$0x3]
    %v5043 = vsel %vm5011, %v4985, %v5042
    %5044 = vst [vmem:[#allocation2 + $0x14] sm:$0x3] %v5043
    %v5045 = vld [vmem:[#allocation2 + $0x16] sm:$0x3]
    %v5046 = vsel %vm5011, %v4986, %v5045
    %5047 = vst [vmem:[#allocation2 + $0x16] sm:$0x3] %v5046
    %v5048 = vld [vmem:[#allocation2 + $0x18] sm:$0x3]
    %v5049 = vsel %vm5011, %v4987, %v5048
    %5050 = vst [vmem:[#allocation2 + $0x18] sm:$0x3] %v5049
    %v5051 = vld [vmem:[#allocation2 + $0x1a] sm:$0x3]
    %v5052 = vsel %vm5011, %v4988, %v5051
    %5053 = vst [vmem:[#allocation2 + $0x1a] sm:$0x3] %v5052
    %v5054 = vld [vmem:[#allocation2 + $0x1c] sm:$0x3]
    %v5055 = vsel %vm5011, %v4989, %v5054
    %5056 = vst [vmem:[#allocation2 + $0x1c] sm:$0x3] %v5055
    %v5057 = vld [vmem:[#allocation2 + $0x1e] sm:$0x3]
    %v5058 = vsel %vm5011, %v4990, %v5057
    %5059 = vst [vmem:[#allocation2 + $0x1e] sm:$0x3] %v5058
    %v5060 = vld [vmem:[#allocation2] sm:$0x3]
    %v5061 = vld [vmem:[%s5] sm:$0xff]
    %v5062 = vld [vmem:[%s5 + $0x8] sm:$0xff]
    %v5063 = vld [vmem:[%s5 + $0x10] sm:$0xff]
    %v5064 = vld [vmem:[%s5 + $0x18] sm:$0xff]
    %v5065 = vld [vmem:[%s5 + $0x20] sm:$0xff]
    %v5066 = vld [vmem:[%s5 + $0x28] sm:$0xff]
    %v5067 = vld [vmem:[%s5 + $0x30] sm:$0xff]
    %v5068 = vld [vmem:[%s5 + $0x38] sm:$0xff]
    %v5069 = vld [vmem:[%s5 + $0x40] sm:$0xff]
    %v5070 = vld [vmem:[%s5 + $0x48] sm:$0xff]
    %v5071 = vld [vmem:[%s5 + $0x50] sm:$0xff]
    %v5072 = vld [vmem:[%s5 + $0x58] sm:$0xff]
    %v5073 = vld [vmem:[%s5 + $0x60] sm:$0xff]
    %v5074 = vld [vmem:[%s5 + $0x68] sm:$0xff]
    %v5075 = vld [vmem:[%s5 + $0x70] sm:$0xff]
    %v5076 = vld [vmem:[%s5 + $0x78] sm:$0xff]
    %v5077 = vld [vmem:[%s5 + $0x80] sm:$0xff]
    %v5078 = vld [vmem:[%s5 + $0x88] sm:$0xff]
    %v5079 = vld [vmem:[%s5 + $0x90] sm:$0xff]
    %v5080 = vld [vmem:[%s5 + $0x98] sm:$0xff]
    %v5081 = vld [vmem:[%s5 + $0xa0] sm:$0xff]
    %v5082 = vld [vmem:[%s5 + $0xa8] sm:$0xff]
    %v5083 = vld [vmem:[%s5 + $0xb0] sm:$0xff]
    %v5084 = vld [vmem:[%s5 + $0xb8] sm:$0xff]
    %v5085 = vld [vmem:[%s5 + $0xc0] sm:$0xff]
    %v5086 = vld [vmem:[%s5 + $0xc8] sm:$0xff]
    %v5087 = vld [vmem:[%s5 + $0xd0] sm:$0xff]
    %v5088 = vld [vmem:[%s5 + $0xd8] sm:$0xff]
    %v5089 = vld [vmem:[%s5 + $0xe0] sm:$0xff]
    %v5090 = vld [vmem:[%s5 + $0xe8] sm:$0xff]
    %v5091 = vld [vmem:[%s5 + $0xf0] sm:$0xff]
    %v5092 = vld [vmem:[%s5 + $0xf8] sm:$0xff]
    %s5093 = scalar_lea.vmem [#allocation2], 2
    %v5094 = vld [vmem:[%s5093] sm:$0x3]
    %s5095 = scalar_lea.vmem %s5, 256
    %v5096 = vld [vmem:[%s5095] sm:$0xff]
    %v5097 = vld [vmem:[%s5095 + $0x8] sm:$0xff]
    %v5098 = vld [vmem:[%s5095 + $0x10] sm:$0xff]
    %v5099 = vld [vmem:[%s5095 + $0x18] sm:$0xff]
    %v5100 = vld [vmem:[%s5095 + $0x20] sm:$0xff]
    %v5101 = vld [vmem:[%s5095 + $0x28] sm:$0xff]
    %v5102 = vld [vmem:[%s5095 + $0x30] sm:$0xff]
    %v5103 = vld [vmem:[%s5095 + $0x38] sm:$0xff]
    %v5104 = vld [vmem:[%s5095 + $0x40] sm:$0xff]
    %v5105 = vld [vmem:[%s5095 + $0x48] sm:$0xff]
    %v5106 = vld [vmem:[%s5095 + $0x50] sm:$0xff]
    %v5107 = vld [vmem:[%s5095 + $0x58] sm:$0xff]
    %v5108 = vld [vmem:[%s5095 + $0x60] sm:$0xff]
    %v5109 = vld [vmem:[%s5095 + $0x68] sm:$0xff]
    %v5110 = vld [vmem:[%s5095 + $0x70] sm:$0xff]
    %v5111 = vld [vmem:[%s5095 + $0x78] sm:$0xff]
    %v5112 = vld [vmem:[%s5095 + $0x80] sm:$0xff]
    %v5113 = vld [vmem:[%s5095 + $0x88] sm:$0xff]
    %v5114 = vld [vmem:[%s5095 + $0x90] sm:$0xff]
    %v5115 = vld [vmem:[%s5095 + $0x98] sm:$0xff]
    %v5116 = vld [vmem:[%s5095 + $0xa0] sm:$0xff]
    %v5117 = vld [vmem:[%s5095 + $0xa8] sm:$0xff]
    %v5118 = vld [vmem:[%s5095 + $0xb0] sm:$0xff]
    %v5119 = vld [vmem:[%s5095 + $0xb8] sm:$0xff]
    %v5120 = vld [vmem:[%s5095 + $0xc0] sm:$0xff]
    %v5121 = vld [vmem:[%s5095 + $0xc8] sm:$0xff]
    %v5122 = vld [vmem:[%s5095 + $0xd0] sm:$0xff]
    %v5123 = vld [vmem:[%s5095 + $0xd8] sm:$0xff]
    %v5124 = vld [vmem:[%s5095 + $0xe0] sm:$0xff]
    %v5125 = vld [vmem:[%s5095 + $0xe8] sm:$0xff]
    %v5126 = vld [vmem:[%s5095 + $0xf0] sm:$0xff]
    %v5127 = vld [vmem:[%s5095 + $0xf8] sm:$0xff]
    %v5130 = vunpack.c.l.s4 1966171168
    %v5131 = vunpack.c.0.s8 %v5130
    %v5132 = vlaneseq
    %v5133 = vshrl.u32 %v5132, 7
    %v5134 = vsub.s32 %v5131, %v5133
    %v5135 = vrot.slane %v5094, %v5134
    %v5136 = vcombine.high %v5135, %v5135
    %v5138 = vunpack.c.l.s4 1966171168
    %v5139 = vunpack.c.0.s8 %v5138
    %v5140 = vlaneseq
    %v5141 = vshrl.u32 %v5140, 7
    %v5142 = vsub.s32 %v5139, %v5141
    %v5143 = vrot.slane %v5135, %v5142
    %v5145 = vunpack.c.l.s4 1966171168
    %v5146 = vunpack.c.0.s8 %v5145
    %v5147 = vlaneseq
    %v5148 = vshrl.u32 %v5147, 7
    %v5149 = vsub.s32 %v5146, %v5148
    %v5150 = vrot.slane %v5136, %v5149
    %v5185 = vunpack.c.l.b16 %v5096
    %v5186 = vunpack.c.h.b16 %v5096
    %v5187 = vunpack.c.l.b16 %v5097
    %v5188 = vunpack.c.h.b16 %v5097
    %v5189 = vunpack.c.l.b16 %v5098
    %v5190 = vunpack.c.h.b16 %v5098
    %v5191 = vunpack.c.l.b16 %v5099
    %v5192 = vunpack.c.h.b16 %v5099
    %v5193 = vunpack.c.l.b16 %v5100
    %v5194 = vunpack.c.h.b16 %v5100
    %v5195 = vunpack.c.l.b16 %v5101
    %v5196 = vunpack.c.h.b16 %v5101
    %v5197 = vunpack.c.l.b16 %v5102
    %v5198 = vunpack.c.h.b16 %v5102
    %v5199 = vunpack.c.l.b16 %v5103
    %v5200 = vunpack.c.h.b16 %v5103
    %v5201 = vunpack.c.l.b16 %v5104
    %v5202 = vunpack.c.h.b16 %v5104
    %v5203 = vunpack.c.l.b16 %v5105
    %v5204 = vunpack.c.h.b16 %v5105
    %v5205 = vunpack.c.l.b16 %v5106
    %v5206 = vunpack.c.h.b16 %v5106
    %v5207 = vunpack.c.l.b16 %v5107
    %v5208 = vunpack.c.h.b16 %v5107
    %v5209 = vunpack.c.l.b16 %v5108
    %v5210 = vunpack.c.h.b16 %v5108
    %v5211 = vunpack.c.l.b16 %v5109
    %v5212 = vunpack.c.h.b16 %v5109
    %v5213 = vunpack.c.l.b16 %v5110
    %v5214 = vunpack.c.h.b16 %v5110
    %v5215 = vunpack.c.l.b16 %v5111
    %v5216 = vunpack.c.h.b16 %v5111
    %v5217 = vunpack.c.l.b16 %v5112
    %v5218 = vunpack.c.h.b16 %v5112
    %v5219 = vunpack.c.l.b16 %v5113
    %v5220 = vunpack.c.h.b16 %v5113
    %v5221 = vunpack.c.l.b16 %v5114
    %v5222 = vunpack.c.h.b16 %v5114
    %v5223 = vunpack.c.l.b16 %v5115
    %v5224 = vunpack.c.h.b16 %v5115
    %v5225 = vunpack.c.l.b16 %v5116
    %v5226 = vunpack.c.h.b16 %v5116
    %v5227 = vunpack.c.l.b16 %v5117
    %v5228 = vunpack.c.h.b16 %v5117
    %v5229 = vunpack.c.l.b16 %v5118
    %v5230 = vunpack.c.h.b16 %v5118
    %v5231 = vunpack.c.l.b16 %v5119
    %v5232 = vunpack.c.h.b16 %v5119
    %v5233 = vunpack.c.l.b16 %v5120
    %v5234 = vunpack.c.h.b16 %v5120
    %v5235 = vunpack.c.l.b16 %v5121
    %v5236 = vunpack.c.h.b16 %v5121
    %v5237 = vunpack.c.l.b16 %v5122
    %v5238 = vunpack.c.h.b16 %v5122
    %v5239 = vunpack.c.l.b16 %v5123
    %v5240 = vunpack.c.h.b16 %v5123
    %v5241 = vunpack.c.l.b16 %v5124
    %v5242 = vunpack.c.h.b16 %v5124
    %v5243 = vunpack.c.l.b16 %v5125
    %v5244 = vunpack.c.h.b16 %v5125
    %v5245 = vunpack.c.l.b16 %v5126
    %v5246 = vunpack.c.h.b16 %v5126
    %v5247 = vunpack.c.l.b16 %v5127
    %v5248 = vunpack.c.h.b16 %v5127
    %v5249 = vpack.c.b16 %v5187, %v5185
    %v5250 = vpack.c.b16 %v5188, %v5186
    %v5251 = vpack.c.b16 %v5191, %v5189
    %v5252 = vpack.c.b16 %v5192, %v5190
    %v5253 = vpack.c.b16 %v5195, %v5193
    %v5254 = vpack.c.b16 %v5196, %v5194
    %v5255 = vpack.c.b16 %v5199, %v5197
    %v5256 = vpack.c.b16 %v5200, %v5198
    %v5257 = vpack.c.b16 %v5203, %v5201
    %v5258 = vpack.c.b16 %v5204, %v5202
    %v5259 = vpack.c.b16 %v5207, %v5205
    %v5260 = vpack.c.b16 %v5208, %v5206
    %v5261 = vpack.c.b16 %v5211, %v5209
    %v5262 = vpack.c.b16 %v5212, %v5210
    %v5263 = vpack.c.b16 %v5215, %v5213
    %v5264 = vpack.c.b16 %v5216, %v5214
    %v5265 = vpack.c.b16 %v5219, %v5217
    %v5266 = vpack.c.b16 %v5220, %v5218
    %v5267 = vpack.c.b16 %v5223, %v5221
    %v5268 = vpack.c.b16 %v5224, %v5222
    %v5269 = vpack.c.b16 %v5227, %v5225
    %v5270 = vpack.c.b16 %v5228, %v5226
    %v5271 = vpack.c.b16 %v5231, %v5229
    %v5272 = vpack.c.b16 %v5232, %v5230
    %v5273 = vpack.c.b16 %v5235, %v5233
    %v5274 = vpack.c.b16 %v5236, %v5234
    %v5275 = vpack.c.b16 %v5239, %v5237
    %v5276 = vpack.c.b16 %v5240, %v5238
    %v5277 = vpack.c.b16 %v5243, %v5241
    %v5278 = vpack.c.b16 %v5244, %v5242
    %v5279 = vpack.c.b16 %v5247, %v5245
    %v5280 = vpack.c.b16 %v5248, %v5246
    %5313 = vmatprep.subr.bf16.mxu0 %v5264
    %5314 = vmatpush1.bf16.msra.mxu0 %v5263
    %5315 = vmatprep.subr.bf16.mxu0 %v5262
    %5316 = vmatpush1.bf16.msra.mxu0 %v5261
    %5317 = vmatprep.subr.bf16.mxu0 %v5260
    %5318 = vmatpush1.bf16.msra.mxu0 %v5259
    %5319 = vmatprep.subr.bf16.mxu0 %v5258
    %5320 = vmatpush1.bf16.msra.mxu0 %v5257
    %5321 = vmatprep.subr.bf16.mxu0 %v5256
    %5322 = vmatpush1.bf16.msra.mxu0 %v5255
    %5323 = vmatprep.subr.bf16.mxu0 %v5254
    %5324 = vmatpush1.bf16.msra.mxu0 %v5253
    %5325 = vmatprep.subr.bf16.mxu0 %v5252
    %5326 = vmatpush1.bf16.msra.mxu0 %v5251
    %5327 = vmatprep.subr.bf16.mxu0 %v5250
    %5328 = vmatpush1.bf16.msra.mxu0 %v5249
    %5329 = vmatprep.subr.bf16.mxu0 %v5280
    %5330 = vmatpush2.bf16.msra.mxu0 %v5279
    %5331 = vmatprep.subr.bf16.mxu0 %v5278
    %5332 = vmatpush2.bf16.msra.mxu0 %v5277
    %5333 = vmatprep.subr.bf16.mxu0 %v5276
    %5334 = vmatpush2.bf16.msra.mxu0 %v5275
    %5335 = vmatprep.subr.bf16.mxu0 %v5274
    %5336 = vmatpush2.bf16.msra.mxu0 %v5273
    %5337 = vmatprep.subr.bf16.mxu0 %v5272
    %5338 = vmatpush2.bf16.msra.mxu0 %v5271
    %5339 = vmatprep.subr.bf16.mxu0 %v5270
    %5340 = vmatpush2.bf16.msra.mxu0 %v5269
    %5341 = vmatprep.subr.bf16.mxu0 %v5268
    %5342 = vmatpush2.bf16.msra.mxu0 %v5267
    %5343 = vmatprep.subr.bf16.mxu0 %v5266
    %5344 = vmatpush2.bf16.msra.mxu0 %v5265
    %5345 = vmatprep.mubr.bf16.mxu0 %v5150
    %5346 = vmatmul.mubr.bf16.gmra.mxu0 %v5143
    %v5347 = vpop.f32.mrf.mxu0
    %v5348 = vadd.f32 0.0, %v5347
    %v5349 = vpop.f32.mrf.mxu0
    %v5350 = vadd.f32 0.0, %v5349
    %v5351 = vpop.f32.mrf.mxu0
    %v5352 = vpop.f32.mrf.mxu0
    %5353 = vdwg.mxu0
    %v5356 = vunpack.c.l.s4 1966171168
    %v5357 = vunpack.c.0.s8 %v5356
    %v5358 = vlaneseq
    %v5359 = vshrl.u32 %v5358, 7
    %v5360 = vsub.s32 %v5357, %v5359
    %v5361 = vrot.slane %v5060, %v5360
    %v5362 = vcombine.high %v5361, %v5361
    %v5364 = vunpack.c.l.s4 1966171168
    %v5365 = vunpack.c.0.s8 %v5364
    %v5366 = vlaneseq
    %v5367 = vshrl.u32 %v5366, 7
    %v5368 = vsub.s32 %v5365, %v5367
    %v5369 = vrot.slane %v5361, %v5368
    %v5371 = vunpack.c.l.s4 1966171168
    %v5372 = vunpack.c.0.s8 %v5371
    %v5373 = vlaneseq
    %v5374 = vshrl.u32 %v5373, 7
    %v5375 = vsub.s32 %v5372, %v5374
    %v5376 = vrot.slane %v5362, %v5375
    %v5411 = vunpack.c.l.b16 %v5061
    %v5412 = vunpack.c.h.b16 %v5061
    %v5413 = vunpack.c.l.b16 %v5062
    %v5414 = vunpack.c.h.b16 %v5062
    %v5415 = vunpack.c.l.b16 %v5063
    %v5416 = vunpack.c.h.b16 %v5063
    %v5417 = vunpack.c.l.b16 %v5064
    %v5418 = vunpack.c.h.b16 %v5064
    %v5419 = vunpack.c.l.b16 %v5065
    %v5420 = vunpack.c.h.b16 %v5065
    %v5421 = vunpack.c.l.b16 %v5066
    %v5422 = vunpack.c.h.b16 %v5066
    %v5423 = vunpack.c.l.b16 %v5067
    %v5424 = vunpack.c.h.b16 %v5067
    %v5425 = vunpack.c.l.b16 %v5068
    %v5426 = vunpack.c.h.b16 %v5068
    %v5427 = vunpack.c.l.b16 %v5069
    %v5428 = vunpack.c.h.b16 %v5069
    %v5429 = vunpack.c.l.b16 %v5070
    %v5430 = vunpack.c.h.b16 %v5070
    %v5431 = vunpack.c.l.b16 %v5071
    %v5432 = vunpack.c.h.b16 %v5071
    %v5433 = vunpack.c.l.b16 %v5072
    %v5434 = vunpack.c.h.b16 %v5072
    %v5435 = vunpack.c.l.b16 %v5073
    %v5436 = vunpack.c.h.b16 %v5073
    %v5437 = vunpack.c.l.b16 %v5074
    %v5438 = vunpack.c.h.b16 %v5074
    %v5439 = vunpack.c.l.b16 %v5075
    %v5440 = vunpack.c.h.b16 %v5075
    %v5441 = vunpack.c.l.b16 %v5076
    %v5442 = vunpack.c.h.b16 %v5076
    %v5443 = vunpack.c.l.b16 %v5077
    %v5444 = vunpack.c.h.b16 %v5077
    %v5445 = vunpack.c.l.b16 %v5078
    %v5446 = vunpack.c.h.b16 %v5078
    %v5447 = vunpack.c.l.b16 %v5079
    %v5448 = vunpack.c.h.b16 %v5079
    %v5449 = vunpack.c.l.b16 %v5080
    %v5450 = vunpack.c.h.b16 %v5080
    %v5451 = vunpack.c.l.b16 %v5081
    %v5452 = vunpack.c.h.b16 %v5081
    %v5453 = vunpack.c.l.b16 %v5082
    %v5454 = vunpack.c.h.b16 %v5082
    %v5455 = vunpack.c.l.b16 %v5083
    %v5456 = vunpack.c.h.b16 %v5083
    %v5457 = vunpack.c.l.b16 %v5084
    %v5458 = vunpack.c.h.b16 %v5084
    %v5459 = vunpack.c.l.b16 %v5085
    %v5460 = vunpack.c.h.b16 %v5085
    %v5461 = vunpack.c.l.b16 %v5086
    %v5462 = vunpack.c.h.b16 %v5086
    %v5463 = vunpack.c.l.b16 %v5087
    %v5464 = vunpack.c.h.b16 %v5087
    %v5465 = vunpack.c.l.b16 %v5088
    %v5466 = vunpack.c.h.b16 %v5088
    %v5467 = vunpack.c.l.b16 %v5089
    %v5468 = vunpack.c.h.b16 %v5089
    %v5469 = vunpack.c.l.b16 %v5090
    %v5470 = vunpack.c.h.b16 %v5090
    %v5471 = vunpack.c.l.b16 %v5091
    %v5472 = vunpack.c.h.b16 %v5091
    %v5473 = vunpack.c.l.b16 %v5092
    %v5474 = vunpack.c.h.b16 %v5092
    %v5475 = vpack.c.b16 %v5413, %v5411
    %v5476 = vpack.c.b16 %v5414, %v5412
    %v5477 = vpack.c.b16 %v5417, %v5415
    %v5478 = vpack.c.b16 %v5418, %v5416
    %v5479 = vpack.c.b16 %v5421, %v5419
    %v5480 = vpack.c.b16 %v5422, %v5420
    %v5481 = vpack.c.b16 %v5425, %v5423
    %v5482 = vpack.c.b16 %v5426, %v5424
    %v5483 = vpack.c.b16 %v5429, %v5427
    %v5484 = vpack.c.b16 %v5430, %v5428
    %v5485 = vpack.c.b16 %v5433, %v5431
    %v5486 = vpack.c.b16 %v5434, %v5432
    %v5487 = vpack.c.b16 %v5437, %v5435
    %v5488 = vpack.c.b16 %v5438, %v5436
    %v5489 = vpack.c.b16 %v5441, %v5439
    %v5490 = vpack.c.b16 %v5442, %v5440
    %v5491 = vpack.c.b16 %v5445, %v5443
    %v5492 = vpack.c.b16 %v5446, %v5444
    %v5493 = vpack.c.b16 %v5449, %v5447
    %v5494 = vpack.c.b16 %v5450, %v5448
    %v5495 = vpack.c.b16 %v5453, %v5451
    %v5496 = vpack.c.b16 %v5454, %v5452
    %v5497 = vpack.c.b16 %v5457, %v5455
    %v5498 = vpack.c.b16 %v5458, %v5456
    %v5499 = vpack.c.b16 %v5461, %v5459
    %v5500 = vpack.c.b16 %v5462, %v5460
    %v5501 = vpack.c.b16 %v5465, %v5463
    %v5502 = vpack.c.b16 %v5466, %v5464
    %v5503 = vpack.c.b16 %v5469, %v5467
    %v5504 = vpack.c.b16 %v5470, %v5468
    %v5505 = vpack.c.b16 %v5473, %v5471
    %v5506 = vpack.c.b16 %v5474, %v5472
    %5539 = vmatprep.subr.bf16.mxu0 %v5490
    %5540 = vmatpush1.bf16.msra.mxu0 %v5489
    %5541 = vmatprep.subr.bf16.mxu0 %v5488
    %5542 = vmatpush1.bf16.msra.mxu0 %v5487
    %5543 = vmatprep.subr.bf16.mxu0 %v5486
    %5544 = vmatpush1.bf16.msra.mxu0 %v5485
    %5545 = vmatprep.subr.bf16.mxu0 %v5484
    %5546 = vmatpush1.bf16.msra.mxu0 %v5483
    %5547 = vmatprep.subr.bf16.mxu0 %v5482
    %5548 = vmatpush1.bf16.msra.mxu0 %v5481
    %5549 = vmatprep.subr.bf16.mxu0 %v5480
    %5550 = vmatpush1.bf16.msra.mxu0 %v5479
    %5551 = vmatprep.subr.bf16.mxu0 %v5478
    %5552 = vmatpush1.bf16.msra.mxu0 %v5477
    %5553 = vmatprep.subr.bf16.mxu0 %v5476
    %5554 = vmatpush1.bf16.msra.mxu0 %v5475
    %5555 = vmatprep.subr.bf16.mxu0 %v5506
    %5556 = vmatpush2.bf16.msra.mxu0 %v5505
    %5557 = vmatprep.subr.bf16.mxu0 %v5504
    %5558 = vmatpush2.bf16.msra.mxu0 %v5503
    %5559 = vmatprep.subr.bf16.mxu0 %v5502
    %5560 = vmatpush2.bf16.msra.mxu0 %v5501
    %5561 = vmatprep.subr.bf16.mxu0 %v5500
    %5562 = vmatpush2.bf16.msra.mxu0 %v5499
    %5563 = vmatprep.subr.bf16.mxu0 %v5498
    %5564 = vmatpush2.bf16.msra.mxu0 %v5497
    %5565 = vmatprep.subr.bf16.mxu0 %v5496
    %5566 = vmatpush2.bf16.msra.mxu0 %v5495
    %5567 = vmatprep.subr.bf16.mxu0 %v5494
    %5568 = vmatpush2.bf16.msra.mxu0 %v5493
    %5569 = vmatprep.subr.bf16.mxu0 %v5492
    %5570 = vmatpush2.bf16.msra.mxu0 %v5491
    %5571 = vmatprep.mubr.bf16.mxu0 %v5376
    %5572 = vmatmul.mubr.bf16.gmra.mxu0 %v5369
    %v5573 = vpop.f32.mrf.mxu0
    %v5574 = vadd.f32 %v5348, %v5573
    %v5575 = vpop.f32.mrf.mxu0
    %v5576 = vadd.f32 %v5350, %v5575
    %v5577 = vpop.f32.mrf.mxu0
    %v5578 = vpop.f32.mrf.mxu0
    %5579 = vdwg.mxu0
    %s5580 = scalar_lea.vmem [#allocation2], 4
    %v5581 = vld [vmem:[%s5580] sm:$0x3]
    %s5582 = scalar_lea.vmem %s5, 512
    %v5583 = vld [vmem:[%s5582] sm:$0xff]
    %v5584 = vld [vmem:[%s5582 + $0x8] sm:$0xff]
    %v5585 = vld [vmem:[%s5582 + $0x10] sm:$0xff]
    %v5586 = vld [vmem:[%s5582 + $0x18] sm:$0xff]
    %v5587 = vld [vmem:[%s5582 + $0x20] sm:$0xff]
    %v5588 = vld [vmem:[%s5582 + $0x28] sm:$0xff]
    %v5589 = vld [vmem:[%s5582 + $0x30] sm:$0xff]
    %v5590 = vld [vmem:[%s5582 + $0x38] sm:$0xff]
    %v5591 = vld [vmem:[%s5582 + $0x40] sm:$0xff]
    %v5592 = vld [vmem:[%s5582 + $0x48] sm:$0xff]
    %v5593 = vld [vmem:[%s5582 + $0x50] sm:$0xff]
    %v5594 = vld [vmem:[%s5582 + $0x58] sm:$0xff]
    %v5595 = vld [vmem:[%s5582 + $0x60] sm:$0xff]
    %v5596 = vld [vmem:[%s5582 + $0x68] sm:$0xff]
    %v5597 = vld [vmem:[%s5582 + $0x70] sm:$0xff]
    %v5598 = vld [vmem:[%s5582 + $0x78] sm:$0xff]
    %v5599 = vld [vmem:[%s5582 + $0x80] sm:$0xff]
    %v5600 = vld [vmem:[%s5582 + $0x88] sm:$0xff]
    %v5601 = vld [vmem:[%s5582 + $0x90] sm:$0xff]
    %v5602 = vld [vmem:[%s5582 + $0x98] sm:$0xff]
    %v5603 = vld [vmem:[%s5582 + $0xa0] sm:$0xff]
    %v5604 = vld [vmem:[%s5582 + $0xa8] sm:$0xff]
    %v5605 = vld [vmem:[%s5582 + $0xb0] sm:$0xff]
    %v5606 = vld [vmem:[%s5582 + $0xb8] sm:$0xff]
    %v5607 = vld [vmem:[%s5582 + $0xc0] sm:$0xff]
    %v5608 = vld [vmem:[%s5582 + $0xc8] sm:$0xff]
    %v5609 = vld [vmem:[%s5582 + $0xd0] sm:$0xff]
    %v5610 = vld [vmem:[%s5582 + $0xd8] sm:$0xff]
    %v5611 = vld [vmem:[%s5582 + $0xe0] sm:$0xff]
    %v5612 = vld [vmem:[%s5582 + $0xe8] sm:$0xff]
    %v5613 = vld [vmem:[%s5582 + $0xf0] sm:$0xff]
    %v5614 = vld [vmem:[%s5582 + $0xf8] sm:$0xff]
    %v5617 = vunpack.c.l.s4 1966171168
    %v5618 = vunpack.c.0.s8 %v5617
    %v5619 = vlaneseq
    %v5620 = vshrl.u32 %v5619, 7
    %v5621 = vsub.s32 %v5618, %v5620
    %v5622 = vrot.slane %v5581, %v5621
    %v5623 = vcombine.high %v5622, %v5622
    %v5625 = vunpack.c.l.s4 1966171168
    %v5626 = vunpack.c.0.s8 %v5625
    %v5627 = vlaneseq
    %v5628 = vshrl.u32 %v5627, 7
    %v5629 = vsub.s32 %v5626, %v5628
    %v5630 = vrot.slane %v5622, %v5629
    %v5632 = vunpack.c.l.s4 1966171168
    %v5633 = vunpack.c.0.s8 %v5632
    %v5634 = vlaneseq
    %v5635 = vshrl.u32 %v5634, 7
    %v5636 = vsub.s32 %v5633, %v5635
    %v5637 = vrot.slane %v5623, %v5636
    %v5672 = vunpack.c.l.b16 %v5583
    %v5673 = vunpack.c.h.b16 %v5583
    %v5674 = vunpack.c.l.b16 %v5584
    %v5675 = vunpack.c.h.b16 %v5584
    %v5676 = vunpack.c.l.b16 %v5585
    %v5677 = vunpack.c.h.b16 %v5585
    %v5678 = vunpack.c.l.b16 %v5586
    %v5679 = vunpack.c.h.b16 %v5586
    %v5680 = vunpack.c.l.b16 %v5587
    %v5681 = vunpack.c.h.b16 %v5587
    %v5682 = vunpack.c.l.b16 %v5588
    %v5683 = vunpack.c.h.b16 %v5588
    %v5684 = vunpack.c.l.b16 %v5589
    %v5685 = vunpack.c.h.b16 %v5589
    %v5686 = vunpack.c.l.b16 %v5590
    %v5687 = vunpack.c.h.b16 %v5590
    %v5688 = vunpack.c.l.b16 %v5591
    %v5689 = vunpack.c.h.b16 %v5591
    %v5690 = vunpack.c.l.b16 %v5592
    %v5691 = vunpack.c.h.b16 %v5592
    %v5692 = vunpack.c.l.b16 %v5593
    %v5693 = vunpack.c.h.b16 %v5593
    %v5694 = vunpack.c.l.b16 %v5594
    %v5695 = vunpack.c.h.b16 %v5594
    %v5696 = vunpack.c.l.b16 %v5595
    %v5697 = vunpack.c.h.b16 %v5595
    %v5698 = vunpack.c.l.b16 %v5596
    %v5699 = vunpack.c.h.b16 %v5596
    %v5700 = vunpack.c.l.b16 %v5597
    %v5701 = vunpack.c.h.b16 %v5597
    %v5702 = vunpack.c.l.b16 %v5598
    %v5703 = vunpack.c.h.b16 %v5598
    %v5704 = vunpack.c.l.b16 %v5599
    %v5705 = vunpack.c.h.b16 %v5599
    %v5706 = vunpack.c.l.b16 %v5600
    %v5707 = vunpack.c.h.b16 %v5600
    %v5708 = vunpack.c.l.b16 %v5601
    %v5709 = vunpack.c.h.b16 %v5601
    %v5710 = vunpack.c.l.b16 %v5602
    %v5711 = vunpack.c.h.b16 %v5602
    %v5712 = vunpack.c.l.b16 %v5603
    %v5713 = vunpack.c.h.b16 %v5603
    %v5714 = vunpack.c.l.b16 %v5604
    %v5715 = vunpack.c.h.b16 %v5604
    %v5716 = vunpack.c.l.b16 %v5605
    %v5717 = vunpack.c.h.b16 %v5605
    %v5718 = vunpack.c.l.b16 %v5606
    %v5719 = vunpack.c.h.b16 %v5606
    %v5720 = vunpack.c.l.b16 %v5607
    %v5721 = vunpack.c.h.b16 %v5607
    %v5722 = vunpack.c.l.b16 %v5608
    %v5723 = vunpack.c.h.b16 %v5608
    %v5724 = vunpack.c.l.b16 %v5609
    %v5725 = vunpack.c.h.b16 %v5609
    %v5726 = vunpack.c.l.b16 %v5610
    %v5727 = vunpack.c.h.b16 %v5610
    %v5728 = vunpack.c.l.b16 %v5611
    %v5729 = vunpack.c.h.b16 %v5611
    %v5730 = vunpack.c.l.b16 %v5612
    %v5731 = vunpack.c.h.b16 %v5612
    %v5732 = vunpack.c.l.b16 %v5613
    %v5733 = vunpack.c.h.b16 %v5613
    %v5734 = vunpack.c.l.b16 %v5614
    %v5735 = vunpack.c.h.b16 %v5614
    %v5736 = vpack.c.b16 %v5674, %v5672
    %v5737 = vpack.c.b16 %v5675, %v5673
    %v5738 = vpack.c.b16 %v5678, %v5676
    %v5739 = vpack.c.b16 %v5679, %v5677
    %v5740 = vpack.c.b16 %v5682, %v5680
    %v5741 = vpack.c.b16 %v5683, %v5681
    %v5742 = vpack.c.b16 %v5686, %v5684
    %v5743 = vpack.c.b16 %v5687, %v5685
    %v5744 = vpack.c.b16 %v5690, %v5688
    %v5745 = vpack.c.b16 %v5691, %v5689
    %v5746 = vpack.c.b16 %v5694, %v5692
    %v5747 = vpack.c.b16 %v5695, %v5693
    %v5748 = vpack.c.b16 %v5698, %v5696
    %v5749 = vpack.c.b16 %v5699, %v5697
    %v5750 = vpack.c.b16 %v5702, %v5700
    %v5751 = vpack.c.b16 %v5703, %v5701
    %v5752 = vpack.c.b16 %v5706, %v5704
    %v5753 = vpack.c.b16 %v5707, %v5705
    %v5754 = vpack.c.b16 %v5710, %v5708
    %v5755 = vpack.c.b16 %v5711, %v5709
    %v5756 = vpack.c.b16 %v5714, %v5712
    %v5757 = vpack.c.b16 %v5715, %v5713
    %v5758 = vpack.c.b16 %v5718, %v5716
    %v5759 = vpack.c.b16 %v5719, %v5717
    %v5760 = vpack.c.b16 %v5722, %v5720
    %v5761 = vpack.c.b16 %v5723, %v5721
    %v5762 = vpack.c.b16 %v5726, %v5724
    %v5763 = vpack.c.b16 %v5727, %v5725
    %v5764 = vpack.c.b16 %v5730, %v5728
    %v5765 = vpack.c.b16 %v5731, %v5729
    %v5766 = vpack.c.b16 %v5734, %v5732
    %v5767 = vpack.c.b16 %v5735, %v5733
    %5800 = vmatprep.subr.bf16.mxu0 %v5751
    %5801 = vmatpush1.bf16.msra.mxu0 %v5750
    %5802 = vmatprep.subr.bf16.mxu0 %v5749
    %5803 = vmatpush1.bf16.msra.mxu0 %v5748
    %5804 = vmatprep.subr.bf16.mxu0 %v5747
    %5805 = vmatpush1.bf16.msra.mxu0 %v5746
    %5806 = vmatprep.subr.bf16.mxu0 %v5745
    %5807 = vmatpush1.bf16.msra.mxu0 %v5744
    %5808 = vmatprep.subr.bf16.mxu0 %v5743
    %5809 = vmatpush1.bf16.msra.mxu0 %v5742
    %5810 = vmatprep.subr.bf16.mxu0 %v5741
    %5811 = vmatpush1.bf16.msra.mxu0 %v5740
    %5812 = vmatprep.subr.bf16.mxu0 %v5739
    %5813 = vmatpush1.bf16.msra.mxu0 %v5738
    %5814 = vmatprep.subr.bf16.mxu0 %v5737
    %5815 = vmatpush1.bf16.msra.mxu0 %v5736
    %5816 = vmatprep.subr.bf16.mxu0 %v5767
    %5817 = vmatpush2.bf16.msra.mxu0 %v5766
    %5818 = vmatprep.subr.bf16.mxu0 %v5765
    %5819 = vmatpush2.bf16.msra.mxu0 %v5764
    %5820 = vmatprep.subr.bf16.mxu0 %v5763
    %5821 = vmatpush2.bf16.msra.mxu0 %v5762
    %5822 = vmatprep.subr.bf16.mxu0 %v5761
    %5823 = vmatpush2.bf16.msra.mxu0 %v5760
    %5824 = vmatprep.subr.bf16.mxu0 %v5759
    %5825 = vmatpush2.bf16.msra.mxu0 %v5758
    %5826 = vmatprep.subr.bf16.mxu0 %v5757
    %5827 = vmatpush2.bf16.msra.mxu0 %v5756
    %5828 = vmatprep.subr.bf16.mxu0 %v5755
    %5829 = vmatpush2.bf16.msra.mxu0 %v5754
    %5830 = vmatprep.subr.bf16.mxu0 %v5753
    %5831 = vmatpush2.bf16.msra.mxu0 %v5752
    %5832 = vmatprep.mubr.bf16.mxu0 %v5637
    %5833 = vmatmul.mubr.bf16.gmra.mxu0 %v5630
    %v5834 = vpop.f32.mrf.mxu0
    %v5835 = vadd.f32 0.0, %v5834
    %v5836 = vpop.f32.mrf.mxu0
    %v5837 = vadd.f32 0.0, %v5836
    %v5838 = vpop.f32.mrf.mxu0
    %v5839 = vpop.f32.mrf.mxu0
    %5840 = vdwg.mxu0
    %v5841 = vadd.f32 %v5574, %v5835
    %v5842 = vadd.f32 %v5576, %v5837
    %s5843 = scalar_lea.vmem [#allocation2], 6
    %v5844 = vld [vmem:[%s5843] sm:$0x3]
    %s5845 = scalar_lea.vmem %s5, 768
    %v5846 = vld [vmem:[%s5845] sm:$0xff]
    %v5847 = vld [vmem:[%s5845 + $0x8] sm:$0xff]
    %v5848 = vld [vmem:[%s5845 + $0x10] sm:$0xff]
    %v5849 = vld [vmem:[%s5845 + $0x18] sm:$0xff]
    %v5850 = vld [vmem:[%s5845 + $0x20] sm:$0xff]
    %v5851 = vld [vmem:[%s5845 + $0x28] sm:$0xff]
    %v5852 = vld [vmem:[%s5845 + $0x30] sm:$0xff]
    %v5853 = vld [vmem:[%s5845 + $0x38] sm:$0xff]
    %v5854 = vld [vmem:[%s5845 + $0x40] sm:$0xff]
    %v5855 = vld [vmem:[%s5845 + $0x48] sm:$0xff]
    %v5856 = vld [vmem:[%s5845 + $0x50] sm:$0xff]
    %v5857 = vld [vmem:[%s5845 + $0x58] sm:$0xff]
    %v5858 = vld [vmem:[%s5845 + $0x60] sm:$0xff]
    %v5859 = vld [vmem:[%s5845 + $0x68] sm:$0xff]
    %v5860 = vld [vmem:[%s5845 + $0x70] sm:$0xff]
    %v5861 = vld [vmem:[%s5845 + $0x78] sm:$0xff]
    %v5862 = vld [vmem:[%s5845 + $0x80] sm:$0xff]
    %v5863 = vld [vmem:[%s5845 + $0x88] sm:$0xff]
    %v5864 = vld [vmem:[%s5845 + $0x90] sm:$0xff]
    %v5865 = vld [vmem:[%s5845 + $0x98] sm:$0xff]
    %v5866 = vld [vmem:[%s5845 + $0xa0] sm:$0xff]
    %v5867 = vld [vmem:[%s5845 + $0xa8] sm:$0xff]
    %v5868 = vld [vmem:[%s5845 + $0xb0] sm:$0xff]
    %v5869 = vld [vmem:[%s5845 + $0xb8] sm:$0xff]
    %v5870 = vld [vmem:[%s5845 + $0xc0] sm:$0xff]
    %v5871 = vld [vmem:[%s5845 + $0xc8] sm:$0xff]
    %v5872 = vld [vmem:[%s5845 + $0xd0] sm:$0xff]
    %v5873 = vld [vmem:[%s5845 + $0xd8] sm:$0xff]
    %v5874 = vld [vmem:[%s5845 + $0xe0] sm:$0xff]
    %v5875 = vld [vmem:[%s5845 + $0xe8] sm:$0xff]
    %v5876 = vld [vmem:[%s5845 + $0xf0] sm:$0xff]
    %v5877 = vld [vmem:[%s5845 + $0xf8] sm:$0xff]
    %v5880 = vunpack.c.l.s4 1966171168
    %v5881 = vunpack.c.0.s8 %v5880
    %v5882 = vlaneseq
    %v5883 = vshrl.u32 %v5882, 7
    %v5884 = vsub.s32 %v5881, %v5883
    %v5885 = vrot.slane %v5844, %v5884
    %v5886 = vcombine.high %v5885, %v5885
    %v5888 = vunpack.c.l.s4 1966171168
    %v5889 = vunpack.c.0.s8 %v5888
    %v5890 = vlaneseq
    %v5891 = vshrl.u32 %v5890, 7
    %v5892 = vsub.s32 %v5889, %v5891
    %v5893 = vrot.slane %v5885, %v5892
    %v5895 = vunpack.c.l.s4 1966171168
    %v5896 = vunpack.c.0.s8 %v5895
    %v5897 = vlaneseq
    %v5898 = vshrl.u32 %v5897, 7
    %v5899 = vsub.s32 %v5896, %v5898
    %v5900 = vrot.slane %v5886, %v5899
    %v5935 = vunpack.c.l.b16 %v5846
    %v5936 = vunpack.c.h.b16 %v5846
    %v5937 = vunpack.c.l.b16 %v5847
    %v5938 = vunpack.c.h.b16 %v5847
    %v5939 = vunpack.c.l.b16 %v5848
    %v5940 = vunpack.c.h.b16 %v5848
    %v5941 = vunpack.c.l.b16 %v5849
    %v5942 = vunpack.c.h.b16 %v5849
    %v5943 = vunpack.c.l.b16 %v5850
    %v5944 = vunpack.c.h.b16 %v5850
    %v5945 = vunpack.c.l.b16 %v5851
    %v5946 = vunpack.c.h.b16 %v5851
    %v5947 = vunpack.c.l.b16 %v5852
    %v5948 = vunpack.c.h.b16 %v5852
    %v5949 = vunpack.c.l.b16 %v5853
    %v5950 = vunpack.c.h.b16 %v5853
    %v5951 = vunpack.c.l.b16 %v5854
    %v5952 = vunpack.c.h.b16 %v5854
    %v5953 = vunpack.c.l.b16 %v5855
    %v5954 = vunpack.c.h.b16 %v5855
    %v5955 = vunpack.c.l.b16 %v5856
    %v5956 = vunpack.c.h.b16 %v5856
    %v5957 = vunpack.c.l.b16 %v5857
    %v5958 = vunpack.c.h.b16 %v5857
    %v5959 = vunpack.c.l.b16 %v5858
    %v5960 = vunpack.c.h.b16 %v5858
    %v5961 = vunpack.c.l.b16 %v5859
    %v5962 = vunpack.c.h.b16 %v5859
    %v5963 = vunpack.c.l.b16 %v5860
    %v5964 = vunpack.c.h.b16 %v5860
    %v5965 = vunpack.c.l.b16 %v5861
    %v5966 = vunpack.c.h.b16 %v5861
    %v5967 = vunpack.c.l.b16 %v5862
    %v5968 = vunpack.c.h.b16 %v5862
    %v5969 = vunpack.c.l.b16 %v5863
    %v5970 = vunpack.c.h.b16 %v5863
    %v5971 = vunpack.c.l.b16 %v5864
    %v5972 = vunpack.c.h.b16 %v5864
    %v5973 = vunpack.c.l.b16 %v5865
    %v5974 = vunpack.c.h.b16 %v5865
    %v5975 = vunpack.c.l.b16 %v5866
    %v5976 = vunpack.c.h.b16 %v5866
    %v5977 = vunpack.c.l.b16 %v5867
    %v5978 = vunpack.c.h.b16 %v5867
    %v5979 = vunpack.c.l.b16 %v5868
    %v5980 = vunpack.c.h.b16 %v5868
    %v5981 = vunpack.c.l.b16 %v5869
    %v5982 = vunpack.c.h.b16 %v5869
    %v5983 = vunpack.c.l.b16 %v5870
    %v5984 = vunpack.c.h.b16 %v5870
    %v5985 = vunpack.c.l.b16 %v5871
    %v5986 = vunpack.c.h.b16 %v5871
    %v5987 = vunpack.c.l.b16 %v5872
    %v5988 = vunpack.c.h.b16 %v5872
    %v5989 = vunpack.c.l.b16 %v5873
    %v5990 = vunpack.c.h.b16 %v5873
    %v5991 = vunpack.c.l.b16 %v5874
    %v5992 = vunpack.c.h.b16 %v5874
    %v5993 = vunpack.c.l.b16 %v5875
    %v5994 = vunpack.c.h.b16 %v5875
    %v5995 = vunpack.c.l.b16 %v5876
    %v5996 = vunpack.c.h.b16 %v5876
    %v5997 = vunpack.c.l.b16 %v5877
    %v5998 = vunpack.c.h.b16 %v5877
    %v5999 = vpack.c.b16 %v5937, %v5935
    %v6000 = vpack.c.b16 %v5938, %v5936
    %v6001 = vpack.c.b16 %v5941, %v5939
    %v6002 = vpack.c.b16 %v5942, %v5940
    %v6003 = vpack.c.b16 %v5945, %v5943
    %v6004 = vpack.c.b16 %v5946, %v5944
    %v6005 = vpack.c.b16 %v5949, %v5947
    %v6006 = vpack.c.b16 %v5950, %v5948
    %v6007 = vpack.c.b16 %v5953, %v5951
    %v6008 = vpack.c.b16 %v5954, %v5952
    %v6009 = vpack.c.b16 %v5957, %v5955
    %v6010 = vpack.c.b16 %v5958, %v5956
    %v6011 = vpack.c.b16 %v5961, %v5959
    %v6012 = vpack.c.b16 %v5962, %v5960
    %v6013 = vpack.c.b16 %v5965, %v5963
    %v6014 = vpack.c.b16 %v5966, %v5964
    %v6015 = vpack.c.b16 %v5969, %v5967
    %v6016 = vpack.c.b16 %v5970, %v5968
    %v6017 = vpack.c.b16 %v5973, %v5971
    %v6018 = vpack.c.b16 %v5974, %v5972
    %v6019 = vpack.c.b16 %v5977, %v5975
    %v6020 = vpack.c.b16 %v5978, %v5976
    %v6021 = vpack.c.b16 %v5981, %v5979
    %v6022 = vpack.c.b16 %v5982, %v5980
    %v6023 = vpack.c.b16 %v5985, %v5983
    %v6024 = vpack.c.b16 %v5986, %v5984
    %v6025 = vpack.c.b16 %v5989, %v5987
    %v6026 = vpack.c.b16 %v5990, %v5988
    %v6027 = vpack.c.b16 %v5993, %v5991
    %v6028 = vpack.c.b16 %v5994, %v5992
    %v6029 = vpack.c.b16 %v5997, %v5995
    %v6030 = vpack.c.b16 %v5998, %v5996
    %6063 = vmatprep.subr.bf16.mxu0 %v6014
    %6064 = vmatpush1.bf16.msra.mxu0 %v6013
    %6065 = vmatprep.subr.bf16.mxu0 %v6012
    %6066 = vmatpush1.bf16.msra.mxu0 %v6011
    %6067 = vmatprep.subr.bf16.mxu0 %v6010
    %6068 = vmatpush1.bf16.msra.mxu0 %v6009
    %6069 = vmatprep.subr.bf16.mxu0 %v6008
    %6070 = vmatpush1.bf16.msra.mxu0 %v6007
    %6071 = vmatprep.subr.bf16.mxu0 %v6006
    %6072 = vmatpush1.bf16.msra.mxu0 %v6005
    %6073 = vmatprep.subr.bf16.mxu0 %v6004
    %6074 = vmatpush1.bf16.msra.mxu0 %v6003
    %6075 = vmatprep.subr.bf16.mxu0 %v6002
    %6076 = vmatpush1.bf16.msra.mxu0 %v6001
    %6077 = vmatprep.subr.bf16.mxu0 %v6000
    %6078 = vmatpush1.bf16.msra.mxu0 %v5999
    %6079 = vmatprep.subr.bf16.mxu0 %v6030
    %6080 = vmatpush2.bf16.msra.mxu0 %v6029
    %6081 = vmatprep.subr.bf16.mxu0 %v6028
    %6082 = vmatpush2.bf16.msra.mxu0 %v6027
    %6083 = vmatprep.subr.bf16.mxu0 %v6026
    %6084 = vmatpush2.bf16.msra.mxu0 %v6025
    %6085 = vmatprep.subr.bf16.mxu0 %v6024
    %6086 = vmatpush2.bf16.msra.mxu0 %v6023
    %6087 = vmatprep.subr.bf16.mxu0 %v6022
    %6088 = vmatpush2.bf16.msra.mxu0 %v6021
    %6089 = vmatprep.subr.bf16.mxu0 %v6020
    %6090 = vmatpush2.bf16.msra.mxu0 %v6019
    %6091 = vmatprep.subr.bf16.mxu0 %v6018
    %6092 = vmatpush2.bf16.msra.mxu0 %v6017
    %6093 = vmatprep.subr.bf16.mxu0 %v6016
    %6094 = vmatpush2.bf16.msra.mxu0 %v6015
    %6095 = vmatprep.mubr.bf16.mxu0 %v5900
    %6096 = vmatmul.mubr.bf16.gmra.mxu0 %v5893
    %v6097 = vpop.f32.mrf.mxu0
    %v6098 = vadd.f32 0.0, %v6097
    %v6099 = vpop.f32.mrf.mxu0
    %v6100 = vadd.f32 0.0, %v6099
    %v6101 = vpop.f32.mrf.mxu0
    %v6102 = vpop.f32.mrf.mxu0
    %6103 = vdwg.mxu0
    %v6104 = vadd.f32 %v5841, %v6098
    %v6105 = vadd.f32 %v5842, %v6100
    %s6106 = scalar_lea.vmem [#allocation2], 8
    %v6107 = vld [vmem:[%s6106] sm:$0x3]
    %s6108 = scalar_lea.vmem %s5, 1024
    %v6109 = vld [vmem:[%s6108] sm:$0xff]
    %v6110 = vld [vmem:[%s6108 + $0x8] sm:$0xff]
    %v6111 = vld [vmem:[%s6108 + $0x10] sm:$0xff]
    %v6112 = vld [vmem:[%s6108 + $0x18] sm:$0xff]
    %v6113 = vld [vmem:[%s6108 + $0x20] sm:$0xff]
    %v6114 = vld [vmem:[%s6108 + $0x28] sm:$0xff]
    %v6115 = vld [vmem:[%s6108 + $0x30] sm:$0xff]
    %v6116 = vld [vmem:[%s6108 + $0x38] sm:$0xff]
    %v6117 = vld [vmem:[%s6108 + $0x40] sm:$0xff]
    %v6118 = vld [vmem:[%s6108 + $0x48] sm:$0xff]
    %v6119 = vld [vmem:[%s6108 + $0x50] sm:$0xff]
    %v6120 = vld [vmem:[%s6108 + $0x58] sm:$0xff]
    %v6121 = vld [vmem:[%s6108 + $0x60] sm:$0xff]
    %v6122 = vld [vmem:[%s6108 + $0x68] sm:$0xff]
    %v6123 = vld [vmem:[%s6108 + $0x70] sm:$0xff]
    %v6124 = vld [vmem:[%s6108 + $0x78] sm:$0xff]
    %v6125 = vld [vmem:[%s6108 + $0x80] sm:$0xff]
    %v6126 = vld [vmem:[%s6108 + $0x88] sm:$0xff]
    %v6127 = vld [vmem:[%s6108 + $0x90] sm:$0xff]
    %v6128 = vld [vmem:[%s6108 + $0x98] sm:$0xff]
    %v6129 = vld [vmem:[%s6108 + $0xa0] sm:$0xff]
    %v6130 = vld [vmem:[%s6108 + $0xa8] sm:$0xff]
    %v6131 = vld [vmem:[%s6108 + $0xb0] sm:$0xff]
    %v6132 = vld [vmem:[%s6108 + $0xb8] sm:$0xff]
    %v6133 = vld [vmem:[%s6108 + $0xc0] sm:$0xff]
    %v6134 = vld [vmem:[%s6108 + $0xc8] sm:$0xff]
    %v6135 = vld [vmem:[%s6108 + $0xd0] sm:$0xff]
    %v6136 = vld [vmem:[%s6108 + $0xd8] sm:$0xff]
    %v6137 = vld [vmem:[%s6108 + $0xe0] sm:$0xff]
    %v6138 = vld [vmem:[%s6108 + $0xe8] sm:$0xff]
    %v6139 = vld [vmem:[%s6108 + $0xf0] sm:$0xff]
    %v6140 = vld [vmem:[%s6108 + $0xf8] sm:$0xff]
    %v6143 = vunpack.c.l.s4 1966171168
    %v6144 = vunpack.c.0.s8 %v6143
    %v6145 = vlaneseq
    %v6146 = vshrl.u32 %v6145, 7
    %v6147 = vsub.s32 %v6144, %v6146
    %v6148 = vrot.slane %v6107, %v6147
    %v6149 = vcombine.high %v6148, %v6148
    %v6151 = vunpack.c.l.s4 1966171168
    %v6152 = vunpack.c.0.s8 %v6151
    %v6153 = vlaneseq
    %v6154 = vshrl.u32 %v6153, 7
    %v6155 = vsub.s32 %v6152, %v6154
    %v6156 = vrot.slane %v6148, %v6155
    %v6158 = vunpack.c.l.s4 1966171168
    %v6159 = vunpack.c.0.s8 %v6158
    %v6160 = vlaneseq
    %v6161 = vshrl.u32 %v6160, 7
    %v6162 = vsub.s32 %v6159, %v6161
    %v6163 = vrot.slane %v6149, %v6162
    %v6198 = vunpack.c.l.b16 %v6109
    %v6199 = vunpack.c.h.b16 %v6109
    %v6200 = vunpack.c.l.b16 %v6110
    %v6201 = vunpack.c.h.b16 %v6110
    %v6202 = vunpack.c.l.b16 %v6111
    %v6203 = vunpack.c.h.b16 %v6111
    %v6204 = vunpack.c.l.b16 %v6112
    %v6205 = vunpack.c.h.b16 %v6112
    %v6206 = vunpack.c.l.b16 %v6113
    %v6207 = vunpack.c.h.b16 %v6113
    %v6208 = vunpack.c.l.b16 %v6114
    %v6209 = vunpack.c.h.b16 %v6114
    %v6210 = vunpack.c.l.b16 %v6115
    %v6211 = vunpack.c.h.b16 %v6115
    %v6212 = vunpack.c.l.b16 %v6116
    %v6213 = vunpack.c.h.b16 %v6116
    %v6214 = vunpack.c.l.b16 %v6117
    %v6215 = vunpack.c.h.b16 %v6117
    %v6216 = vunpack.c.l.b16 %v6118
    %v6217 = vunpack.c.h.b16 %v6118
    %v6218 = vunpack.c.l.b16 %v6119
    %v6219 = vunpack.c.h.b16 %v6119
    %v6220 = vunpack.c.l.b16 %v6120
    %v6221 = vunpack.c.h.b16 %v6120
    %v6222 = vunpack.c.l.b16 %v6121
    %v6223 = vunpack.c.h.b16 %v6121
    %v6224 = vunpack.c.l.b16 %v6122
    %v6225 = vunpack.c.h.b16 %v6122
    %v6226 = vunpack.c.l.b16 %v6123
    %v6227 = vunpack.c.h.b16 %v6123
    %v6228 = vunpack.c.l.b16 %v6124
    %v6229 = vunpack.c.h.b16 %v6124
    %v6230 = vunpack.c.l.b16 %v6125
    %v6231 = vunpack.c.h.b16 %v6125
    %v6232 = vunpack.c.l.b16 %v6126
    %v6233 = vunpack.c.h.b16 %v6126
    %v6234 = vunpack.c.l.b16 %v6127
    %v6235 = vunpack.c.h.b16 %v6127
    %v6236 = vunpack.c.l.b16 %v6128
    %v6237 = vunpack.c.h.b16 %v6128
    %v6238 = vunpack.c.l.b16 %v6129
    %v6239 = vunpack.c.h.b16 %v6129
    %v6240 = vunpack.c.l.b16 %v6130
    %v6241 = vunpack.c.h.b16 %v6130
    %v6242 = vunpack.c.l.b16 %v6131
    %v6243 = vunpack.c.h.b16 %v6131
    %v6244 = vunpack.c.l.b16 %v6132
    %v6245 = vunpack.c.h.b16 %v6132
    %v6246 = vunpack.c.l.b16 %v6133
    %v6247 = vunpack.c.h.b16 %v6133
    %v6248 = vunpack.c.l.b16 %v6134
    %v6249 = vunpack.c.h.b16 %v6134
    %v6250 = vunpack.c.l.b16 %v6135
    %v6251 = vunpack.c.h.b16 %v6135
    %v6252 = vunpack.c.l.b16 %v6136
    %v6253 = vunpack.c.h.b16 %v6136
    %v6254 = vunpack.c.l.b16 %v6137
    %v6255 = vunpack.c.h.b16 %v6137
    %v6256 = vunpack.c.l.b16 %v6138
    %v6257 = vunpack.c.h.b16 %v6138
    %v6258 = vunpack.c.l.b16 %v6139
    %v6259 = vunpack.c.h.b16 %v6139
    %v6260 = vunpack.c.l.b16 %v6140
    %v6261 = vunpack.c.h.b16 %v6140
    %v6262 = vpack.c.b16 %v6200, %v6198
    %v6263 = vpack.c.b16 %v6201, %v6199
    %v6264 = vpack.c.b16 %v6204, %v6202
    %v6265 = vpack.c.b16 %v6205, %v6203
    %v6266 = vpack.c.b16 %v6208, %v6206
    %v6267 = vpack.c.b16 %v6209, %v6207
    %v6268 = vpack.c.b16 %v6212, %v6210
    %v6269 = vpack.c.b16 %v6213, %v6211
    %v6270 = vpack.c.b16 %v6216, %v6214
    %v6271 = vpack.c.b16 %v6217, %v6215
    %v6272 = vpack.c.b16 %v6220, %v6218
    %v6273 = vpack.c.b16 %v6221, %v6219
    %v6274 = vpack.c.b16 %v6224, %v6222
    %v6275 = vpack.c.b16 %v6225, %v6223
    %v6276 = vpack.c.b16 %v6228, %v6226
    %v6277 = vpack.c.b16 %v6229, %v6227
    %v6278 = vpack.c.b16 %v6232, %v6230
    %v6279 = vpack.c.b16 %v6233, %v6231
    %v6280 = vpack.c.b16 %v6236, %v6234
    %v6281 = vpack.c.b16 %v6237, %v6235
    %v6282 = vpack.c.b16 %v6240, %v6238
    %v6283 = vpack.c.b16 %v6241, %v6239
    %v6284 = vpack.c.b16 %v6244, %v6242
    %v6285 = vpack.c.b16 %v6245, %v6243
    %v6286 = vpack.c.b16 %v6248, %v6246
    %v6287 = vpack.c.b16 %v6249, %v6247
    %v6288 = vpack.c.b16 %v6252, %v6250
    %v6289 = vpack.c.b16 %v6253, %v6251
    %v6290 = vpack.c.b16 %v6256, %v6254
    %v6291 = vpack.c.b16 %v6257, %v6255
    %v6292 = vpack.c.b16 %v6260, %v6258
    %v6293 = vpack.c.b16 %v6261, %v6259
    %6326 = vmatprep.subr.bf16.mxu0 %v6277
    %6327 = vmatpush1.bf16.msra.mxu0 %v6276
    %6328 = vmatprep.subr.bf16.mxu0 %v6275
    %6329 = vmatpush1.bf16.msra.mxu0 %v6274
    %6330 = vmatprep.subr.bf16.mxu0 %v6273
    %6331 = vmatpush1.bf16.msra.mxu0 %v6272
    %6332 = vmatprep.subr.bf16.mxu0 %v6271
    %6333 = vmatpush1.bf16.msra.mxu0 %v6270
    %6334 = vmatprep.subr.bf16.mxu0 %v6269
    %6335 = vmatpush1.bf16.msra.mxu0 %v6268
    %6336 = vmatprep.subr.bf16.mxu0 %v6267
    %6337 = vmatpush1.bf16.msra.mxu0 %v6266
    %6338 = vmatprep.subr.bf16.mxu0 %v6265
    %6339 = vmatpush1.bf16.msra.mxu0 %v6264
    %6340 = vmatprep.subr.bf16.mxu0 %v6263
    %6341 = vmatpush1.bf16.msra.mxu0 %v6262
    %6342 = vmatprep.subr.bf16.mxu0 %v6293
    %6343 = vmatpush2.bf16.msra.mxu0 %v6292
    %6344 = vmatprep.subr.bf16.mxu0 %v6291
    %6345 = vmatpush2.bf16.msra.mxu0 %v6290
    %6346 = vmatprep.subr.bf16.mxu0 %v6289
    %6347 = vmatpush2.bf16.msra.mxu0 %v6288
    %6348 = vmatprep.subr.bf16.mxu0 %v6287
    %6349 = vmatpush2.bf16.msra.mxu0 %v6286
    %6350 = vmatprep.subr.bf16.mxu0 %v6285
    %6351 = vmatpush2.bf16.msra.mxu0 %v6284
    %6352 = vmatprep.subr.bf16.mxu0 %v6283
    %6353 = vmatpush2.bf16.msra.mxu0 %v6282
    %6354 = vmatprep.subr.bf16.mxu0 %v6281
    %6355 = vmatpush2.bf16.msra.mxu0 %v6280
    %6356 = vmatprep.subr.bf16.mxu0 %v6279
    %6357 = vmatpush2.bf16.msra.mxu0 %v6278
    %6358 = vmatprep.mubr.bf16.mxu0 %v6163
    %6359 = vmatmul.mubr.bf16.gmra.mxu0 %v6156
    %v6360 = vpop.f32.mrf.mxu0
    %v6361 = vadd.f32 0.0, %v6360
    %v6362 = vpop.f32.mrf.mxu0
    %v6363 = vadd.f32 0.0, %v6362
    %v6364 = vpop.f32.mrf.mxu0
    %v6365 = vpop.f32.mrf.mxu0
    %6366 = vdwg.mxu0
    %v6367 = vadd.f32 %v6104, %v6361
    %v6368 = vadd.f32 %v6105, %v6363
    %s6369 = scalar_lea.vmem [#allocation2], 10
    %v6370 = vld [vmem:[%s6369] sm:$0x3]
    %s6371 = scalar_lea.vmem %s5, 1280
    %v6372 = vld [vmem:[%s6371] sm:$0xff]
    %v6373 = vld [vmem:[%s6371 + $0x8] sm:$0xff]
    %v6374 = vld [vmem:[%s6371 + $0x10] sm:$0xff]
    %v6375 = vld [vmem:[%s6371 + $0x18] sm:$0xff]
    %v6376 = vld [vmem:[%s6371 + $0x20] sm:$0xff]
    %v6377 = vld [vmem:[%s6371 + $0x28] sm:$0xff]
    %v6378 = vld [vmem:[%s6371 + $0x30] sm:$0xff]
    %v6379 = vld [vmem:[%s6371 + $0x38] sm:$0xff]
    %v6380 = vld [vmem:[%s6371 + $0x40] sm:$0xff]
    %v6381 = vld [vmem:[%s6371 + $0x48] sm:$0xff]
    %v6382 = vld [vmem:[%s6371 + $0x50] sm:$0xff]
    %v6383 = vld [vmem:[%s6371 + $0x58] sm:$0xff]
    %v6384 = vld [vmem:[%s6371 + $0x60] sm:$0xff]
    %v6385 = vld [vmem:[%s6371 + $0x68] sm:$0xff]
    %v6386 = vld [vmem:[%s6371 + $0x70] sm:$0xff]
    %v6387 = vld [vmem:[%s6371 + $0x78] sm:$0xff]
    %v6388 = vld [vmem:[%s6371 + $0x80] sm:$0xff]
    %v6389 = vld [vmem:[%s6371 + $0x88] sm:$0xff]
    %v6390 = vld [vmem:[%s6371 + $0x90] sm:$0xff]
    %v6391 = vld [vmem:[%s6371 + $0x98] sm:$0xff]
    %v6392 = vld [vmem:[%s6371 + $0xa0] sm:$0xff]
    %v6393 = vld [vmem:[%s6371 + $0xa8] sm:$0xff]
    %v6394 = vld [vmem:[%s6371 + $0xb0] sm:$0xff]
    %v6395 = vld [vmem:[%s6371 + $0xb8] sm:$0xff]
    %v6396 = vld [vmem:[%s6371 + $0xc0] sm:$0xff]
    %v6397 = vld [vmem:[%s6371 + $0xc8] sm:$0xff]
    %v6398 = vld [vmem:[%s6371 + $0xd0] sm:$0xff]
    %v6399 = vld [vmem:[%s6371 + $0xd8] sm:$0xff]
    %v6400 = vld [vmem:[%s6371 + $0xe0] sm:$0xff]
    %v6401 = vld [vmem:[%s6371 + $0xe8] sm:$0xff]
    %v6402 = vld [vmem:[%s6371 + $0xf0] sm:$0xff]
    %v6403 = vld [vmem:[%s6371 + $0xf8] sm:$0xff]
    %v6406 = vunpack.c.l.s4 1966171168
    %v6407 = vunpack.c.0.s8 %v6406
    %v6408 = vlaneseq
    %v6409 = vshrl.u32 %v6408, 7
    %v6410 = vsub.s32 %v6407, %v6409
    %v6411 = vrot.slane %v6370, %v6410
    %v6412 = vcombine.high %v6411, %v6411
    %v6414 = vunpack.c.l.s4 1966171168
    %v6415 = vunpack.c.0.s8 %v6414
    %v6416 = vlaneseq
    %v6417 = vshrl.u32 %v6416, 7
    %v6418 = vsub.s32 %v6415, %v6417
    %v6419 = vrot.slane %v6411, %v6418
    %v6421 = vunpack.c.l.s4 1966171168
    %v6422 = vunpack.c.0.s8 %v6421
    %v6423 = vlaneseq
    %v6424 = vshrl.u32 %v6423, 7
    %v6425 = vsub.s32 %v6422, %v6424
    %v6426 = vrot.slane %v6412, %v6425
    %v6461 = vunpack.c.l.b16 %v6372
    %v6462 = vunpack.c.h.b16 %v6372
    %v6463 = vunpack.c.l.b16 %v6373
    %v6464 = vunpack.c.h.b16 %v6373
    %v6465 = vunpack.c.l.b16 %v6374
    %v6466 = vunpack.c.h.b16 %v6374
    %v6467 = vunpack.c.l.b16 %v6375
    %v6468 = vunpack.c.h.b16 %v6375
    %v6469 = vunpack.c.l.b16 %v6376
    %v6470 = vunpack.c.h.b16 %v6376
    %v6471 = vunpack.c.l.b16 %v6377
    %v6472 = vunpack.c.h.b16 %v6377
    %v6473 = vunpack.c.l.b16 %v6378
    %v6474 = vunpack.c.h.b16 %v6378
    %v6475 = vunpack.c.l.b16 %v6379
    %v6476 = vunpack.c.h.b16 %v6379
    %v6477 = vunpack.c.l.b16 %v6380
    %v6478 = vunpack.c.h.b16 %v6380
    %v6479 = vunpack.c.l.b16 %v6381
    %v6480 = vunpack.c.h.b16 %v6381
    %v6481 = vunpack.c.l.b16 %v6382
    %v6482 = vunpack.c.h.b16 %v6382
    %v6483 = vunpack.c.l.b16 %v6383
    %v6484 = vunpack.c.h.b16 %v6383
    %v6485 = vunpack.c.l.b16 %v6384
    %v6486 = vunpack.c.h.b16 %v6384
    %v6487 = vunpack.c.l.b16 %v6385
    %v6488 = vunpack.c.h.b16 %v6385
    %v6489 = vunpack.c.l.b16 %v6386
    %v6490 = vunpack.c.h.b16 %v6386
    %v6491 = vunpack.c.l.b16 %v6387
    %v6492 = vunpack.c.h.b16 %v6387
    %v6493 = vunpack.c.l.b16 %v6388
    %v6494 = vunpack.c.h.b16 %v6388
    %v6495 = vunpack.c.l.b16 %v6389
    %v6496 = vunpack.c.h.b16 %v6389
    %v6497 = vunpack.c.l.b16 %v6390
    %v6498 = vunpack.c.h.b16 %v6390
    %v6499 = vunpack.c.l.b16 %v6391
    %v6500 = vunpack.c.h.b16 %v6391
    %v6501 = vunpack.c.l.b16 %v6392
    %v6502 = vunpack.c.h.b16 %v6392
    %v6503 = vunpack.c.l.b16 %v6393
    %v6504 = vunpack.c.h.b16 %v6393
    %v6505 = vunpack.c.l.b16 %v6394
    %v6506 = vunpack.c.h.b16 %v6394
    %v6507 = vunpack.c.l.b16 %v6395
    %v6508 = vunpack.c.h.b16 %v6395
    %v6509 = vunpack.c.l.b16 %v6396
    %v6510 = vunpack.c.h.b16 %v6396
    %v6511 = vunpack.c.l.b16 %v6397
    %v6512 = vunpack.c.h.b16 %v6397
    %v6513 = vunpack.c.l.b16 %v6398
    %v6514 = vunpack.c.h.b16 %v6398
    %v6515 = vunpack.c.l.b16 %v6399
    %v6516 = vunpack.c.h.b16 %v6399
    %v6517 = vunpack.c.l.b16 %v6400
    %v6518 = vunpack.c.h.b16 %v6400
    %v6519 = vunpack.c.l.b16 %v6401
    %v6520 = vunpack.c.h.b16 %v6401
    %v6521 = vunpack.c.l.b16 %v6402
    %v6522 = vunpack.c.h.b16 %v6402
    %v6523 = vunpack.c.l.b16 %v6403
    %v6524 = vunpack.c.h.b16 %v6403
    %v6525 = vpack.c.b16 %v6463, %v6461
    %v6526 = vpack.c.b16 %v6464, %v6462
    %v6527 = vpack.c.b16 %v6467, %v6465
    %v6528 = vpack.c.b16 %v6468, %v6466
    %v6529 = vpack.c.b16 %v6471, %v6469
    %v6530 = vpack.c.b16 %v6472, %v6470
    %v6531 = vpack.c.b16 %v6475, %v6473
    %v6532 = vpack.c.b16 %v6476, %v6474
    %v6533 = vpack.c.b16 %v6479, %v6477
    %v6534 = vpack.c.b16 %v6480, %v6478
    %v6535 = vpack.c.b16 %v6483, %v6481
    %v6536 = vpack.c.b16 %v6484, %v6482
    %v6537 = vpack.c.b16 %v6487, %v6485
    %v6538 = vpack.c.b16 %v6488, %v6486
    %v6539 = vpack.c.b16 %v6491, %v6489
    %v6540 = vpack.c.b16 %v6492, %v6490
    %v6541 = vpack.c.b16 %v6495, %v6493
    %v6542 = vpack.c.b16 %v6496, %v6494
    %v6543 = vpack.c.b16 %v6499, %v6497
    %v6544 = vpack.c.b16 %v6500, %v6498
    %v6545 = vpack.c.b16 %v6503, %v6501
    %v6546 = vpack.c.b16 %v6504, %v6502
    %v6547 = vpack.c.b16 %v6507, %v6505
    %v6548 = vpack.c.b16 %v6508, %v6506
    %v6549 = vpack.c.b16 %v6511, %v6509
    %v6550 = vpack.c.b16 %v6512, %v6510
    %v6551 = vpack.c.b16 %v6515, %v6513
    %v6552 = vpack.c.b16 %v6516, %v6514
    %v6553 = vpack.c.b16 %v6519, %v6517
    %v6554 = vpack.c.b16 %v6520, %v6518
    %v6555 = vpack.c.b16 %v6523, %v6521
    %v6556 = vpack.c.b16 %v6524, %v6522
    %6589 = vmatprep.subr.bf16.mxu0 %v6540
    %6590 = vmatpush1.bf16.msra.mxu0 %v6539
    %6591 = vmatprep.subr.bf16.mxu0 %v6538
    %6592 = vmatpush1.bf16.msra.mxu0 %v6537
    %6593 = vmatprep.subr.bf16.mxu0 %v6536
    %6594 = vmatpush1.bf16.msra.mxu0 %v6535
    %6595 = vmatprep.subr.bf16.mxu0 %v6534
    %6596 = vmatpush1.bf16.msra.mxu0 %v6533
    %6597 = vmatprep.subr.bf16.mxu0 %v6532
    %6598 = vmatpush1.bf16.msra.mxu0 %v6531
    %6599 = vmatprep.subr.bf16.mxu0 %v6530
    %6600 = vmatpush1.bf16.msra.mxu0 %v6529
    %6601 = vmatprep.subr.bf16.mxu0 %v6528
    %6602 = vmatpush1.bf16.msra.mxu0 %v6527
    %6603 = vmatprep.subr.bf16.mxu0 %v6526
    %6604 = vmatpush1.bf16.msra.mxu0 %v6525
    %6605 = vmatprep.subr.bf16.mxu0 %v6556
    %6606 = vmatpush2.bf16.msra.mxu0 %v6555
    %6607 = vmatprep.subr.bf16.mxu0 %v6554
    %6608 = vmatpush2.bf16.msra.mxu0 %v6553
    %6609 = vmatprep.subr.bf16.mxu0 %v6552
    %6610 = vmatpush2.bf16.msra.mxu0 %v6551
    %6611 = vmatprep.subr.bf16.mxu0 %v6550
    %6612 = vmatpush2.bf16.msra.mxu0 %v6549
    %6613 = vmatprep.subr.bf16.mxu0 %v6548
    %6614 = vmatpush2.bf16.msra.mxu0 %v6547
    %6615 = vmatprep.subr.bf16.mxu0 %v6546
    %6616 = vmatpush2.bf16.msra.mxu0 %v6545
    %6617 = vmatprep.subr.bf16.mxu0 %v6544
    %6618 = vmatpush2.bf16.msra.mxu0 %v6543
    %6619 = vmatprep.subr.bf16.mxu0 %v6542
    %6620 = vmatpush2.bf16.msra.mxu0 %v6541
    %6621 = vmatprep.mubr.bf16.mxu0 %v6426
    %6622 = vmatmul.mubr.bf16.gmra.mxu0 %v6419
    %v6623 = vpop.f32.mrf.mxu0
    %v6624 = vadd.f32 0.0, %v6623
    %v6625 = vpop.f32.mrf.mxu0
    %v6626 = vadd.f32 0.0, %v6625
    %v6627 = vpop.f32.mrf.mxu0
    %v6628 = vpop.f32.mrf.mxu0
    %6629 = vdwg.mxu0
    %v6630 = vadd.f32 %v6367, %v6624
    %v6631 = vadd.f32 %v6368, %v6626
    %s6632 = scalar_lea.vmem [#allocation2], 12
    %v6633 = vld [vmem:[%s6632] sm:$0x3]
    %s6634 = scalar_lea.vmem %s5, 1536
    %v6635 = vld [vmem:[%s6634] sm:$0xff]
    %v6636 = vld [vmem:[%s6634 + $0x8] sm:$0xff]
    %v6637 = vld [vmem:[%s6634 + $0x10] sm:$0xff]
    %v6638 = vld [vmem:[%s6634 + $0x18] sm:$0xff]
    %v6639 = vld [vmem:[%s6634 + $0x20] sm:$0xff]
    %v6640 = vld [vmem:[%s6634 + $0x28] sm:$0xff]
    %v6641 = vld [vmem:[%s6634 + $0x30] sm:$0xff]
    %v6642 = vld [vmem:[%s6634 + $0x38] sm:$0xff]
    %v6643 = vld [vmem:[%s6634 + $0x40] sm:$0xff]
    %v6644 = vld [vmem:[%s6634 + $0x48] sm:$0xff]
    %v6645 = vld [vmem:[%s6634 + $0x50] sm:$0xff]
    %v6646 = vld [vmem:[%s6634 + $0x58] sm:$0xff]
    %v6647 = vld [vmem:[%s6634 + $0x60] sm:$0xff]
    %v6648 = vld [vmem:[%s6634 + $0x68] sm:$0xff]
    %v6649 = vld [vmem:[%s6634 + $0x70] sm:$0xff]
    %v6650 = vld [vmem:[%s6634 + $0x78] sm:$0xff]
    %v6651 = vld [vmem:[%s6634 + $0x80] sm:$0xff]
    %v6652 = vld [vmem:[%s6634 + $0x88] sm:$0xff]
    %v6653 = vld [vmem:[%s6634 + $0x90] sm:$0xff]
    %v6654 = vld [vmem:[%s6634 + $0x98] sm:$0xff]
    %v6655 = vld [vmem:[%s6634 + $0xa0] sm:$0xff]
    %v6656 = vld [vmem:[%s6634 + $0xa8] sm:$0xff]
    %v6657 = vld [vmem:[%s6634 + $0xb0] sm:$0xff]
    %v6658 = vld [vmem:[%s6634 + $0xb8] sm:$0xff]
    %v6659 = vld [vmem:[%s6634 + $0xc0] sm:$0xff]
    %v6660 = vld [vmem:[%s6634 + $0xc8] sm:$0xff]
    %v6661 = vld [vmem:[%s6634 + $0xd0] sm:$0xff]
    %v6662 = vld [vmem:[%s6634 + $0xd8] sm:$0xff]
    %v6663 = vld [vmem:[%s6634 + $0xe0] sm:$0xff]
    %v6664 = vld [vmem:[%s6634 + $0xe8] sm:$0xff]
    %v6665 = vld [vmem:[%s6634 + $0xf0] sm:$0xff]
    %v6666 = vld [vmem:[%s6634 + $0xf8] sm:$0xff]
    %v6669 = vunpack.c.l.s4 1966171168
    %v6670 = vunpack.c.0.s8 %v6669
    %v6671 = vlaneseq
    %v6672 = vshrl.u32 %v6671, 7
    %v6673 = vsub.s32 %v6670, %v6672
    %v6674 = vrot.slane %v6633, %v6673
    %v6675 = vcombine.high %v6674, %v6674
    %v6677 = vunpack.c.l.s4 1966171168
    %v6678 = vunpack.c.0.s8 %v6677
    %v6679 = vlaneseq
    %v6680 = vshrl.u32 %v6679, 7
    %v6681 = vsub.s32 %v6678, %v6680
    %v6682 = vrot.slane %v6674, %v6681
    %v6684 = vunpack.c.l.s4 1966171168
    %v6685 = vunpack.c.0.s8 %v6684
    %v6686 = vlaneseq
    %v6687 = vshrl.u32 %v6686, 7
    %v6688 = vsub.s32 %v6685, %v6687
    %v6689 = vrot.slane %v6675, %v6688
    %v6724 = vunpack.c.l.b16 %v6635
    %v6725 = vunpack.c.h.b16 %v6635
    %v6726 = vunpack.c.l.b16 %v6636
    %v6727 = vunpack.c.h.b16 %v6636
    %v6728 = vunpack.c.l.b16 %v6637
    %v6729 = vunpack.c.h.b16 %v6637
    %v6730 = vunpack.c.l.b16 %v6638
    %v6731 = vunpack.c.h.b16 %v6638
    %v6732 = vunpack.c.l.b16 %v6639
    %v6733 = vunpack.c.h.b16 %v6639
    %v6734 = vunpack.c.l.b16 %v6640
    %v6735 = vunpack.c.h.b16 %v6640
    %v6736 = vunpack.c.l.b16 %v6641
    %v6737 = vunpack.c.h.b16 %v6641
    %v6738 = vunpack.c.l.b16 %v6642
    %v6739 = vunpack.c.h.b16 %v6642
    %v6740 = vunpack.c.l.b16 %v6643
    %v6741 = vunpack.c.h.b16 %v6643
    %v6742 = vunpack.c.l.b16 %v6644
    %v6743 = vunpack.c.h.b16 %v6644
    %v6744 = vunpack.c.l.b16 %v6645
    %v6745 = vunpack.c.h.b16 %v6645
    %v6746 = vunpack.c.l.b16 %v6646
    %v6747 = vunpack.c.h.b16 %v6646
    %v6748 = vunpack.c.l.b16 %v6647
    %v6749 = vunpack.c.h.b16 %v6647
    %v6750 = vunpack.c.l.b16 %v6648
    %v6751 = vunpack.c.h.b16 %v6648
    %v6752 = vunpack.c.l.b16 %v6649
    %v6753 = vunpack.c.h.b16 %v6649
    %v6754 = vunpack.c.l.b16 %v6650
    %v6755 = vunpack.c.h.b16 %v6650
    %v6756 = vunpack.c.l.b16 %v6651
    %v6757 = vunpack.c.h.b16 %v6651
    %v6758 = vunpack.c.l.b16 %v6652
    %v6759 = vunpack.c.h.b16 %v6652
    %v6760 = vunpack.c.l.b16 %v6653
    %v6761 = vunpack.c.h.b16 %v6653
    %v6762 = vunpack.c.l.b16 %v6654
    %v6763 = vunpack.c.h.b16 %v6654
    %v6764 = vunpack.c.l.b16 %v6655
    %v6765 = vunpack.c.h.b16 %v6655
    %v6766 = vunpack.c.l.b16 %v6656
    %v6767 = vunpack.c.h.b16 %v6656
    %v6768 = vunpack.c.l.b16 %v6657
    %v6769 = vunpack.c.h.b16 %v6657
    %v6770 = vunpack.c.l.b16 %v6658
    %v6771 = vunpack.c.h.b16 %v6658
    %v6772 = vunpack.c.l.b16 %v6659
    %v6773 = vunpack.c.h.b16 %v6659
    %v6774 = vunpack.c.l.b16 %v6660
    %v6775 = vunpack.c.h.b16 %v6660
    %v6776 = vunpack.c.l.b16 %v6661
    %v6777 = vunpack.c.h.b16 %v6661
    %v6778 = vunpack.c.l.b16 %v6662
    %v6779 = vunpack.c.h.b16 %v6662
    %v6780 = vunpack.c.l.b16 %v6663
    %v6781 = vunpack.c.h.b16 %v6663
    %v6782 = vunpack.c.l.b16 %v6664
    %v6783 = vunpack.c.h.b16 %v6664
    %v6784 = vunpack.c.l.b16 %v6665
    %v6785 = vunpack.c.h.b16 %v6665
    %v6786 = vunpack.c.l.b16 %v6666
    %v6787 = vunpack.c.h.b16 %v6666
    %v6788 = vpack.c.b16 %v6726, %v6724
    %v6789 = vpack.c.b16 %v6727, %v6725
    %v6790 = vpack.c.b16 %v6730, %v6728
    %v6791 = vpack.c.b16 %v6731, %v6729
    %v6792 = vpack.c.b16 %v6734, %v6732
    %v6793 = vpack.c.b16 %v6735, %v6733
    %v6794 = vpack.c.b16 %v6738, %v6736
    %v6795 = vpack.c.b16 %v6739, %v6737
    %v6796 = vpack.c.b16 %v6742, %v6740
    %v6797 = vpack.c.b16 %v6743, %v6741
    %v6798 = vpack.c.b16 %v6746, %v6744
    %v6799 = vpack.c.b16 %v6747, %v6745
    %v6800 = vpack.c.b16 %v6750, %v6748
    %v6801 = vpack.c.b16 %v6751, %v6749
    %v6802 = vpack.c.b16 %v6754, %v6752
    %v6803 = vpack.c.b16 %v6755, %v6753
    %v6804 = vpack.c.b16 %v6758, %v6756
    %v6805 = vpack.c.b16 %v6759, %v6757
    %v6806 = vpack.c.b16 %v6762, %v6760
    %v6807 = vpack.c.b16 %v6763, %v6761
    %v6808 = vpack.c.b16 %v6766, %v6764
    %v6809 = vpack.c.b16 %v6767, %v6765
    %v6810 = vpack.c.b16 %v6770, %v6768
    %v6811 = vpack.c.b16 %v6771, %v6769
    %v6812 = vpack.c.b16 %v6774, %v6772
    %v6813 = vpack.c.b16 %v6775, %v6773
    %v6814 = vpack.c.b16 %v6778, %v6776
    %v6815 = vpack.c.b16 %v6779, %v6777
    %v6816 = vpack.c.b16 %v6782, %v6780
    %v6817 = vpack.c.b16 %v6783, %v6781
    %v6818 = vpack.c.b16 %v6786, %v6784
    %v6819 = vpack.c.b16 %v6787, %v6785
    %6852 = vmatprep.subr.bf16.mxu0 %v6803
    %6853 = vmatpush1.bf16.msra.mxu0 %v6802
    %6854 = vmatprep.subr.bf16.mxu0 %v6801
    %6855 = vmatpush1.bf16.msra.mxu0 %v6800
    %6856 = vmatprep.subr.bf16.mxu0 %v6799
    %6857 = vmatpush1.bf16.msra.mxu0 %v6798
    %6858 = vmatprep.subr.bf16.mxu0 %v6797
    %6859 = vmatpush1.bf16.msra.mxu0 %v6796
    %6860 = vmatprep.subr.bf16.mxu0 %v6795
    %6861 = vmatpush1.bf16.msra.mxu0 %v6794
    %6862 = vmatprep.subr.bf16.mxu0 %v6793
    %6863 = vmatpush1.bf16.msra.mxu0 %v6792
    %6864 = vmatprep.subr.bf16.mxu0 %v6791
    %6865 = vmatpush1.bf16.msra.mxu0 %v6790
    %6866 = vmatprep.subr.bf16.mxu0 %v6789
    %6867 = vmatpush1.bf16.msra.mxu0 %v6788
    %6868 = vmatprep.subr.bf16.mxu0 %v6819
    %6869 = vmatpush2.bf16.msra.mxu0 %v6818
    %6870 = vmatprep.subr.bf16.mxu0 %v6817
    %6871 = vmatpush2.bf16.msra.mxu0 %v6816
    %6872 = vmatprep.subr.bf16.mxu0 %v6815
    %6873 = vmatpush2.bf16.msra.mxu0 %v6814
    %6874 = vmatprep.subr.bf16.mxu0 %v6813
    %6875 = vmatpush2.bf16.msra.mxu0 %v6812
    %6876 = vmatprep.subr.bf16.mxu0 %v6811
    %6877 = vmatpush2.bf16.msra.mxu0 %v6810
    %6878 = vmatprep.subr.bf16.mxu0 %v6809
    %6879 = vmatpush2.bf16.msra.mxu0 %v6808
    %6880 = vmatprep.subr.bf16.mxu0 %v6807
    %6881 = vmatpush2.bf16.msra.mxu0 %v6806
    %6882 = vmatprep.subr.bf16.mxu0 %v6805
    %6883 = vmatpush2.bf16.msra.mxu0 %v6804
    %6884 = vmatprep.mubr.bf16.mxu0 %v6689
    %6885 = vmatmul.mubr.bf16.gmra.mxu0 %v6682
    %v6886 = vpop.f32.mrf.mxu0
    %v6887 = vadd.f32 0.0, %v6886
    %v6888 = vpop.f32.mrf.mxu0
    %v6889 = vadd.f32 0.0, %v6888
    %v6890 = vpop.f32.mrf.mxu0
    %v6891 = vpop.f32.mrf.mxu0
    %6892 = vdwg.mxu0
    %v6893 = vadd.f32 %v6630, %v6887
    %v6894 = vadd.f32 %v6631, %v6889
    %s6895 = scalar_lea.vmem [#allocation2], 14
    %v6896 = vld [vmem:[%s6895] sm:$0x3]
    %s6897 = scalar_lea.vmem %s5, 1792
    %v6898 = vld [vmem:[%s6897] sm:$0xff]
    %v6899 = vld [vmem:[%s6897 + $0x8] sm:$0xff]
    %v6900 = vld [vmem:[%s6897 + $0x10] sm:$0xff]
    %v6901 = vld [vmem:[%s6897 + $0x18] sm:$0xff]
    %v6902 = vld [vmem:[%s6897 + $0x20] sm:$0xff]
    %v6903 = vld [vmem:[%s6897 + $0x28] sm:$0xff]
    %v6904 = vld [vmem:[%s6897 + $0x30] sm:$0xff]
    %v6905 = vld [vmem:[%s6897 + $0x38] sm:$0xff]
    %v6906 = vld [vmem:[%s6897 + $0x40] sm:$0xff]
    %v6907 = vld [vmem:[%s6897 + $0x48] sm:$0xff]
    %v6908 = vld [vmem:[%s6897 + $0x50] sm:$0xff]
    %v6909 = vld [vmem:[%s6897 + $0x58] sm:$0xff]
    %v6910 = vld [vmem:[%s6897 + $0x60] sm:$0xff]
    %v6911 = vld [vmem:[%s6897 + $0x68] sm:$0xff]
    %v6912 = vld [vmem:[%s6897 + $0x70] sm:$0xff]
    %v6913 = vld [vmem:[%s6897 + $0x78] sm:$0xff]
    %v6914 = vld [vmem:[%s6897 + $0x80] sm:$0xff]
    %v6915 = vld [vmem:[%s6897 + $0x88] sm:$0xff]
    %v6916 = vld [vmem:[%s6897 + $0x90] sm:$0xff]
    %v6917 = vld [vmem:[%s6897 + $0x98] sm:$0xff]
    %v6918 = vld [vmem:[%s6897 + $0xa0] sm:$0xff]
    %v6919 = vld [vmem:[%s6897 + $0xa8] sm:$0xff]
    %v6920 = vld [vmem:[%s6897 + $0xb0] sm:$0xff]
    %v6921 = vld [vmem:[%s6897 + $0xb8] sm:$0xff]
    %v6922 = vld [vmem:[%s6897 + $0xc0] sm:$0xff]
    %v6923 = vld [vmem:[%s6897 + $0xc8] sm:$0xff]
    %v6924 = vld [vmem:[%s6897 + $0xd0] sm:$0xff]
    %v6925 = vld [vmem:[%s6897 + $0xd8] sm:$0xff]
    %v6926 = vld [vmem:[%s6897 + $0xe0] sm:$0xff]
    %v6927 = vld [vmem:[%s6897 + $0xe8] sm:$0xff]
    %v6928 = vld [vmem:[%s6897 + $0xf0] sm:$0xff]
    %v6929 = vld [vmem:[%s6897 + $0xf8] sm:$0xff]
    %v6932 = vunpack.c.l.s4 1966171168
    %v6933 = vunpack.c.0.s8 %v6932
    %v6934 = vlaneseq
    %v6935 = vshrl.u32 %v6934, 7
    %v6936 = vsub.s32 %v6933, %v6935
    %v6937 = vrot.slane %v6896, %v6936
    %v6938 = vcombine.high %v6937, %v6937
    %v6940 = vunpack.c.l.s4 1966171168
    %v6941 = vunpack.c.0.s8 %v6940
    %v6942 = vlaneseq
    %v6943 = vshrl.u32 %v6942, 7
    %v6944 = vsub.s32 %v6941, %v6943
    %v6945 = vrot.slane %v6937, %v6944
    %v6947 = vunpack.c.l.s4 1966171168
    %v6948 = vunpack.c.0.s8 %v6947
    %v6949 = vlaneseq
    %v6950 = vshrl.u32 %v6949, 7
    %v6951 = vsub.s32 %v6948, %v6950
    %v6952 = vrot.slane %v6938, %v6951
    %v6987 = vunpack.c.l.b16 %v6898
    %v6988 = vunpack.c.h.b16 %v6898
    %v6989 = vunpack.c.l.b16 %v6899
    %v6990 = vunpack.c.h.b16 %v6899
    %v6991 = vunpack.c.l.b16 %v6900
    %v6992 = vunpack.c.h.b16 %v6900
    %v6993 = vunpack.c.l.b16 %v6901
    %v6994 = vunpack.c.h.b16 %v6901
    %v6995 = vunpack.c.l.b16 %v6902
    %v6996 = vunpack.c.h.b16 %v6902
    %v6997 = vunpack.c.l.b16 %v6903
    %v6998 = vunpack.c.h.b16 %v6903
    %v6999 = vunpack.c.l.b16 %v6904
    %v7000 = vunpack.c.h.b16 %v6904
    %v7001 = vunpack.c.l.b16 %v6905
    %v7002 = vunpack.c.h.b16 %v6905
    %v7003 = vunpack.c.l.b16 %v6906
    %v7004 = vunpack.c.h.b16 %v6906
    %v7005 = vunpack.c.l.b16 %v6907
    %v7006 = vunpack.c.h.b16 %v6907
    %v7007 = vunpack.c.l.b16 %v6908
    %v7008 = vunpack.c.h.b16 %v6908
    %v7009 = vunpack.c.l.b16 %v6909
    %v7010 = vunpack.c.h.b16 %v6909
    %v7011 = vunpack.c.l.b16 %v6910
    %v7012 = vunpack.c.h.b16 %v6910
    %v7013 = vunpack.c.l.b16 %v6911
    %v7014 = vunpack.c.h.b16 %v6911
    %v7015 = vunpack.c.l.b16 %v6912
    %v7016 = vunpack.c.h.b16 %v6912
    %v7017 = vunpack.c.l.b16 %v6913
    %v7018 = vunpack.c.h.b16 %v6913
    %v7019 = vunpack.c.l.b16 %v6914
    %v7020 = vunpack.c.h.b16 %v6914
    %v7021 = vunpack.c.l.b16 %v6915
    %v7022 = vunpack.c.h.b16 %v6915
    %v7023 = vunpack.c.l.b16 %v6916
    %v7024 = vunpack.c.h.b16 %v6916
    %v7025 = vunpack.c.l.b16 %v6917
    %v7026 = vunpack.c.h.b16 %v6917
    %v7027 = vunpack.c.l.b16 %v6918
    %v7028 = vunpack.c.h.b16 %v6918
    %v7029 = vunpack.c.l.b16 %v6919
    %v7030 = vunpack.c.h.b16 %v6919
    %v7031 = vunpack.c.l.b16 %v6920
    %v7032 = vunpack.c.h.b16 %v6920
    %v7033 = vunpack.c.l.b16 %v6921
    %v7034 = vunpack.c.h.b16 %v6921
    %v7035 = vunpack.c.l.b16 %v6922
    %v7036 = vunpack.c.h.b16 %v6922
    %v7037 = vunpack.c.l.b16 %v6923
    %v7038 = vunpack.c.h.b16 %v6923
    %v7039 = vunpack.c.l.b16 %v6924
    %v7040 = vunpack.c.h.b16 %v6924
    %v7041 = vunpack.c.l.b16 %v6925
    %v7042 = vunpack.c.h.b16 %v6925
    %v7043 = vunpack.c.l.b16 %v6926
    %v7044 = vunpack.c.h.b16 %v6926
    %v7045 = vunpack.c.l.b16 %v6927
    %v7046 = vunpack.c.h.b16 %v6927
    %v7047 = vunpack.c.l.b16 %v6928
    %v7048 = vunpack.c.h.b16 %v6928
    %v7049 = vunpack.c.l.b16 %v6929
    %v7050 = vunpack.c.h.b16 %v6929
    %v7051 = vpack.c.b16 %v6989, %v6987
    %v7052 = vpack.c.b16 %v6990, %v6988
    %v7053 = vpack.c.b16 %v6993, %v6991
    %v7054 = vpack.c.b16 %v6994, %v6992
    %v7055 = vpack.c.b16 %v6997, %v6995
    %v7056 = vpack.c.b16 %v6998, %v6996
    %v7057 = vpack.c.b16 %v7001, %v6999
    %v7058 = vpack.c.b16 %v7002, %v7000
    %v7059 = vpack.c.b16 %v7005, %v7003
    %v7060 = vpack.c.b16 %v7006, %v7004
    %v7061 = vpack.c.b16 %v7009, %v7007
    %v7062 = vpack.c.b16 %v7010, %v7008
    %v7063 = vpack.c.b16 %v7013, %v7011
    %v7064 = vpack.c.b16 %v7014, %v7012
    %v7065 = vpack.c.b16 %v7017, %v7015
    %v7066 = vpack.c.b16 %v7018, %v7016
    %v7067 = vpack.c.b16 %v7021, %v7019
    %v7068 = vpack.c.b16 %v7022, %v7020
    %v7069 = vpack.c.b16 %v7025, %v7023
    %v7070 = vpack.c.b16 %v7026, %v7024
    %v7071 = vpack.c.b16 %v7029, %v7027
    %v7072 = vpack.c.b16 %v7030, %v7028
    %v7073 = vpack.c.b16 %v7033, %v7031
    %v7074 = vpack.c.b16 %v7034, %v7032
    %v7075 = vpack.c.b16 %v7037, %v7035
    %v7076 = vpack.c.b16 %v7038, %v7036
    %v7077 = vpack.c.b16 %v7041, %v7039
    %v7078 = vpack.c.b16 %v7042, %v7040
    %v7079 = vpack.c.b16 %v7045, %v7043
    %v7080 = vpack.c.b16 %v7046, %v7044
    %v7081 = vpack.c.b16 %v7049, %v7047
    %v7082 = vpack.c.b16 %v7050, %v7048
    %7115 = vmatprep.subr.bf16.mxu0 %v7066
    %7116 = vmatpush1.bf16.msra.mxu0 %v7065
    %7117 = vmatprep.subr.bf16.mxu0 %v7064
    %7118 = vmatpush1.bf16.msra.mxu0 %v7063
    %7119 = vmatprep.subr.bf16.mxu0 %v7062
    %7120 = vmatpush1.bf16.msra.mxu0 %v7061
    %7121 = vmatprep.subr.bf16.mxu0 %v7060
    %7122 = vmatpush1.bf16.msra.mxu0 %v7059
    %7123 = vmatprep.subr.bf16.mxu0 %v7058
    %7124 = vmatpush1.bf16.msra.mxu0 %v7057
    %7125 = vmatprep.subr.bf16.mxu0 %v7056
    %7126 = vmatpush1.bf16.msra.mxu0 %v7055
    %7127 = vmatprep.subr.bf16.mxu0 %v7054
    %7128 = vmatpush1.bf16.msra.mxu0 %v7053
    %7129 = vmatprep.subr.bf16.mxu0 %v7052
    %7130 = vmatpush1.bf16.msra.mxu0 %v7051
    %7131 = vmatprep.subr.bf16.mxu0 %v7082
    %7132 = vmatpush2.bf16.msra.mxu0 %v7081
    %7133 = vmatprep.subr.bf16.mxu0 %v7080
    %7134 = vmatpush2.bf16.msra.mxu0 %v7079
    %7135 = vmatprep.subr.bf16.mxu0 %v7078
    %7136 = vmatpush2.bf16.msra.mxu0 %v7077
    %7137 = vmatprep.subr.bf16.mxu0 %v7076
    %7138 = vmatpush2.bf16.msra.mxu0 %v7075
    %7139 = vmatprep.subr.bf16.mxu0 %v7074
    %7140 = vmatpush2.bf16.msra.mxu0 %v7073
    %7141 = vmatprep.subr.bf16.mxu0 %v7072
    %7142 = vmatpush2.bf16.msra.mxu0 %v7071
    %7143 = vmatprep.subr.bf16.mxu0 %v7070
    %7144 = vmatpush2.bf16.msra.mxu0 %v7069
    %7145 = vmatprep.subr.bf16.mxu0 %v7068
    %7146 = vmatpush2.bf16.msra.mxu0 %v7067
    %7147 = vmatprep.mubr.bf16.mxu0 %v6952
    %7148 = vmatmul.mubr.bf16.gmra.mxu0 %v6945
    %v7149 = vpop.f32.mrf.mxu0
    %v7150 = vadd.f32 0.0, %v7149
    %v7151 = vpop.f32.mrf.mxu0
    %v7152 = vadd.f32 0.0, %v7151
    %v7153 = vpop.f32.mrf.mxu0
    %v7154 = vpop.f32.mrf.mxu0
    %7155 = vdwg.mxu0
    %v7156 = vadd.f32 %v6893, %v7150
    %v7157 = vadd.f32 %v6894, %v7152
    %s7158 = scalar_lea.vmem [#allocation2], 16
    %v7159 = vld [vmem:[%s7158] sm:$0x3]
    %s7160 = scalar_lea.vmem %s5, 2048
    %v7161 = vld [vmem:[%s7160] sm:$0xff]
    %v7162 = vld [vmem:[%s7160 + $0x8] sm:$0xff]
    %v7163 = vld [vmem:[%s7160 + $0x10] sm:$0xff]
    %v7164 = vld [vmem:[%s7160 + $0x18] sm:$0xff]
    %v7165 = vld [vmem:[%s7160 + $0x20] sm:$0xff]
    %v7166 = vld [vmem:[%s7160 + $0x28] sm:$0xff]
    %v7167 = vld [vmem:[%s7160 + $0x30] sm:$0xff]
    %v7168 = vld [vmem:[%s7160 + $0x38] sm:$0xff]
    %v7169 = vld [vmem:[%s7160 + $0x40] sm:$0xff]
    %v7170 = vld [vmem:[%s7160 + $0x48] sm:$0xff]
    %v7171 = vld [vmem:[%s7160 + $0x50] sm:$0xff]
    %v7172 = vld [vmem:[%s7160 + $0x58] sm:$0xff]
    %v7173 = vld [vmem:[%s7160 + $0x60] sm:$0xff]
    %v7174 = vld [vmem:[%s7160 + $0x68] sm:$0xff]
    %v7175 = vld [vmem:[%s7160 + $0x70] sm:$0xff]
    %v7176 = vld [vmem:[%s7160 + $0x78] sm:$0xff]
    %v7177 = vld [vmem:[%s7160 + $0x80] sm:$0xff]
    %v7178 = vld [vmem:[%s7160 + $0x88] sm:$0xff]
    %v7179 = vld [vmem:[%s7160 + $0x90] sm:$0xff]
    %v7180 = vld [vmem:[%s7160 + $0x98] sm:$0xff]
    %v7181 = vld [vmem:[%s7160 + $0xa0] sm:$0xff]
    %v7182 = vld [vmem:[%s7160 + $0xa8] sm:$0xff]
    %v7183 = vld [vmem:[%s7160 + $0xb0] sm:$0xff]
    %v7184 = vld [vmem:[%s7160 + $0xb8] sm:$0xff]
    %v7185 = vld [vmem:[%s7160 + $0xc0] sm:$0xff]
    %v7186 = vld [vmem:[%s7160 + $0xc8] sm:$0xff]
    %v7187 = vld [vmem:[%s7160 + $0xd0] sm:$0xff]
    %v7188 = vld [vmem:[%s7160 + $0xd8] sm:$0xff]
    %v7189 = vld [vmem:[%s7160 + $0xe0] sm:$0xff]
    %v7190 = vld [vmem:[%s7160 + $0xe8] sm:$0xff]
    %v7191 = vld [vmem:[%s7160 + $0xf0] sm:$0xff]
    %v7192 = vld [vmem:[%s7160 + $0xf8] sm:$0xff]
    %v7195 = vunpack.c.l.s4 1966171168
    %v7196 = vunpack.c.0.s8 %v7195
    %v7197 = vlaneseq
    %v7198 = vshrl.u32 %v7197, 7
    %v7199 = vsub.s32 %v7196, %v7198
    %v7200 = vrot.slane %v7159, %v7199
    %v7201 = vcombine.high %v7200, %v7200
    %v7203 = vunpack.c.l.s4 1966171168
    %v7204 = vunpack.c.0.s8 %v7203
    %v7205 = vlaneseq
    %v7206 = vshrl.u32 %v7205, 7
    %v7207 = vsub.s32 %v7204, %v7206
    %v7208 = vrot.slane %v7200, %v7207
    %v7210 = vunpack.c.l.s4 1966171168
    %v7211 = vunpack.c.0.s8 %v7210
    %v7212 = vlaneseq
    %v7213 = vshrl.u32 %v7212, 7
    %v7214 = vsub.s32 %v7211, %v7213
    %v7215 = vrot.slane %v7201, %v7214
    %v7250 = vunpack.c.l.b16 %v7161
    %v7251 = vunpack.c.h.b16 %v7161
    %v7252 = vunpack.c.l.b16 %v7162
    %v7253 = vunpack.c.h.b16 %v7162
    %v7254 = vunpack.c.l.b16 %v7163
    %v7255 = vunpack.c.h.b16 %v7163
    %v7256 = vunpack.c.l.b16 %v7164
    %v7257 = vunpack.c.h.b16 %v7164
    %v7258 = vunpack.c.l.b16 %v7165
    %v7259 = vunpack.c.h.b16 %v7165
    %v7260 = vunpack.c.l.b16 %v7166
    %v7261 = vunpack.c.h.b16 %v7166
    %v7262 = vunpack.c.l.b16 %v7167
    %v7263 = vunpack.c.h.b16 %v7167
    %v7264 = vunpack.c.l.b16 %v7168
    %v7265 = vunpack.c.h.b16 %v7168
    %v7266 = vunpack.c.l.b16 %v7169
    %v7267 = vunpack.c.h.b16 %v7169
    %v7268 = vunpack.c.l.b16 %v7170
    %v7269 = vunpack.c.h.b16 %v7170
    %v7270 = vunpack.c.l.b16 %v7171
    %v7271 = vunpack.c.h.b16 %v7171
    %v7272 = vunpack.c.l.b16 %v7172
    %v7273 = vunpack.c.h.b16 %v7172
    %v7274 = vunpack.c.l.b16 %v7173
    %v7275 = vunpack.c.h.b16 %v7173
    %v7276 = vunpack.c.l.b16 %v7174
    %v7277 = vunpack.c.h.b16 %v7174
    %v7278 = vunpack.c.l.b16 %v7175
    %v7279 = vunpack.c.h.b16 %v7175
    %v7280 = vunpack.c.l.b16 %v7176
    %v7281 = vunpack.c.h.b16 %v7176
    %v7282 = vunpack.c.l.b16 %v7177
    %v7283 = vunpack.c.h.b16 %v7177
    %v7284 = vunpack.c.l.b16 %v7178
    %v7285 = vunpack.c.h.b16 %v7178
    %v7286 = vunpack.c.l.b16 %v7179
    %v7287 = vunpack.c.h.b16 %v7179
    %v7288 = vunpack.c.l.b16 %v7180
    %v7289 = vunpack.c.h.b16 %v7180
    %v7290 = vunpack.c.l.b16 %v7181
    %v7291 = vunpack.c.h.b16 %v7181
    %v7292 = vunpack.c.l.b16 %v7182
    %v7293 = vunpack.c.h.b16 %v7182
    %v7294 = vunpack.c.l.b16 %v7183
    %v7295 = vunpack.c.h.b16 %v7183
    %v7296 = vunpack.c.l.b16 %v7184
    %v7297 = vunpack.c.h.b16 %v7184
    %v7298 = vunpack.c.l.b16 %v7185
    %v7299 = vunpack.c.h.b16 %v7185
    %v7300 = vunpack.c.l.b16 %v7186
    %v7301 = vunpack.c.h.b16 %v7186
    %v7302 = vunpack.c.l.b16 %v7187
    %v7303 = vunpack.c.h.b16 %v7187
    %v7304 = vunpack.c.l.b16 %v7188
    %v7305 = vunpack.c.h.b16 %v7188
    %v7306 = vunpack.c.l.b16 %v7189
    %v7307 = vunpack.c.h.b16 %v7189
    %v7308 = vunpack.c.l.b16 %v7190
    %v7309 = vunpack.c.h.b16 %v7190
    %v7310 = vunpack.c.l.b16 %v7191
    %v7311 = vunpack.c.h.b16 %v7191
    %v7312 = vunpack.c.l.b16 %v7192
    %v7313 = vunpack.c.h.b16 %v7192
    %v7314 = vpack.c.b16 %v7252, %v7250
    %v7315 = vpack.c.b16 %v7253, %v7251
    %v7316 = vpack.c.b16 %v7256, %v7254
    %v7317 = vpack.c.b16 %v7257, %v7255
    %v7318 = vpack.c.b16 %v7260, %v7258
    %v7319 = vpack.c.b16 %v7261, %v7259
    %v7320 = vpack.c.b16 %v7264, %v7262
    %v7321 = vpack.c.b16 %v7265, %v7263
    %v7322 = vpack.c.b16 %v7268, %v7266
    %v7323 = vpack.c.b16 %v7269, %v7267
    %v7324 = vpack.c.b16 %v7272, %v7270
    %v7325 = vpack.c.b16 %v7273, %v7271
    %v7326 = vpack.c.b16 %v7276, %v7274
    %v7327 = vpack.c.b16 %v7277, %v7275
    %v7328 = vpack.c.b16 %v7280, %v7278
    %v7329 = vpack.c.b16 %v7281, %v7279
    %v7330 = vpack.c.b16 %v7284, %v7282
    %v7331 = vpack.c.b16 %v7285, %v7283
    %v7332 = vpack.c.b16 %v7288, %v7286
    %v7333 = vpack.c.b16 %v7289, %v7287
    %v7334 = vpack.c.b16 %v7292, %v7290
    %v7335 = vpack.c.b16 %v7293, %v7291
    %v7336 = vpack.c.b16 %v7296, %v7294
    %v7337 = vpack.c.b16 %v7297, %v7295
    %v7338 = vpack.c.b16 %v7300, %v7298
    %v7339 = vpack.c.b16 %v7301, %v7299
    %v7340 = vpack.c.b16 %v7304, %v7302
    %v7341 = vpack.c.b16 %v7305, %v7303
    %v7342 = vpack.c.b16 %v7308, %v7306
    %v7343 = vpack.c.b16 %v7309, %v7307
    %v7344 = vpack.c.b16 %v7312, %v7310
    %v7345 = vpack.c.b16 %v7313, %v7311
    %7378 = vmatprep.subr.bf16.mxu0 %v7329
    %7379 = vmatpush1.bf16.msra.mxu0 %v7328
    %7380 = vmatprep.subr.bf16.mxu0 %v7327
    %7381 = vmatpush1.bf16.msra.mxu0 %v7326
    %7382 = vmatprep.subr.bf16.mxu0 %v7325
    %7383 = vmatpush1.bf16.msra.mxu0 %v7324
    %7384 = vmatprep.subr.bf16.mxu0 %v7323
    %7385 = vmatpush1.bf16.msra.mxu0 %v7322
    %7386 = vmatprep.subr.bf16.mxu0 %v7321
    %7387 = vmatpush1.bf16.msra.mxu0 %v7320
    %7388 = vmatprep.subr.bf16.mxu0 %v7319
    %7389 = vmatpush1.bf16.msra.mxu0 %v7318
    %7390 = vmatprep.subr.bf16.mxu0 %v7317
    %7391 = vmatpush1.bf16.msra.mxu0 %v7316
    %7392 = vmatprep.subr.bf16.mxu0 %v7315
    %7393 = vmatpush1.bf16.msra.mxu0 %v7314
    %7394 = vmatprep.subr.bf16.mxu0 %v7345
    %7395 = vmatpush2.bf16.msra.mxu0 %v7344
    %7396 = vmatprep.subr.bf16.mxu0 %v7343
    %7397 = vmatpush2.bf16.msra.mxu0 %v7342
    %7398 = vmatprep.subr.bf16.mxu0 %v7341
    %7399 = vmatpush2.bf16.msra.mxu0 %v7340
    %7400 = vmatprep.subr.bf16.mxu0 %v7339
    %7401 = vmatpush2.bf16.msra.mxu0 %v7338
    %7402 = vmatprep.subr.bf16.mxu0 %v7337
    %7403 = vmatpush2.bf16.msra.mxu0 %v7336
    %7404 = vmatprep.subr.bf16.mxu0 %v7335
    %7405 = vmatpush2.bf16.msra.mxu0 %v7334
    %7406 = vmatprep.subr.bf16.mxu0 %v7333
    %7407 = vmatpush2.bf16.msra.mxu0 %v7332
    %7408 = vmatprep.subr.bf16.mxu0 %v7331
    %7409 = vmatpush2.bf16.msra.mxu0 %v7330
    %7410 = vmatprep.mubr.bf16.mxu0 %v7215
    %7411 = vmatmul.mubr.bf16.gmra.mxu0 %v7208
    %v7412 = vpop.f32.mrf.mxu0
    %v7413 = vadd.f32 0.0, %v7412
    %v7414 = vpop.f32.mrf.mxu0
    %v7415 = vadd.f32 0.0, %v7414
    %v7416 = vpop.f32.mrf.mxu0
    %v7417 = vpop.f32.mrf.mxu0
    %7418 = vdwg.mxu0
    %v7419 = vadd.f32 %v7156, %v7413
    %v7420 = vadd.f32 %v7157, %v7415
    %s7421 = scalar_lea.vmem [#allocation2], 18
    %v7422 = vld [vmem:[%s7421] sm:$0x3]
    %s7423 = scalar_lea.vmem %s5, 2304
    %v7424 = vld [vmem:[%s7423] sm:$0xff]
    %v7425 = vld [vmem:[%s7423 + $0x8] sm:$0xff]
    %v7426 = vld [vmem:[%s7423 + $0x10] sm:$0xff]
    %v7427 = vld [vmem:[%s7423 + $0x18] sm:$0xff]
    %v7428 = vld [vmem:[%s7423 + $0x20] sm:$0xff]
    %v7429 = vld [vmem:[%s7423 + $0x28] sm:$0xff]
    %v7430 = vld [vmem:[%s7423 + $0x30] sm:$0xff]
    %v7431 = vld [vmem:[%s7423 + $0x38] sm:$0xff]
    %v7432 = vld [vmem:[%s7423 + $0x40] sm:$0xff]
    %v7433 = vld [vmem:[%s7423 + $0x48] sm:$0xff]
    %v7434 = vld [vmem:[%s7423 + $0x50] sm:$0xff]
    %v7435 = vld [vmem:[%s7423 + $0x58] sm:$0xff]
    %v7436 = vld [vmem:[%s7423 + $0x60] sm:$0xff]
    %v7437 = vld [vmem:[%s7423 + $0x68] sm:$0xff]
    %v7438 = vld [vmem:[%s7423 + $0x70] sm:$0xff]
    %v7439 = vld [vmem:[%s7423 + $0x78] sm:$0xff]
    %v7440 = vld [vmem:[%s7423 + $0x80] sm:$0xff]
    %v7441 = vld [vmem:[%s7423 + $0x88] sm:$0xff]
    %v7442 = vld [vmem:[%s7423 + $0x90] sm:$0xff]
    %v7443 = vld [vmem:[%s7423 + $0x98] sm:$0xff]
    %v7444 = vld [vmem:[%s7423 + $0xa0] sm:$0xff]
    %v7445 = vld [vmem:[%s7423 + $0xa8] sm:$0xff]
    %v7446 = vld [vmem:[%s7423 + $0xb0] sm:$0xff]
    %v7447 = vld [vmem:[%s7423 + $0xb8] sm:$0xff]
    %v7448 = vld [vmem:[%s7423 + $0xc0] sm:$0xff]
    %v7449 = vld [vmem:[%s7423 + $0xc8] sm:$0xff]
    %v7450 = vld [vmem:[%s7423 + $0xd0] sm:$0xff]
    %v7451 = vld [vmem:[%s7423 + $0xd8] sm:$0xff]
    %v7452 = vld [vmem:[%s7423 + $0xe0] sm:$0xff]
    %v7453 = vld [vmem:[%s7423 + $0xe8] sm:$0xff]
    %v7454 = vld [vmem:[%s7423 + $0xf0] sm:$0xff]
    %v7455 = vld [vmem:[%s7423 + $0xf8] sm:$0xff]
    %v7458 = vunpack.c.l.s4 1966171168
    %v7459 = vunpack.c.0.s8 %v7458
    %v7460 = vlaneseq
    %v7461 = vshrl.u32 %v7460, 7
    %v7462 = vsub.s32 %v7459, %v7461
    %v7463 = vrot.slane %v7422, %v7462
    %v7464 = vcombine.high %v7463, %v7463
    %v7466 = vunpack.c.l.s4 1966171168
    %v7467 = vunpack.c.0.s8 %v7466
    %v7468 = vlaneseq
    %v7469 = vshrl.u32 %v7468, 7
    %v7470 = vsub.s32 %v7467, %v7469
    %v7471 = vrot.slane %v7463, %v7470
    %v7473 = vunpack.c.l.s4 1966171168
    %v7474 = vunpack.c.0.s8 %v7473
    %v7475 = vlaneseq
    %v7476 = vshrl.u32 %v7475, 7
    %v7477 = vsub.s32 %v7474, %v7476
    %v7478 = vrot.slane %v7464, %v7477
    %v7513 = vunpack.c.l.b16 %v7424
    %v7514 = vunpack.c.h.b16 %v7424
    %v7515 = vunpack.c.l.b16 %v7425
    %v7516 = vunpack.c.h.b16 %v7425
    %v7517 = vunpack.c.l.b16 %v7426
    %v7518 = vunpack.c.h.b16 %v7426
    %v7519 = vunpack.c.l.b16 %v7427
    %v7520 = vunpack.c.h.b16 %v7427
    %v7521 = vunpack.c.l.b16 %v7428
    %v7522 = vunpack.c.h.b16 %v7428
    %v7523 = vunpack.c.l.b16 %v7429
    %v7524 = vunpack.c.h.b16 %v7429
    %v7525 = vunpack.c.l.b16 %v7430
    %v7526 = vunpack.c.h.b16 %v7430
    %v7527 = vunpack.c.l.b16 %v7431
    %v7528 = vunpack.c.h.b16 %v7431
    %v7529 = vunpack.c.l.b16 %v7432
    %v7530 = vunpack.c.h.b16 %v7432
    %v7531 = vunpack.c.l.b16 %v7433
    %v7532 = vunpack.c.h.b16 %v7433
    %v7533 = vunpack.c.l.b16 %v7434
    %v7534 = vunpack.c.h.b16 %v7434
    %v7535 = vunpack.c.l.b16 %v7435
    %v7536 = vunpack.c.h.b16 %v7435
    %v7537 = vunpack.c.l.b16 %v7436
    %v7538 = vunpack.c.h.b16 %v7436
    %v7539 = vunpack.c.l.b16 %v7437
    %v7540 = vunpack.c.h.b16 %v7437
    %v7541 = vunpack.c.l.b16 %v7438
    %v7542 = vunpack.c.h.b16 %v7438
    %v7543 = vunpack.c.l.b16 %v7439
    %v7544 = vunpack.c.h.b16 %v7439
    %v7545 = vunpack.c.l.b16 %v7440
    %v7546 = vunpack.c.h.b16 %v7440
    %v7547 = vunpack.c.l.b16 %v7441
    %v7548 = vunpack.c.h.b16 %v7441
    %v7549 = vunpack.c.l.b16 %v7442
    %v7550 = vunpack.c.h.b16 %v7442
    %v7551 = vunpack.c.l.b16 %v7443
    %v7552 = vunpack.c.h.b16 %v7443
    %v7553 = vunpack.c.l.b16 %v7444
    %v7554 = vunpack.c.h.b16 %v7444
    %v7555 = vunpack.c.l.b16 %v7445
    %v7556 = vunpack.c.h.b16 %v7445
    %v7557 = vunpack.c.l.b16 %v7446
    %v7558 = vunpack.c.h.b16 %v7446
    %v7559 = vunpack.c.l.b16 %v7447
    %v7560 = vunpack.c.h.b16 %v7447
    %v7561 = vunpack.c.l.b16 %v7448
    %v7562 = vunpack.c.h.b16 %v7448
    %v7563 = vunpack.c.l.b16 %v7449
    %v7564 = vunpack.c.h.b16 %v7449
    %v7565 = vunpack.c.l.b16 %v7450
    %v7566 = vunpack.c.h.b16 %v7450
    %v7567 = vunpack.c.l.b16 %v7451
    %v7568 = vunpack.c.h.b16 %v7451
    %v7569 = vunpack.c.l.b16 %v7452
    %v7570 = vunpack.c.h.b16 %v7452
    %v7571 = vunpack.c.l.b16 %v7453
    %v7572 = vunpack.c.h.b16 %v7453
    %v7573 = vunpack.c.l.b16 %v7454
    %v7574 = vunpack.c.h.b16 %v7454
    %v7575 = vunpack.c.l.b16 %v7455
    %v7576 = vunpack.c.h.b16 %v7455
    %v7577 = vpack.c.b16 %v7515, %v7513
    %v7578 = vpack.c.b16 %v7516, %v7514
    %v7579 = vpack.c.b16 %v7519, %v7517
    %v7580 = vpack.c.b16 %v7520, %v7518
    %v7581 = vpack.c.b16 %v7523, %v7521
    %v7582 = vpack.c.b16 %v7524, %v7522
    %v7583 = vpack.c.b16 %v7527, %v7525
    %v7584 = vpack.c.b16 %v7528, %v7526
    %v7585 = vpack.c.b16 %v7531, %v7529
    %v7586 = vpack.c.b16 %v7532, %v7530
    %v7587 = vpack.c.b16 %v7535, %v7533
    %v7588 = vpack.c.b16 %v7536, %v7534
    %v7589 = vpack.c.b16 %v7539, %v7537
    %v7590 = vpack.c.b16 %v7540, %v7538
    %v7591 = vpack.c.b16 %v7543, %v7541
    %v7592 = vpack.c.b16 %v7544, %v7542
    %v7593 = vpack.c.b16 %v7547, %v7545
    %v7594 = vpack.c.b16 %v7548, %v7546
    %v7595 = vpack.c.b16 %v7551, %v7549
    %v7596 = vpack.c.b16 %v7552, %v7550
    %v7597 = vpack.c.b16 %v7555, %v7553
    %v7598 = vpack.c.b16 %v7556, %v7554
    %v7599 = vpack.c.b16 %v7559, %v7557
    %v7600 = vpack.c.b16 %v7560, %v7558
    %v7601 = vpack.c.b16 %v7563, %v7561
    %v7602 = vpack.c.b16 %v7564, %v7562
    %v7603 = vpack.c.b16 %v7567, %v7565
    %v7604 = vpack.c.b16 %v7568, %v7566
    %v7605 = vpack.c.b16 %v7571, %v7569
    %v7606 = vpack.c.b16 %v7572, %v7570
    %v7607 = vpack.c.b16 %v7575, %v7573
    %v7608 = vpack.c.b16 %v7576, %v7574
    %7641 = vmatprep.subr.bf16.mxu0 %v7592
    %7642 = vmatpush1.bf16.msra.mxu0 %v7591
    %7643 = vmatprep.subr.bf16.mxu0 %v7590
    %7644 = vmatpush1.bf16.msra.mxu0 %v7589
    %7645 = vmatprep.subr.bf16.mxu0 %v7588
    %7646 = vmatpush1.bf16.msra.mxu0 %v7587
    %7647 = vmatprep.subr.bf16.mxu0 %v7586
    %7648 = vmatpush1.bf16.msra.mxu0 %v7585
    %7649 = vmatprep.subr.bf16.mxu0 %v7584
    %7650 = vmatpush1.bf16.msra.mxu0 %v7583
    %7651 = vmatprep.subr.bf16.mxu0 %v7582
    %7652 = vmatpush1.bf16.msra.mxu0 %v7581
    %7653 = vmatprep.subr.bf16.mxu0 %v7580
    %7654 = vmatpush1.bf16.msra.mxu0 %v7579
    %7655 = vmatprep.subr.bf16.mxu0 %v7578
    %7656 = vmatpush1.bf16.msra.mxu0 %v7577
    %7657 = vmatprep.subr.bf16.mxu0 %v7608
    %7658 = vmatpush2.bf16.msra.mxu0 %v7607
    %7659 = vmatprep.subr.bf16.mxu0 %v7606
    %7660 = vmatpush2.bf16.msra.mxu0 %v7605
    %7661 = vmatprep.subr.bf16.mxu0 %v7604
    %7662 = vmatpush2.bf16.msra.mxu0 %v7603
    %7663 = vmatprep.subr.bf16.mxu0 %v7602
    %7664 = vmatpush2.bf16.msra.mxu0 %v7601
    %7665 = vmatprep.subr.bf16.mxu0 %v7600
    %7666 = vmatpush2.bf16.msra.mxu0 %v7599
    %7667 = vmatprep.subr.bf16.mxu0 %v7598
    %7668 = vmatpush2.bf16.msra.mxu0 %v7597
    %7669 = vmatprep.subr.bf16.mxu0 %v7596
    %7670 = vmatpush2.bf16.msra.mxu0 %v7595
    %7671 = vmatprep.subr.bf16.mxu0 %v7594
    %7672 = vmatpush2.bf16.msra.mxu0 %v7593
    %7673 = vmatprep.mubr.bf16.mxu0 %v7478
    %7674 = vmatmul.mubr.bf16.gmra.mxu0 %v7471
    %v7675 = vpop.f32.mrf.mxu0
    %v7676 = vadd.f32 0.0, %v7675
    %v7677 = vpop.f32.mrf.mxu0
    %v7678 = vadd.f32 0.0, %v7677
    %v7679 = vpop.f32.mrf.mxu0
    %v7680 = vpop.f32.mrf.mxu0
    %7681 = vdwg.mxu0
    %v7682 = vadd.f32 %v7419, %v7676
    %v7683 = vadd.f32 %v7420, %v7678
    %s7684 = scalar_lea.vmem [#allocation2], 20
    %v7685 = vld [vmem:[%s7684] sm:$0x3]
    %s7686 = scalar_lea.vmem %s5, 2560
    %v7687 = vld [vmem:[%s7686] sm:$0xff]
    %v7688 = vld [vmem:[%s7686 + $0x8] sm:$0xff]
    %v7689 = vld [vmem:[%s7686 + $0x10] sm:$0xff]
    %v7690 = vld [vmem:[%s7686 + $0x18] sm:$0xff]
    %v7691 = vld [vmem:[%s7686 + $0x20] sm:$0xff]
    %v7692 = vld [vmem:[%s7686 + $0x28] sm:$0xff]
    %v7693 = vld [vmem:[%s7686 + $0x30] sm:$0xff]
    %v7694 = vld [vmem:[%s7686 + $0x38] sm:$0xff]
    %v7695 = vld [vmem:[%s7686 + $0x40] sm:$0xff]
    %v7696 = vld [vmem:[%s7686 + $0x48] sm:$0xff]
    %v7697 = vld [vmem:[%s7686 + $0x50] sm:$0xff]
    %v7698 = vld [vmem:[%s7686 + $0x58] sm:$0xff]
    %v7699 = vld [vmem:[%s7686 + $0x60] sm:$0xff]
    %v7700 = vld [vmem:[%s7686 + $0x68] sm:$0xff]
    %v7701 = vld [vmem:[%s7686 + $0x70] sm:$0xff]
    %v7702 = vld [vmem:[%s7686 + $0x78] sm:$0xff]
    %v7703 = vld [vmem:[%s7686 + $0x80] sm:$0xff]
    %v7704 = vld [vmem:[%s7686 + $0x88] sm:$0xff]
    %v7705 = vld [vmem:[%s7686 + $0x90] sm:$0xff]
    %v7706 = vld [vmem:[%s7686 + $0x98] sm:$0xff]
    %v7707 = vld [vmem:[%s7686 + $0xa0] sm:$0xff]
    %v7708 = vld [vmem:[%s7686 + $0xa8] sm:$0xff]
    %v7709 = vld [vmem:[%s7686 + $0xb0] sm:$0xff]
    %v7710 = vld [vmem:[%s7686 + $0xb8] sm:$0xff]
    %v7711 = vld [vmem:[%s7686 + $0xc0] sm:$0xff]
    %v7712 = vld [vmem:[%s7686 + $0xc8] sm:$0xff]
    %v7713 = vld [vmem:[%s7686 + $0xd0] sm:$0xff]
    %v7714 = vld [vmem:[%s7686 + $0xd8] sm:$0xff]
    %v7715 = vld [vmem:[%s7686 + $0xe0] sm:$0xff]
    %v7716 = vld [vmem:[%s7686 + $0xe8] sm:$0xff]
    %v7717 = vld [vmem:[%s7686 + $0xf0] sm:$0xff]
    %v7718 = vld [vmem:[%s7686 + $0xf8] sm:$0xff]
    %v7721 = vunpack.c.l.s4 1966171168
    %v7722 = vunpack.c.0.s8 %v7721
    %v7723 = vlaneseq
    %v7724 = vshrl.u32 %v7723, 7
    %v7725 = vsub.s32 %v7722, %v7724
    %v7726 = vrot.slane %v7685, %v7725
    %v7727 = vcombine.high %v7726, %v7726
    %v7729 = vunpack.c.l.s4 1966171168
    %v7730 = vunpack.c.0.s8 %v7729
    %v7731 = vlaneseq
    %v7732 = vshrl.u32 %v7731, 7
    %v7733 = vsub.s32 %v7730, %v7732
    %v7734 = vrot.slane %v7726, %v7733
    %v7736 = vunpack.c.l.s4 1966171168
    %v7737 = vunpack.c.0.s8 %v7736
    %v7738 = vlaneseq
    %v7739 = vshrl.u32 %v7738, 7
    %v7740 = vsub.s32 %v7737, %v7739
    %v7741 = vrot.slane %v7727, %v7740
    %v7776 = vunpack.c.l.b16 %v7687
    %v7777 = vunpack.c.h.b16 %v7687
    %v7778 = vunpack.c.l.b16 %v7688
    %v7779 = vunpack.c.h.b16 %v7688
    %v7780 = vunpack.c.l.b16 %v7689
    %v7781 = vunpack.c.h.b16 %v7689
    %v7782 = vunpack.c.l.b16 %v7690
    %v7783 = vunpack.c.h.b16 %v7690
    %v7784 = vunpack.c.l.b16 %v7691
    %v7785 = vunpack.c.h.b16 %v7691
    %v7786 = vunpack.c.l.b16 %v7692
    %v7787 = vunpack.c.h.b16 %v7692
    %v7788 = vunpack.c.l.b16 %v7693
    %v7789 = vunpack.c.h.b16 %v7693
    %v7790 = vunpack.c.l.b16 %v7694
    %v7791 = vunpack.c.h.b16 %v7694
    %v7792 = vunpack.c.l.b16 %v7695
    %v7793 = vunpack.c.h.b16 %v7695
    %v7794 = vunpack.c.l.b16 %v7696
    %v7795 = vunpack.c.h.b16 %v7696
    %v7796 = vunpack.c.l.b16 %v7697
    %v7797 = vunpack.c.h.b16 %v7697
    %v7798 = vunpack.c.l.b16 %v7698
    %v7799 = vunpack.c.h.b16 %v7698
    %v7800 = vunpack.c.l.b16 %v7699
    %v7801 = vunpack.c.h.b16 %v7699
    %v7802 = vunpack.c.l.b16 %v7700
    %v7803 = vunpack.c.h.b16 %v7700
    %v7804 = vunpack.c.l.b16 %v7701
    %v7805 = vunpack.c.h.b16 %v7701
    %v7806 = vunpack.c.l.b16 %v7702
    %v7807 = vunpack.c.h.b16 %v7702
    %v7808 = vunpack.c.l.b16 %v7703
    %v7809 = vunpack.c.h.b16 %v7703
    %v7810 = vunpack.c.l.b16 %v7704
    %v7811 = vunpack.c.h.b16 %v7704
    %v7812 = vunpack.c.l.b16 %v7705
    %v7813 = vunpack.c.h.b16 %v7705
    %v7814 = vunpack.c.l.b16 %v7706
    %v7815 = vunpack.c.h.b16 %v7706
    %v7816 = vunpack.c.l.b16 %v7707
    %v7817 = vunpack.c.h.b16 %v7707
    %v7818 = vunpack.c.l.b16 %v7708
    %v7819 = vunpack.c.h.b16 %v7708
    %v7820 = vunpack.c.l.b16 %v7709
    %v7821 = vunpack.c.h.b16 %v7709
    %v7822 = vunpack.c.l.b16 %v7710
    %v7823 = vunpack.c.h.b16 %v7710
    %v7824 = vunpack.c.l.b16 %v7711
    %v7825 = vunpack.c.h.b16 %v7711
    %v7826 = vunpack.c.l.b16 %v7712
    %v7827 = vunpack.c.h.b16 %v7712
    %v7828 = vunpack.c.l.b16 %v7713
    %v7829 = vunpack.c.h.b16 %v7713
    %v7830 = vunpack.c.l.b16 %v7714
    %v7831 = vunpack.c.h.b16 %v7714
    %v7832 = vunpack.c.l.b16 %v7715
    %v7833 = vunpack.c.h.b16 %v7715
    %v7834 = vunpack.c.l.b16 %v7716
    %v7835 = vunpack.c.h.b16 %v7716
    %v7836 = vunpack.c.l.b16 %v7717
    %v7837 = vunpack.c.h.b16 %v7717
    %v7838 = vunpack.c.l.b16 %v7718
    %v7839 = vunpack.c.h.b16 %v7718
    %v7840 = vpack.c.b16 %v7778, %v7776
    %v7841 = vpack.c.b16 %v7779, %v7777
    %v7842 = vpack.c.b16 %v7782, %v7780
    %v7843 = vpack.c.b16 %v7783, %v7781
    %v7844 = vpack.c.b16 %v7786, %v7784
    %v7845 = vpack.c.b16 %v7787, %v7785
    %v7846 = vpack.c.b16 %v7790, %v7788
    %v7847 = vpack.c.b16 %v7791, %v7789
    %v7848 = vpack.c.b16 %v7794, %v7792
    %v7849 = vpack.c.b16 %v7795, %v7793
    %v7850 = vpack.c.b16 %v7798, %v7796
    %v7851 = vpack.c.b16 %v7799, %v7797
    %v7852 = vpack.c.b16 %v7802, %v7800
    %v7853 = vpack.c.b16 %v7803, %v7801
    %v7854 = vpack.c.b16 %v7806, %v7804
    %v7855 = vpack.c.b16 %v7807, %v7805
    %v7856 = vpack.c.b16 %v7810, %v7808
    %v7857 = vpack.c.b16 %v7811, %v7809
    %v7858 = vpack.c.b16 %v7814, %v7812
    %v7859 = vpack.c.b16 %v7815, %v7813
    %v7860 = vpack.c.b16 %v7818, %v7816
    %v7861 = vpack.c.b16 %v7819, %v7817
    %v7862 = vpack.c.b16 %v7822, %v7820
    %v7863 = vpack.c.b16 %v7823, %v7821
    %v7864 = vpack.c.b16 %v7826, %v7824
    %v7865 = vpack.c.b16 %v7827, %v7825
    %v7866 = vpack.c.b16 %v7830, %v7828
    %v7867 = vpack.c.b16 %v7831, %v7829
    %v7868 = vpack.c.b16 %v7834, %v7832
    %v7869 = vpack.c.b16 %v7835, %v7833
    %v7870 = vpack.c.b16 %v7838, %v7836
    %v7871 = vpack.c.b16 %v7839, %v7837
    %7904 = vmatprep.subr.bf16.mxu0 %v7855
    %7905 = vmatpush1.bf16.msra.mxu0 %v7854
    %7906 = vmatprep.subr.bf16.mxu0 %v7853
    %7907 = vmatpush1.bf16.msra.mxu0 %v7852
    %7908 = vmatprep.subr.bf16.mxu0 %v7851
    %7909 = vmatpush1.bf16.msra.mxu0 %v7850
    %7910 = vmatprep.subr.bf16.mxu0 %v7849
    %7911 = vmatpush1.bf16.msra.mxu0 %v7848
    %7912 = vmatprep.subr.bf16.mxu0 %v7847
    %7913 = vmatpush1.bf16.msra.mxu0 %v7846
    %7914 = vmatprep.subr.bf16.mxu0 %v7845
    %7915 = vmatpush1.bf16.msra.mxu0 %v7844
    %7916 = vmatprep.subr.bf16.mxu0 %v7843
    %7917 = vmatpush1.bf16.msra.mxu0 %v7842
    %7918 = vmatprep.subr.bf16.mxu0 %v7841
    %7919 = vmatpush1.bf16.msra.mxu0 %v7840
    %7920 = vmatprep.subr.bf16.mxu0 %v7871
    %7921 = vmatpush2.bf16.msra.mxu0 %v7870
    %7922 = vmatprep.subr.bf16.mxu0 %v7869
    %7923 = vmatpush2.bf16.msra.mxu0 %v7868
    %7924 = vmatprep.subr.bf16.mxu0 %v7867
    %7925 = vmatpush2.bf16.msra.mxu0 %v7866
    %7926 = vmatprep.subr.bf16.mxu0 %v7865
    %7927 = vmatpush2.bf16.msra.mxu0 %v7864
    %7928 = vmatprep.subr.bf16.mxu0 %v7863
    %7929 = vmatpush2.bf16.msra.mxu0 %v7862
    %7930 = vmatprep.subr.bf16.mxu0 %v7861
    %7931 = vmatpush2.bf16.msra.mxu0 %v7860
    %7932 = vmatprep.subr.bf16.mxu0 %v7859
    %7933 = vmatpush2.bf16.msra.mxu0 %v7858
    %7934 = vmatprep.subr.bf16.mxu0 %v7857
    %7935 = vmatpush2.bf16.msra.mxu0 %v7856
    %7936 = vmatprep.mubr.bf16.mxu0 %v7741
    %7937 = vmatmul.mubr.bf16.gmra.mxu0 %v7734
    %v7938 = vpop.f32.mrf.mxu0
    %v7939 = vadd.f32 0.0, %v7938
    %v7940 = vpop.f32.mrf.mxu0
    %v7941 = vadd.f32 0.0, %v7940
    %v7942 = vpop.f32.mrf.mxu0
    %v7943 = vpop.f32.mrf.mxu0
    %7944 = vdwg.mxu0
    %v7945 = vadd.f32 %v7682, %v7939
    %v7946 = vadd.f32 %v7683, %v7941
    %s7947 = scalar_lea.vmem [#allocation2], 22
    %v7948 = vld [vmem:[%s7947] sm:$0x3]
    %s7949 = scalar_lea.vmem %s5, 2816
    %v7950 = vld [vmem:[%s7949] sm:$0xff]
    %v7951 = vld [vmem:[%s7949 + $0x8] sm:$0xff]
    %v7952 = vld [vmem:[%s7949 + $0x10] sm:$0xff]
    %v7953 = vld [vmem:[%s7949 + $0x18] sm:$0xff]
    %v7954 = vld [vmem:[%s7949 + $0x20] sm:$0xff]
    %v7955 = vld [vmem:[%s7949 + $0x28] sm:$0xff]
    %v7956 = vld [vmem:[%s7949 + $0x30] sm:$0xff]
    %v7957 = vld [vmem:[%s7949 + $0x38] sm:$0xff]
    %v7958 = vld [vmem:[%s7949 + $0x40] sm:$0xff]
    %v7959 = vld [vmem:[%s7949 + $0x48] sm:$0xff]
    %v7960 = vld [vmem:[%s7949 + $0x50] sm:$0xff]
    %v7961 = vld [vmem:[%s7949 + $0x58] sm:$0xff]
    %v7962 = vld [vmem:[%s7949 + $0x60] sm:$0xff]
    %v7963 = vld [vmem:[%s7949 + $0x68] sm:$0xff]
    %v7964 = vld [vmem:[%s7949 + $0x70] sm:$0xff]
    %v7965 = vld [vmem:[%s7949 + $0x78] sm:$0xff]
    %v7966 = vld [vmem:[%s7949 + $0x80] sm:$0xff]
    %v7967 = vld [vmem:[%s7949 + $0x88] sm:$0xff]
    %v7968 = vld [vmem:[%s7949 + $0x90] sm:$0xff]
    %v7969 = vld [vmem:[%s7949 + $0x98] sm:$0xff]
    %v7970 = vld [vmem:[%s7949 + $0xa0] sm:$0xff]
    %v7971 = vld [vmem:[%s7949 + $0xa8] sm:$0xff]
    %v7972 = vld [vmem:[%s7949 + $0xb0] sm:$0xff]
    %v7973 = vld [vmem:[%s7949 + $0xb8] sm:$0xff]
    %v7974 = vld [vmem:[%s7949 + $0xc0] sm:$0xff]
    %v7975 = vld [vmem:[%s7949 + $0xc8] sm:$0xff]
    %v7976 = vld [vmem:[%s7949 + $0xd0] sm:$0xff]
    %v7977 = vld [vmem:[%s7949 + $0xd8] sm:$0xff]
    %v7978 = vld [vmem:[%s7949 + $0xe0] sm:$0xff]
    %v7979 = vld [vmem:[%s7949 + $0xe8] sm:$0xff]
    %v7980 = vld [vmem:[%s7949 + $0xf0] sm:$0xff]
    %v7981 = vld [vmem:[%s7949 + $0xf8] sm:$0xff]
    %v7984 = vunpack.c.l.s4 1966171168
    %v7985 = vunpack.c.0.s8 %v7984
    %v7986 = vlaneseq
    %v7987 = vshrl.u32 %v7986, 7
    %v7988 = vsub.s32 %v7985, %v7987
    %v7989 = vrot.slane %v7948, %v7988
    %v7990 = vcombine.high %v7989, %v7989
    %v7992 = vunpack.c.l.s4 1966171168
    %v7993 = vunpack.c.0.s8 %v7992
    %v7994 = vlaneseq
    %v7995 = vshrl.u32 %v7994, 7
    %v7996 = vsub.s32 %v7993, %v7995
    %v7997 = vrot.slane %v7989, %v7996
    %v7999 = vunpack.c.l.s4 1966171168
    %v8000 = vunpack.c.0.s8 %v7999
    %v8001 = vlaneseq
    %v8002 = vshrl.u32 %v8001, 7
    %v8003 = vsub.s32 %v8000, %v8002
    %v8004 = vrot.slane %v7990, %v8003
    %v8039 = vunpack.c.l.b16 %v7950
    %v8040 = vunpack.c.h.b16 %v7950
    %v8041 = vunpack.c.l.b16 %v7951
    %v8042 = vunpack.c.h.b16 %v7951
    %v8043 = vunpack.c.l.b16 %v7952
    %v8044 = vunpack.c.h.b16 %v7952
    %v8045 = vunpack.c.l.b16 %v7953
    %v8046 = vunpack.c.h.b16 %v7953
    %v8047 = vunpack.c.l.b16 %v7954
    %v8048 = vunpack.c.h.b16 %v7954
    %v8049 = vunpack.c.l.b16 %v7955
    %v8050 = vunpack.c.h.b16 %v7955
    %v8051 = vunpack.c.l.b16 %v7956
    %v8052 = vunpack.c.h.b16 %v7956
    %v8053 = vunpack.c.l.b16 %v7957
    %v8054 = vunpack.c.h.b16 %v7957
    %v8055 = vunpack.c.l.b16 %v7958
    %v8056 = vunpack.c.h.b16 %v7958
    %v8057 = vunpack.c.l.b16 %v7959
    %v8058 = vunpack.c.h.b16 %v7959
    %v8059 = vunpack.c.l.b16 %v7960
    %v8060 = vunpack.c.h.b16 %v7960
    %v8061 = vunpack.c.l.b16 %v7961
    %v8062 = vunpack.c.h.b16 %v7961
    %v8063 = vunpack.c.l.b16 %v7962
    %v8064 = vunpack.c.h.b16 %v7962
    %v8065 = vunpack.c.l.b16 %v7963
    %v8066 = vunpack.c.h.b16 %v7963
    %v8067 = vunpack.c.l.b16 %v7964
    %v8068 = vunpack.c.h.b16 %v7964
    %v8069 = vunpack.c.l.b16 %v7965
    %v8070 = vunpack.c.h.b16 %v7965
    %v8071 = vunpack.c.l.b16 %v7966
    %v8072 = vunpack.c.h.b16 %v7966
    %v8073 = vunpack.c.l.b16 %v7967
    %v8074 = vunpack.c.h.b16 %v7967
    %v8075 = vunpack.c.l.b16 %v7968
    %v8076 = vunpack.c.h.b16 %v7968
    %v8077 = vunpack.c.l.b16 %v7969
    %v8078 = vunpack.c.h.b16 %v7969
    %v8079 = vunpack.c.l.b16 %v7970
    %v8080 = vunpack.c.h.b16 %v7970
    %v8081 = vunpack.c.l.b16 %v7971
    %v8082 = vunpack.c.h.b16 %v7971
    %v8083 = vunpack.c.l.b16 %v7972
    %v8084 = vunpack.c.h.b16 %v7972
    %v8085 = vunpack.c.l.b16 %v7973
    %v8086 = vunpack.c.h.b16 %v7973
    %v8087 = vunpack.c.l.b16 %v7974
    %v8088 = vunpack.c.h.b16 %v7974
    %v8089 = vunpack.c.l.b16 %v7975
    %v8090 = vunpack.c.h.b16 %v7975
    %v8091 = vunpack.c.l.b16 %v7976
    %v8092 = vunpack.c.h.b16 %v7976
    %v8093 = vunpack.c.l.b16 %v7977
    %v8094 = vunpack.c.h.b16 %v7977
    %v8095 = vunpack.c.l.b16 %v7978
    %v8096 = vunpack.c.h.b16 %v7978
    %v8097 = vunpack.c.l.b16 %v7979
    %v8098 = vunpack.c.h.b16 %v7979
    %v8099 = vunpack.c.l.b16 %v7980
    %v8100 = vunpack.c.h.b16 %v7980
    %v8101 = vunpack.c.l.b16 %v7981
    %v8102 = vunpack.c.h.b16 %v7981
    %v8103 = vpack.c.b16 %v8041, %v8039
    %v8104 = vpack.c.b16 %v8042, %v8040
    %v8105 = vpack.c.b16 %v8045, %v8043
    %v8106 = vpack.c.b16 %v8046, %v8044
    %v8107 = vpack.c.b16 %v8049, %v8047
    %v8108 = vpack.c.b16 %v8050, %v8048
    %v8109 = vpack.c.b16 %v8053, %v8051
    %v8110 = vpack.c.b16 %v8054, %v8052
    %v8111 = vpack.c.b16 %v8057, %v8055
    %v8112 = vpack.c.b16 %v8058, %v8056
    %v8113 = vpack.c.b16 %v8061, %v8059
    %v8114 = vpack.c.b16 %v8062, %v8060
    %v8115 = vpack.c.b16 %v8065, %v8063
    %v8116 = vpack.c.b16 %v8066, %v8064
    %v8117 = vpack.c.b16 %v8069, %v8067
    %v8118 = vpack.c.b16 %v8070, %v8068
    %v8119 = vpack.c.b16 %v8073, %v8071
    %v8120 = vpack.c.b16 %v8074, %v8072
    %v8121 = vpack.c.b16 %v8077, %v8075
    %v8122 = vpack.c.b16 %v8078, %v8076
    %v8123 = vpack.c.b16 %v8081, %v8079
    %v8124 = vpack.c.b16 %v8082, %v8080
    %v8125 = vpack.c.b16 %v8085, %v8083
    %v8126 = vpack.c.b16 %v8086, %v8084
    %v8127 = vpack.c.b16 %v8089, %v8087
    %v8128 = vpack.c.b16 %v8090, %v8088
    %v8129 = vpack.c.b16 %v8093, %v8091
    %v8130 = vpack.c.b16 %v8094, %v8092
    %v8131 = vpack.c.b16 %v8097, %v8095
    %v8132 = vpack.c.b16 %v8098, %v8096
    %v8133 = vpack.c.b16 %v8101, %v8099
    %v8134 = vpack.c.b16 %v8102, %v8100
    %8167 = vmatprep.subr.bf16.mxu0 %v8118
    %8168 = vmatpush1.bf16.msra.mxu0 %v8117
    %8169 = vmatprep.subr.bf16.mxu0 %v8116
    %8170 = vmatpush1.bf16.msra.mxu0 %v8115
    %8171 = vmatprep.subr.bf16.mxu0 %v8114
    %8172 = vmatpush1.bf16.msra.mxu0 %v8113
    %8173 = vmatprep.subr.bf16.mxu0 %v8112
    %8174 = vmatpush1.bf16.msra.mxu0 %v8111
    %8175 = vmatprep.subr.bf16.mxu0 %v8110
    %8176 = vmatpush1.bf16.msra.mxu0 %v8109
    %8177 = vmatprep.subr.bf16.mxu0 %v8108
    %8178 = vmatpush1.bf16.msra.mxu0 %v8107
    %8179 = vmatprep.subr.bf16.mxu0 %v8106
    %8180 = vmatpush1.bf16.msra.mxu0 %v8105
    %8181 = vmatprep.subr.bf16.mxu0 %v8104
    %8182 = vmatpush1.bf16.msra.mxu0 %v8103
    %8183 = vmatprep.subr.bf16.mxu0 %v8134
    %8184 = vmatpush2.bf16.msra.mxu0 %v8133
    %8185 = vmatprep.subr.bf16.mxu0 %v8132
    %8186 = vmatpush2.bf16.msra.mxu0 %v8131
    %8187 = vmatprep.subr.bf16.mxu0 %v8130
    %8188 = vmatpush2.bf16.msra.mxu0 %v8129
    %8189 = vmatprep.subr.bf16.mxu0 %v8128
    %8190 = vmatpush2.bf16.msra.mxu0 %v8127
    %8191 = vmatprep.subr.bf16.mxu0 %v8126
    %8192 = vmatpush2.bf16.msra.mxu0 %v8125
    %8193 = vmatprep.subr.bf16.mxu0 %v8124
    %8194 = vmatpush2.bf16.msra.mxu0 %v8123
    %8195 = vmatprep.subr.bf16.mxu0 %v8122
    %8196 = vmatpush2.bf16.msra.mxu0 %v8121
    %8197 = vmatprep.subr.bf16.mxu0 %v8120
    %8198 = vmatpush2.bf16.msra.mxu0 %v8119
    %8199 = vmatprep.mubr.bf16.mxu0 %v8004
    %8200 = vmatmul.mubr.bf16.gmra.mxu0 %v7997
    %v8201 = vpop.f32.mrf.mxu0
    %v8202 = vadd.f32 0.0, %v8201
    %v8203 = vpop.f32.mrf.mxu0
    %v8204 = vadd.f32 0.0, %v8203
    %v8205 = vpop.f32.mrf.mxu0
    %v8206 = vpop.f32.mrf.mxu0
    %8207 = vdwg.mxu0
    %v8208 = vadd.f32 %v7945, %v8202
    %v8209 = vadd.f32 %v7946, %v8204
    %s8210 = scalar_lea.vmem [#allocation2], 24
    %v8211 = vld [vmem:[%s8210] sm:$0x3]
    %s8212 = scalar_lea.vmem %s5, 3072
    %v8213 = vld [vmem:[%s8212] sm:$0xff]
    %v8214 = vld [vmem:[%s8212 + $0x8] sm:$0xff]
    %v8215 = vld [vmem:[%s8212 + $0x10] sm:$0xff]
    %v8216 = vld [vmem:[%s8212 + $0x18] sm:$0xff]
    %v8217 = vld [vmem:[%s8212 + $0x20] sm:$0xff]
    %v8218 = vld [vmem:[%s8212 + $0x28] sm:$0xff]
    %v8219 = vld [vmem:[%s8212 + $0x30] sm:$0xff]
    %v8220 = vld [vmem:[%s8212 + $0x38] sm:$0xff]
    %v8221 = vld [vmem:[%s8212 + $0x40] sm:$0xff]
    %v8222 = vld [vmem:[%s8212 + $0x48] sm:$0xff]
    %v8223 = vld [vmem:[%s8212 + $0x50] sm:$0xff]
    %v8224 = vld [vmem:[%s8212 + $0x58] sm:$0xff]
    %v8225 = vld [vmem:[%s8212 + $0x60] sm:$0xff]
    %v8226 = vld [vmem:[%s8212 + $0x68] sm:$0xff]
    %v8227 = vld [vmem:[%s8212 + $0x70] sm:$0xff]
    %v8228 = vld [vmem:[%s8212 + $0x78] sm:$0xff]
    %v8229 = vld [vmem:[%s8212 + $0x80] sm:$0xff]
    %v8230 = vld [vmem:[%s8212 + $0x88] sm:$0xff]
    %v8231 = vld [vmem:[%s8212 + $0x90] sm:$0xff]
    %v8232 = vld [vmem:[%s8212 + $0x98] sm:$0xff]
    %v8233 = vld [vmem:[%s8212 + $0xa0] sm:$0xff]
    %v8234 = vld [vmem:[%s8212 + $0xa8] sm:$0xff]
    %v8235 = vld [vmem:[%s8212 + $0xb0] sm:$0xff]
    %v8236 = vld [vmem:[%s8212 + $0xb8] sm:$0xff]
    %v8237 = vld [vmem:[%s8212 + $0xc0] sm:$0xff]
    %v8238 = vld [vmem:[%s8212 + $0xc8] sm:$0xff]
    %v8239 = vld [vmem:[%s8212 + $0xd0] sm:$0xff]
    %v8240 = vld [vmem:[%s8212 + $0xd8] sm:$0xff]
    %v8241 = vld [vmem:[%s8212 + $0xe0] sm:$0xff]
    %v8242 = vld [vmem:[%s8212 + $0xe8] sm:$0xff]
    %v8243 = vld [vmem:[%s8212 + $0xf0] sm:$0xff]
    %v8244 = vld [vmem:[%s8212 + $0xf8] sm:$0xff]
    %v8247 = vunpack.c.l.s4 1966171168
    %v8248 = vunpack.c.0.s8 %v8247
    %v8249 = vlaneseq
    %v8250 = vshrl.u32 %v8249, 7
    %v8251 = vsub.s32 %v8248, %v8250
    %v8252 = vrot.slane %v8211, %v8251
    %v8253 = vcombine.high %v8252, %v8252
    %v8255 = vunpack.c.l.s4 1966171168
    %v8256 = vunpack.c.0.s8 %v8255
    %v8257 = vlaneseq
    %v8258 = vshrl.u32 %v8257, 7
    %v8259 = vsub.s32 %v8256, %v8258
    %v8260 = vrot.slane %v8252, %v8259
    %v8262 = vunpack.c.l.s4 1966171168
    %v8263 = vunpack.c.0.s8 %v8262
    %v8264 = vlaneseq
    %v8265 = vshrl.u32 %v8264, 7
    %v8266 = vsub.s32 %v8263, %v8265
    %v8267 = vrot.slane %v8253, %v8266
    %v8302 = vunpack.c.l.b16 %v8213
    %v8303 = vunpack.c.h.b16 %v8213
    %v8304 = vunpack.c.l.b16 %v8214
    %v8305 = vunpack.c.h.b16 %v8214
    %v8306 = vunpack.c.l.b16 %v8215
    %v8307 = vunpack.c.h.b16 %v8215
    %v8308 = vunpack.c.l.b16 %v8216
    %v8309 = vunpack.c.h.b16 %v8216
    %v8310 = vunpack.c.l.b16 %v8217
    %v8311 = vunpack.c.h.b16 %v8217
    %v8312 = vunpack.c.l.b16 %v8218
    %v8313 = vunpack.c.h.b16 %v8218
    %v8314 = vunpack.c.l.b16 %v8219
    %v8315 = vunpack.c.h.b16 %v8219
    %v8316 = vunpack.c.l.b16 %v8220
    %v8317 = vunpack.c.h.b16 %v8220
    %v8318 = vunpack.c.l.b16 %v8221
    %v8319 = vunpack.c.h.b16 %v8221
    %v8320 = vunpack.c.l.b16 %v8222
    %v8321 = vunpack.c.h.b16 %v8222
    %v8322 = vunpack.c.l.b16 %v8223
    %v8323 = vunpack.c.h.b16 %v8223
    %v8324 = vunpack.c.l.b16 %v8224
    %v8325 = vunpack.c.h.b16 %v8224
    %v8326 = vunpack.c.l.b16 %v8225
    %v8327 = vunpack.c.h.b16 %v8225
    %v8328 = vunpack.c.l.b16 %v8226
    %v8329 = vunpack.c.h.b16 %v8226
    %v8330 = vunpack.c.l.b16 %v8227
    %v8331 = vunpack.c.h.b16 %v8227
    %v8332 = vunpack.c.l.b16 %v8228
    %v8333 = vunpack.c.h.b16 %v8228
    %v8334 = vunpack.c.l.b16 %v8229
    %v8335 = vunpack.c.h.b16 %v8229
    %v8336 = vunpack.c.l.b16 %v8230
    %v8337 = vunpack.c.h.b16 %v8230
    %v8338 = vunpack.c.l.b16 %v8231
    %v8339 = vunpack.c.h.b16 %v8231
    %v8340 = vunpack.c.l.b16 %v8232
    %v8341 = vunpack.c.h.b16 %v8232
    %v8342 = vunpack.c.l.b16 %v8233
    %v8343 = vunpack.c.h.b16 %v8233
    %v8344 = vunpack.c.l.b16 %v8234
    %v8345 = vunpack.c.h.b16 %v8234
    %v8346 = vunpack.c.l.b16 %v8235
    %v8347 = vunpack.c.h.b16 %v8235
    %v8348 = vunpack.c.l.b16 %v8236
    %v8349 = vunpack.c.h.b16 %v8236
    %v8350 = vunpack.c.l.b16 %v8237
    %v8351 = vunpack.c.h.b16 %v8237
    %v8352 = vunpack.c.l.b16 %v8238
    %v8353 = vunpack.c.h.b16 %v8238
    %v8354 = vunpack.c.l.b16 %v8239
    %v8355 = vunpack.c.h.b16 %v8239
    %v8356 = vunpack.c.l.b16 %v8240
    %v8357 = vunpack.c.h.b16 %v8240
    %v8358 = vunpack.c.l.b16 %v8241
    %v8359 = vunpack.c.h.b16 %v8241
    %v8360 = vunpack.c.l.b16 %v8242
    %v8361 = vunpack.c.h.b16 %v8242
    %v8362 = vunpack.c.l.b16 %v8243
    %v8363 = vunpack.c.h.b16 %v8243
    %v8364 = vunpack.c.l.b16 %v8244
    %v8365 = vunpack.c.h.b16 %v8244
    %v8366 = vpack.c.b16 %v8304, %v8302
    %v8367 = vpack.c.b16 %v8305, %v8303
    %v8368 = vpack.c.b16 %v8308, %v8306
    %v8369 = vpack.c.b16 %v8309, %v8307
    %v8370 = vpack.c.b16 %v8312, %v8310
    %v8371 = vpack.c.b16 %v8313, %v8311
    %v8372 = vpack.c.b16 %v8316, %v8314
    %v8373 = vpack.c.b16 %v8317, %v8315
    %v8374 = vpack.c.b16 %v8320, %v8318
    %v8375 = vpack.c.b16 %v8321, %v8319
    %v8376 = vpack.c.b16 %v8324, %v8322
    %v8377 = vpack.c.b16 %v8325, %v8323
    %v8378 = vpack.c.b16 %v8328, %v8326
    %v8379 = vpack.c.b16 %v8329, %v8327
    %v8380 = vpack.c.b16 %v8332, %v8330
    %v8381 = vpack.c.b16 %v8333, %v8331
    %v8382 = vpack.c.b16 %v8336, %v8334
    %v8383 = vpack.c.b16 %v8337, %v8335
    %v8384 = vpack.c.b16 %v8340, %v8338
    %v8385 = vpack.c.b16 %v8341, %v8339
    %v8386 = vpack.c.b16 %v8344, %v8342
    %v8387 = vpack.c.b16 %v8345, %v8343
    %v8388 = vpack.c.b16 %v8348, %v8346
    %v8389 = vpack.c.b16 %v8349, %v8347
    %v8390 = vpack.c.b16 %v8352, %v8350
    %v8391 = vpack.c.b16 %v8353, %v8351
    %v8392 = vpack.c.b16 %v8356, %v8354
    %v8393 = vpack.c.b16 %v8357, %v8355
    %v8394 = vpack.c.b16 %v8360, %v8358
    %v8395 = vpack.c.b16 %v8361, %v8359
    %v8396 = vpack.c.b16 %v8364, %v8362
    %v8397 = vpack.c.b16 %v8365, %v8363
    %8430 = vmatprep.subr.bf16.mxu0 %v8381
    %8431 = vmatpush1.bf16.msra.mxu0 %v8380
    %8432 = vmatprep.subr.bf16.mxu0 %v8379
    %8433 = vmatpush1.bf16.msra.mxu0 %v8378
    %8434 = vmatprep.subr.bf16.mxu0 %v8377
    %8435 = vmatpush1.bf16.msra.mxu0 %v8376
    %8436 = vmatprep.subr.bf16.mxu0 %v8375
    %8437 = vmatpush1.bf16.msra.mxu0 %v8374
    %8438 = vmatprep.subr.bf16.mxu0 %v8373
    %8439 = vmatpush1.bf16.msra.mxu0 %v8372
    %8440 = vmatprep.subr.bf16.mxu0 %v8371
    %8441 = vmatpush1.bf16.msra.mxu0 %v8370
    %8442 = vmatprep.subr.bf16.mxu0 %v8369
    %8443 = vmatpush1.bf16.msra.mxu0 %v8368
    %8444 = vmatprep.subr.bf16.mxu0 %v8367
    %8445 = vmatpush1.bf16.msra.mxu0 %v8366
    %8446 = vmatprep.subr.bf16.mxu0 %v8397
    %8447 = vmatpush2.bf16.msra.mxu0 %v8396
    %8448 = vmatprep.subr.bf16.mxu0 %v8395
    %8449 = vmatpush2.bf16.msra.mxu0 %v8394
    %8450 = vmatprep.subr.bf16.mxu0 %v8393
    %8451 = vmatpush2.bf16.msra.mxu0 %v8392
    %8452 = vmatprep.subr.bf16.mxu0 %v8391
    %8453 = vmatpush2.bf16.msra.mxu0 %v8390
    %8454 = vmatprep.subr.bf16.mxu0 %v8389
    %8455 = vmatpush2.bf16.msra.mxu0 %v8388
    %8456 = vmatprep.subr.bf16.mxu0 %v8387
    %8457 = vmatpush2.bf16.msra.mxu0 %v8386
    %8458 = vmatprep.subr.bf16.mxu0 %v8385
    %8459 = vmatpush2.bf16.msra.mxu0 %v8384
    %8460 = vmatprep.subr.bf16.mxu0 %v8383
    %8461 = vmatpush2.bf16.msra.mxu0 %v8382
    %8462 = vmatprep.mubr.bf16.mxu0 %v8267
    %8463 = vmatmul.mubr.bf16.gmra.mxu0 %v8260
    %v8464 = vpop.f32.mrf.mxu0
    %v8465 = vadd.f32 0.0, %v8464
    %v8466 = vpop.f32.mrf.mxu0
    %v8467 = vadd.f32 0.0, %v8466
    %v8468 = vpop.f32.mrf.mxu0
    %v8469 = vpop.f32.mrf.mxu0
    %8470 = vdwg.mxu0
    %v8471 = vadd.f32 %v8208, %v8465
    %v8472 = vadd.f32 %v8209, %v8467
    %s8473 = scalar_lea.vmem [#allocation2], 26
    %v8474 = vld [vmem:[%s8473] sm:$0x3]
    %s8475 = scalar_lea.vmem %s5, 3328
    %v8476 = vld [vmem:[%s8475] sm:$0xff]
    %v8477 = vld [vmem:[%s8475 + $0x8] sm:$0xff]
    %v8478 = vld [vmem:[%s8475 + $0x10] sm:$0xff]
    %v8479 = vld [vmem:[%s8475 + $0x18] sm:$0xff]
    %v8480 = vld [vmem:[%s8475 + $0x20] sm:$0xff]
    %v8481 = vld [vmem:[%s8475 + $0x28] sm:$0xff]
    %v8482 = vld [vmem:[%s8475 + $0x30] sm:$0xff]
    %v8483 = vld [vmem:[%s8475 + $0x38] sm:$0xff]
    %v8484 = vld [vmem:[%s8475 + $0x40] sm:$0xff]
    %v8485 = vld [vmem:[%s8475 + $0x48] sm:$0xff]
    %v8486 = vld [vmem:[%s8475 + $0x50] sm:$0xff]
    %v8487 = vld [vmem:[%s8475 + $0x58] sm:$0xff]
    %v8488 = vld [vmem:[%s8475 + $0x60] sm:$0xff]
    %v8489 = vld [vmem:[%s8475 + $0x68] sm:$0xff]
    %v8490 = vld [vmem:[%s8475 + $0x70] sm:$0xff]
    %v8491 = vld [vmem:[%s8475 + $0x78] sm:$0xff]
    %v8492 = vld [vmem:[%s8475 + $0x80] sm:$0xff]
    %v8493 = vld [vmem:[%s8475 + $0x88] sm:$0xff]
    %v8494 = vld [vmem:[%s8475 + $0x90] sm:$0xff]
    %v8495 = vld [vmem:[%s8475 + $0x98] sm:$0xff]
    %v8496 = vld [vmem:[%s8475 + $0xa0] sm:$0xff]
    %v8497 = vld [vmem:[%s8475 + $0xa8] sm:$0xff]
    %v8498 = vld [vmem:[%s8475 + $0xb0] sm:$0xff]
    %v8499 = vld [vmem:[%s8475 + $0xb8] sm:$0xff]
    %v8500 = vld [vmem:[%s8475 + $0xc0] sm:$0xff]
    %v8501 = vld [vmem:[%s8475 + $0xc8] sm:$0xff]
    %v8502 = vld [vmem:[%s8475 + $0xd0] sm:$0xff]
    %v8503 = vld [vmem:[%s8475 + $0xd8] sm:$0xff]
    %v8504 = vld [vmem:[%s8475 + $0xe0] sm:$0xff]
    %v8505 = vld [vmem:[%s8475 + $0xe8] sm:$0xff]
    %v8506 = vld [vmem:[%s8475 + $0xf0] sm:$0xff]
    %v8507 = vld [vmem:[%s8475 + $0xf8] sm:$0xff]
    %v8510 = vunpack.c.l.s4 1966171168
    %v8511 = vunpack.c.0.s8 %v8510
    %v8512 = vlaneseq
    %v8513 = vshrl.u32 %v8512, 7
    %v8514 = vsub.s32 %v8511, %v8513
    %v8515 = vrot.slane %v8474, %v8514
    %v8516 = vcombine.high %v8515, %v8515
    %v8518 = vunpack.c.l.s4 1966171168
    %v8519 = vunpack.c.0.s8 %v8518
    %v8520 = vlaneseq
    %v8521 = vshrl.u32 %v8520, 7
    %v8522 = vsub.s32 %v8519, %v8521
    %v8523 = vrot.slane %v8515, %v8522
    %v8525 = vunpack.c.l.s4 1966171168
    %v8526 = vunpack.c.0.s8 %v8525
    %v8527 = vlaneseq
    %v8528 = vshrl.u32 %v8527, 7
    %v8529 = vsub.s32 %v8526, %v8528
    %v8530 = vrot.slane %v8516, %v8529
    %v8565 = vunpack.c.l.b16 %v8476
    %v8566 = vunpack.c.h.b16 %v8476
    %v8567 = vunpack.c.l.b16 %v8477
    %v8568 = vunpack.c.h.b16 %v8477
    %v8569 = vunpack.c.l.b16 %v8478
    %v8570 = vunpack.c.h.b16 %v8478
    %v8571 = vunpack.c.l.b16 %v8479
    %v8572 = vunpack.c.h.b16 %v8479
    %v8573 = vunpack.c.l.b16 %v8480
    %v8574 = vunpack.c.h.b16 %v8480
    %v8575 = vunpack.c.l.b16 %v8481
    %v8576 = vunpack.c.h.b16 %v8481
    %v8577 = vunpack.c.l.b16 %v8482
    %v8578 = vunpack.c.h.b16 %v8482
    %v8579 = vunpack.c.l.b16 %v8483
    %v8580 = vunpack.c.h.b16 %v8483
    %v8581 = vunpack.c.l.b16 %v8484
    %v8582 = vunpack.c.h.b16 %v8484
    %v8583 = vunpack.c.l.b16 %v8485
    %v8584 = vunpack.c.h.b16 %v8485
    %v8585 = vunpack.c.l.b16 %v8486
    %v8586 = vunpack.c.h.b16 %v8486
    %v8587 = vunpack.c.l.b16 %v8487
    %v8588 = vunpack.c.h.b16 %v8487
    %v8589 = vunpack.c.l.b16 %v8488
    %v8590 = vunpack.c.h.b16 %v8488
    %v8591 = vunpack.c.l.b16 %v8489
    %v8592 = vunpack.c.h.b16 %v8489
    %v8593 = vunpack.c.l.b16 %v8490
    %v8594 = vunpack.c.h.b16 %v8490
    %v8595 = vunpack.c.l.b16 %v8491
    %v8596 = vunpack.c.h.b16 %v8491
    %v8597 = vunpack.c.l.b16 %v8492
    %v8598 = vunpack.c.h.b16 %v8492
    %v8599 = vunpack.c.l.b16 %v8493
    %v8600 = vunpack.c.h.b16 %v8493
    %v8601 = vunpack.c.l.b16 %v8494
    %v8602 = vunpack.c.h.b16 %v8494
    %v8603 = vunpack.c.l.b16 %v8495
    %v8604 = vunpack.c.h.b16 %v8495
    %v8605 = vunpack.c.l.b16 %v8496
    %v8606 = vunpack.c.h.b16 %v8496
    %v8607 = vunpack.c.l.b16 %v8497
    %v8608 = vunpack.c.h.b16 %v8497
    %v8609 = vunpack.c.l.b16 %v8498
    %v8610 = vunpack.c.h.b16 %v8498
    %v8611 = vunpack.c.l.b16 %v8499
    %v8612 = vunpack.c.h.b16 %v8499
    %v8613 = vunpack.c.l.b16 %v8500
    %v8614 = vunpack.c.h.b16 %v8500
    %v8615 = vunpack.c.l.b16 %v8501
    %v8616 = vunpack.c.h.b16 %v8501
    %v8617 = vunpack.c.l.b16 %v8502
    %v8618 = vunpack.c.h.b16 %v8502
    %v8619 = vunpack.c.l.b16 %v8503
    %v8620 = vunpack.c.h.b16 %v8503
    %v8621 = vunpack.c.l.b16 %v8504
    %v8622 = vunpack.c.h.b16 %v8504
    %v8623 = vunpack.c.l.b16 %v8505
    %v8624 = vunpack.c.h.b16 %v8505
    %v8625 = vunpack.c.l.b16 %v8506
    %v8626 = vunpack.c.h.b16 %v8506
    %v8627 = vunpack.c.l.b16 %v8507
    %v8628 = vunpack.c.h.b16 %v8507
    %v8629 = vpack.c.b16 %v8567, %v8565
    %v8630 = vpack.c.b16 %v8568, %v8566
    %v8631 = vpack.c.b16 %v8571, %v8569
    %v8632 = vpack.c.b16 %v8572, %v8570
    %v8633 = vpack.c.b16 %v8575, %v8573
    %v8634 = vpack.c.b16 %v8576, %v8574
    %v8635 = vpack.c.b16 %v8579, %v8577
    %v8636 = vpack.c.b16 %v8580, %v8578
    %v8637 = vpack.c.b16 %v8583, %v8581
    %v8638 = vpack.c.b16 %v8584, %v8582
    %v8639 = vpack.c.b16 %v8587, %v8585
    %v8640 = vpack.c.b16 %v8588, %v8586
    %v8641 = vpack.c.b16 %v8591, %v8589
    %v8642 = vpack.c.b16 %v8592, %v8590
    %v8643 = vpack.c.b16 %v8595, %v8593
    %v8644 = vpack.c.b16 %v8596, %v8594
    %v8645 = vpack.c.b16 %v8599, %v8597
    %v8646 = vpack.c.b16 %v8600, %v8598
    %v8647 = vpack.c.b16 %v8603, %v8601
    %v8648 = vpack.c.b16 %v8604, %v8602
    %v8649 = vpack.c.b16 %v8607, %v8605
    %v8650 = vpack.c.b16 %v8608, %v8606
    %v8651 = vpack.c.b16 %v8611, %v8609
    %v8652 = vpack.c.b16 %v8612, %v8610
    %v8653 = vpack.c.b16 %v8615, %v8613
    %v8654 = vpack.c.b16 %v8616, %v8614
    %v8655 = vpack.c.b16 %v8619, %v8617
    %v8656 = vpack.c.b16 %v8620, %v8618
    %v8657 = vpack.c.b16 %v8623, %v8621
    %v8658 = vpack.c.b16 %v8624, %v8622
    %v8659 = vpack.c.b16 %v8627, %v8625
    %v8660 = vpack.c.b16 %v8628, %v8626
    %8693 = vmatprep.subr.bf16.mxu0 %v8644
    %8694 = vmatpush1.bf16.msra.mxu0 %v8643
    %8695 = vmatprep.subr.bf16.mxu0 %v8642
    %8696 = vmatpush1.bf16.msra.mxu0 %v8641
    %8697 = vmatprep.subr.bf16.mxu0 %v8640
    %8698 = vmatpush1.bf16.msra.mxu0 %v8639
    %8699 = vmatprep.subr.bf16.mxu0 %v8638
    %8700 = vmatpush1.bf16.msra.mxu0 %v8637
    %8701 = vmatprep.subr.bf16.mxu0 %v8636
    %8702 = vmatpush1.bf16.msra.mxu0 %v8635
    %8703 = vmatprep.subr.bf16.mxu0 %v8634
    %8704 = vmatpush1.bf16.msra.mxu0 %v8633
    %8705 = vmatprep.subr.bf16.mxu0 %v8632
    %8706 = vmatpush1.bf16.msra.mxu0 %v8631
    %8707 = vmatprep.subr.bf16.mxu0 %v8630
    %8708 = vmatpush1.bf16.msra.mxu0 %v8629
    %8709 = vmatprep.subr.bf16.mxu0 %v8660
    %8710 = vmatpush2.bf16.msra.mxu0 %v8659
    %8711 = vmatprep.subr.bf16.mxu0 %v8658
    %8712 = vmatpush2.bf16.msra.mxu0 %v8657
    %8713 = vmatprep.subr.bf16.mxu0 %v8656
    %8714 = vmatpush2.bf16.msra.mxu0 %v8655
    %8715 = vmatprep.subr.bf16.mxu0 %v8654
    %8716 = vmatpush2.bf16.msra.mxu0 %v8653
    %8717 = vmatprep.subr.bf16.mxu0 %v8652
    %8718 = vmatpush2.bf16.msra.mxu0 %v8651
    %8719 = vmatprep.subr.bf16.mxu0 %v8650
    %8720 = vmatpush2.bf16.msra.mxu0 %v8649
    %8721 = vmatprep.subr.bf16.mxu0 %v8648
    %8722 = vmatpush2.bf16.msra.mxu0 %v8647
    %8723 = vmatprep.subr.bf16.mxu0 %v8646
    %8724 = vmatpush2.bf16.msra.mxu0 %v8645
    %8725 = vmatprep.mubr.bf16.mxu0 %v8530
    %8726 = vmatmul.mubr.bf16.gmra.mxu0 %v8523
    %v8727 = vpop.f32.mrf.mxu0
    %v8728 = vadd.f32 0.0, %v8727
    %v8729 = vpop.f32.mrf.mxu0
    %v8730 = vadd.f32 0.0, %v8729
    %v8731 = vpop.f32.mrf.mxu0
    %v8732 = vpop.f32.mrf.mxu0
    %8733 = vdwg.mxu0
    %v8734 = vadd.f32 %v8471, %v8728
    %v8735 = vadd.f32 %v8472, %v8730
    %s8736 = scalar_lea.vmem [#allocation2], 28
    %v8737 = vld [vmem:[%s8736] sm:$0x3]
    %s8738 = scalar_lea.vmem %s5, 3584
    %v8739 = vld [vmem:[%s8738] sm:$0xff]
    %v8740 = vld [vmem:[%s8738 + $0x8] sm:$0xff]
    %v8741 = vld [vmem:[%s8738 + $0x10] sm:$0xff]
    %v8742 = vld [vmem:[%s8738 + $0x18] sm:$0xff]
    %v8743 = vld [vmem:[%s8738 + $0x20] sm:$0xff]
    %v8744 = vld [vmem:[%s8738 + $0x28] sm:$0xff]
    %v8745 = vld [vmem:[%s8738 + $0x30] sm:$0xff]
    %v8746 = vld [vmem:[%s8738 + $0x38] sm:$0xff]
    %v8747 = vld [vmem:[%s8738 + $0x40] sm:$0xff]
    %v8748 = vld [vmem:[%s8738 + $0x48] sm:$0xff]
    %v8749 = vld [vmem:[%s8738 + $0x50] sm:$0xff]
    %v8750 = vld [vmem:[%s8738 + $0x58] sm:$0xff]
    %v8751 = vld [vmem:[%s8738 + $0x60] sm:$0xff]
    %v8752 = vld [vmem:[%s8738 + $0x68] sm:$0xff]
    %v8753 = vld [vmem:[%s8738 + $0x70] sm:$0xff]
    %v8754 = vld [vmem:[%s8738 + $0x78] sm:$0xff]
    %v8755 = vld [vmem:[%s8738 + $0x80] sm:$0xff]
    %v8756 = vld [vmem:[%s8738 + $0x88] sm:$0xff]
    %v8757 = vld [vmem:[%s8738 + $0x90] sm:$0xff]
    %v8758 = vld [vmem:[%s8738 + $0x98] sm:$0xff]
    %v8759 = vld [vmem:[%s8738 + $0xa0] sm:$0xff]
    %v8760 = vld [vmem:[%s8738 + $0xa8] sm:$0xff]
    %v8761 = vld [vmem:[%s8738 + $0xb0] sm:$0xff]
    %v8762 = vld [vmem:[%s8738 + $0xb8] sm:$0xff]
    %v8763 = vld [vmem:[%s8738 + $0xc0] sm:$0xff]
    %v8764 = vld [vmem:[%s8738 + $0xc8] sm:$0xff]
    %v8765 = vld [vmem:[%s8738 + $0xd0] sm:$0xff]
    %v8766 = vld [vmem:[%s8738 + $0xd8] sm:$0xff]
    %v8767 = vld [vmem:[%s8738 + $0xe0] sm:$0xff]
    %v8768 = vld [vmem:[%s8738 + $0xe8] sm:$0xff]
    %v8769 = vld [vmem:[%s8738 + $0xf0] sm:$0xff]
    %v8770 = vld [vmem:[%s8738 + $0xf8] sm:$0xff]
    %v8773 = vunpack.c.l.s4 1966171168
    %v8774 = vunpack.c.0.s8 %v8773
    %v8775 = vlaneseq
    %v8776 = vshrl.u32 %v8775, 7
    %v8777 = vsub.s32 %v8774, %v8776
    %v8778 = vrot.slane %v8737, %v8777
    %v8779 = vcombine.high %v8778, %v8778
    %v8781 = vunpack.c.l.s4 1966171168
    %v8782 = vunpack.c.0.s8 %v8781
    %v8783 = vlaneseq
    %v8784 = vshrl.u32 %v8783, 7
    %v8785 = vsub.s32 %v8782, %v8784
    %v8786 = vrot.slane %v8778, %v8785
    %v8788 = vunpack.c.l.s4 1966171168
    %v8789 = vunpack.c.0.s8 %v8788
    %v8790 = vlaneseq
    %v8791 = vshrl.u32 %v8790, 7
    %v8792 = vsub.s32 %v8789, %v8791
    %v8793 = vrot.slane %v8779, %v8792
    %v8828 = vunpack.c.l.b16 %v8739
    %v8829 = vunpack.c.h.b16 %v8739
    %v8830 = vunpack.c.l.b16 %v8740
    %v8831 = vunpack.c.h.b16 %v8740
    %v8832 = vunpack.c.l.b16 %v8741
    %v8833 = vunpack.c.h.b16 %v8741
    %v8834 = vunpack.c.l.b16 %v8742
    %v8835 = vunpack.c.h.b16 %v8742
    %v8836 = vunpack.c.l.b16 %v8743
    %v8837 = vunpack.c.h.b16 %v8743
    %v8838 = vunpack.c.l.b16 %v8744
    %v8839 = vunpack.c.h.b16 %v8744
    %v8840 = vunpack.c.l.b16 %v8745
    %v8841 = vunpack.c.h.b16 %v8745
    %v8842 = vunpack.c.l.b16 %v8746
    %v8843 = vunpack.c.h.b16 %v8746
    %v8844 = vunpack.c.l.b16 %v8747
    %v8845 = vunpack.c.h.b16 %v8747
    %v8846 = vunpack.c.l.b16 %v8748
    %v8847 = vunpack.c.h.b16 %v8748
    %v8848 = vunpack.c.l.b16 %v8749
    %v8849 = vunpack.c.h.b16 %v8749
    %v8850 = vunpack.c.l.b16 %v8750
    %v8851 = vunpack.c.h.b16 %v8750
    %v8852 = vunpack.c.l.b16 %v8751
    %v8853 = vunpack.c.h.b16 %v8751
    %v8854 = vunpack.c.l.b16 %v8752
    %v8855 = vunpack.c.h.b16 %v8752
    %v8856 = vunpack.c.l.b16 %v8753
    %v8857 = vunpack.c.h.b16 %v8753
    %v8858 = vunpack.c.l.b16 %v8754
    %v8859 = vunpack.c.h.b16 %v8754
    %v8860 = vunpack.c.l.b16 %v8755
    %v8861 = vunpack.c.h.b16 %v8755
    %v8862 = vunpack.c.l.b16 %v8756
    %v8863 = vunpack.c.h.b16 %v8756
    %v8864 = vunpack.c.l.b16 %v8757
    %v8865 = vunpack.c.h.b16 %v8757
    %v8866 = vunpack.c.l.b16 %v8758
    %v8867 = vunpack.c.h.b16 %v8758
    %v8868 = vunpack.c.l.b16 %v8759
    %v8869 = vunpack.c.h.b16 %v8759
    %v8870 = vunpack.c.l.b16 %v8760
    %v8871 = vunpack.c.h.b16 %v8760
    %v8872 = vunpack.c.l.b16 %v8761
    %v8873 = vunpack.c.h.b16 %v8761
    %v8874 = vunpack.c.l.b16 %v8762
    %v8875 = vunpack.c.h.b16 %v8762
    %v8876 = vunpack.c.l.b16 %v8763
    %v8877 = vunpack.c.h.b16 %v8763
    %v8878 = vunpack.c.l.b16 %v8764
    %v8879 = vunpack.c.h.b16 %v8764
    %v8880 = vunpack.c.l.b16 %v8765
    %v8881 = vunpack.c.h.b16 %v8765
    %v8882 = vunpack.c.l.b16 %v8766
    %v8883 = vunpack.c.h.b16 %v8766
    %v8884 = vunpack.c.l.b16 %v8767
    %v8885 = vunpack.c.h.b16 %v8767
    %v8886 = vunpack.c.l.b16 %v8768
    %v8887 = vunpack.c.h.b16 %v8768
    %v8888 = vunpack.c.l.b16 %v8769
    %v8889 = vunpack.c.h.b16 %v8769
    %v8890 = vunpack.c.l.b16 %v8770
    %v8891 = vunpack.c.h.b16 %v8770
    %v8892 = vpack.c.b16 %v8830, %v8828
    %v8893 = vpack.c.b16 %v8831, %v8829
    %v8894 = vpack.c.b16 %v8834, %v8832
    %v8895 = vpack.c.b16 %v8835, %v8833
    %v8896 = vpack.c.b16 %v8838, %v8836
    %v8897 = vpack.c.b16 %v8839, %v8837
    %v8898 = vpack.c.b16 %v8842, %v8840
    %v8899 = vpack.c.b16 %v8843, %v8841
    %v8900 = vpack.c.b16 %v8846, %v8844
    %v8901 = vpack.c.b16 %v8847, %v8845
    %v8902 = vpack.c.b16 %v8850, %v8848
    %v8903 = vpack.c.b16 %v8851, %v8849
    %v8904 = vpack.c.b16 %v8854, %v8852
    %v8905 = vpack.c.b16 %v8855, %v8853
    %v8906 = vpack.c.b16 %v8858, %v8856
    %v8907 = vpack.c.b16 %v8859, %v8857
    %v8908 = vpack.c.b16 %v8862, %v8860
    %v8909 = vpack.c.b16 %v8863, %v8861
    %v8910 = vpack.c.b16 %v8866, %v8864
    %v8911 = vpack.c.b16 %v8867, %v8865
    %v8912 = vpack.c.b16 %v8870, %v8868
    %v8913 = vpack.c.b16 %v8871, %v8869
    %v8914 = vpack.c.b16 %v8874, %v8872
    %v8915 = vpack.c.b16 %v8875, %v8873
    %v8916 = vpack.c.b16 %v8878, %v8876
    %v8917 = vpack.c.b16 %v8879, %v8877
    %v8918 = vpack.c.b16 %v8882, %v8880
    %v8919 = vpack.c.b16 %v8883, %v8881
    %v8920 = vpack.c.b16 %v8886, %v8884
    %v8921 = vpack.c.b16 %v8887, %v8885
    %v8922 = vpack.c.b16 %v8890, %v8888
    %v8923 = vpack.c.b16 %v8891, %v8889
    %8956 = vmatprep.subr.bf16.mxu0 %v8907
    %8957 = vmatpush1.bf16.msra.mxu0 %v8906
    %8958 = vmatprep.subr.bf16.mxu0 %v8905
    %8959 = vmatpush1.bf16.msra.mxu0 %v8904
    %8960 = vmatprep.subr.bf16.mxu0 %v8903
    %8961 = vmatpush1.bf16.msra.mxu0 %v8902
    %8962 = vmatprep.subr.bf16.mxu0 %v8901
    %8963 = vmatpush1.bf16.msra.mxu0 %v8900
    %8964 = vmatprep.subr.bf16.mxu0 %v8899
    %8965 = vmatpush1.bf16.msra.mxu0 %v8898
    %8966 = vmatprep.subr.bf16.mxu0 %v8897
    %8967 = vmatpush1.bf16.msra.mxu0 %v8896
    %8968 = vmatprep.subr.bf16.mxu0 %v8895
    %8969 = vmatpush1.bf16.msra.mxu0 %v8894
    %8970 = vmatprep.subr.bf16.mxu0 %v8893
    %8971 = vmatpush1.bf16.msra.mxu0 %v8892
    %8972 = vmatprep.subr.bf16.mxu0 %v8923
    %8973 = vmatpush2.bf16.msra.mxu0 %v8922
    %8974 = vmatprep.subr.bf16.mxu0 %v8921
    %8975 = vmatpush2.bf16.msra.mxu0 %v8920
    %8976 = vmatprep.subr.bf16.mxu0 %v8919
    %8977 = vmatpush2.bf16.msra.mxu0 %v8918
    %8978 = vmatprep.subr.bf16.mxu0 %v8917
    %8979 = vmatpush2.bf16.msra.mxu0 %v8916
    %8980 = vmatprep.subr.bf16.mxu0 %v8915
    %8981 = vmatpush2.bf16.msra.mxu0 %v8914
    %8982 = vmatprep.subr.bf16.mxu0 %v8913
    %8983 = vmatpush2.bf16.msra.mxu0 %v8912
    %8984 = vmatprep.subr.bf16.mxu0 %v8911
    %8985 = vmatpush2.bf16.msra.mxu0 %v8910
    %8986 = vmatprep.subr.bf16.mxu0 %v8909
    %8987 = vmatpush2.bf16.msra.mxu0 %v8908
    %8988 = vmatprep.mubr.bf16.mxu0 %v8793
    %8989 = vmatmul.mubr.bf16.gmra.mxu0 %v8786
    %v8990 = vpop.f32.mrf.mxu0
    %v8991 = vadd.f32 0.0, %v8990
    %v8992 = vpop.f32.mrf.mxu0
    %v8993 = vadd.f32 0.0, %v8992
    %v8994 = vpop.f32.mrf.mxu0
    %v8995 = vpop.f32.mrf.mxu0
    %8996 = vdwg.mxu0
    %v8997 = vadd.f32 %v8734, %v8991
    %v8998 = vadd.f32 %v8735, %v8993
    %s8999 = scalar_lea.vmem [#allocation2], 30
    %v9000 = vld [vmem:[%s8999] sm:$0x3]
    %s9001 = scalar_lea.vmem %s5, 3840
    %v9002 = vld [vmem:[%s9001] sm:$0xff]
    %v9003 = vld [vmem:[%s9001 + $0x8] sm:$0xff]
    %v9004 = vld [vmem:[%s9001 + $0x10] sm:$0xff]
    %v9005 = vld [vmem:[%s9001 + $0x18] sm:$0xff]
    %v9006 = vld [vmem:[%s9001 + $0x20] sm:$0xff]
    %v9007 = vld [vmem:[%s9001 + $0x28] sm:$0xff]
    %v9008 = vld [vmem:[%s9001 + $0x30] sm:$0xff]
    %v9009 = vld [vmem:[%s9001 + $0x38] sm:$0xff]
    %v9010 = vld [vmem:[%s9001 + $0x40] sm:$0xff]
    %v9011 = vld [vmem:[%s9001 + $0x48] sm:$0xff]
    %v9012 = vld [vmem:[%s9001 + $0x50] sm:$0xff]
    %v9013 = vld [vmem:[%s9001 + $0x58] sm:$0xff]
    %v9014 = vld [vmem:[%s9001 + $0x60] sm:$0xff]
    %v9015 = vld [vmem:[%s9001 + $0x68] sm:$0xff]
    %v9016 = vld [vmem:[%s9001 + $0x70] sm:$0xff]
    %v9017 = vld [vmem:[%s9001 + $0x78] sm:$0xff]
    %v9018 = vld [vmem:[%s9001 + $0x80] sm:$0xff]
    %v9019 = vld [vmem:[%s9001 + $0x88] sm:$0xff]
    %v9020 = vld [vmem:[%s9001 + $0x90] sm:$0xff]
    %v9021 = vld [vmem:[%s9001 + $0x98] sm:$0xff]
    %v9022 = vld [vmem:[%s9001 + $0xa0] sm:$0xff]
    %v9023 = vld [vmem:[%s9001 + $0xa8] sm:$0xff]
    %v9024 = vld [vmem:[%s9001 + $0xb0] sm:$0xff]
    %v9025 = vld [vmem:[%s9001 + $0xb8] sm:$0xff]
    %v9026 = vld [vmem:[%s9001 + $0xc0] sm:$0xff]
    %v9027 = vld [vmem:[%s9001 + $0xc8] sm:$0xff]
    %v9028 = vld [vmem:[%s9001 + $0xd0] sm:$0xff]
    %v9029 = vld [vmem:[%s9001 + $0xd8] sm:$0xff]
    %v9030 = vld [vmem:[%s9001 + $0xe0] sm:$0xff]
    %v9031 = vld [vmem:[%s9001 + $0xe8] sm:$0xff]
    %v9032 = vld [vmem:[%s9001 + $0xf0] sm:$0xff]
    %v9033 = vld [vmem:[%s9001 + $0xf8] sm:$0xff]
    %v9036 = vunpack.c.l.s4 1966171168
    %v9037 = vunpack.c.0.s8 %v9036
    %v9038 = vlaneseq
    %v9039 = vshrl.u32 %v9038, 7
    %v9040 = vsub.s32 %v9037, %v9039
    %v9041 = vrot.slane %v9000, %v9040
    %v9042 = vcombine.high %v9041, %v9041
    %v9044 = vunpack.c.l.s4 1966171168
    %v9045 = vunpack.c.0.s8 %v9044
    %v9046 = vlaneseq
    %v9047 = vshrl.u32 %v9046, 7
    %v9048 = vsub.s32 %v9045, %v9047
    %v9049 = vrot.slane %v9041, %v9048
    %v9051 = vunpack.c.l.s4 1966171168
    %v9052 = vunpack.c.0.s8 %v9051
    %v9053 = vlaneseq
    %v9054 = vshrl.u32 %v9053, 7
    %v9055 = vsub.s32 %v9052, %v9054
    %v9056 = vrot.slane %v9042, %v9055
    %v9091 = vunpack.c.l.b16 %v9002
    %v9092 = vunpack.c.h.b16 %v9002
    %v9093 = vunpack.c.l.b16 %v9003
    %v9094 = vunpack.c.h.b16 %v9003
    %v9095 = vunpack.c.l.b16 %v9004
    %v9096 = vunpack.c.h.b16 %v9004
    %v9097 = vunpack.c.l.b16 %v9005
    %v9098 = vunpack.c.h.b16 %v9005
    %v9099 = vunpack.c.l.b16 %v9006
    %v9100 = vunpack.c.h.b16 %v9006
    %v9101 = vunpack.c.l.b16 %v9007
    %v9102 = vunpack.c.h.b16 %v9007
    %v9103 = vunpack.c.l.b16 %v9008
    %v9104 = vunpack.c.h.b16 %v9008
    %v9105 = vunpack.c.l.b16 %v9009
    %v9106 = vunpack.c.h.b16 %v9009
    %v9107 = vunpack.c.l.b16 %v9010
    %v9108 = vunpack.c.h.b16 %v9010
    %v9109 = vunpack.c.l.b16 %v9011
    %v9110 = vunpack.c.h.b16 %v9011
    %v9111 = vunpack.c.l.b16 %v9012
    %v9112 = vunpack.c.h.b16 %v9012
    %v9113 = vunpack.c.l.b16 %v9013
    %v9114 = vunpack.c.h.b16 %v9013
    %v9115 = vunpack.c.l.b16 %v9014
    %v9116 = vunpack.c.h.b16 %v9014
    %v9117 = vunpack.c.l.b16 %v9015
    %v9118 = vunpack.c.h.b16 %v9015
    %v9119 = vunpack.c.l.b16 %v9016
    %v9120 = vunpack.c.h.b16 %v9016
    %v9121 = vunpack.c.l.b16 %v9017
    %v9122 = vunpack.c.h.b16 %v9017
    %v9123 = vunpack.c.l.b16 %v9018
    %v9124 = vunpack.c.h.b16 %v9018
    %v9125 = vunpack.c.l.b16 %v9019
    %v9126 = vunpack.c.h.b16 %v9019
    %v9127 = vunpack.c.l.b16 %v9020
    %v9128 = vunpack.c.h.b16 %v9020
    %v9129 = vunpack.c.l.b16 %v9021
    %v9130 = vunpack.c.h.b16 %v9021
    %v9131 = vunpack.c.l.b16 %v9022
    %v9132 = vunpack.c.h.b16 %v9022
    %v9133 = vunpack.c.l.b16 %v9023
    %v9134 = vunpack.c.h.b16 %v9023
    %v9135 = vunpack.c.l.b16 %v9024
    %v9136 = vunpack.c.h.b16 %v9024
    %v9137 = vunpack.c.l.b16 %v9025
    %v9138 = vunpack.c.h.b16 %v9025
    %v9139 = vunpack.c.l.b16 %v9026
    %v9140 = vunpack.c.h.b16 %v9026
    %v9141 = vunpack.c.l.b16 %v9027
    %v9142 = vunpack.c.h.b16 %v9027
    %v9143 = vunpack.c.l.b16 %v9028
    %v9144 = vunpack.c.h.b16 %v9028
    %v9145 = vunpack.c.l.b16 %v9029
    %v9146 = vunpack.c.h.b16 %v9029
    %v9147 = vunpack.c.l.b16 %v9030
    %v9148 = vunpack.c.h.b16 %v9030
    %v9149 = vunpack.c.l.b16 %v9031
    %v9150 = vunpack.c.h.b16 %v9031
    %v9151 = vunpack.c.l.b16 %v9032
    %v9152 = vunpack.c.h.b16 %v9032
    %v9153 = vunpack.c.l.b16 %v9033
    %v9154 = vunpack.c.h.b16 %v9033
    %v9155 = vpack.c.b16 %v9093, %v9091
    %v9156 = vpack.c.b16 %v9094, %v9092
    %v9157 = vpack.c.b16 %v9097, %v9095
    %v9158 = vpack.c.b16 %v9098, %v9096
    %v9159 = vpack.c.b16 %v9101, %v9099
    %v9160 = vpack.c.b16 %v9102, %v9100
    %v9161 = vpack.c.b16 %v9105, %v9103
    %v9162 = vpack.c.b16 %v9106, %v9104
    %v9163 = vpack.c.b16 %v9109, %v9107
    %v9164 = vpack.c.b16 %v9110, %v9108
    %v9165 = vpack.c.b16 %v9113, %v9111
    %v9166 = vpack.c.b16 %v9114, %v9112
    %v9167 = vpack.c.b16 %v9117, %v9115
    %v9168 = vpack.c.b16 %v9118, %v9116
    %v9169 = vpack.c.b16 %v9121, %v9119
    %v9170 = vpack.c.b16 %v9122, %v9120
    %v9171 = vpack.c.b16 %v9125, %v9123
    %v9172 = vpack.c.b16 %v9126, %v9124
    %v9173 = vpack.c.b16 %v9129, %v9127
    %v9174 = vpack.c.b16 %v9130, %v9128
    %v9175 = vpack.c.b16 %v9133, %v9131
    %v9176 = vpack.c.b16 %v9134, %v9132
    %v9177 = vpack.c.b16 %v9137, %v9135
    %v9178 = vpack.c.b16 %v9138, %v9136
    %v9179 = vpack.c.b16 %v9141, %v9139
    %v9180 = vpack.c.b16 %v9142, %v9140
    %v9181 = vpack.c.b16 %v9145, %v9143
    %v9182 = vpack.c.b16 %v9146, %v9144
    %v9183 = vpack.c.b16 %v9149, %v9147
    %v9184 = vpack.c.b16 %v9150, %v9148
    %v9185 = vpack.c.b16 %v9153, %v9151
    %v9186 = vpack.c.b16 %v9154, %v9152
    %9219 = vmatprep.subr.bf16.mxu0 %v9170
    %9220 = vmatpush1.bf16.msra.mxu0 %v9169
    %9221 = vmatprep.subr.bf16.mxu0 %v9168
    %9222 = vmatpush1.bf16.msra.mxu0 %v9167
    %9223 = vmatprep.subr.bf16.mxu0 %v9166
    %9224 = vmatpush1.bf16.msra.mxu0 %v9165
    %9225 = vmatprep.subr.bf16.mxu0 %v9164
    %9226 = vmatpush1.bf16.msra.mxu0 %v9163
    %9227 = vmatprep.subr.bf16.mxu0 %v9162
    %9228 = vmatpush1.bf16.msra.mxu0 %v9161
    %9229 = vmatprep.subr.bf16.mxu0 %v9160
    %9230 = vmatpush1.bf16.msra.mxu0 %v9159
    %9231 = vmatprep.subr.bf16.mxu0 %v9158
    %9232 = vmatpush1.bf16.msra.mxu0 %v9157
    %9233 = vmatprep.subr.bf16.mxu0 %v9156
    %9234 = vmatpush1.bf16.msra.mxu0 %v9155
    %9235 = vmatprep.subr.bf16.mxu0 %v9186
    %9236 = vmatpush2.bf16.msra.mxu0 %v9185
    %9237 = vmatprep.subr.bf16.mxu0 %v9184
    %9238 = vmatpush2.bf16.msra.mxu0 %v9183
    %9239 = vmatprep.subr.bf16.mxu0 %v9182
    %9240 = vmatpush2.bf16.msra.mxu0 %v9181
    %9241 = vmatprep.subr.bf16.mxu0 %v9180
    %9242 = vmatpush2.bf16.msra.mxu0 %v9179
    %9243 = vmatprep.subr.bf16.mxu0 %v9178
    %9244 = vmatpush2.bf16.msra.mxu0 %v9177
    %9245 = vmatprep.subr.bf16.mxu0 %v9176
    %9246 = vmatpush2.bf16.msra.mxu0 %v9175
    %9247 = vmatprep.subr.bf16.mxu0 %v9174
    %9248 = vmatpush2.bf16.msra.mxu0 %v9173
    %9249 = vmatprep.subr.bf16.mxu0 %v9172
    %9250 = vmatpush2.bf16.msra.mxu0 %v9171
    %9251 = vmatprep.mubr.bf16.mxu0 %v9056
    %9252 = vmatmul.mubr.bf16.gmra.mxu0 %v9049
    %v9253 = vpop.f32.mrf.mxu0
    %v9254 = vadd.f32 0.0, %v9253
    %v9255 = vpop.f32.mrf.mxu0
    %v9256 = vadd.f32 0.0, %v9255
    %v9257 = vpop.f32.mrf.mxu0
    %v9258 = vpop.f32.mrf.mxu0
    %9259 = vdwg.mxu0
    %v9260 = vadd.f32 %v8997, %v9254
    %v9261 = vadd.f32 %v8998, %v9256
    %v9262 = vld [vmem:[%s6] sm:$0x3]
    %v9264 = vlaneseq
    %v9265 = vshrl.u32 %v9264, 7
    %v9266 = vsub.s32 0, %v9265
    %v9267 = vrot.slane %v9262, %v9266
    %v9268 = vlaneseq
    %v9269 = vshrl.u32 %v9268, 7
    %v9270 = vsub.s32 1, %v9269
    %v9271 = vrot.slane %v9262, %v9270
    %v9274 = vadd.f32 %v9260, %v9267
    %v9275 = vadd.f32 %v9261, %v9271
    %v9276 = vmax.f32 %v9274, 0.0
    %v9277 = vmax.f32 %v9275, 0.0
    %v9278 = vpack.c.bf16 %v9276, %v9276
    %v9279 = vpack.c.bf16 %v9277, %v9277
    %v9280 = vld [vmem:[%s7] sm:$0xf]
    %v9281 = vld [vmem:[%s7 + $0x4] sm:$0xf]
    %v9282 = vld [vmem:[%s7 + $0x8] sm:$0xf]
    %v9283 = vld [vmem:[%s7 + $0xc] sm:$0xf]
    %v9284 = vld [vmem:[%s7 + $0x10] sm:$0xf]
    %v9285 = vld [vmem:[%s7 + $0x14] sm:$0xf]
    %v9286 = vld [vmem:[%s7 + $0x18] sm:$0xf]
    %v9287 = vld [vmem:[%s7 + $0x1c] sm:$0xf]
    %v9288 = vld [vmem:[%s7 + $0x20] sm:$0xf]
    %v9289 = vld [vmem:[%s7 + $0x24] sm:$0xf]
    %v9290 = vld [vmem:[%s7 + $0x28] sm:$0xf]
    %v9291 = vld [vmem:[%s7 + $0x2c] sm:$0xf]
    %v9292 = vld [vmem:[%s7 + $0x30] sm:$0xf]
    %v9293 = vld [vmem:[%s7 + $0x34] sm:$0xf]
    %v9294 = vld [vmem:[%s7 + $0x38] sm:$0xf]
    %v9295 = vld [vmem:[%s7 + $0x3c] sm:$0xf]
    %v9296 = vld [vmem:[%s7 + $0x40] sm:$0xf]
    %v9297 = vld [vmem:[%s7 + $0x44] sm:$0xf]
    %v9298 = vld [vmem:[%s7 + $0x48] sm:$0xf]
    %v9299 = vld [vmem:[%s7 + $0x4c] sm:$0xf]
    %v9300 = vld [vmem:[%s7 + $0x50] sm:$0xf]
    %v9301 = vld [vmem:[%s7 + $0x54] sm:$0xf]
    %v9302 = vld [vmem:[%s7 + $0x58] sm:$0xf]
    %v9303 = vld [vmem:[%s7 + $0x5c] sm:$0xf]
    %v9304 = vld [vmem:[%s7 + $0x60] sm:$0xf]
    %v9305 = vld [vmem:[%s7 + $0x64] sm:$0xf]
    %v9306 = vld [vmem:[%s7 + $0x68] sm:$0xf]
    %v9307 = vld [vmem:[%s7 + $0x6c] sm:$0xf]
    %v9308 = vld [vmem:[%s7 + $0x70] sm:$0xf]
    %v9309 = vld [vmem:[%s7 + $0x74] sm:$0xf]
    %v9310 = vld [vmem:[%s7 + $0x78] sm:$0xf]
    %v9311 = vld [vmem:[%s7 + $0x7c] sm:$0xf]
    %v9312 = vld [vmem:[%s8] sm:$0x1]
    %v9314 = vlaneseq
    %v9315 = vshrl.u32 %v9314, 7
    %v9316 = vsub.s32 0, %v9315
    %v9317 = vrot.slane %v9312, %v9316
    %v9351 = vunpack.c.l.b16 %v9280
    %v9352 = vunpack.c.l.b16 %v9281
    %v9353 = vunpack.c.l.b16 %v9282
    %v9354 = vunpack.c.l.b16 %v9283
    %v9355 = vunpack.c.l.b16 %v9284
    %v9356 = vunpack.c.l.b16 %v9285
    %v9357 = vunpack.c.l.b16 %v9286
    %v9358 = vunpack.c.l.b16 %v9287
    %v9359 = vunpack.c.l.b16 %v9288
    %v9360 = vunpack.c.l.b16 %v9289
    %v9361 = vunpack.c.l.b16 %v9290
    %v9362 = vunpack.c.l.b16 %v9291
    %v9363 = vunpack.c.l.b16 %v9292
    %v9364 = vunpack.c.l.b16 %v9293
    %v9365 = vunpack.c.l.b16 %v9294
    %v9366 = vunpack.c.l.b16 %v9295
    %v9367 = vunpack.c.l.b16 %v9296
    %v9368 = vunpack.c.l.b16 %v9297
    %v9369 = vunpack.c.l.b16 %v9298
    %v9370 = vunpack.c.l.b16 %v9299
    %v9371 = vunpack.c.l.b16 %v9300
    %v9372 = vunpack.c.l.b16 %v9301
    %v9373 = vunpack.c.l.b16 %v9302
    %v9374 = vunpack.c.l.b16 %v9303
    %v9375 = vunpack.c.l.b16 %v9304
    %v9376 = vunpack.c.l.b16 %v9305
    %v9377 = vunpack.c.l.b16 %v9306
    %v9378 = vunpack.c.l.b16 %v9307
    %v9379 = vunpack.c.l.b16 %v9308
    %v9380 = vunpack.c.l.b16 %v9309
    %v9381 = vunpack.c.l.b16 %v9310
    %v9382 = vunpack.c.l.b16 %v9311
    %v9383 = vpack.c.b16 %v9352, %v9351
    %v9384 = vpack.c.b16 %v9354, %v9353
    %v9385 = vpack.c.b16 %v9356, %v9355
    %v9386 = vpack.c.b16 %v9358, %v9357
    %v9387 = vpack.c.b16 %v9360, %v9359
    %v9388 = vpack.c.b16 %v9362, %v9361
    %v9389 = vpack.c.b16 %v9364, %v9363
    %v9390 = vpack.c.b16 %v9366, %v9365
    %v9391 = vpack.c.b16 %v9368, %v9367
    %v9392 = vpack.c.b16 %v9370, %v9369
    %v9393 = vpack.c.b16 %v9372, %v9371
    %v9394 = vpack.c.b16 %v9374, %v9373
    %v9395 = vpack.c.b16 %v9376, %v9375
    %v9396 = vpack.c.b16 %v9378, %v9377
    %v9397 = vpack.c.b16 %v9380, %v9379
    %v9398 = vpack.c.b16 %v9382, %v9381
    %9415 = vmatprep.subr.bf16.mxu0 0
    %9416 = vmatpush1.bf16.msra.mxu0 %v9390
    %9417 = vmatprep.subr.bf16.mxu0 0
    %9418 = vmatpush1.bf16.msra.mxu0 %v9389
    %9419 = vmatprep.subr.bf16.mxu0 0
    %9420 = vmatpush1.bf16.msra.mxu0 %v9388
    %9421 = vmatprep.subr.bf16.mxu0 0
    %9422 = vmatpush1.bf16.msra.mxu0 %v9387
    %9423 = vmatprep.subr.bf16.mxu0 0
    %9424 = vmatpush1.bf16.msra.mxu0 %v9386
    %9425 = vmatprep.subr.bf16.mxu0 0
    %9426 = vmatpush1.bf16.msra.mxu0 %v9385
    %9427 = vmatprep.subr.bf16.mxu0 0
    %9428 = vmatpush1.bf16.msra.mxu0 %v9384
    %9429 = vmatprep.subr.bf16.mxu0 0
    %9430 = vmatpush1.bf16.msra.mxu0 %v9383
    %9431 = vmatprep.subr.bf16.mxu0 0
    %9432 = vmatpush2.bf16.msra.mxu0 %v9398
    %9433 = vmatprep.subr.bf16.mxu0 0
    %9434 = vmatpush2.bf16.msra.mxu0 %v9397
    %9435 = vmatprep.subr.bf16.mxu0 0
    %9436 = vmatpush2.bf16.msra.mxu0 %v9396
    %9437 = vmatprep.subr.bf16.mxu0 0
    %9438 = vmatpush2.bf16.msra.mxu0 %v9395
    %9439 = vmatprep.subr.bf16.mxu0 0
    %9440 = vmatpush2.bf16.msra.mxu0 %v9394
    %9441 = vmatprep.subr.bf16.mxu0 0
    %9442 = vmatpush2.bf16.msra.mxu0 %v9393
    %9443 = vmatprep.subr.bf16.mxu0 0
    %9444 = vmatpush2.bf16.msra.mxu0 %v9392
    %9445 = vmatprep.subr.bf16.mxu0 0
    %9446 = vmatpush2.bf16.msra.mxu0 %v9391
    %9447 = vmatprep.mubr.bf16.mxu0 %v9279
    %9448 = vmatmul.mubr.bf16.gmra.mxu0 %v9278
    %v9449 = vpop.f32.mrf.mxu0
    %v9450 = vadd.f32 %v9317, %v9449
    %v9451 = vpop.f32.mrf.mxu0
    %v9452 = vpop.f32.mrf.mxu0
    %v9453 = vpop.f32.mrf.mxu0
    %9454 = vdwg.mxu0
    %v9455 = vmax.f32 %v9450, 0.0
    %9456 = vst [vmem:[#allocation3] sm:$0x3] %v9455
    // Predicated region
    $region38: #{cnn_forward.1} parent=1 // pred_check
      _
    $region39: #{cnn_forward.1} parent=1 // pred_check_branch
      %9458 = sbr.rel (0) target = $region41
    $region40: #{cnn_forward.1} parent=1 // pred_region
      %s9460 = ssub.s32 32, 32
      %9461 = vsyncadd [#allocation4], %s9460
      %s9463 = sshll.u32 [#allocation3], 4
      %s9464 = int_to_ptr.vmem [resolvable:$true] %s9463
      %9466 = dma.vmem_to_hbm [thread:$0]  %s9464, 32, %s9, [#allocation4]
    $region41: #{cnn_forward.1} parent=1 // pred_fallthru
      _
    // Predicated region
    $region42: #{cnn_forward.1} parent=1 // pred_check
      _
    $region43: #{cnn_forward.1} parent=1 // pred_check_branch
      %9468 = sbr.rel (0) target = $region45
    $region44: #{cnn_forward.1} parent=1 // pred_region
      %9469 = dma.done [#allocation4], 32
    $region45: #{cnn_forward.1} parent=1 // pred_fallthru
      _
    %9470 = vsyncpa [#allocation4], 1

</llo_original>
